<compile_context>
chip_gen: v7x
topology: tpu7x:2x2x1
jax: 0.10.0
libtpu: 0.0.40
codegen_flags: <defaults>
</compile_context>

<pallas_src>
import functools

import jax
import jax.numpy as jnp
from jax.experimental import pallas as pl
from jax.experimental.pallas import tpu as pltpu

EPS = 1e-5


# ----------------------------- small helpers -----------------------------

def _rup(x, m):
    return ((x + m - 1) // m) * m


def _pick_tile(mp, target=512):
    t = target
    while t > 8 and mp % t:
        t //= 2
    return t


def _tm_for(m):
    tm = min(256, _rup(m, 16))
    return tm, _rup(m, tm)


def _pick_tk(kp, max_tk=2048):
    """kp is a multiple of 128. Single K step when it fits, else a 128-multiple
    divisor."""
    if kp <= max_tk:
        return kp
    best = 128
    t = 256
    while t <= max_tk:
        if kp % t == 0:
            best = t
        t += 128
    return best


# ------------- Pallas kernel: matmul + bias + BN-stats (+opt act) -------------

def _mm_epilogue(y, bias_row, valid_m, tm, need_mask, act_fn, o_ref, s_ref):
    y = y + bias_row
    ym = y
    if need_mask:  # exclude padded rows from the batch statistics
        row = tm * pl.program_id(1) + jax.lax.broadcasted_iota(
            jnp.int32, y.shape, 0)
        ym = jnp.where(row < valid_m, y, 0.0)
    s1 = jnp.sum(ym, axis=0, keepdims=True)
    s2 = jnp.sum(ym * ym, axis=0, keepdims=True)
    s_ref[...] = jnp.concatenate([s1, s2], axis=0).reshape(s_ref.shape)
    if act_fn is not None:
        y = act_fn(y)
    o_ref[...] = y.astype(o_ref.dtype)


def _mm_single_kernel(valid_m, tm, need_mask, act_fn,
                      a_ref, w_ref, b_ref, o_ref, s_ref):
    y = jnp.dot(a_ref[...], w_ref[...], preferred_element_type=jnp.float32)
    _mm_epilogue(y, b_ref[...], valid_m, tm, need_mask, act_fn, o_ref, s_ref)


def _mm_multi_kernel(nk, valid_m, tm, need_mask, act_fn,
                     a_ref, w_ref, b_ref, o_ref, s_ref, acc_ref):
    k = pl.program_id(2)

    @pl.when(k == 0)
    def _():
        acc_ref[...] = jnp.zeros_like(acc_ref)

    acc_ref[...] += jnp.dot(a_ref[...], w_ref[...],
                            preferred_element_type=jnp.float32)

    @pl.when(k == nk - 1)
    def _():
        _mm_epilogue(acc_ref[...], b_ref[...], valid_m, tm, need_mask, act_fn,
                     o_ref, s_ref)


def matmul_bias_stats(a_cls, w_cls, b_row, m_valid, act_fn=None):
    """Batched-over-classes matmul with fused bias + BN partial stats.

    a_cls: (nc, Mp, Kp) bf16, w_cls: (nc, Kp, Np) bf16, b_row: (1, Np) f32.
    Returns y (nc, Mp, Np) bf16 and stats (nc, nm, 2, Np) f32 (per-tile
    partial sum / sum-of-squares over valid rows)."""
    nc, mp, kp = a_cls.shape
    np_ = w_cls.shape[2]
    tm, mp_expect = _tm_for(m_valid)
    assert mp == mp_expect, (mp, mp_expect)
    nm = mp // tm
    tk = _pick_tk(kp)
    nk = kp // tk
    need_mask = mp != m_valid

    # derived VMEM budget (double-buffered inputs/outputs + optional f32 acc)
    est = 2 * (tm * tk * 2 + tk * np_ * 2 + np_ * 4 + tm * np_ * 2 + 2 * np_ * 4)
    if nk > 1:
        est += tm * np_ * 4
    vmem_limit = min(max(2 * est, 32 * 1024 * 1024), 40 * 1024 * 1024)

    out_shape = (jax.ShapeDtypeStruct((nc, mp, np_), jnp.bfloat16),
                 jax.ShapeDtypeStruct((nc, nm, 2, np_), jnp.float32))

    if nk == 1:
        kernel = functools.partial(_mm_single_kernel, m_valid, tm, need_mask,
                                   act_fn)
        grid = (nc, nm)
        in_specs = [pl.BlockSpec((None, tm, tk), lambda c, i: (c, i, 0)),
                    pl.BlockSpec((None, tk, np_), lambda c, i: (c, 0, 0)),
                    pl.BlockSpec((1, np_), lambda c, i: (0, 0))]
        out_specs = (pl.BlockSpec((None, tm, np_), lambda c, i: (c, i, 0)),
                     pl.BlockSpec((None, 1, 2, np_), lambda c, i: (c, i, 0, 0)))
        scratch = []
        dims = ("parallel", "parallel")
    else:
        kernel = functools.partial(_mm_multi_kernel, nk, m_valid, tm, need_mask,
                                   act_fn)
        grid = (nc, nm, nk)
        in_specs = [pl.BlockSpec((None, tm, tk), lambda c, i, k: (c, i, k)),
                    pl.BlockSpec((None, tk, np_), lambda c, i, k: (c, k, 0)),
                    pl.BlockSpec((1, np_), lambda c, i, k: (0, 0))]
        out_specs = (pl.BlockSpec((None, tm, np_), lambda c, i, k: (c, i, 0)),
                     pl.BlockSpec((None, 1, 2, np_),
                                  lambda c, i, k: (c, i, 0, 0)))
        scratch = [pltpu.VMEM((tm, np_), jnp.float32)]
        dims = ("parallel", "parallel", "arbitrary")

    y, stats = pl.pallas_call(
        kernel,
        out_shape=out_shape,
        grid=grid,
        in_specs=in_specs,
        out_specs=out_specs,
        scratch_shapes=scratch,
        compiler_params=pltpu.CompilerParams(
            dimension_semantics=dims, vmem_limit_bytes=vmem_limit),
    )(a_cls, w_cls, b_row)
    return y, stats


# ---------- Pallas kernel: fused scale/shift + activation (+residual) ----------

def _affine_kernel(act_fn, y_ref, sc_ref, sh_ref, o_ref):
    v = y_ref[...].astype(jnp.float32) * sc_ref[...] + sh_ref[...]
    o_ref[...] = act_fn(v).astype(o_ref.dtype)


def _affine_res_kernel(act_fn, y_ref, sc_ref, sh_ref, r_ref, o_ref):
    v = (y_ref[...].astype(jnp.float32) * sc_ref[...] + sh_ref[...]
         + r_ref[...].astype(jnp.float32))
    o_ref[...] = act_fn(v).astype(o_ref.dtype)


def affine_act(y_cls, scale_row, shift_row, act_fn, residual=None):
    """out = act(y*scale + shift [+ residual]) on the padded bf16 matmul
    output.  y_cls/residual: (nc, Mp, Cp) bf16, scale/shift: (1, Cp) f32.
    Returns (nc, Mp, Cp) bf16 (padded columns stay exactly zero)."""
    nc, mp, cp = y_cls.shape
    tm = _pick_tile(mp, 512)
    tile = pl.BlockSpec((None, tm, cp), lambda c, i: (c, i, 0))
    row = pl.BlockSpec((1, cp), lambda c, i: (0, 0))
    args = [y_cls, scale_row, shift_row]
    specs = [tile, row, row]
    if residual is not None:
        args.append(residual)
        specs.append(tile)
        kernel = functools.partial(_affine_res_kernel, act_fn)
    else:
        kernel = functools.partial(_affine_kernel, act_fn)
    return pl.pallas_call(
        kernel,
        out_shape=jax.ShapeDtypeStruct((nc, mp, cp), jnp.bfloat16),
        grid=(nc, mp // tm),
        in_specs=specs,
        out_specs=tile,
        compiler_params=pltpu.CompilerParams(
            dimension_semantics=("parallel", "parallel")),
    )(*args)


def _bn_scale_shift(stats, count, gamma_p, beta_p):
    """stats: (nc, nm, 2, Np) partial sums; gamma_p/beta_p zero-padded (Np,).
    Padded columns yield scale=shift=0 so padded lanes stay zero."""
    s = jnp.sum(stats, axis=(0, 1))                    # (2, Np) f32
    mean = s[0] / count
    var = jnp.maximum(s[1] / count - mean * mean, 0.0)  # biased, clamped >= 0
    inv = jax.lax.rsqrt(var + EPS)
    scale = gamma_p * inv
    shift = beta_p - mean * scale
    return scale.reshape(1, -1), shift.reshape(1, -1)


# ------------------------------ layout glue (JAX) ------------------------------

def _im2col(x, kh, kw, stride):
    """x: (N, Hp, Wp, C) already padded. Returns ((N*Ho*Wo, kh*kw*C), geo)."""
    N, Hp, Wp, C = x.shape
    Ho = (Hp - kh) // stride + 1
    Wo = (Wp - kw) // stride + 1
    if kh == 1 and kw == 1 and stride == 1:
        return x.reshape(N * Ho * Wo, C), (N, Ho, Wo)
    cols = []
    for dy in range(kh):
        for dx in range(kw):
            cols.append(x[:, dy:dy + (Ho - 1) * stride + 1:stride,
                          dx:dx + (Wo - 1) * stride + 1:stride, :])
    patches = jnp.concatenate(cols, axis=-1)
    return patches.reshape(N * Ho * Wo, kh * kw * C), (N, Ho, Wo)


def _padded_to_spatial(yp, M, C, N, H, W):
    return yp[:M, :C].reshape(N, H, W, C)


# ------------------------------ fused layer ops ------------------------------

def conv_bn_act_spatial(x_nhwc, lw, stride, padding=0, pad_mode="constant",
                        act_fn=None, out_spatial=True):
    """Conv2d + training-mode BN + activation.  Input spatial NHWC; output
    either spatial NHWC (bf16) or the padded (Mp, Cp) bf16 matmul layout."""
    x = x_nhwc.astype(jnp.bfloat16)
    if padding > 0:
        x = jnp.pad(x, ((0, 0), (padding, padding), (padding, padding), (0, 0)),
                    mode=pad_mode)
    a2d, (N, Ho, Wo) = _im2col(x, lw["kh"], lw["kw"], stride)
    M = N * Ho * Wo
    tm, Mp = _tm_for(M)
    Kp = lw["w"].shape[1]
    A = jnp.zeros((1, Mp, Kp), jnp.bfloat16).at[0, :M, :lw["K"]].set(a2d)

    y, stats = matmul_bias_stats(A, lw["w"], lw["b"], M)
    scale, shift = _bn_scale_shift(stats, jnp.float32(M), lw["gp"], lw["btp"])
    out = affine_act(y, scale, shift, act_fn)
    if out_spatial:
        return out[0, :M, :lw["N"]].reshape(N, Ho, Wo, lw["N"]), (N, Ho, Wo)
    return out[0], (N, Ho, Wo)


def conv_bn_act_padded(yp_in, lw, M, act_fn, residual=None):
    """1x1 Conv2d + BN + act (+ residual) entirely in the padded (Mp, Cp) bf16
    layout — no slice / re-pad HBM round trips."""
    Mp, Kp_in = yp_in.shape
    assert Kp_in == lw["w"].shape[1]
    tm, Mp_expect = _tm_for(M)
    assert Mp == Mp_expect
    y, stats = matmul_bias_stats(yp_in[None], lw["w"], lw["b"], M)
    scale, shift = _bn_scale_shift(stats, jnp.float32(M), lw["gp"], lw["btp"])
    res = None if residual is None else residual[None]
    return affine_act(y, scale, shift, act_fn, residual=res)[0]


def conv_act_final(x_nhwc, lw, padding, pad_mode, act_fn):
    """Conv2d + activation (no BN): activation fused into the matmul epilogue,
    no second pass over the activation."""
    x = x_nhwc.astype(jnp.bfloat16)
    if padding > 0:
        x = jnp.pad(x, ((0, 0), (padding, padding), (padding, padding), (0, 0)),
                    mode=pad_mode)
    a2d, (N, Ho, Wo) = _im2col(x, lw["kh"], lw["kw"], 1)
    M = N * Ho * Wo
    tm, Mp = _tm_for(M)
    Kp = lw["w"].shape[1]
    A = jnp.zeros((1, Mp, Kp), jnp.bfloat16).at[0, :M, :lw["K"]].set(a2d)
    y, _stats = matmul_bias_stats(A, lw["w"], lw["b"], M, act_fn=act_fn)
    return y[0, :M, :lw["N"]].reshape(N, Ho, Wo, lw["N"])


def deconv_bn_act(x_nhwc, d, act_fn):
    """ConvTranspose2d + BN + act via s^2 sub-pixel decomposition.  All s*s
    parity classes share ONE batched matmul call and ONE batched affine call;
    BN statistics are combined across classes; outputs are interleaved."""
    x = x_nhwc.astype(jnp.bfloat16)
    N, H, W, I = x.shape
    s, padk, O = d["s"], d["padk"], d["N"]
    M = N * H * W
    nc = s * s
    tm, Mp = _tm_for(M)
    Kp = d["w"].shape[1]

    xp = jnp.pad(x, ((0, 0), (padk, padk), (padk, padk), (0, 0)))
    a_cls = []
    for taps in d["taps"]:
        cols = [xp[:, oy:oy + H, ox:ox + W, :] for (oy, ox) in taps]
        a = jnp.concatenate(cols, axis=-1).reshape(M, len(taps) * I)
        a_cls.append(jnp.zeros((Mp, Kp), jnp.bfloat16)
                     .at[:M, :a.shape[1]].set(a))
    A = jnp.stack(a_cls, axis=0)                       # (nc, Mp, Kp)

    y, stats = matmul_bias_stats(A, d["w"], d["b"], M)
    scale, shift = _bn_scale_shift(stats, jnp.float32(nc * M),
                                   d["gp"], d["btp"])
    o = affine_act(y, scale, shift, act_fn)            # (nc, Mp, Np) bf16

    o = o[:, :M, :O].reshape(s, s, N, H, W, O)
    o = jnp.transpose(o, (2, 3, 0, 4, 1, 5)).reshape(N, s * H, s * W, O)
    return o


# ----------------------------- parameters -----------------------------

def init_params(key, ngf, ndf, channels):
    keys = iter(jax.random.split(key, 256))

    def w(shape, scale=0.1):
        return scale * jax.random.normal(next(keys), shape, jnp.float32)

    def bn(c):
        return {"g": jnp.ones((c,), jnp.float32)
                     + 0.05 * jax.random.normal(next(keys), (c,), jnp.float32),
                "b": 0.05 * jax.random.normal(next(keys), (c,), jnp.float32)}

    c2, c4, c8 = 2 * ngf, 4 * ngf, 8 * ngf
    p = {}
    p["ct0_w"] = w((1, 2 * ndf, 4, 4))          # ConvTranspose2d weight (in,out,kh,kw)
    p["ct0_b"] = w((2 * ndf,))
    p["bn0"] = bn(c2)
    p["c1_w"] = w((c4, c2, 7, 7)); p["c1_b"] = w((c4,)); p["bn1"] = bn(c4)
    p["d1_w"] = w((c8, c4, 3, 3)); p["d1_b"] = w((c8,)); p["bnd1"] = bn(c8)
    p["d2_w"] = w((c8, c8, 3, 3)); p["d2_b"] = w((c8,)); p["bnd2"] = bn(c8)
    res = []
    for _ in range(6):
        res.append({
            "w1": w((ngf, c8, 1, 1)), "b1": w((ngf,)), "bn1": bn(ngf),
            "w2": w((ngf, ngf, 3, 3)), "b2": w((ngf,)), "bn2": bn(ngf),
            "w3": w((c8, ngf, 1, 1)), "b3": w((c8,)), "bn3": bn(c8),
        })
    p["res"] = res
    p["u1_w"] = w((c8, c4, 3, 3)); p["u1_b"] = w((c4,)); p["bnu1"] = bn(c4)
    p["u2_w"] = w((c4, c2, 3, 3)); p["u2_b"] = w((c2,)); p["bnu2"] = bn(c2)
    p["co_w"] = w((channels, c2, 7, 7)); p["co_b"] = w((channels,))
    return p


def prepare_params(p):
    """Pre-transpose / pre-pad all weights, biases and BN affine params once so
    no static-data shuffling happens inside the jitted forward pass."""

    def prep_conv(w, b, bn=None):
        O, I, kh, kw = (int(v) for v in w.shape)
        K = kh * kw * I
        Kp, Np = _rup(K, 128), _rup(O, 128)
        wm = jnp.transpose(w, (2, 3, 1, 0)).reshape(K, O)  # (dy,dx,I) row order
        d = {"w": jnp.zeros((1, Kp, Np), jnp.bfloat16)
                  .at[0, :K, :O].set(wm.astype(jnp.bfloat16)),
             "b": jnp.zeros((1, Np), jnp.float32).at[0, :O].set(b),
             "K": K, "N": O, "kh": kh, "kw": kw}
        if bn is not None:
            d["gp"] = jnp.zeros((Np,), jnp.float32).at[:O].set(bn["g"])
            d["btp"] = jnp.zeros((Np,), jnp.float32).at[:O].set(bn["b"])
        return d

    def prep_deconv(w, b, bn, stride, padding, output_padding):
        I, O, kh, kw = (int(v) for v in w.shape)
        s, pd, op = stride, padding, output_padding
        # holds for the configurations used by G_net (k=4,p=1,op=0 / k=3,p=1,op=1)
        assert -2 * pd + kh + op == s, "unsupported transposed-conv geometry"
        padk = max(kh, kw)
        classes = []
        for qy in range(s):
            ry, by = (qy + pd) % s, (qy + pd) // s
            njy = (kh - ry + s - 1) // s
            for qx in range(s):
                rx, bx = (qx + pd) % s, (qx + pd) // s
                njx = (kw - rx + s - 1) // s
                taps = []
                for jy in range(njy):
                    for jx in range(njx):
                        taps.append((padk + by - jy, padk + bx - jx,
                                     ry + jy * s, rx + jx * s))
                classes.append(taps)
        nc = s * s
        Kmax = max(len(t) for t in classes) * I
        Kp, Np = _rup(Kmax, 128), _rup(O, 128)
        wstk = jnp.zeros((nc, Kp, Np), jnp.bfloat16)
        tap_sp = []
        for ci, taps in enumerate(classes):
            rows = [w[:, :, ky, kx] for (_, _, ky, kx) in taps]   # each (I, O)
            wm = jnp.concatenate(rows, axis=0)                    # (ntaps*I, O)
            wstk = wstk.at[ci, :wm.shape[0], :O].set(wm.astype(jnp.bfloat16))
            tap_sp.append([(oy, ox) for (oy, ox, _, _) in taps])
        return {"w": wstk,
                "b": jnp.zeros((1, Np), jnp.float32).at[0, :O].set(b),
                "N": O, "s": s, "padk": padk, "taps": tap_sp,
                "gp": jnp.zeros((Np,), jnp.float32).at[:O].set(bn["g"]),
                "btp": jnp.zeros((Np,), jnp.float32).at[:O].set(bn["b"])}

    prep = {}
    prep["ct0"] = prep_deconv(p["ct0_w"], p["ct0_b"], p["bn0"], 2, 1, 0)
    prep["c1"] = prep_conv(p["c1_w"], p["c1_b"], p["bn1"])
    prep["d1"] = prep_conv(p["d1_w"], p["d1_b"], p["bnd1"])
    prep["d2"] = prep_conv(p["d2_w"], p["d2_b"], p["bnd2"])
    prep["res"] = [{"c1": prep_conv(r["w1"], r["b1"], r["bn1"]),
                    "c2": prep_conv(r["w2"], r["b2"], r["bn2"]),
                    "c3": prep_conv(r["w3"], r["b3"], r["bn3"])}
                   for r in p["res"]]
    prep["u1"] = prep_deconv(p["u1_w"], p["u1_b"], p["bnu1"], 2, 1, 1)
    prep["u2"] = prep_deconv(p["u2_w"], p["u2_b"], p["bnu2"], 2, 1, 1)
    prep["co"] = prep_conv(p["co_w"], p["co_b"], None)
    return prep


# ------------------------------- forward -------------------------------

def g_net_forward(prep, img_nchw):
    relu = lambda v: jnp.maximum(v, 0.0)
    x = jnp.transpose(img_nchw, (0, 2, 3, 1)).astype(jnp.float32)  # NCHW->NHWC

    # ConvTranspose2d(1, 2*ndf, k=4, s=2, p=1) + BN + ReLU
    y = deconv_bn_act(x, prep["ct0"], relu)

    # conv(init=True): ReflectionPad(3) + Conv7 + BN + ReLU
    y, _ = conv_bn_act_spatial(y, prep["c1"], stride=1, padding=3,
                               pad_mode="reflect", act_fn=relu)

    # scaling(up=False) x2: Conv3 stride2 pad1 + BN + ReLU
    y, _ = conv_bn_act_spatial(y, prep["d1"], stride=2, padding=1, act_fn=relu)
    yp, (N, H, W) = conv_bn_act_spatial(y, prep["d2"], stride=2, padding=1,
                                        act_fn=relu, out_spatial=False)
    M = N * H * W
    c8 = prep["d2"]["N"]

    # 6 x ResBlock(8*ngf): out = relu(x + BN(conv(...)))
    # 1x1 convs + residual stay in the padded (Mp, Cp) bf16 layout.
    for rb in prep["res"]:
        h = conv_bn_act_padded(yp, rb["c1"], M, relu)
        h_sp = _padded_to_spatial(h, M, rb["c1"]["N"], N, H, W)
        h2, _ = conv_bn_act_spatial(h_sp, rb["c2"], stride=1, padding=1,
                                    act_fn=relu, out_spatial=False)
        yp = conv_bn_act_padded(h2, rb["c3"], M, relu, residual=yp)

    y = _padded_to_spatial(yp, M, c8, N, H, W)

    # scaling(up=True) x2: ConvTranspose3 s2 p1 op1 + BN + ReLU
    y = deconv_bn_act(y, prep["u1"], relu)
    y = deconv_bn_act(y, prep["u2"], relu)

    # conv(init=False): ReflectionPad(3) + Conv7 + Tanh, then the outer Tanh
    # (activation fused into the matmul epilogue — no affine pass).
    y = conv_act_final(y, prep["co"], padding=3, pad_mode="reflect",
                       act_fn=lambda v: jnp.tanh(jnp.tanh(v)))

    return jnp.transpose(y, (0, 3, 1, 2)).astype(jnp.float32)  # NHWC -> NCHW


if __name__ == "__main__":
    ngf = ndf = 4      # args.ngf == args.ndf required for the PyTorch module
    channels = 2       # args.channels
    key = jax.random.PRNGKey(0)
    kp, kx = jax.random.split(key)
    raw_params = init_params(kp, ngf, ndf, channels)
    prep = prepare_params(raw_params)                 # one-time weight prep
    img = jax.random.normal(kx, (2, 1, 8, 8), jnp.float32)   # NCHW like PyTorch

    fwd = jax.jit(functools.partial(g_net_forward, prep))
    out = jax.block_until_ready(fwd(img))

    assert out.shape == (2, channels, 16, 16), out.shape
    assert bool(jnp.all(jnp.isfinite(out)))
    assert bool(jnp.all(jnp.abs(out) <= 1.0 + 1e-6))  # double tanh output range
    print("KERNEL_OK")
</pallas_src>

<mosaic_0001>
module attributes {stable_mosaic.version = 11 : i64} {
  func.func @_mm_single_kernel(%arg0: i32, %arg1: i32, %arg2: memref<1x128x128xbf16, #tpu.memory_space<vmem>>, %arg3: memref<1x128x128xbf16, #tpu.memory_space<vmem>>, %arg4: memref<1x128xf32, #tpu.memory_space<vmem>>, %arg5: memref<1x128x128xbf16, #tpu.memory_space<vmem>>, %arg6: memref<1x1x2x128xf32, #tpu.memory_space<vmem>>) attributes {dimension_semantics = [#tpu.dimension_semantics<parallel>, #tpu.dimension_semantics<parallel>], iteration_bounds = array<i64: 4, 1>, scalar_prefetch = 0 : i64, scratch_operands = 0 : i64, tpu.core_type = #tpu.core_type<tc>, window_params = [{transform_indices = @transform_0, window_bounds = array<i64: 1, 128, 128>}, {transform_indices = @transform_1, window_bounds = array<i64: 1, 128, 128>}, {pipeline_mode = #tpu.pipeline_mode<synchronous>, transform_indices = @transform_2, window_bounds = array<i64: 1, 128>}, {transform_indices = @transform_3, window_bounds = array<i64: 1, 128, 128>}, {transform_indices = @transform_4, window_bounds = array<i64: 1, 1, 2, 128>}]} {
    %c0 = arith.constant 0 : index
    %c0_0 = arith.constant 0 : index
    %c0_1 = arith.constant 0 : index
    %0 = vector.load %arg2[%c0, %c0_0, %c0_1] : memref<1x128x128xbf16, #tpu.memory_space<vmem>>, vector<1x128x128xbf16>
    %1 = vector.shape_cast %0 : vector<1x128x128xbf16> to vector<128x128xbf16>
    %c0_2 = arith.constant 0 : index
    %c0_3 = arith.constant 0 : index
    %c0_4 = arith.constant 0 : index
    %2 = vector.load %arg3[%c0_2, %c0_3, %c0_4] : memref<1x128x128xbf16, #tpu.memory_space<vmem>>, vector<1x128x128xbf16>
    %3 = vector.shape_cast %2 : vector<1x128x128xbf16> to vector<128x128xbf16>
    %cst = arith.constant dense<0.000000e+00> : vector<128x128xf32>
    %4 = tpu.matmul %1, %3, %cst {dimension_numbers = #tpu.dot_dimension_numbers<[1], [0], [0], [1], [0, 0, 1, 1], [], []>} : vector<128x128xbf16>, vector<128x128xbf16>, vector<128x128xf32> -> vector<128x128xf32>
    %c0_5 = arith.constant 0 : index
    %c0_6 = arith.constant 0 : index
    %5 = vector.load %arg4[%c0_5, %c0_6] : memref<1x128xf32, #tpu.memory_space<vmem>>, vector<1x128xf32>
    %6 = vector.broadcast %5 : vector<1x128xf32> to vector<128x128xf32>
    %7 = arith.addf %4, %6 : vector<128x128xf32>
    %cst_7 = arith.constant dense<0.000000e+00> : vector<128xf32>
    %8 = vector.multi_reduction <add>, %7, %cst_7 [0] : vector<128x128xf32> to vector<128xf32>
    %9 = vector.shape_cast %8 : vector<128xf32> to vector<1x128xf32>
    %10 = arith.mulf %7, %7 : vector<128x128xf32>
    %cst_8 = arith.constant dense<0.000000e+00> : vector<128xf32>
    %11 = vector.multi_reduction <add>, %10, %cst_8 [0] : vector<128x128xf32> to vector<128xf32>
    %12 = vector.shape_cast %11 : vector<128xf32> to vector<1x128xf32>
    %13 = tpu.concatenate %9, %12 in 0 : vector<1x128xf32>, vector<1x128xf32> -> vector<2x128xf32>
    %14 = vector.shape_cast %13 : vector<2x128xf32> to vector<1x2x128xf32>
    %c0_9 = arith.constant 0 : index
    %c0_10 = arith.constant 0 : index
    %c0_11 = arith.constant 0 : index
    %c0_12 = arith.constant 0 : index
    %15 = vector.load %arg6[%c0_9, %c0_10, %c0_11, %c0_12] : memref<1x1x2x128xf32, #tpu.memory_space<vmem>>, vector<1x1x2x128xf32>
    %16 = vector.shape_cast %15 : vector<1x1x2x128xf32> to vector<1x2x128xf32>
    %17 = vector.shape_cast %14 : vector<1x2x128xf32> to vector<1x1x2x128xf32>
    tpu.vector_store %arg6[%c0_9, %c0_10, %c0_11, %c0_12], %17 {strides = array<i32>} : memref<1x1x2x128xf32, #tpu.memory_space<vmem>>, vector<1x1x2x128xf32>,
    %18 = arith.truncf %7 : vector<128x128xf32> to vector<128x128xbf16>
    %c0_13 = arith.constant 0 : index
    %c0_14 = arith.constant 0 : index
    %c0_15 = arith.constant 0 : index
    %19 = vector.load %arg5[%c0_13, %c0_14, %c0_15] : memref<1x128x128xbf16, #tpu.memory_space<vmem>>, vector<1x128x128xbf16>
    %20 = vector.shape_cast %19 : vector<1x128x128xbf16> to vector<128x128xbf16>
    %21 = vector.shape_cast %18 : vector<128x128xbf16> to vector<1x128x128xbf16>
    tpu.vector_store %arg5[%c0_13, %c0_14, %c0_15], %21 {strides = array<i32>} : memref<1x128x128xbf16, #tpu.memory_space<vmem>>, vector<1x128x128xbf16>,
    return
  }
  func.func @transform_0(%arg0: i32, %arg1: i32) -> (i32, i32, i32) {
    %c0_i32 = arith.constant 0 : i32
    %c0_i32_0 = arith.constant 0 : i32
    return %arg0, %arg1, %c0_i32 : i32, i32, i32
  }
  func.func @transform_1(%arg0: i32, %arg1: i32) -> (i32, i32, i32) {
    %c0_i32 = arith.constant 0 : i32
    %c0_i32_0 = arith.constant 0 : i32
    %c0_i32_1 = arith.constant 0 : i32
    return %arg0, %c0_i32, %c0_i32_0 : i32, i32, i32
  }
  func.func @transform_2(%arg0: i32, %arg1: i32) -> (i32, i32) {
    %c0_i32 = arith.constant 0 : i32
    %c0_i32_0 = arith.constant 0 : i32
    %c0_i32_1 = arith.constant 0 : i32
    return %c0_i32, %c0_i32_0 : i32, i32
  }
  func.func @transform_3(%arg0: i32, %arg1: i32) -> (i32, i32, i32) {
    %c0_i32 = arith.constant 0 : i32
    %c0_i32_0 = arith.constant 0 : i32
    return %arg0, %arg1, %c0_i32 : i32, i32, i32
  }
  func.func @transform_4(%arg0: i32, %arg1: i32) -> (i32, i32, i32, i32) {
    %c0_i32 = arith.constant 0 : i32
    %c0_i32_0 = arith.constant 0 : i32
    %c0_i32_1 = arith.constant 0 : i32
    return %arg0, %arg1, %c0_i32, %c0_i32_0 : i32, i32, i32, i32
  }
}

module attributes {stable_mosaic.version = 11 : i64} {
  func.func @_affine_kernel(%arg0: i32, %arg1: i32, %arg2: memref<1x128x128xbf16, #tpu.memory_space<vmem>>, %arg3: memref<1x128xf32, #tpu.memory_space<vmem>>, %arg4: memref<1x128xf32, #tpu.memory_space<vmem>>, %arg5: memref<1x128x128xbf16, #tpu.memory_space<vmem>>) attributes {dimension_semantics = [#tpu.dimension_semantics<parallel>, #tpu.dimension_semantics<parallel>], iteration_bounds = array<i64: 4, 1>, scalar_prefetch = 0 : i64, scratch_operands = 0 : i64, tpu.core_type = #tpu.core_type<tc>, window_params = [{transform_indices = @transform_0, window_bounds = array<i64: 1, 128, 128>}, {pipeline_mode = #tpu.pipeline_mode<synchronous>, transform_indices = @transform_1, window_bounds = array<i64: 1, 128>}, {pipeline_mode = #tpu.pipeline_mode<synchronous>, transform_indices = @transform_2, window_bounds = array<i64: 1, 128>}, {transform_indices = @transform_3, window_bounds = array<i64: 1, 128, 128>}]} {
    %c0 = arith.constant 0 : index
    %c0_0 = arith.constant 0 : index
    %c0_1 = arith.constant 0 : index
    %0 = vector.load %arg2[%c0, %c0_0, %c0_1] : memref<1x128x128xbf16, #tpu.memory_space<vmem>>, vector<1x128x128xbf16>
    %1 = vector.shape_cast %0 : vector<1x128x128xbf16> to vector<128x128xbf16>
    %2 = arith.extf %1 : vector<128x128xbf16> to vector<128x128xf32>
    %c0_2 = arith.constant 0 : index
    %c0_3 = arith.constant 0 : index
    %3 = vector.load %arg3[%c0_2, %c0_3] : memref<1x128xf32, #tpu.memory_space<vmem>>, vector<1x128xf32>
    %4 = vector.broadcast %3 : vector<1x128xf32> to vector<128x128xf32>
    %5 = arith.mulf %2, %4 : vector<128x128xf32>
    %c0_4 = arith.constant 0 : index
    %c0_5 = arith.constant 0 : index
    %6 = vector.load %arg4[%c0_4, %c0_5] : memref<1x128xf32, #tpu.memory_space<vmem>>, vector<1x128xf32>
    %7 = vector.broadcast %6 : vector<1x128xf32> to vector<128x128xf32>
    %8 = arith.addf %5, %7 : vector<128x128xf32>
    %cst = arith.constant 0.000000e+00 : f32
    %9 = vector.broadcast %cst : f32 to vector<128x128xf32>
    %10 = arith.maximumf %8, %9 : vector<128x128xf32>
    %11 = arith.truncf %10 : vector<128x128xf32> to vector<128x128xbf16>
    %c0_6 = arith.constant 0 : index
    %c0_7 = arith.constant 0 : index
    %c0_8 = arith.constant 0 : index
    %12 = vector.load %arg5[%c0_6, %c0_7, %c0_8] : memref<1x128x128xbf16, #tpu.memory_space<vmem>>, vector<1x128x128xbf16>
    %13 = vector.shape_cast %12 : vector<1x128x128xbf16> to vector<128x128xbf16>
    %14 = vector.shape_cast %11 : vector<128x128xbf16> to vector<1x128x128xbf16>
    tpu.vector_store %arg5[%c0_6, %c0_7, %c0_8], %14 {strides = array<i32>} : memref<1x128x128xbf16, #tpu.memory_space<vmem>>, vector<1x128x128xbf16>,
    return
  }
  func.func @transform_0(%arg0: i32, %arg1: i32) -> (i32, i32, i32) {
    %c0_i32 = arith.constant 0 : i32
    %c0_i32_0 = arith.constant 0 : i32
    return %arg0, %arg1, %c0_i32 : i32, i32, i32
  }
  func.func @transform_1(%arg0: i32, %arg1: i32) -> (i32, i32) {
    %c0_i32 = arith.constant 0 : i32
    %c0_i32_0 = arith.constant 0 : i32
    %c0_i32_1 = arith.constant 0 : i32
    return %c0_i32, %c0_i32_0 : i32, i32
  }
  func.func @transform_2(%arg0: i32, %arg1: i32) -> (i32, i32) {
    %c0_i32 = arith.constant 0 : i32
    %c0_i32_0 = arith.constant 0 : i32
    %c0_i32_1 = arith.constant 0 : i32
    return %c0_i32, %c0_i32_0 : i32, i32
  }
  func.func @transform_3(%arg0: i32, %arg1: i32) -> (i32, i32, i32) {
    %c0_i32 = arith.constant 0 : i32
    %c0_i32_0 = arith.constant 0 : i32
    return %arg0, %arg1, %c0_i32 : i32, i32, i32
  }
}

module attributes {stable_mosaic.version = 11 : i64} {
  func.func @_mm_single_kernel(%arg0: i32, %arg1: i32, %arg2: memref<1x256x512xbf16, #tpu.memory_space<vmem>>, %arg3: memref<1x512x128xbf16, #tpu.memory_space<vmem>>, %arg4: memref<1x128xf32, #tpu.memory_space<vmem>>, %arg5: memref<1x256x128xbf16, #tpu.memory_space<vmem>>, %arg6: memref<1x1x2x128xf32, #tpu.memory_space<vmem>>) attributes {dimension_semantics = [#tpu.dimension_semantics<parallel>, #tpu.dimension_semantics<parallel>], iteration_bounds = array<i64: 1, 2>, scalar_prefetch = 0 : i64, scratch_operands = 0 : i64, tpu.core_type = #tpu.core_type<tc>, window_params = [{transform_indices = @transform_0, window_bounds = array<i64: 1, 256, 512>}, {transform_indices = @transform_1, window_bounds = array<i64: 1, 512, 128>}, {pipeline_mode = #tpu.pipeline_mode<synchronous>, transform_indices = @transform_2, window_bounds = array<i64: 1, 128>}, {transform_indices = @transform_3, window_bounds = array<i64: 1, 256, 128>}, {transform_indices = @transform_4, window_bounds = array<i64: 1, 1, 2, 128>}]} {
    %c0 = arith.constant 0 : index
    %c0_0 = arith.constant 0 : index
    %c0_1 = arith.constant 0 : index
    %0 = vector.load %arg2[%c0, %c0_0, %c0_1] : memref<1x256x512xbf16, #tpu.memory_space<vmem>>, vector<1x256x512xbf16>
    %1 = vector.shape_cast %0 : vector<1x256x512xbf16> to vector<256x512xbf16>
    %c0_2 = arith.constant 0 : index
    %c0_3 = arith.constant 0 : index
    %c0_4 = arith.constant 0 : index
    %2 = vector.load %arg3[%c0_2, %c0_3, %c0_4] : memref<1x512x128xbf16, #tpu.memory_space<vmem>>, vector<1x512x128xbf16>
    %3 = vector.shape_cast %2 : vector<1x512x128xbf16> to vector<512x128xbf16>
    %cst = arith.constant dense<0.000000e+00> : vector<256x128xf32>
    %4 = tpu.matmul %1, %3, %cst {dimension_numbers = #tpu.dot_dimension_numbers<[1], [0], [0], [1], [0, 0, 1, 1], [], []>} : vector<256x512xbf16>, vector<512x128xbf16>, vector<256x128xf32> -> vector<256x128xf32>
    %c0_5 = arith.constant 0 : index
    %c0_6 = arith.constant 0 : index
    %5 = vector.load %arg4[%c0_5, %c0_6] : memref<1x128xf32, #tpu.memory_space<vmem>>, vector<1x128xf32>
    %6 = vector.broadcast %5 : vector<1x128xf32> to vector<256x128xf32>
    %7 = arith.addf %4, %6 : vector<256x128xf32>
    %cst_7 = arith.constant dense<0.000000e+00> : vector<128xf32>
    %8 = vector.multi_reduction <add>, %7, %cst_7 [0] : vector<256x128xf32> to vector<128xf32>
    %9 = vector.shape_cast %8 : vector<128xf32> to vector<1x128xf32>
    %10 = arith.mulf %7, %7 : vector<256x128xf32>
    %cst_8 = arith.constant dense<0.000000e+00> : vector<128xf32>
    %11 = vector.multi_reduction <add>, %10, %cst_8 [0] : vector<256x128xf32> to vector<128xf32>
    %12 = vector.shape_cast %11 : vector<128xf32> to vector<1x128xf32>
    %13 = tpu.concatenate %9, %12 in 0 : vector<1x128xf32>, vector<1x128xf32> -> vector<2x128xf32>
    %14 = vector.shape_cast %13 : vector<2x128xf32> to vector<1x2x128xf32>
    %c0_9 = arith.constant 0 : index
    %c0_10 = arith.constant 0 : index
    %c0_11 = arith.constant 0 : index
    %c0_12 = arith.constant 0 : index
    %15 = vector.load %arg6[%c0_9, %c0_10, %c0_11, %c0_12] : memref<1x1x2x128xf32, #tpu.memory_space<vmem>>, vector<1x1x2x128xf32>
    %16 = vector.shape_cast %15 : vector<1x1x2x128xf32> to vector<1x2x128xf32>
    %17 = vector.shape_cast %14 : vector<1x2x128xf32> to vector<1x1x2x128xf32>
    tpu.vector_store %arg6[%c0_9, %c0_10, %c0_11, %c0_12], %17 {strides = array<i32>} : memref<1x1x2x128xf32, #tpu.memory_space<vmem>>, vector<1x1x2x128xf32>,
    %18 = arith.truncf %7 : vector<256x128xf32> to vector<256x128xbf16>
    %c0_13 = arith.constant 0 : index
    %c0_14 = arith.constant 0 : index
    %c0_15 = arith.constant 0 : index
    %19 = vector.load %arg5[%c0_13, %c0_14, %c0_15] : memref<1x256x128xbf16, #tpu.memory_space<vmem>>, vector<1x256x128xbf16>
    %20 = vector.shape_cast %19 : vector<1x256x128xbf16> to vector<256x128xbf16>
    %21 = vector.shape_cast %18 : vector<256x128xbf16> to vector<1x256x128xbf16>
    tpu.vector_store %arg5[%c0_13, %c0_14, %c0_15], %21 {strides = array<i32>} : memref<1x256x128xbf16, #tpu.memory_space<vmem>>, vector<1x256x128xbf16>,
    return
  }
  func.func @transform_0(%arg0: i32, %arg1: i32) -> (i32, i32, i32) {
    %c0_i32 = arith.constant 0 : i32
    %c0_i32_0 = arith.constant 0 : i32
    return %arg0, %arg1, %c0_i32 : i32, i32, i32
  }
  func.func @transform_1(%arg0: i32, %arg1: i32) -> (i32, i32, i32) {
    %c0_i32 = arith.constant 0 : i32
    %c0_i32_0 = arith.constant 0 : i32
    %c0_i32_1 = arith.constant 0 : i32
    return %arg0, %c0_i32, %c0_i32_0 : i32, i32, i32
  }
  func.func @transform_2(%arg0: i32, %arg1: i32) -> (i32, i32) {
    %c0_i32 = arith.constant 0 : i32
    %c0_i32_0 = arith.constant 0 : i32
    %c0_i32_1 = arith.constant 0 : i32
    return %c0_i32, %c0_i32_0 : i32, i32
  }
  func.func @transform_3(%arg0: i32, %arg1: i32) -> (i32, i32, i32) {
    %c0_i32 = arith.constant 0 : i32
    %c0_i32_0 = arith.constant 0 : i32
    return %arg0, %arg1, %c0_i32 : i32, i32, i32
  }
  func.func @transform_4(%arg0: i32, %arg1: i32) -> (i32, i32, i32, i32) {
    %c0_i32 = arith.constant 0 : i32
    %c0_i32_0 = arith.constant 0 : i32
    %c0_i32_1 = arith.constant 0 : i32
    return %arg0, %arg1, %c0_i32, %c0_i32_0 : i32, i32, i32, i32
  }
}

module attributes {stable_mosaic.version = 11 : i64} {
  func.func @_affine_kernel(%arg0: i32, %arg1: i32, %arg2: memref<1x512x128xbf16, #tpu.memory_space<vmem>>, %arg3: memref<1x128xf32, #tpu.memory_space<vmem>>, %arg4: memref<1x128xf32, #tpu.memory_space<vmem>>, %arg5: memref<1x512x128xbf16, #tpu.memory_space<vmem>>) attributes {dimension_semantics = [#tpu.dimension_semantics<parallel>, #tpu.dimension_semantics<parallel>], iteration_bounds = array<i64: 1, 1>, scalar_prefetch = 0 : i64, scratch_operands = 0 : i64, tpu.core_type = #tpu.core_type<tc>, window_params = [{transform_indices = @transform_0, window_bounds = array<i64: 1, 512, 128>}, {pipeline_mode = #tpu.pipeline_mode<synchronous>, transform_indices = @transform_1, window_bounds = array<i64: 1, 128>}, {pipeline_mode = #tpu.pipeline_mode<synchronous>, transform_indices = @transform_2, window_bounds = array<i64: 1, 128>}, {transform_indices = @transform_3, window_bounds = array<i64: 1, 512, 128>}]} {
    %c0 = arith.constant 0 : index
    %c0_0 = arith.constant 0 : index
    %c0_1 = arith.constant 0 : index
    %0 = vector.load %arg2[%c0, %c0_0, %c0_1] : memref<1x512x128xbf16, #tpu.memory_space<vmem>>, vector<1x512x128xbf16>
    %1 = vector.shape_cast %0 : vector<1x512x128xbf16> to vector<512x128xbf16>
    %2 = arith.extf %1 : vector<512x128xbf16> to vector<512x128xf32>
    %c0_2 = arith.constant 0 : index
    %c0_3 = arith.constant 0 : index
    %3 = vector.load %arg3[%c0_2, %c0_3] : memref<1x128xf32, #tpu.memory_space<vmem>>, vector<1x128xf32>
    %4 = vector.broadcast %3 : vector<1x128xf32> to vector<512x128xf32>
    %5 = arith.mulf %2, %4 : vector<512x128xf32>
    %c0_4 = arith.constant 0 : index
    %c0_5 = arith.constant 0 : index
    %6 = vector.load %arg4[%c0_4, %c0_5] : memref<1x128xf32, #tpu.memory_space<vmem>>, vector<1x128xf32>
    %7 = vector.broadcast %6 : vector<1x128xf32> to vector<512x128xf32>
    %8 = arith.addf %5, %7 : vector<512x128xf32>
    %cst = arith.constant 0.000000e+00 : f32
    %9 = vector.broadcast %cst : f32 to vector<512x128xf32>
    %10 = arith.maximumf %8, %9 : vector<512x128xf32>
    %11 = arith.truncf %10 : vector<512x128xf32> to vector<512x128xbf16>
    %c0_6 = arith.constant 0 : index
    %c0_7 = arith.constant 0 : index
    %c0_8 = arith.constant 0 : index
    %12 = vector.load %arg5[%c0_6, %c0_7, %c0_8] : memref<1x512x128xbf16, #tpu.memory_space<vmem>>, vector<1x512x128xbf16>
    %13 = vector.shape_cast %12 : vector<1x512x128xbf16> to vector<512x128xbf16>
    %14 = vector.shape_cast %11 : vector<512x128xbf16> to vector<1x512x128xbf16>
    tpu.vector_store %arg5[%c0_6, %c0_7, %c0_8], %14 {strides = array<i32>} : memref<1x512x128xbf16, #tpu.memory_space<vmem>>, vector<1x512x128xbf16>,
    return
  }
  func.func @transform_0(%arg0: i32, %arg1: i32) -> (i32, i32, i32) {
    %c0_i32 = arith.constant 0 : i32
    %c0_i32_0 = arith.constant 0 : i32
    return %arg0, %arg1, %c0_i32 : i32, i32, i32
  }
  func.func @transform_1(%arg0: i32, %arg1: i32) -> (i32, i32) {
    %c0_i32 = arith.constant 0 : i32
    %c0_i32_0 = arith.constant 0 : i32
    %c0_i32_1 = arith.constant 0 : i32
    return %c0_i32, %c0_i32_0 : i32, i32
  }
  func.func @transform_2(%arg0: i32, %arg1: i32) -> (i32, i32) {
    %c0_i32 = arith.constant 0 : i32
    %c0_i32_0 = arith.constant 0 : i32
    %c0_i32_1 = arith.constant 0 : i32
    return %c0_i32, %c0_i32_0 : i32, i32
  }
  func.func @transform_3(%arg0: i32, %arg1: i32) -> (i32, i32, i32) {
    %c0_i32 = arith.constant 0 : i32
    %c0_i32_0 = arith.constant 0 : i32
    return %arg0, %arg1, %c0_i32 : i32, i32, i32
  }
}

module attributes {stable_mosaic.version = 11 : i64} {
  func.func @_affine_kernel(%arg0: i32, %arg1: i32, %arg2: memref<1x128x128xbf16, #tpu.memory_space<vmem>>, %arg3: memref<1x128xf32, #tpu.memory_space<vmem>>, %arg4: memref<1x128xf32, #tpu.memory_space<vmem>>, %arg5: memref<1x128x128xbf16, #tpu.memory_space<vmem>>) attributes {dimension_semantics = [#tpu.dimension_semantics<parallel>, #tpu.dimension_semantics<parallel>], iteration_bounds = array<i64: 1, 1>, scalar_prefetch = 0 : i64, scratch_operands = 0 : i64, tpu.core_type = #tpu.core_type<tc>, window_params = [{transform_indices = @transform_0, window_bounds = array<i64: 1, 128, 128>}, {pipeline_mode = #tpu.pipeline_mode<synchronous>, transform_indices = @transform_1, window_bounds = array<i64: 1, 128>}, {pipeline_mode = #tpu.pipeline_mode<synchronous>, transform_indices = @transform_2, window_bounds = array<i64: 1, 128>}, {transform_indices = @transform_3, window_bounds = array<i64: 1, 128, 128>}]} {
    %c0 = arith.constant 0 : index
    %c0_0 = arith.constant 0 : index
    %c0_1 = arith.constant 0 : index
    %0 = vector.load %arg2[%c0, %c0_0, %c0_1] : memref<1x128x128xbf16, #tpu.memory_space<vmem>>, vector<1x128x128xbf16>
    %1 = vector.shape_cast %0 : vector<1x128x128xbf16> to vector<128x128xbf16>
    %2 = arith.extf %1 : vector<128x128xbf16> to vector<128x128xf32>
    %c0_2 = arith.constant 0 : index
    %c0_3 = arith.constant 0 : index
    %3 = vector.load %arg3[%c0_2, %c0_3] : memref<1x128xf32, #tpu.memory_space<vmem>>, vector<1x128xf32>
    %4 = vector.broadcast %3 : vector<1x128xf32> to vector<128x128xf32>
    %5 = arith.mulf %2, %4 : vector<128x128xf32>
    %c0_4 = arith.constant 0 : index
    %c0_5 = arith.constant 0 : index
    %6 = vector.load %arg4[%c0_4, %c0_5] : memref<1x128xf32, #tpu.memory_space<vmem>>, vector<1x128xf32>
    %7 = vector.broadcast %6 : vector<1x128xf32> to vector<128x128xf32>
    %8 = arith.addf %5, %7 : vector<128x128xf32>
    %cst = arith.constant 0.000000e+00 : f32
    %9 = vector.broadcast %cst : f32 to vector<128x128xf32>
    %10 = arith.maximumf %8, %9 : vector<128x128xf32>
    %11 = arith.truncf %10 : vector<128x128xf32> to vector<128x128xbf16>
    %c0_6 = arith.constant 0 : index
    %c0_7 = arith.constant 0 : index
    %c0_8 = arith.constant 0 : index
    %12 = vector.load %arg5[%c0_6, %c0_7, %c0_8] : memref<1x128x128xbf16, #tpu.memory_space<vmem>>, vector<1x128x128xbf16>
    %13 = vector.shape_cast %12 : vector<1x128x128xbf16> to vector<128x128xbf16>
    %14 = vector.shape_cast %11 : vector<128x128xbf16> to vector<1x128x128xbf16>
    tpu.vector_store %arg5[%c0_6, %c0_7, %c0_8], %14 {strides = array<i32>} : memref<1x128x128xbf16, #tpu.memory_space<vmem>>, vector<1x128x128xbf16>,
    return
  }
  func.func @transform_0(%arg0: i32, %arg1: i32) -> (i32, i32, i32) {
    %c0_i32 = arith.constant 0 : i32
    %c0_i32_0 = arith.constant 0 : i32
    return %arg0, %arg1, %c0_i32 : i32, i32, i32
  }
  func.func @transform_1(%arg0: i32, %arg1: i32) -> (i32, i32) {
    %c0_i32 = arith.constant 0 : i32
    %c0_i32_0 = arith.constant 0 : i32
    %c0_i32_1 = arith.constant 0 : i32
    return %c0_i32, %c0_i32_0 : i32, i32
  }
  func.func @transform_2(%arg0: i32, %arg1: i32) -> (i32, i32) {
    %c0_i32 = arith.constant 0 : i32
    %c0_i32_0 = arith.constant 0 : i32
    %c0_i32_1 = arith.constant 0 : i32
    return %c0_i32, %c0_i32_0 : i32, i32
  }
  func.func @transform_3(%arg0: i32, %arg1: i32) -> (i32, i32, i32) {
    %c0_i32 = arith.constant 0 : i32
    %c0_i32_0 = arith.constant 0 : i32
    return %arg0, %arg1, %c0_i32 : i32, i32, i32
  }
}

module attributes {stable_mosaic.version = 11 : i64} {
  func.func @_mm_single_kernel(%arg0: i32, %arg1: i32, %arg2: memref<1x128x256xbf16, #tpu.memory_space<vmem>>, %arg3: memref<1x256x128xbf16, #tpu.memory_space<vmem>>, %arg4: memref<1x128xf32, #tpu.memory_space<vmem>>, %arg5: memref<1x128x128xbf16, #tpu.memory_space<vmem>>, %arg6: memref<1x1x2x128xf32, #tpu.memory_space<vmem>>) attributes {dimension_semantics = [#tpu.dimension_semantics<parallel>, #tpu.dimension_semantics<parallel>], iteration_bounds = array<i64: 1, 1>, scalar_prefetch = 0 : i64, scratch_operands = 0 : i64, tpu.core_type = #tpu.core_type<tc>, window_params = [{transform_indices = @transform_0, window_bounds = array<i64: 1, 128, 256>}, {transform_indices = @transform_1, window_bounds = array<i64: 1, 256, 128>}, {pipeline_mode = #tpu.pipeline_mode<synchronous>, transform_indices = @transform_2, window_bounds = array<i64: 1, 128>}, {transform_indices = @transform_3, window_bounds = array<i64: 1, 128, 128>}, {transform_indices = @transform_4, window_bounds = array<i64: 1, 1, 2, 128>}]} {
    %c0 = arith.constant 0 : index
    %c0_0 = arith.constant 0 : index
    %c0_1 = arith.constant 0 : index
    %0 = vector.load %arg2[%c0, %c0_0, %c0_1] : memref<1x128x256xbf16, #tpu.memory_space<vmem>>, vector<1x128x256xbf16>
    %1 = vector.shape_cast %0 : vector<1x128x256xbf16> to vector<128x256xbf16>
    %c0_2 = arith.constant 0 : index
    %c0_3 = arith.constant 0 : index
    %c0_4 = arith.constant 0 : index
    %2 = vector.load %arg3[%c0_2, %c0_3, %c0_4] : memref<1x256x128xbf16, #tpu.memory_space<vmem>>, vector<1x256x128xbf16>
    %3 = vector.shape_cast %2 : vector<1x256x128xbf16> to vector<256x128xbf16>
    %cst = arith.constant dense<0.000000e+00> : vector<128x128xf32>
    %4 = tpu.matmul %1, %3, %cst {dimension_numbers = #tpu.dot_dimension_numbers<[1], [0], [0], [1], [0, 0, 1, 1], [], []>} : vector<128x256xbf16>, vector<256x128xbf16>, vector<128x128xf32> -> vector<128x128xf32>
    %c0_5 = arith.constant 0 : index
    %c0_6 = arith.constant 0 : index
    %5 = vector.load %arg4[%c0_5, %c0_6] : memref<1x128xf32, #tpu.memory_space<vmem>>, vector<1x128xf32>
    %6 = vector.broadcast %5 : vector<1x128xf32> to vector<128x128xf32>
    %7 = arith.addf %4, %6 : vector<128x128xf32>
    %cst_7 = arith.constant dense<0.000000e+00> : vector<128xf32>
    %8 = vector.multi_reduction <add>, %7, %cst_7 [0] : vector<128x128xf32> to vector<128xf32>
    %9 = vector.shape_cast %8 : vector<128xf32> to vector<1x128xf32>
    %10 = arith.mulf %7, %7 : vector<128x128xf32>
    %cst_8 = arith.constant dense<0.000000e+00> : vector<128xf32>
    %11 = vector.multi_reduction <add>, %10, %cst_8 [0] : vector<128x128xf32> to vector<128xf32>
    %12 = vector.shape_cast %11 : vector<128xf32> to vector<1x128xf32>
    %13 = tpu.concatenate %9, %12 in 0 : vector<1x128xf32>, vector<1x128xf32> -> vector<2x128xf32>
    %14 = vector.shape_cast %13 : vector<2x128xf32> to vector<1x2x128xf32>
    %c0_9 = arith.constant 0 : index
    %c0_10 = arith.constant 0 : index
    %c0_11 = arith.constant 0 : index
    %c0_12 = arith.constant 0 : index
    %15 = vector.load %arg6[%c0_9, %c0_10, %c0_11, %c0_12] : memref<1x1x2x128xf32, #tpu.memory_space<vmem>>, vector<1x1x2x128xf32>
    %16 = vector.shape_cast %15 : vector<1x1x2x128xf32> to vector<1x2x128xf32>
    %17 = vector.shape_cast %14 : vector<1x2x128xf32> to vector<1x1x2x128xf32>
    tpu.vector_store %arg6[%c0_9, %c0_10, %c0_11, %c0_12], %17 {strides = array<i32>} : memref<1x1x2x128xf32, #tpu.memory_space<vmem>>, vector<1x1x2x128xf32>,
    %18 = arith.truncf %7 : vector<128x128xf32> to vector<128x128xbf16>
    %c0_13 = arith.constant 0 : index
    %c0_14 = arith.constant 0 : index
    %c0_15 = arith.constant 0 : index
    %19 = vector.load %arg5[%c0_13, %c0_14, %c0_15] : memref<1x128x128xbf16, #tpu.memory_space<vmem>>, vector<1x128x128xbf16>
    %20 = vector.shape_cast %19 : vector<1x128x128xbf16> to vector<128x128xbf16>
    %21 = vector.shape_cast %18 : vector<128x128xbf16> to vector<1x128x128xbf16>
    tpu.vector_store %arg5[%c0_13, %c0_14, %c0_15], %21 {strides = array<i32>} : memref<1x128x128xbf16, #tpu.memory_space<vmem>>, vector<1x128x128xbf16>,
    return
  }
  func.func @transform_0(%arg0: i32, %arg1: i32) -> (i32, i32, i32) {
    %c0_i32 = arith.constant 0 : i32
    %c0_i32_0 = arith.constant 0 : i32
    return %arg0, %arg1, %c0_i32 : i32, i32, i32
  }
  func.func @transform_1(%arg0: i32, %arg1: i32) -> (i32, i32, i32) {
    %c0_i32 = arith.constant 0 : i32
    %c0_i32_0 = arith.constant 0 : i32
    %c0_i32_1 = arith.constant 0 : i32
    return %arg0, %c0_i32, %c0_i32_0 : i32, i32, i32
  }
  func.func @transform_2(%arg0: i32, %arg1: i32) -> (i32, i32) {
    %c0_i32 = arith.constant 0 : i32
    %c0_i32_0 = arith.constant 0 : i32
    %c0_i32_1 = arith.constant 0 : i32
    return %c0_i32, %c0_i32_0 : i32, i32
  }
  func.func @transform_3(%arg0: i32, %arg1: i32) -> (i32, i32, i32) {
    %c0_i32 = arith.constant 0 : i32
    %c0_i32_0 = arith.constant 0 : i32
    return %arg0, %arg1, %c0_i32 : i32, i32, i32
  }
  func.func @transform_4(%arg0: i32, %arg1: i32) -> (i32, i32, i32, i32) {
    %c0_i32 = arith.constant 0 : i32
    %c0_i32_0 = arith.constant 0 : i32
    %c0_i32_1 = arith.constant 0 : i32
    return %arg0, %arg1, %c0_i32, %c0_i32_0 : i32, i32, i32, i32
  }
}

module attributes {stable_mosaic.version = 11 : i64} {
  func.func @_mm_single_kernel(%arg0: i32, %arg1: i32, %arg2: memref<1x32x128xbf16, #tpu.memory_space<vmem>>, %arg3: memref<1x128x128xbf16, #tpu.memory_space<vmem>>, %arg4: memref<1x128xf32, #tpu.memory_space<vmem>>, %arg5: memref<1x32x128xbf16, #tpu.memory_space<vmem>>, %arg6: memref<1x1x2x128xf32, #tpu.memory_space<vmem>>) attributes {dimension_semantics = [#tpu.dimension_semantics<parallel>, #tpu.dimension_semantics<parallel>], iteration_bounds = array<i64: 1, 1>, scalar_prefetch = 0 : i64, scratch_operands = 0 : i64, tpu.core_type = #tpu.core_type<tc>, window_params = [{transform_indices = @transform_0, window_bounds = array<i64: 1, 32, 128>}, {transform_indices = @transform_1, window_bounds = array<i64: 1, 128, 128>}, {pipeline_mode = #tpu.pipeline_mode<synchronous>, transform_indices = @transform_2, window_bounds = array<i64: 1, 128>}, {transform_indices = @transform_3, window_bounds = array<i64: 1, 32, 128>}, {transform_indices = @transform_4, window_bounds = array<i64: 1, 1, 2, 128>}]} {
    %c0 = arith.constant 0 : index
    %c0_0 = arith.constant 0 : index
    %c0_1 = arith.constant 0 : index
    %0 = vector.load %arg2[%c0, %c0_0, %c0_1] : memref<1x32x128xbf16, #tpu.memory_space<vmem>>, vector<1x32x128xbf16>
    %1 = vector.shape_cast %0 : vector<1x32x128xbf16> to vector<32x128xbf16>
    %c0_2 = arith.constant 0 : index
    %c0_3 = arith.constant 0 : index
    %c0_4 = arith.constant 0 : index
    %2 = vector.load %arg3[%c0_2, %c0_3, %c0_4] : memref<1x128x128xbf16, #tpu.memory_space<vmem>>, vector<1x128x128xbf16>
    %3 = vector.shape_cast %2 : vector<1x128x128xbf16> to vector<128x128xbf16>
    %cst = arith.constant dense<0.000000e+00> : vector<32x128xf32>
    %4 = tpu.matmul %1, %3, %cst {dimension_numbers = #tpu.dot_dimension_numbers<[1], [0], [0], [1], [0, 0, 1, 1], [], []>} : vector<32x128xbf16>, vector<128x128xbf16>, vector<32x128xf32> -> vector<32x128xf32>
    %c0_5 = arith.constant 0 : index
    %c0_6 = arith.constant 0 : index
    %5 = vector.load %arg4[%c0_5, %c0_6] : memref<1x128xf32, #tpu.memory_space<vmem>>, vector<1x128xf32>
    %6 = vector.broadcast %5 : vector<1x128xf32> to vector<32x128xf32>
    %7 = arith.addf %4, %6 : vector<32x128xf32>
    %cst_7 = arith.constant dense<0.000000e+00> : vector<128xf32>
    %8 = vector.multi_reduction <add>, %7, %cst_7 [0] : vector<32x128xf32> to vector<128xf32>
    %9 = vector.shape_cast %8 : vector<128xf32> to vector<1x128xf32>
    %10 = arith.mulf %7, %7 : vector<32x128xf32>
    %cst_8 = arith.constant dense<0.000000e+00> : vector<128xf32>
    %11 = vector.multi_reduction <add>, %10, %cst_8 [0] : vector<32x128xf32> to vector<128xf32>
    %12 = vector.shape_cast %11 : vector<128xf32> to vector<1x128xf32>
    %13 = tpu.concatenate %9, %12 in 0 : vector<1x128xf32>, vector<1x128xf32> -> vector<2x128xf32>
    %14 = vector.shape_cast %13 : vector<2x128xf32> to vector<1x2x128xf32>
    %c0_9 = arith.constant 0 : index
    %c0_10 = arith.constant 0 : index
    %c0_11 = arith.constant 0 : index
    %c0_12 = arith.constant 0 : index
    %15 = vector.load %arg6[%c0_9, %c0_10, %c0_11, %c0_12] : memref<1x1x2x128xf32, #tpu.memory_space<vmem>>, vector<1x1x2x128xf32>
    %16 = vector.shape_cast %15 : vector<1x1x2x128xf32> to vector<1x2x128xf32>
    %17 = vector.shape_cast %14 : vector<1x2x128xf32> to vector<1x1x2x128xf32>
    tpu.vector_store %arg6[%c0_9, %c0_10, %c0_11, %c0_12], %17 {strides = array<i32>} : memref<1x1x2x128xf32, #tpu.memory_space<vmem>>, vector<1x1x2x128xf32>,
    %18 = arith.truncf %7 : vector<32x128xf32> to vector<32x128xbf16>
    %c0_13 = arith.constant 0 : index
    %c0_14 = arith.constant 0 : index
    %c0_15 = arith.constant 0 : index
    %19 = vector.load %arg5[%c0_13, %c0_14, %c0_15] : memref<1x32x128xbf16, #tpu.memory_space<vmem>>, vector<1x32x128xbf16>
    %20 = vector.shape_cast %19 : vector<1x32x128xbf16> to vector<32x128xbf16>
    %21 = vector.shape_cast %18 : vector<32x128xbf16> to vector<1x32x128xbf16>
    tpu.vector_store %arg5[%c0_13, %c0_14, %c0_15], %21 {strides = array<i32>} : memref<1x32x128xbf16, #tpu.memory_space<vmem>>, vector<1x32x128xbf16>,
    return
  }
  func.func @transform_0(%arg0: i32, %arg1: i32) -> (i32, i32, i32) {
    %c0_i32 = arith.constant 0 : i32
    %c0_i32_0 = arith.constant 0 : i32
    return %arg0, %arg1, %c0_i32 : i32, i32, i32
  }
  func.func @transform_1(%arg0: i32, %arg1: i32) -> (i32, i32, i32) {
    %c0_i32 = arith.constant 0 : i32
    %c0_i32_0 = arith.constant 0 : i32
    %c0_i32_1 = arith.constant 0 : i32
    return %arg0, %c0_i32, %c0_i32_0 : i32, i32, i32
  }
  func.func @transform_2(%arg0: i32, %arg1: i32) -> (i32, i32) {
    %c0_i32 = arith.constant 0 : i32
    %c0_i32_0 = arith.constant 0 : i32
    %c0_i32_1 = arith.constant 0 : i32
    return %c0_i32, %c0_i32_0 : i32, i32
  }
  func.func @transform_3(%arg0: i32, %arg1: i32) -> (i32, i32, i32) {
    %c0_i32 = arith.constant 0 : i32
    %c0_i32_0 = arith.constant 0 : i32
    return %arg0, %arg1, %c0_i32 : i32, i32, i32
  }
  func.func @transform_4(%arg0: i32, %arg1: i32) -> (i32, i32, i32, i32) {
    %c0_i32 = arith.constant 0 : i32
    %c0_i32_0 = arith.constant 0 : i32
    %c0_i32_1 = arith.constant 0 : i32
    return %arg0, %arg1, %c0_i32, %c0_i32_0 : i32, i32, i32, i32
  }
}

module attributes {stable_mosaic.version = 11 : i64} {
  func.func @_mm_single_kernel(%arg0: i32, %arg1: i32, %arg2: memref<1x32x384xbf16, #tpu.memory_space<vmem>>, %arg3: memref<1x384x128xbf16, #tpu.memory_space<vmem>>, %arg4: memref<1x128xf32, #tpu.memory_space<vmem>>, %arg5: memref<1x32x128xbf16, #tpu.memory_space<vmem>>, %arg6: memref<1x1x2x128xf32, #tpu.memory_space<vmem>>) attributes {dimension_semantics = [#tpu.dimension_semantics<parallel>, #tpu.dimension_semantics<parallel>], iteration_bounds = array<i64: 1, 1>, scalar_prefetch = 0 : i64, scratch_operands = 0 : i64, tpu.core_type = #tpu.core_type<tc>, window_params = [{transform_indices = @transform_0, window_bounds = array<i64: 1, 32, 384>}, {transform_indices = @transform_1, window_bounds = array<i64: 1, 384, 128>}, {pipeline_mode = #tpu.pipeline_mode<synchronous>, transform_indices = @transform_2, window_bounds = array<i64: 1, 128>}, {transform_indices = @transform_3, window_bounds = array<i64: 1, 32, 128>}, {transform_indices = @transform_4, window_bounds = array<i64: 1, 1, 2, 128>}]} {
    %c0 = arith.constant 0 : index
    %c0_0 = arith.constant 0 : index
    %c0_1 = arith.constant 0 : index
    %0 = vector.load %arg2[%c0, %c0_0, %c0_1] : memref<1x32x384xbf16, #tpu.memory_space<vmem>>, vector<1x32x384xbf16>
    %1 = vector.shape_cast %0 : vector<1x32x384xbf16> to vector<32x384xbf16>
    %c0_2 = arith.constant 0 : index
    %c0_3 = arith.constant 0 : index
    %c0_4 = arith.constant 0 : index
    %2 = vector.load %arg3[%c0_2, %c0_3, %c0_4] : memref<1x384x128xbf16, #tpu.memory_space<vmem>>, vector<1x384x128xbf16>
    %3 = vector.shape_cast %2 : vector<1x384x128xbf16> to vector<384x128xbf16>
    %cst = arith.constant dense<0.000000e+00> : vector<32x128xf32>
    %4 = tpu.matmul %1, %3, %cst {dimension_numbers = #tpu.dot_dimension_numbers<[1], [0], [0], [1], [0, 0, 1, 1], [], []>} : vector<32x384xbf16>, vector<384x128xbf16>, vector<32x128xf32> -> vector<32x128xf32>
    %c0_5 = arith.constant 0 : index
    %c0_6 = arith.constant 0 : index
    %5 = vector.load %arg4[%c0_5, %c0_6] : memref<1x128xf32, #tpu.memory_space<vmem>>, vector<1x128xf32>
    %6 = vector.broadcast %5 : vector<1x128xf32> to vector<32x128xf32>
    %7 = arith.addf %4, %6 : vector<32x128xf32>
    %cst_7 = arith.constant dense<0.000000e+00> : vector<128xf32>
    %8 = vector.multi_reduction <add>, %7, %cst_7 [0] : vector<32x128xf32> to vector<128xf32>
    %9 = vector.shape_cast %8 : vector<128xf32> to vector<1x128xf32>
    %10 = arith.mulf %7, %7 : vector<32x128xf32>
    %cst_8 = arith.constant dense<0.000000e+00> : vector<128xf32>
    %11 = vector.multi_reduction <add>, %10, %cst_8 [0] : vector<32x128xf32> to vector<128xf32>
    %12 = vector.shape_cast %11 : vector<128xf32> to vector<1x128xf32>
    %13 = tpu.concatenate %9, %12 in 0 : vector<1x128xf32>, vector<1x128xf32> -> vector<2x128xf32>
    %14 = vector.shape_cast %13 : vector<2x128xf32> to vector<1x2x128xf32>
    %c0_9 = arith.constant 0 : index
    %c0_10 = arith.constant 0 : index
    %c0_11 = arith.constant 0 : index
    %c0_12 = arith.constant 0 : index
    %15 = vector.load %arg6[%c0_9, %c0_10, %c0_11, %c0_12] : memref<1x1x2x128xf32, #tpu.memory_space<vmem>>, vector<1x1x2x128xf32>
    %16 = vector.shape_cast %15 : vector<1x1x2x128xf32> to vector<1x2x128xf32>
    %17 = vector.shape_cast %14 : vector<1x2x128xf32> to vector<1x1x2x128xf32>
    tpu.vector_store %arg6[%c0_9, %c0_10, %c0_11, %c0_12], %17 {strides = array<i32>} : memref<1x1x2x128xf32, #tpu.memory_space<vmem>>, vector<1x1x2x128xf32>,
    %18 = arith.truncf %7 : vector<32x128xf32> to vector<32x128xbf16>
    %c0_13 = arith.constant 0 : index
    %c0_14 = arith.constant 0 : index
    %c0_15 = arith.constant 0 : index
    %19 = vector.load %arg5[%c0_13, %c0_14, %c0_15] : memref<1x32x128xbf16, #tpu.memory_space<vmem>>, vector<1x32x128xbf16>
    %20 = vector.shape_cast %19 : vector<1x32x128xbf16> to vector<32x128xbf16>
    %21 = vector.shape_cast %18 : vector<32x128xbf16> to vector<1x32x128xbf16>
    tpu.vector_store %arg5[%c0_13, %c0_14, %c0_15], %21 {strides = array<i32>} : memref<1x32x128xbf16, #tpu.memory_space<vmem>>, vector<1x32x128xbf16>,
    return
  }
  func.func @transform_0(%arg0: i32, %arg1: i32) -> (i32, i32, i32) {
    %c0_i32 = arith.constant 0 : i32
    %c0_i32_0 = arith.constant 0 : i32
    return %arg0, %arg1, %c0_i32 : i32, i32, i32
  }
  func.func @transform_1(%arg0: i32, %arg1: i32) -> (i32, i32, i32) {
    %c0_i32 = arith.constant 0 : i32
    %c0_i32_0 = arith.constant 0 : i32
    %c0_i32_1 = arith.constant 0 : i32
    return %arg0, %c0_i32, %c0_i32_0 : i32, i32, i32
  }
  func.func @transform_2(%arg0: i32, %arg1: i32) -> (i32, i32) {
    %c0_i32 = arith.constant 0 : i32
    %c0_i32_0 = arith.constant 0 : i32
    %c0_i32_1 = arith.constant 0 : i32
    return %c0_i32, %c0_i32_0 : i32, i32
  }
  func.func @transform_3(%arg0: i32, %arg1: i32) -> (i32, i32, i32) {
    %c0_i32 = arith.constant 0 : i32
    %c0_i32_0 = arith.constant 0 : i32
    return %arg0, %arg1, %c0_i32 : i32, i32, i32
  }
  func.func @transform_4(%arg0: i32, %arg1: i32) -> (i32, i32, i32, i32) {
    %c0_i32 = arith.constant 0 : i32
    %c0_i32_0 = arith.constant 0 : i32
    %c0_i32_1 = arith.constant 0 : i32
    return %arg0, %arg1, %c0_i32, %c0_i32_0 : i32, i32, i32, i32
  }
}

module attributes {stable_mosaic.version = 11 : i64} {
  func.func @_affine_kernel(%arg0: i32, %arg1: i32, %arg2: memref<1x32x128xbf16, #tpu.memory_space<vmem>>, %arg3: memref<1x128xf32, #tpu.memory_space<vmem>>, %arg4: memref<1x128xf32, #tpu.memory_space<vmem>>, %arg5: memref<1x32x128xbf16, #tpu.memory_space<vmem>>) attributes {dimension_semantics = [#tpu.dimension_semantics<parallel>, #tpu.dimension_semantics<parallel>], iteration_bounds = array<i64: 1, 1>, scalar_prefetch = 0 : i64, scratch_operands = 0 : i64, tpu.core_type = #tpu.core_type<tc>, window_params = [{transform_indices = @transform_0, window_bounds = array<i64: 1, 32, 128>}, {pipeline_mode = #tpu.pipeline_mode<synchronous>, transform_indices = @transform_1, window_bounds = array<i64: 1, 128>}, {pipeline_mode = #tpu.pipeline_mode<synchronous>, transform_indices = @transform_2, window_bounds = array<i64: 1, 128>}, {transform_indices = @transform_3, window_bounds = array<i64: 1, 32, 128>}]} {
    %c0 = arith.constant 0 : index
    %c0_0 = arith.constant 0 : index
    %c0_1 = arith.constant 0 : index
    %0 = vector.load %arg2[%c0, %c0_0, %c0_1] : memref<1x32x128xbf16, #tpu.memory_space<vmem>>, vector<1x32x128xbf16>
    %1 = vector.shape_cast %0 : vector<1x32x128xbf16> to vector<32x128xbf16>
    %2 = arith.extf %1 : vector<32x128xbf16> to vector<32x128xf32>
    %c0_2 = arith.constant 0 : index
    %c0_3 = arith.constant 0 : index
    %3 = vector.load %arg3[%c0_2, %c0_3] : memref<1x128xf32, #tpu.memory_space<vmem>>, vector<1x128xf32>
    %4 = vector.broadcast %3 : vector<1x128xf32> to vector<32x128xf32>
    %5 = arith.mulf %2, %4 : vector<32x128xf32>
    %c0_4 = arith.constant 0 : index
    %c0_5 = arith.constant 0 : index
    %6 = vector.load %arg4[%c0_4, %c0_5] : memref<1x128xf32, #tpu.memory_space<vmem>>, vector<1x128xf32>
    %7 = vector.broadcast %6 : vector<1x128xf32> to vector<32x128xf32>
    %8 = arith.addf %5, %7 : vector<32x128xf32>
    %cst = arith.constant 0.000000e+00 : f32
    %9 = vector.broadcast %cst : f32 to vector<32x128xf32>
    %10 = arith.maximumf %8, %9 : vector<32x128xf32>
    %11 = arith.truncf %10 : vector<32x128xf32> to vector<32x128xbf16>
    %c0_6 = arith.constant 0 : index
    %c0_7 = arith.constant 0 : index
    %c0_8 = arith.constant 0 : index
    %12 = vector.load %arg5[%c0_6, %c0_7, %c0_8] : memref<1x32x128xbf16, #tpu.memory_space<vmem>>, vector<1x32x128xbf16>
    %13 = vector.shape_cast %12 : vector<1x32x128xbf16> to vector<32x128xbf16>
    %14 = vector.shape_cast %11 : vector<32x128xbf16> to vector<1x32x128xbf16>
    tpu.vector_store %arg5[%c0_6, %c0_7, %c0_8], %14 {strides = array<i32>} : memref<1x32x128xbf16, #tpu.memory_space<vmem>>, vector<1x32x128xbf16>,
    return
  }
  func.func @transform_0(%arg0: i32, %arg1: i32) -> (i32, i32, i32) {
    %c0_i32 = arith.constant 0 : i32
    %c0_i32_0 = arith.constant 0 : i32
    return %arg0, %arg1, %c0_i32 : i32, i32, i32
  }
  func.func @transform_1(%arg0: i32, %arg1: i32) -> (i32, i32) {
    %c0_i32 = arith.constant 0 : i32
    %c0_i32_0 = arith.constant 0 : i32
    %c0_i32_1 = arith.constant 0 : i32
    return %c0_i32, %c0_i32_0 : i32, i32
  }
  func.func @transform_2(%arg0: i32, %arg1: i32) -> (i32, i32) {
    %c0_i32 = arith.constant 0 : i32
    %c0_i32_0 = arith.constant 0 : i32
    %c0_i32_1 = arith.constant 0 : i32
    return %c0_i32, %c0_i32_0 : i32, i32
  }
  func.func @transform_3(%arg0: i32, %arg1: i32) -> (i32, i32, i32) {
    %c0_i32 = arith.constant 0 : i32
    %c0_i32_0 = arith.constant 0 : i32
    return %arg0, %arg1, %c0_i32 : i32, i32, i32
  }
}

module attributes {stable_mosaic.version = 11 : i64} {
  func.func @_affine_res_kernel(%arg0: i32, %arg1: i32, %arg2: memref<1x32x128xbf16, #tpu.memory_space<vmem>>, %arg3: memref<1x128xf32, #tpu.memory_space<vmem>>, %arg4: memref<1x128xf32, #tpu.memory_space<vmem>>, %arg5: memref<1x32x128xbf16, #tpu.memory_space<vmem>>, %arg6: memref<1x32x128xbf16, #tpu.memory_space<vmem>>) attributes {dimension_semantics = [#tpu.dimension_semantics<parallel>, #tpu.dimension_semantics<parallel>], iteration_bounds = array<i64: 1, 1>, scalar_prefetch = 0 : i64, scratch_operands = 0 : i64, tpu.core_type = #tpu.core_type<tc>, window_params = [{transform_indices = @transform_0, window_bounds = array<i64: 1, 32, 128>}, {pipeline_mode = #tpu.pipeline_mode<synchronous>, transform_indices = @transform_1, window_bounds = array<i64: 1, 128>}, {pipeline_mode = #tpu.pipeline_mode<synchronous>, transform_indices = @transform_2, window_bounds = array<i64: 1, 128>}, {transform_indices = @transform_3, window_bounds = array<i64: 1, 32, 128>}, {transform_indices = @transform_4, window_bounds = array<i64: 1, 32, 128>}]} {
    %c0 = arith.constant 0 : index
    %c0_0 = arith.constant 0 : index
    %c0_1 = arith.constant 0 : index
    %0 = vector.load %arg2[%c0, %c0_0, %c0_1] : memref<1x32x128xbf16, #tpu.memory_space<vmem>>, vector<1x32x128xbf16>
    %1 = vector.shape_cast %0 : vector<1x32x128xbf16> to vector<32x128xbf16>
    %2 = arith.extf %1 : vector<32x128xbf16> to vector<32x128xf32>
    %c0_2 = arith.constant 0 : index
    %c0_3 = arith.constant 0 : index
    %3 = vector.load %arg3[%c0_2, %c0_3] : memref<1x128xf32, #tpu.memory_space<vmem>>, vector<1x128xf32>
    %4 = vector.broadcast %3 : vector<1x128xf32> to vector<32x128xf32>
    %5 = arith.mulf %2, %4 : vector<32x128xf32>
    %c0_4 = arith.constant 0 : index
    %c0_5 = arith.constant 0 : index
    %6 = vector.load %arg4[%c0_4, %c0_5] : memref<1x128xf32, #tpu.memory_space<vmem>>, vector<1x128xf32>
    %7 = vector.broadcast %6 : vector<1x128xf32> to vector<32x128xf32>
    %8 = arith.addf %5, %7 : vector<32x128xf32>
    %c0_6 = arith.constant 0 : index
    %c0_7 = arith.constant 0 : index
    %c0_8 = arith.constant 0 : index
    %9 = vector.load %arg5[%c0_6, %c0_7, %c0_8] : memref<1x32x128xbf16, #tpu.memory_space<vmem>>, vector<1x32x128xbf16>
    %10 = vector.shape_cast %9 : vector<1x32x128xbf16> to vector<32x128xbf16>
    %11 = arith.extf %10 : vector<32x128xbf16> to vector<32x128xf32>
    %12 = arith.addf %8, %11 : vector<32x128xf32>
    %cst = arith.constant 0.000000e+00 : f32
    %13 = vector.broadcast %cst : f32 to vector<32x128xf32>
    %14 = arith.maximumf %12, %13 : vector<32x128xf32>
    %15 = arith.truncf %14 : vector<32x128xf32> to vector<32x128xbf16>
    %c0_9 = arith.constant 0 : index
    %c0_10 = arith.constant 0 : index
    %c0_11 = arith.constant 0 : index
    %16 = vector.load %arg6[%c0_9, %c0_10, %c0_11] : memref<1x32x128xbf16, #tpu.memory_space<vmem>>, vector<1x32x128xbf16>
    %17 = vector.shape_cast %16 : vector<1x32x128xbf16> to vector<32x128xbf16>
    %18 = vector.shape_cast %15 : vector<32x128xbf16> to vector<1x32x128xbf16>
    tpu.vector_store %arg6[%c0_9, %c0_10, %c0_11], %18 {strides = array<i32>} : memref<1x32x128xbf16, #tpu.memory_space<vmem>>, vector<1x32x128xbf16>,
    return
  }
  func.func @transform_0(%arg0: i32, %arg1: i32) -> (i32, i32, i32) {
    %c0_i32 = arith.constant 0 : i32
    %c0_i32_0 = arith.constant 0 : i32
    return %arg0, %arg1, %c0_i32 : i32, i32, i32
  }
  func.func @transform_1(%arg0: i32, %arg1: i32) -> (i32, i32) {
    %c0_i32 = arith.constant 0 : i32
    %c0_i32_0 = arith.constant 0 : i32
    %c0_i32_1 = arith.constant 0 : i32
    return %c0_i32, %c0_i32_0 : i32, i32
  }
  func.func @transform_2(%arg0: i32, %arg1: i32) -> (i32, i32) {
    %c0_i32 = arith.constant 0 : i32
    %c0_i32_0 = arith.constant 0 : i32
    %c0_i32_1 = arith.constant 0 : i32
    return %c0_i32, %c0_i32_0 : i32, i32
  }
  func.func @transform_3(%arg0: i32, %arg1: i32) -> (i32, i32, i32) {
    %c0_i32 = arith.constant 0 : i32
    %c0_i32_0 = arith.constant 0 : i32
    return %arg0, %arg1, %c0_i32 : i32, i32, i32
  }
  func.func @transform_4(%arg0: i32, %arg1: i32) -> (i32, i32, i32) {
    %c0_i32 = arith.constant 0 : i32
    %c0_i32_0 = arith.constant 0 : i32
    return %arg0, %arg1, %c0_i32 : i32, i32, i32
  }
}

module attributes {stable_mosaic.version = 11 : i64} {
  func.func @_affine_kernel(%arg0: i32, %arg1: i32, %arg2: memref<1x32x128xbf16, #tpu.memory_space<vmem>>, %arg3: memref<1x128xf32, #tpu.memory_space<vmem>>, %arg4: memref<1x128xf32, #tpu.memory_space<vmem>>, %arg5: memref<1x32x128xbf16, #tpu.memory_space<vmem>>) attributes {dimension_semantics = [#tpu.dimension_semantics<parallel>, #tpu.dimension_semantics<parallel>], iteration_bounds = array<i64: 4, 1>, scalar_prefetch = 0 : i64, scratch_operands = 0 : i64, tpu.core_type = #tpu.core_type<tc>, window_params = [{transform_indices = @transform_0, window_bounds = array<i64: 1, 32, 128>}, {pipeline_mode = #tpu.pipeline_mode<synchronous>, transform_indices = @transform_1, window_bounds = array<i64: 1, 128>}, {pipeline_mode = #tpu.pipeline_mode<synchronous>, transform_indices = @transform_2, window_bounds = array<i64: 1, 128>}, {transform_indices = @transform_3, window_bounds = array<i64: 1, 32, 128>}]} {
    %c0 = arith.constant 0 : index
    %c0_0 = arith.constant 0 : index
    %c0_1 = arith.constant 0 : index
    %0 = vector.load %arg2[%c0, %c0_0, %c0_1] : memref<1x32x128xbf16, #tpu.memory_space<vmem>>, vector<1x32x128xbf16>
    %1 = vector.shape_cast %0 : vector<1x32x128xbf16> to vector<32x128xbf16>
    %2 = arith.extf %1 : vector<32x128xbf16> to vector<32x128xf32>
    %c0_2 = arith.constant 0 : index
    %c0_3 = arith.constant 0 : index
    %3 = vector.load %arg3[%c0_2, %c0_3] : memref<1x128xf32, #tpu.memory_space<vmem>>, vector<1x128xf32>
    %4 = vector.broadcast %3 : vector<1x128xf32> to vector<32x128xf32>
    %5 = arith.mulf %2, %4 : vector<32x128xf32>
    %c0_4 = arith.constant 0 : index
    %c0_5 = arith.constant 0 : index
    %6 = vector.load %arg4[%c0_4, %c0_5] : memref<1x128xf32, #tpu.memory_space<vmem>>, vector<1x128xf32>
    %7 = vector.broadcast %6 : vector<1x128xf32> to vector<32x128xf32>
    %8 = arith.addf %5, %7 : vector<32x128xf32>
    %cst = arith.constant 0.000000e+00 : f32
    %9 = vector.broadcast %cst : f32 to vector<32x128xf32>
    %10 = arith.maximumf %8, %9 : vector<32x128xf32>
    %11 = arith.truncf %10 : vector<32x128xf32> to vector<32x128xbf16>
    %c0_6 = arith.constant 0 : index
    %c0_7 = arith.constant 0 : index
    %c0_8 = arith.constant 0 : index
    %12 = vector.load %arg5[%c0_6, %c0_7, %c0_8] : memref<1x32x128xbf16, #tpu.memory_space<vmem>>, vector<1x32x128xbf16>
    %13 = vector.shape_cast %12 : vector<1x32x128xbf16> to vector<32x128xbf16>
    %14 = vector.shape_cast %11 : vector<32x128xbf16> to vector<1x32x128xbf16>
    tpu.vector_store %arg5[%c0_6, %c0_7, %c0_8], %14 {strides = array<i32>} : memref<1x32x128xbf16, #tpu.memory_space<vmem>>, vector<1x32x128xbf16>,
    return
  }
  func.func @transform_0(%arg0: i32, %arg1: i32) -> (i32, i32, i32) {
    %c0_i32 = arith.constant 0 : i32
    %c0_i32_0 = arith.constant 0 : i32
    return %arg0, %arg1, %c0_i32 : i32, i32, i32
  }
  func.func @transform_1(%arg0: i32, %arg1: i32) -> (i32, i32) {
    %c0_i32 = arith.constant 0 : i32
    %c0_i32_0 = arith.constant 0 : i32
    %c0_i32_1 = arith.constant 0 : i32
    return %c0_i32, %c0_i32_0 : i32, i32
  }
  func.func @transform_2(%arg0: i32, %arg1: i32) -> (i32, i32) {
    %c0_i32 = arith.constant 0 : i32
    %c0_i32_0 = arith.constant 0 : i32
    %c0_i32_1 = arith.constant 0 : i32
    return %c0_i32, %c0_i32_0 : i32, i32
  }
  func.func @transform_3(%arg0: i32, %arg1: i32) -> (i32, i32, i32) {
    %c0_i32 = arith.constant 0 : i32
    %c0_i32_0 = arith.constant 0 : i32
    return %arg0, %arg1, %c0_i32 : i32, i32, i32
  }
}

module attributes {stable_mosaic.version = 11 : i64} {
  func.func @_mm_single_kernel(%arg0: i32, %arg1: i32, %arg2: memref<1x32x128xbf16, #tpu.memory_space<vmem>>, %arg3: memref<1x128x128xbf16, #tpu.memory_space<vmem>>, %arg4: memref<1x128xf32, #tpu.memory_space<vmem>>, %arg5: memref<1x32x128xbf16, #tpu.memory_space<vmem>>, %arg6: memref<1x1x2x128xf32, #tpu.memory_space<vmem>>) attributes {dimension_semantics = [#tpu.dimension_semantics<parallel>, #tpu.dimension_semantics<parallel>], iteration_bounds = array<i64: 4, 1>, scalar_prefetch = 0 : i64, scratch_operands = 0 : i64, tpu.core_type = #tpu.core_type<tc>, window_params = [{transform_indices = @transform_0, window_bounds = array<i64: 1, 32, 128>}, {transform_indices = @transform_1, window_bounds = array<i64: 1, 128, 128>}, {pipeline_mode = #tpu.pipeline_mode<synchronous>, transform_indices = @transform_2, window_bounds = array<i64: 1, 128>}, {transform_indices = @transform_3, window_bounds = array<i64: 1, 32, 128>}, {transform_indices = @transform_4, window_bounds = array<i64: 1, 1, 2, 128>}]} {
    %c0 = arith.constant 0 : index
    %c0_0 = arith.constant 0 : index
    %c0_1 = arith.constant 0 : index
    %0 = vector.load %arg2[%c0, %c0_0, %c0_1] : memref<1x32x128xbf16, #tpu.memory_space<vmem>>, vector<1x32x128xbf16>
    %1 = vector.shape_cast %0 : vector<1x32x128xbf16> to vector<32x128xbf16>
    %c0_2 = arith.constant 0 : index
    %c0_3 = arith.constant 0 : index
    %c0_4 = arith.constant 0 : index
    %2 = vector.load %arg3[%c0_2, %c0_3, %c0_4] : memref<1x128x128xbf16, #tpu.memory_space<vmem>>, vector<1x128x128xbf16>
    %3 = vector.shape_cast %2 : vector<1x128x128xbf16> to vector<128x128xbf16>
    %cst = arith.constant dense<0.000000e+00> : vector<32x128xf32>
    %4 = tpu.matmul %1, %3, %cst {dimension_numbers = #tpu.dot_dimension_numbers<[1], [0], [0], [1], [0, 0, 1, 1], [], []>} : vector<32x128xbf16>, vector<128x128xbf16>, vector<32x128xf32> -> vector<32x128xf32>
    %c0_5 = arith.constant 0 : index
    %c0_6 = arith.constant 0 : index
    %5 = vector.load %arg4[%c0_5, %c0_6] : memref<1x128xf32, #tpu.memory_space<vmem>>, vector<1x128xf32>
    %6 = vector.broadcast %5 : vector<1x128xf32> to vector<32x128xf32>
    %7 = arith.addf %4, %6 : vector<32x128xf32>
    %cst_7 = arith.constant dense<0.000000e+00> : vector<128xf32>
    %8 = vector.multi_reduction <add>, %7, %cst_7 [0] : vector<32x128xf32> to vector<128xf32>
    %9 = vector.shape_cast %8 : vector<128xf32> to vector<1x128xf32>
    %10 = arith.mulf %7, %7 : vector<32x128xf32>
    %cst_8 = arith.constant dense<0.000000e+00> : vector<128xf32>
    %11 = vector.multi_reduction <add>, %10, %cst_8 [0] : vector<32x128xf32> to vector<128xf32>
    %12 = vector.shape_cast %11 : vector<128xf32> to vector<1x128xf32>
    %13 = tpu.concatenate %9, %12 in 0 : vector<1x128xf32>, vector<1x128xf32> -> vector<2x128xf32>
    %14 = vector.shape_cast %13 : vector<2x128xf32> to vector<1x2x128xf32>
    %c0_9 = arith.constant 0 : index
    %c0_10 = arith.constant 0 : index
    %c0_11 = arith.constant 0 : index
    %c0_12 = arith.constant 0 : index
    %15 = vector.load %arg6[%c0_9, %c0_10, %c0_11, %c0_12] : memref<1x1x2x128xf32, #tpu.memory_space<vmem>>, vector<1x1x2x128xf32>
    %16 = vector.shape_cast %15 : vector<1x1x2x128xf32> to vector<1x2x128xf32>
    %17 = vector.shape_cast %14 : vector<1x2x128xf32> to vector<1x1x2x128xf32>
    tpu.vector_store %arg6[%c0_9, %c0_10, %c0_11, %c0_12], %17 {strides = array<i32>} : memref<1x1x2x128xf32, #tpu.memory_space<vmem>>, vector<1x1x2x128xf32>,
    %18 = arith.truncf %7 : vector<32x128xf32> to vector<32x128xbf16>
    %c0_13 = arith.constant 0 : index
    %c0_14 = arith.constant 0 : index
    %c0_15 = arith.constant 0 : index
    %19 = vector.load %arg5[%c0_13, %c0_14, %c0_15] : memref<1x32x128xbf16, #tpu.memory_space<vmem>>, vector<1x32x128xbf16>
    %20 = vector.shape_cast %19 : vector<1x32x128xbf16> to vector<32x128xbf16>
    %21 = vector.shape_cast %18 : vector<32x128xbf16> to vector<1x32x128xbf16>
    tpu.vector_store %arg5[%c0_13, %c0_14, %c0_15], %21 {strides = array<i32>} : memref<1x32x128xbf16, #tpu.memory_space<vmem>>, vector<1x32x128xbf16>,
    return
  }
  func.func @transform_0(%arg0: i32, %arg1: i32) -> (i32, i32, i32) {
    %c0_i32 = arith.constant 0 : i32
    %c0_i32_0 = arith.constant 0 : i32
    return %arg0, %arg1, %c0_i32 : i32, i32, i32
  }
  func.func @transform_1(%arg0: i32, %arg1: i32) -> (i32, i32, i32) {
    %c0_i32 = arith.constant 0 : i32
    %c0_i32_0 = arith.constant 0 : i32
    %c0_i32_1 = arith.constant 0 : i32
    return %arg0, %c0_i32, %c0_i32_0 : i32, i32, i32
  }
  func.func @transform_2(%arg0: i32, %arg1: i32) -> (i32, i32) {
    %c0_i32 = arith.constant 0 : i32
    %c0_i32_0 = arith.constant 0 : i32
    %c0_i32_1 = arith.constant 0 : i32
    return %c0_i32, %c0_i32_0 : i32, i32
  }
  func.func @transform_3(%arg0: i32, %arg1: i32) -> (i32, i32, i32) {
    %c0_i32 = arith.constant 0 : i32
    %c0_i32_0 = arith.constant 0 : i32
    return %arg0, %arg1, %c0_i32 : i32, i32, i32
  }
  func.func @transform_4(%arg0: i32, %arg1: i32) -> (i32, i32, i32, i32) {
    %c0_i32 = arith.constant 0 : i32
    %c0_i32_0 = arith.constant 0 : i32
    %c0_i32_1 = arith.constant 0 : i32
    return %arg0, %arg1, %c0_i32, %c0_i32_0 : i32, i32, i32, i32
  }
}

module attributes {stable_mosaic.version = 11 : i64} {
  func.func @_mm_single_kernel(%arg0: i32, %arg1: i32, %arg2: memref<1x256x512xbf16, #tpu.memory_space<vmem>>, %arg3: memref<1x512x128xbf16, #tpu.memory_space<vmem>>, %arg4: memref<1x128xf32, #tpu.memory_space<vmem>>, %arg5: memref<1x256x128xbf16, #tpu.memory_space<vmem>>, %arg6: memref<1x1x2x128xf32, #tpu.memory_space<vmem>>) attributes {dimension_semantics = [#tpu.dimension_semantics<parallel>, #tpu.dimension_semantics<parallel>], iteration_bounds = array<i64: 1, 2>, scalar_prefetch = 0 : i64, scratch_operands = 0 : i64, tpu.core_type = #tpu.core_type<tc>, window_params = [{transform_indices = @transform_0, window_bounds = array<i64: 1, 256, 512>}, {transform_indices = @transform_1, window_bounds = array<i64: 1, 512, 128>}, {pipeline_mode = #tpu.pipeline_mode<synchronous>, transform_indices = @transform_2, window_bounds = array<i64: 1, 128>}, {transform_indices = @transform_3, window_bounds = array<i64: 1, 256, 128>}, {transform_indices = @transform_4, window_bounds = array<i64: 1, 1, 2, 128>}]} {
    %c0 = arith.constant 0 : index
    %c0_0 = arith.constant 0 : index
    %c0_1 = arith.constant 0 : index
    %0 = vector.load %arg2[%c0, %c0_0, %c0_1] : memref<1x256x512xbf16, #tpu.memory_space<vmem>>, vector<1x256x512xbf16>
    %1 = vector.shape_cast %0 : vector<1x256x512xbf16> to vector<256x512xbf16>
    %c0_2 = arith.constant 0 : index
    %c0_3 = arith.constant 0 : index
    %c0_4 = arith.constant 0 : index
    %2 = vector.load %arg3[%c0_2, %c0_3, %c0_4] : memref<1x512x128xbf16, #tpu.memory_space<vmem>>, vector<1x512x128xbf16>
    %3 = vector.shape_cast %2 : vector<1x512x128xbf16> to vector<512x128xbf16>
    %cst = arith.constant dense<0.000000e+00> : vector<256x128xf32>
    %4 = tpu.matmul %1, %3, %cst {dimension_numbers = #tpu.dot_dimension_numbers<[1], [0], [0], [1], [0, 0, 1, 1], [], []>} : vector<256x512xbf16>, vector<512x128xbf16>, vector<256x128xf32> -> vector<256x128xf32>
    %c0_5 = arith.constant 0 : index
    %c0_6 = arith.constant 0 : index
    %5 = vector.load %arg4[%c0_5, %c0_6] : memref<1x128xf32, #tpu.memory_space<vmem>>, vector<1x128xf32>
    %6 = vector.broadcast %5 : vector<1x128xf32> to vector<256x128xf32>
    %7 = arith.addf %4, %6 : vector<256x128xf32>
    %cst_7 = arith.constant dense<0.000000e+00> : vector<128xf32>
    %8 = vector.multi_reduction <add>, %7, %cst_7 [0] : vector<256x128xf32> to vector<128xf32>
    %9 = vector.shape_cast %8 : vector<128xf32> to vector<1x128xf32>
    %10 = arith.mulf %7, %7 : vector<256x128xf32>
    %cst_8 = arith.constant dense<0.000000e+00> : vector<128xf32>
    %11 = vector.multi_reduction <add>, %10, %cst_8 [0] : vector<256x128xf32> to vector<128xf32>
    %12 = vector.shape_cast %11 : vector<128xf32> to vector<1x128xf32>
    %13 = tpu.concatenate %9, %12 in 0 : vector<1x128xf32>, vector<1x128xf32> -> vector<2x128xf32>
    %14 = vector.shape_cast %13 : vector<2x128xf32> to vector<1x2x128xf32>
    %c0_9 = arith.constant 0 : index
    %c0_10 = arith.constant 0 : index
    %c0_11 = arith.constant 0 : index
    %c0_12 = arith.constant 0 : index
    %15 = vector.load %arg6[%c0_9, %c0_10, %c0_11, %c0_12] : memref<1x1x2x128xf32, #tpu.memory_space<vmem>>, vector<1x1x2x128xf32>
    %16 = vector.shape_cast %15 : vector<1x1x2x128xf32> to vector<1x2x128xf32>
    %17 = vector.shape_cast %14 : vector<1x2x128xf32> to vector<1x1x2x128xf32>
    tpu.vector_store %arg6[%c0_9, %c0_10, %c0_11, %c0_12], %17 {strides = array<i32>} : memref<1x1x2x128xf32, #tpu.memory_space<vmem>>, vector<1x1x2x128xf32>,
    %18 = math.tanh %7 : vector<256x128xf32>
    %19 = math.tanh %18 : vector<256x128xf32>
    %20 = arith.truncf %19 : vector<256x128xf32> to vector<256x128xbf16>
    %c0_13 = arith.constant 0 : index
    %c0_14 = arith.constant 0 : index
    %c0_15 = arith.constant 0 : index
    %21 = vector.load %arg5[%c0_13, %c0_14, %c0_15] : memref<1x256x128xbf16, #tpu.memory_space<vmem>>, vector<1x256x128xbf16>
    %22 = vector.shape_cast %21 : vector<1x256x128xbf16> to vector<256x128xbf16>
    %23 = vector.shape_cast %20 : vector<256x128xbf16> to vector<1x256x128xbf16>
    tpu.vector_store %arg5[%c0_13, %c0_14, %c0_15], %23 {strides = array<i32>} : memref<1x256x128xbf16, #tpu.memory_space<vmem>>, vector<1x256x128xbf16>,
    return
  }
  func.func @transform_0(%arg0: i32, %arg1: i32) -> (i32, i32, i32) {
    %c0_i32 = arith.constant 0 : i32
    %c0_i32_0 = arith.constant 0 : i32
    return %arg0, %arg1, %c0_i32 : i32, i32, i32
  }
  func.func @transform_1(%arg0: i32, %arg1: i32) -> (i32, i32, i32) {
    %c0_i32 = arith.constant 0 : i32
    %c0_i32_0 = arith.constant 0 : i32
    %c0_i32_1 = arith.constant 0 : i32
    return %arg0, %c0_i32, %c0_i32_0 : i32, i32, i32
  }
  func.func @transform_2(%arg0: i32, %arg1: i32) -> (i32, i32) {
    %c0_i32 = arith.constant 0 : i32
    %c0_i32_0 = arith.constant 0 : i32
    %c0_i32_1 = arith.constant 0 : i32
    return %c0_i32, %c0_i32_0 : i32, i32
  }
  func.func @transform_3(%arg0: i32, %arg1: i32) -> (i32, i32, i32) {
    %c0_i32 = arith.constant 0 : i32
    %c0_i32_0 = arith.constant 0 : i32
    return %arg0, %arg1, %c0_i32 : i32, i32, i32
  }
  func.func @transform_4(%arg0: i32, %arg1: i32) -> (i32, i32, i32, i32) {
    %c0_i32 = arith.constant 0 : i32
    %c0_i32_0 = arith.constant 0 : i32
    %c0_i32_1 = arith.constant 0 : i32
    return %arg0, %arg1, %c0_i32, %c0_i32_0 : i32, i32, i32, i32
  }
}

</mosaic_0001>

<llo_original>
// kernel: g_net_forward.50
$region0: #{g_net_forward.50}
  #allocation0 [shape = 'u32[]', space=smem, size = 0x4, offset = 0x4, fixed_abs, tag = 'smem constant byte address 0x4 - core index']
  #allocation1 [shape = 'u32[144,128]{1,0:T(1,128)}', space=vmem, size = 0x12000, scoped, tag = 'internal scratch']
  %s0 = inlined_call_operand.vmem [shape: bf16[4,128,128], index: 0, kind: input, shape index: {}]
  %s1 = inlined_call_operand.vmem [shape: f32[1,128], index: 1, kind: input, shape index: {}]
  %s2 = inlined_call_operand.vmem [shape: f32[1,128], index: 2, kind: input, shape index: {}]
  %s3 = inlined_call_operand.vmem [shape: bf16[4,128,128], index: 3, kind: output, shape index: {}]
  %s4 = sld [smem:[#allocation0]]
  $region45: #{g_net_forward.50} parent=0
    _
  %s6 = ssub.s32 1, %s4
  %s7 = scalar_select 0, %s6, %s4
  loop: start=0, step=1, limit=6
  $region2: #{g_net_forward.50} parent=0 // loop_pre_header
    _
  $region3: #{g_net_forward.50} parent=0 // loop_header
    %s9 = sphi 0, %s13
    %p10 = scmp.ge.s32.totalorder %s9, 6
    %s16 = sphi 0, %s28
    %s17 = sphi 0, %s24
    %s18 = sphi 0, %s16
    %s19 = sphi 0, %s17
    %s20 = sphi 0, %s18
    %s21 = sphi 0, %s19
    %s33 = sphi 0, %s35
    %s36 = sphi 0, %s33
    %s37 = sphi 0, %s36
    %s53 = sphi 0, %s37
    %s57 = sphi 0, %s57
    %s59 = sphi 0, %s57
    %s60 = sphi 0, %s59
    %s74 = sphi 0, %s60
    %s78 = sphi 0, %s78
    %s80 = sphi 0, %s78
    %s81 = sphi 0, %s80
    %s95 = sphi 0, %s81
    %s103 = sphi 0, %s105
    %s106 = sphi 0, %s103
    %s107 = sphi 0, %s106
    %s123 = sphi 0, %s107
  $region4: #{g_net_forward.50} parent=0 // loop_header_branch
    %12 = sbr.rel (%p10) target = $region8
  $region5: #{g_net_forward.50} parent=0 // loop_body
    %s14 = ssub.s32 %s9, 1
    %s15 = ssub.s32 %s9, 2
    %s22 = sadd.s32 1, %s17
    %p23 = scmp.ge.s32.totalorder %s22, 1
    %s24 = scalar_select %p23, 0, %s22
    %s25 = sadd.s32 1, %s16
    %s26 = scalar_select %p23, %s25, %s16
    %p27 = scmp.ge.s32.totalorder %s26, 4
    %s28 = scalar_select %p27, 0, %s26
    %s29 = ssub.s32 %s16, %s28
    %s30 = ssub.s32 %s17, %s24
    %s31 = sor.u32 %s29, %s30
    %p32 = scmp.eq.s32.totalorder %s31, 0
    %s34 = sadd.s32 %s33, 1
    %s35 = scalar_select %p32, %s33, %s34
    %p38 = pneg %p32
    %p39 = scmp.eq.s32.totalorder %s9, 3
    %p40 = por %p38, %p39
    %p41 = scmp.ne.s32.totalorder %s33, %s36
    %p42 = scmp.eq.s32.totalorder %s9, 0
    %p43 = por %p41, %p42
    %p44 = scmp.ne.s32.totalorder %s33, %s36
    %p45 = scmp.eq.s32.totalorder %s14, 3
    %p46 = por %p44, %p45
    %p47 = scmp.ne.s32.totalorder %s36, %s37
    %p48 = scmp.eq.s32.totalorder %s14, 0
    %p49 = por %p47, %p48
    %p50 = scmp.ne.s32.totalorder %s36, %s37
    %p51 = scmp.eq.s32.totalorder %s15, 3
    %p52 = por %p50, %p51
    %p54 = scmp.ne.s32.totalorder %s37, %s53
    %p55 = scmp.eq.s32.totalorder %s15, 0
    %p56 = por %p54, %p55
    %s58 = sadd.s32 %s57, 1
    %p61 = scmp.eq.s32.totalorder %s9, 3
    %p62 = scmp.ne.s32.totalorder %s57, %s59
    %p63 = scmp.eq.s32.totalorder %s9, 0
    %p64 = por %p62, %p63
    %p65 = scmp.ne.s32.totalorder %s57, %s59
    %p66 = scmp.eq.s32.totalorder %s14, 3
    %p67 = por %p65, %p66
    %p68 = scmp.ne.s32.totalorder %s59, %s60
    %p69 = scmp.eq.s32.totalorder %s14, 0
    %p70 = por %p68, %p69
    %p71 = scmp.ne.s32.totalorder %s59, %s60
    %p72 = scmp.eq.s32.totalorder %s15, 3
    %p73 = por %p71, %p72
    %p75 = scmp.ne.s32.totalorder %s60, %s74
    %p76 = scmp.eq.s32.totalorder %s15, 0
    %p77 = por %p75, %p76
    %s79 = sadd.s32 %s78, 1
    %p82 = scmp.eq.s32.totalorder %s9, 3
    %p83 = scmp.ne.s32.totalorder %s78, %s80
    %p84 = scmp.eq.s32.totalorder %s9, 0
    %p85 = por %p83, %p84
    %p86 = scmp.ne.s32.totalorder %s78, %s80
    %p87 = scmp.eq.s32.totalorder %s14, 3
    %p88 = por %p86, %p87
    %p89 = scmp.ne.s32.totalorder %s80, %s81
    %p90 = scmp.eq.s32.totalorder %s14, 0
    %p91 = por %p89, %p90
    %p92 = scmp.ne.s32.totalorder %s80, %s81
    %p93 = scmp.eq.s32.totalorder %s15, 3
    %p94 = por %p92, %p93
    %p96 = scmp.ne.s32.totalorder %s81, %s95
    %p97 = scmp.eq.s32.totalorder %s15, 0
    %p98 = por %p96, %p97
    %s99 = ssub.s32 %s16, %s28
    %s100 = ssub.s32 %s17, %s24
    %s101 = sor.u32 %s99, %s100
    %p102 = scmp.eq.s32.totalorder %s101, 0
    %s104 = sadd.s32 %s103, 1
    %s105 = scalar_select %p102, %s103, %s104
    %p108 = pneg %p102
    %p109 = scmp.eq.s32.totalorder %s9, 3
    %p110 = por %p108, %p109
    %p111 = scmp.ne.s32.totalorder %s103, %s106
    %p112 = scmp.eq.s32.totalorder %s9, 0
    %p113 = por %p111, %p112
    %p114 = scmp.ne.s32.totalorder %s103, %s106
    %p115 = scmp.eq.s32.totalorder %s14, 3
    %p116 = por %p114, %p115
    %p117 = scmp.ne.s32.totalorder %s106, %s107
    %p118 = scmp.eq.s32.totalorder %s14, 0
    %p119 = por %p117, %p118
    %p120 = scmp.ne.s32.totalorder %s106, %s107
    %p121 = scmp.eq.s32.totalorder %s15, 3
    %p122 = por %p120, %p121
    %p124 = scmp.ne.s32.totalorder %s107, %s123
    %p125 = scmp.eq.s32.totalorder %s15, 0
    %p126 = por %p124, %p125
    %p127 = scmp.le.s32.totalorder 1, %s9
    %p128 = scmp.lt.s32.totalorder %s9, 5
    %p129 = pnand %p127, %p128
    %p130 = pneg %p129
    // Predicated region
    $region9: #{g_net_forward.50} parent=5 // pred_check
      _
    $region10: #{g_net_forward.50} parent=5 // pred_check_branch
      %132 = sbr.rel (%p129) target = $region12
    $region11: #{g_net_forward.50} parent=5 // pred_region
      %s133 = ssub.s32 %s9, 1
      // Predicated region
      $region13: #{g_net_forward.50} parent=11 // pred_check
        %p134 = pneg %p70
      $region14: #{g_net_forward.50} parent=11 // pred_check_branch
        %136 = sbr.rel (%p134) target = $region16
      $region15: #{g_net_forward.50} parent=11 // pred_region
        _
      $region16: #{g_net_forward.50} parent=11 // pred_fallthru
        _
      // Predicated region
      $region17: #{g_net_forward.50} parent=11 // pred_check
        %p137 = pneg %p91
      $region18: #{g_net_forward.50} parent=11 // pred_check_branch
        %139 = sbr.rel (%p137) target = $region20
      $region19: #{g_net_forward.50} parent=11 // pred_region
        _
      $region20: #{g_net_forward.50} parent=11 // pred_fallthru
        _
    $region12: #{g_net_forward.50} parent=5 // pred_fallthru
      _
    %p140 = scmp.lt.s32.totalorder %s9, 4
    // Predicated region
    $region21: #{g_net_forward.50} parent=5 // pred_check
      %p141 = pneg %p140
    $region22: #{g_net_forward.50} parent=5 // pred_check_branch
      %143 = sbr.rel (%p141) target = $region24
    $region23: #{g_net_forward.50} parent=5 // pred_region
      // Predicated region
      $region25: #{g_net_forward.50} parent=23 // pred_check
        %p144 = pneg %p43
      $region26: #{g_net_forward.50} parent=23 // pred_check_branch
        %146 = sbr.rel (%p144) target = $region28
      $region27: #{g_net_forward.50} parent=23 // pred_region
        %s147 = smul.u32 16, %s17
        %p148 = scmp.lt.s32.totalorder %s16, 3
        %s149 = scalar_select %p148, %s16, 3
        %p150 = scmp.lt.s32.totalorder %s147, 15
        %s151 = scalar_select %p150, %s147, 15
        %s152 = smul.addr %s149, 16
        %s153 = sadd.s32 %s151, %s152
        %s154 = smul.addr %s153, 4
        %s155 = scalar_lea.vmem %s0, %s154
        %s156 = smul.u32 16, %s17
      $region28: #{g_net_forward.50} parent=23 // pred_fallthru
        _
    $region24: #{g_net_forward.50} parent=5 // pred_fallthru
      _
    %p157 = scmp.le.s32.totalorder 1, %s9
    %p158 = scmp.lt.s32.totalorder %s9, 5
    %p159 = pnand %p157, %p158
    %p160 = pneg %p159
    // Predicated region
    $region29: #{g_net_forward.50} parent=5 // pred_check
      _
    $region30: #{g_net_forward.50} parent=5 // pred_check_branch
      %162 = sbr.rel (%p159) target = $region32
    $region31: #{g_net_forward.50} parent=5 // pred_region
      %s163 = ssub.s32 %s9, 1
      %s164 = smul.u32 16, %s19
      %p165 = scmp.lt.s32.totalorder %s18, 3
      %s166 = scalar_select %p165, %s18, 3
      %p167 = scmp.lt.s32.totalorder %s164, 15
      %s168 = scalar_select %p167, %s164, 15
      %s169 = smul.addr %s166, 16
      %s170 = sadd.s32 %s168, %s169
      %s171 = smul.addr %s170, 4
      %s172 = scalar_lea.vmem %s0, %s171
      %p173 = pneg %p49
      %p174 = pneg %p46
      %p175 = pneg %p70
      %p176 = pneg %p67
      %p177 = pneg %p91
      %p178 = pneg %p88
      %p179 = pneg %p119
      %p180 = pneg %p116
      %s181 = smul.u32 16, %s19
      %p182 = scmp.lt.s32.totalorder %s18, 3
      %s183 = scalar_select %p182, %s18, 3
      %p184 = scmp.lt.s32.totalorder %s181, 15
      %s185 = scalar_select %p184, %s181, 15
      %s186 = smul.addr %s183, 16
      %s187 = sadd.s32 %s185, %s186
      %s188 = smul.addr %s187, 4
      %s189 = scalar_lea.vmem %s3, %s188
      %s190 = smul.u32 16, %s19
      %p191 = scmp.lt.s32.totalorder %s18, 3
      %s192 = scalar_select %p191, %s18, 3
      %p193 = scmp.lt.s32.totalorder %s190, 15
      %s194 = scalar_select %p193, %s190, 15
      %s195 = smul.addr %s192, 16
      %s196 = sadd.s32 %s194, %s195
      %s197 = smul.addr %s196, 4
      %s198 = scalar_lea.vmem %s0, %s197
      %s199 = smul.u32 16, %s19
      %s200 = smul.u32 16, %s19
      %p201 = scmp.lt.s32.totalorder %s18, 3
      %s202 = scalar_select %p201, %s18, 3
      %p203 = scmp.lt.s32.totalorder %s200, 15
      %s204 = scalar_select %p203, %s200, 15
      %s205 = smul.addr %s202, 16
      %s206 = sadd.s32 %s204, %s205
      %s207 = smul.addr %s206, 4
      %s208 = scalar_lea.vmem %s3, %s207
      %s209 = smul.u32 16, %s19
      %v210 = vld [vmem:[%s198] sm:$0xf]
      %v211 = vld [vmem:[%s198 + $0x4] sm:$0xf]
      %v212 = vld [vmem:[%s198 + $0x8] sm:$0xf]
      %v213 = vld [vmem:[%s198 + $0xc] sm:$0xf]
      %v214 = vld [vmem:[%s198 + $0x10] sm:$0xf]
      %v215 = vld [vmem:[%s198 + $0x14] sm:$0xf]
      %v216 = vld [vmem:[%s198 + $0x18] sm:$0xf]
      %v217 = vld [vmem:[%s198 + $0x1c] sm:$0xf]
      %v218 = vld [vmem:[%s198 + $0x20] sm:$0xf]
      %v219 = vld [vmem:[%s198 + $0x24] sm:$0xf]
      %v220 = vld [vmem:[%s198 + $0x28] sm:$0xf]
      %v221 = vld [vmem:[%s198 + $0x2c] sm:$0xf]
      %v222 = vld [vmem:[%s198 + $0x30] sm:$0xf]
      %v223 = vld [vmem:[%s198 + $0x34] sm:$0xf]
      %v224 = vld [vmem:[%s198 + $0x38] sm:$0xf]
      %v225 = vld [vmem:[%s198 + $0x3c] sm:$0xf]
      %v226 = vunpack.c.l.bf16 %v210
      %v227 = vunpack.c.l.bf16 %v211
      %v228 = vunpack.c.l.bf16 %v212
      %v229 = vunpack.c.l.bf16 %v213
      %v230 = vunpack.c.l.bf16 %v214
      %v231 = vunpack.c.l.bf16 %v215
      %v232 = vunpack.c.l.bf16 %v216
      %v233 = vunpack.c.l.bf16 %v217
      %v234 = vunpack.c.l.bf16 %v218
      %v235 = vunpack.c.l.bf16 %v219
      %v236 = vunpack.c.l.bf16 %v220
      %v237 = vunpack.c.l.bf16 %v221
      %v238 = vunpack.c.l.bf16 %v222
      %v239 = vunpack.c.l.bf16 %v223
      %v240 = vunpack.c.l.bf16 %v224
      %v241 = vunpack.c.l.bf16 %v225
      %v242 = vld [vmem:[%s1] sm:$0x1]
      %v244 = vlaneseq
      %v245 = vshrl.u32 %v244, 7
      %v246 = vsub.s32 0, %v245
      %v247 = vrot.slane %v242, %v246
      %v249 = vmul.f32 %v226, %v247
      %v250 = vmul.f32 %v227, %v247
      %v251 = vmul.f32 %v228, %v247
      %v252 = vmul.f32 %v229, %v247
      %v253 = vmul.f32 %v230, %v247
      %v254 = vmul.f32 %v231, %v247
      %v255 = vmul.f32 %v232, %v247
      %v256 = vmul.f32 %v233, %v247
      %v257 = vmul.f32 %v234, %v247
      %v258 = vmul.f32 %v235, %v247
      %v259 = vmul.f32 %v236, %v247
      %v260 = vmul.f32 %v237, %v247
      %v261 = vmul.f32 %v238, %v247
      %v262 = vmul.f32 %v239, %v247
      %v263 = vmul.f32 %v240, %v247
      %v264 = vmul.f32 %v241, %v247
      %v265 = vld [vmem:[%s2] sm:$0x1]
      %v267 = vlaneseq
      %v268 = vshrl.u32 %v267, 7
      %v269 = vsub.s32 0, %v268
      %v270 = vrot.slane %v265, %v269
      %v272 = vadd.f32 %v249, %v270
      %v273 = vadd.f32 %v250, %v270
      %v274 = vadd.f32 %v251, %v270
      %v275 = vadd.f32 %v252, %v270
      %v276 = vadd.f32 %v253, %v270
      %v277 = vadd.f32 %v254, %v270
      %v278 = vadd.f32 %v255, %v270
      %v279 = vadd.f32 %v256, %v270
      %v280 = vadd.f32 %v257, %v270
      %v281 = vadd.f32 %v258, %v270
      %v282 = vadd.f32 %v259, %v270
      %v283 = vadd.f32 %v260, %v270
      %v284 = vadd.f32 %v261, %v270
      %v285 = vadd.f32 %v262, %v270
      %v286 = vadd.f32 %v263, %v270
      %v287 = vadd.f32 %v264, %v270
      %v288 = vmax.f32 %v272, 0.0
      %v289 = vmax.f32 %v273, 0.0
      %v290 = vmax.f32 %v274, 0.0
      %v291 = vmax.f32 %v275, 0.0
      %v292 = vmax.f32 %v276, 0.0
      %v293 = vmax.f32 %v277, 0.0
      %v294 = vmax.f32 %v278, 0.0
      %v295 = vmax.f32 %v279, 0.0
      %v296 = vmax.f32 %v280, 0.0
      %v297 = vmax.f32 %v281, 0.0
      %v298 = vmax.f32 %v282, 0.0
      %v299 = vmax.f32 %v283, 0.0
      %v300 = vmax.f32 %v284, 0.0
      %v301 = vmax.f32 %v285, 0.0
      %v302 = vmax.f32 %v286, 0.0
      %v303 = vmax.f32 %v287, 0.0
      %v304 = vpack.c.bf16 %v289, %v288
      %v305 = vpack.c.bf16 %v291, %v290
      %v306 = vpack.c.bf16 %v293, %v292
      %v307 = vpack.c.bf16 %v295, %v294
      %v308 = vpack.c.bf16 %v297, %v296
      %v309 = vpack.c.bf16 %v299, %v298
      %v310 = vpack.c.bf16 %v301, %v300
      %v311 = vpack.c.bf16 %v303, %v302
      %v320 = vunpack.c.l.b16 %v304
      %v321 = vunpack.c.h.b16 %v304
      %v322 = vunpack.c.l.b16 %v305
      %v323 = vunpack.c.h.b16 %v305
      %v324 = vunpack.c.l.b16 %v306
      %v325 = vunpack.c.h.b16 %v306
      %v326 = vunpack.c.l.b16 %v307
      %v327 = vunpack.c.h.b16 %v307
      %v328 = vunpack.c.l.b16 %v308
      %v329 = vunpack.c.h.b16 %v308
      %v330 = vunpack.c.l.b16 %v309
      %v331 = vunpack.c.h.b16 %v309
      %v332 = vunpack.c.l.b16 %v310
      %v333 = vunpack.c.h.b16 %v310
      %v334 = vunpack.c.l.b16 %v311
      %v335 = vunpack.c.h.b16 %v311
      %v336 = vpack.c.b16 %v320, %v320
      %v337 = vpack.c.b16 %v321, %v321
      %v338 = vpack.c.b16 %v322, %v322
      %v339 = vpack.c.b16 %v323, %v323
      %v340 = vpack.c.b16 %v324, %v324
      %v341 = vpack.c.b16 %v325, %v325
      %v342 = vpack.c.b16 %v326, %v326
      %v343 = vpack.c.b16 %v327, %v327
      %v344 = vpack.c.b16 %v328, %v328
      %v345 = vpack.c.b16 %v329, %v329
      %v346 = vpack.c.b16 %v330, %v330
      %v347 = vpack.c.b16 %v331, %v331
      %v348 = vpack.c.b16 %v332, %v332
      %v349 = vpack.c.b16 %v333, %v333
      %v350 = vpack.c.b16 %v334, %v334
      %v351 = vpack.c.b16 %v335, %v335
      %368 = vst [vmem:[%s208] sm:$0xf] %v336
      %369 = vst [vmem:[%s208 + $0x4] sm:$0xf] %v337
      %370 = vst [vmem:[%s208 + $0x8] sm:$0xf] %v338
      %371 = vst [vmem:[%s208 + $0xc] sm:$0xf] %v339
      %372 = vst [vmem:[%s208 + $0x10] sm:$0xf] %v340
      %373 = vst [vmem:[%s208 + $0x14] sm:$0xf] %v341
      %374 = vst [vmem:[%s208 + $0x18] sm:$0xf] %v342
      %375 = vst [vmem:[%s208 + $0x1c] sm:$0xf] %v343
      %376 = vst [vmem:[%s208 + $0x20] sm:$0xf] %v344
      %377 = vst [vmem:[%s208 + $0x24] sm:$0xf] %v345
      %378 = vst [vmem:[%s208 + $0x28] sm:$0xf] %v346
      %379 = vst [vmem:[%s208 + $0x2c] sm:$0xf] %v347
      %380 = vst [vmem:[%s208 + $0x30] sm:$0xf] %v348
      %381 = vst [vmem:[%s208 + $0x34] sm:$0xf] %v349
      %382 = vst [vmem:[%s208 + $0x38] sm:$0xf] %v350
      %383 = vst [vmem:[%s208 + $0x3c] sm:$0xf] %v351
      %s384 = smul.u32 16, %s19
      %p385 = scmp.lt.s32.totalorder %s18, 3
      %s386 = scalar_select %p385, %s18, 3
      %p387 = scmp.lt.s32.totalorder %s384, 15
      %s388 = scalar_select %p387, %s384, 15
      %s389 = smul.addr %s386, 16
      %s390 = sadd.s32 %s388, %s389
      %s391 = smul.addr %s390, 4
      %s392 = scalar_lea.vmem %s3, %s391
      // Predicated region
      $region33: #{g_net_forward.50} parent=31 // pred_check
        %p393 = pneg %p116
      $region34: #{g_net_forward.50} parent=31 // pred_check_branch
        %395 = sbr.rel (%p393) target = $region36
      $region35: #{g_net_forward.50} parent=31 // pred_region
        %s396 = smul.u32 16, %s19
      $region36: #{g_net_forward.50} parent=31 // pred_fallthru
        _
    $region32: #{g_net_forward.50} parent=5 // pred_fallthru
      _
    %p397 = scmp.le.s32.totalorder 2, %s9
    // Predicated region
    $region37: #{g_net_forward.50} parent=5 // pred_check
      %p398 = pneg %p397
    $region38: #{g_net_forward.50} parent=5 // pred_check_branch
      %400 = sbr.rel (%p398) target = $region40
    $region39: #{g_net_forward.50} parent=5 // pred_region
      %s401 = ssub.s32 %s9, 2
      // Predicated region
      $region41: #{g_net_forward.50} parent=39 // pred_check
        %p402 = pneg %p122
      $region42: #{g_net_forward.50} parent=39 // pred_check_branch
        %404 = sbr.rel (%p402) target = $region44
      $region43: #{g_net_forward.50} parent=39 // pred_region
        %s405 = smul.u32 16, %s21
        %p406 = scmp.lt.s32.totalorder %s20, 3
        %s407 = scalar_select %p406, %s20, 3
        %p408 = scmp.lt.s32.totalorder %s405, 15
        %s409 = scalar_select %p408, %s405, 15
        %s410 = smul.addr %s407, 16
        %s411 = sadd.s32 %s409, %s410
        %s412 = smul.addr %s411, 4
        %s413 = scalar_lea.vmem %s3, %s412
      $region44: #{g_net_forward.50} parent=39 // pred_fallthru
        _
    $region40: #{g_net_forward.50} parent=5 // pred_fallthru
      _
  $region6: #{g_net_forward.50} parent=0 // loop_footer
    %s13 = sadd.s32 1, %s9
  $region7: #{g_net_forward.50} parent=0 // loop_footer_branch
    %8 = sbr.rel target = $region3
  $region8: #{g_net_forward.50} parent=0 // loop_exit
    _

// kernel: g_net_forward.49
$region0: #{g_net_forward.49}
  #allocation0 [shape = 'u32[]', space=smem, size = 0x4, offset = 0x4, fixed_abs, tag = 'smem constant byte address 0x4 - core index']
  #allocation1 [shape = 'u32[144,128]{1,0:T(1,128)}', space=vmem, size = 0x12000, scoped, tag = 'internal scratch']
  %s0 = inlined_call_operand.vmem [shape: bf16[4,128,128], index: 0, kind: input, shape index: {}]
  %s1 = inlined_call_operand.vmem [shape: bf16[4,128,128], index: 1, kind: input, shape index: {}]
  %s2 = inlined_call_operand.vmem [shape: f32[1,128], index: 2, kind: input, shape index: {}]
  %s3 = inlined_call_operand.vmem [shape: bf16[4,128,128], index: 3, kind: output, shape index: {0}]
  %s4 = inlined_call_operand.vmem [shape: f32[4,1,2,128], index: 4, kind: output, shape index: {1}]
  %5 = xla_tuple %s3, %s4
  %s6 = sld [smem:[#allocation0]]
  $region53: #{g_net_forward.49} parent=0
    _
  %s8 = ssub.s32 1, %s6
  %s9 = scalar_select 0, %s8, %s6
  loop: start=0, step=1, limit=6
  $region2: #{g_net_forward.49} parent=0 // loop_pre_header
    _
  $region3: #{g_net_forward.49} parent=0 // loop_header
    %s11 = sphi 0, %s15
    %p12 = scmp.ge.s32.totalorder %s11, 6
    %s18 = sphi 0, %s30
    %s19 = sphi 0, %s26
    %s20 = sphi 0, %s18
    %s21 = sphi 0, %s19
    %s22 = sphi 0, %s20
    %s23 = sphi 0, %s21
    %s35 = sphi 0, %s37
    %s38 = sphi 0, %s35
    %s39 = sphi 0, %s38
    %s55 = sphi 0, %s39
    %s61 = sphi 0, %s63
    %s64 = sphi 0, %s61
    %s65 = sphi 0, %s64
    %s81 = sphi 0, %s65
    %s85 = sphi 0, %s85
    %s87 = sphi 0, %s85
    %s88 = sphi 0, %s87
    %s102 = sphi 0, %s88
    %s110 = sphi 0, %s112
    %s113 = sphi 0, %s110
    %s114 = sphi 0, %s113
    %s130 = sphi 0, %s114
    %s138 = sphi 0, %s140
    %s141 = sphi 0, %s138
    %s142 = sphi 0, %s141
    %s158 = sphi 0, %s142
  $region4: #{g_net_forward.49} parent=0 // loop_header_branch
    %14 = sbr.rel (%p12) target = $region8
  $region5: #{g_net_forward.49} parent=0 // loop_body
    %s16 = ssub.s32 %s11, 1
    %s17 = ssub.s32 %s11, 2
    %s24 = sadd.s32 1, %s19
    %p25 = scmp.ge.s32.totalorder %s24, 1
    %s26 = scalar_select %p25, 0, %s24
    %s27 = sadd.s32 1, %s18
    %s28 = scalar_select %p25, %s27, %s18
    %p29 = scmp.ge.s32.totalorder %s28, 4
    %s30 = scalar_select %p29, 0, %s28
    %s31 = ssub.s32 %s18, %s30
    %s32 = ssub.s32 %s19, %s26
    %s33 = sor.u32 %s31, %s32
    %p34 = scmp.eq.s32.totalorder %s33, 0
    %s36 = sadd.s32 %s35, 1
    %s37 = scalar_select %p34, %s35, %s36
    %p40 = pneg %p34
    %p41 = scmp.eq.s32.totalorder %s11, 3
    %p42 = por %p40, %p41
    %p43 = scmp.ne.s32.totalorder %s35, %s38
    %p44 = scmp.eq.s32.totalorder %s11, 0
    %p45 = por %p43, %p44
    %p46 = scmp.ne.s32.totalorder %s35, %s38
    %p47 = scmp.eq.s32.totalorder %s16, 3
    %p48 = por %p46, %p47
    %p49 = scmp.ne.s32.totalorder %s38, %s39
    %p50 = scmp.eq.s32.totalorder %s16, 0
    %p51 = por %p49, %p50
    %p52 = scmp.ne.s32.totalorder %s38, %s39
    %p53 = scmp.eq.s32.totalorder %s17, 3
    %p54 = por %p52, %p53
    %p56 = scmp.ne.s32.totalorder %s39, %s55
    %p57 = scmp.eq.s32.totalorder %s17, 0
    %p58 = por %p56, %p57
    %s59 = ssub.s32 %s18, %s30
    %p60 = scmp.eq.s32.totalorder %s59, 0
    %s62 = sadd.s32 %s61, 1
    %s63 = scalar_select %p60, %s61, %s62
    %p66 = pneg %p60
    %p67 = scmp.eq.s32.totalorder %s11, 3
    %p68 = por %p66, %p67
    %p69 = scmp.ne.s32.totalorder %s61, %s64
    %p70 = scmp.eq.s32.totalorder %s11, 0
    %p71 = por %p69, %p70
    %p72 = scmp.ne.s32.totalorder %s61, %s64
    %p73 = scmp.eq.s32.totalorder %s16, 3
    %p74 = por %p72, %p73
    %p75 = scmp.ne.s32.totalorder %s64, %s65
    %p76 = scmp.eq.s32.totalorder %s16, 0
    %p77 = por %p75, %p76
    %p78 = scmp.ne.s32.totalorder %s64, %s65
    %p79 = scmp.eq.s32.totalorder %s17, 3
    %p80 = por %p78, %p79
    %p82 = scmp.ne.s32.totalorder %s65, %s81
    %p83 = scmp.eq.s32.totalorder %s17, 0
    %p84 = por %p82, %p83
    %s86 = sadd.s32 %s85, 1
    %p89 = scmp.eq.s32.totalorder %s11, 3
    %p90 = scmp.ne.s32.totalorder %s85, %s87
    %p91 = scmp.eq.s32.totalorder %s11, 0
    %p92 = por %p90, %p91
    %p93 = scmp.ne.s32.totalorder %s85, %s87
    %p94 = scmp.eq.s32.totalorder %s16, 3
    %p95 = por %p93, %p94
    %p96 = scmp.ne.s32.totalorder %s87, %s88
    %p97 = scmp.eq.s32.totalorder %s16, 0
    %p98 = por %p96, %p97
    %p99 = scmp.ne.s32.totalorder %s87, %s88
    %p100 = scmp.eq.s32.totalorder %s17, 3
    %p101 = por %p99, %p100
    %p103 = scmp.ne.s32.totalorder %s88, %s102
    %p104 = scmp.eq.s32.totalorder %s17, 0
    %p105 = por %p103, %p104
    %s106 = ssub.s32 %s18, %s30
    %s107 = ssub.s32 %s19, %s26
    %s108 = sor.u32 %s106, %s107
    %p109 = scmp.eq.s32.totalorder %s108, 0
    %s111 = sadd.s32 %s110, 1
    %s112 = scalar_select %p109, %s110, %s111
    %p115 = pneg %p109
    %p116 = scmp.eq.s32.totalorder %s11, 3
    %p117 = por %p115, %p116
    %p118 = scmp.ne.s32.totalorder %s110, %s113
    %p119 = scmp.eq.s32.totalorder %s11, 0
    %p120 = por %p118, %p119
    %p121 = scmp.ne.s32.totalorder %s110, %s113
    %p122 = scmp.eq.s32.totalorder %s16, 3
    %p123 = por %p121, %p122
    %p124 = scmp.ne.s32.totalorder %s113, %s114
    %p125 = scmp.eq.s32.totalorder %s16, 0
    %p126 = por %p124, %p125
    %p127 = scmp.ne.s32.totalorder %s113, %s114
    %p128 = scmp.eq.s32.totalorder %s17, 3
    %p129 = por %p127, %p128
    %p131 = scmp.ne.s32.totalorder %s114, %s130
    %p132 = scmp.eq.s32.totalorder %s17, 0
    %p133 = por %p131, %p132
    %s134 = ssub.s32 %s18, %s30
    %s135 = ssub.s32 %s19, %s26
    %s136 = sor.u32 %s134, %s135
    %p137 = scmp.eq.s32.totalorder %s136, 0
    %s139 = sadd.s32 %s138, 1
    %s140 = scalar_select %p137, %s138, %s139
    %p143 = pneg %p137
    %p144 = scmp.eq.s32.totalorder %s11, 3
    %p145 = por %p143, %p144
    %p146 = scmp.ne.s32.totalorder %s138, %s141
    %p147 = scmp.eq.s32.totalorder %s11, 0
    %p148 = por %p146, %p147
    %p149 = scmp.ne.s32.totalorder %s138, %s141
    %p150 = scmp.eq.s32.totalorder %s16, 3
    %p151 = por %p149, %p150
    %p152 = scmp.ne.s32.totalorder %s141, %s142
    %p153 = scmp.eq.s32.totalorder %s16, 0
    %p154 = por %p152, %p153
    %p155 = scmp.ne.s32.totalorder %s141, %s142
    %p156 = scmp.eq.s32.totalorder %s17, 3
    %p157 = por %p155, %p156
    %p159 = scmp.ne.s32.totalorder %s142, %s158
    %p160 = scmp.eq.s32.totalorder %s17, 0
    %p161 = por %p159, %p160
    %p162 = scmp.le.s32.totalorder 1, %s11
    %p163 = scmp.lt.s32.totalorder %s11, 5
    %p164 = pnand %p162, %p163
    %p165 = pneg %p164
    // Predicated region
    $region9: #{g_net_forward.49} parent=5 // pred_check
      _
    $region10: #{g_net_forward.49} parent=5 // pred_check_branch
      %167 = sbr.rel (%p164) target = $region12
    $region11: #{g_net_forward.49} parent=5 // pred_region
      %s168 = ssub.s32 %s11, 1
      // Predicated region
      $region13: #{g_net_forward.49} parent=11 // pred_check
        %p169 = pneg %p98
      $region14: #{g_net_forward.49} parent=11 // pred_check_branch
        %171 = sbr.rel (%p169) target = $region16
      $region15: #{g_net_forward.49} parent=11 // pred_region
        _
      $region16: #{g_net_forward.49} parent=11 // pred_fallthru
        _
    $region12: #{g_net_forward.49} parent=5 // pred_fallthru
      _
    %p172 = scmp.lt.s32.totalorder %s11, 4
    // Predicated region
    $region17: #{g_net_forward.49} parent=5 // pred_check
      %p173 = pneg %p172
    $region18: #{g_net_forward.49} parent=5 // pred_check_branch
      %175 = sbr.rel (%p173) target = $region20
    $region19: #{g_net_forward.49} parent=5 // pred_region
      // Predicated region
      $region21: #{g_net_forward.49} parent=19 // pred_check
        %p176 = pneg %p45
      $region22: #{g_net_forward.49} parent=19 // pred_check_branch
        %178 = sbr.rel (%p176) target = $region24
      $region23: #{g_net_forward.49} parent=19 // pred_region
        %s179 = smul.u32 16, %s19
        %p180 = scmp.lt.s32.totalorder %s18, 3
        %s181 = scalar_select %p180, %s18, 3
        %p182 = scmp.lt.s32.totalorder %s179, 15
        %s183 = scalar_select %p182, %s179, 15
        %s184 = smul.addr %s181, 16
        %s185 = sadd.s32 %s183, %s184
        %s186 = smul.addr %s185, 4
        %s187 = scalar_lea.vmem %s0, %s186
        %s188 = smul.u32 16, %s19
      $region24: #{g_net_forward.49} parent=19 // pred_fallthru
        _
      // Predicated region
      $region25: #{g_net_forward.49} parent=19 // pred_check
        %p189 = pneg %p71
      $region26: #{g_net_forward.49} parent=19 // pred_check_branch
        %191 = sbr.rel (%p189) target = $region28
      $region27: #{g_net_forward.49} parent=19 // pred_region
        %p192 = scmp.lt.s32.totalorder %s18, 3
        %s193 = scalar_select %p192, %s18, 3
        %s194 = smul.addr %s193, 16
        %s195 = smul.addr %s194, 4
        %s196 = scalar_lea.vmem %s1, %s195
      $region28: #{g_net_forward.49} parent=19 // pred_fallthru
        _
    $region20: #{g_net_forward.49} parent=5 // pred_fallthru
      _
    %p197 = scmp.le.s32.totalorder 1, %s11
    %p198 = scmp.lt.s32.totalorder %s11, 5
    %p199 = pnand %p197, %p198
    %p200 = pneg %p199
    // Predicated region
    $region29: #{g_net_forward.49} parent=5 // pred_check
      _
    $region30: #{g_net_forward.49} parent=5 // pred_check_branch
      %202 = sbr.rel (%p199) target = $region32
    $region31: #{g_net_forward.49} parent=5 // pred_region
      %s203 = ssub.s32 %s11, 1
      %s204 = smul.u32 16, %s21
      %p205 = scmp.lt.s32.totalorder %s20, 3
      %s206 = scalar_select %p205, %s20, 3
      %p207 = scmp.lt.s32.totalorder %s204, 15
      %s208 = scalar_select %p207, %s204, 15
      %s209 = smul.addr %s206, 16
      %s210 = sadd.s32 %s208, %s209
      %s211 = smul.addr %s210, 4
      %s212 = scalar_lea.vmem %s0, %s211
      %p213 = pneg %p51
      %p214 = pneg %p48
      %p215 = scmp.lt.s32.totalorder %s20, 3
      %s216 = scalar_select %p215, %s20, 3
      %s217 = smul.addr %s216, 16
      %s218 = smul.addr %s217, 4
      %s219 = scalar_lea.vmem %s1, %s218
      %p220 = pneg %p77
      %p221 = pneg %p74
      %p222 = pneg %p98
      %p223 = pneg %p95
      %p224 = pneg %p126
      %p225 = pneg %p123
      %s226 = smul.u32 16, %s21
      %p227 = scmp.lt.s32.totalorder %s20, 3
      %s228 = scalar_select %p227, %s20, 3
      %p229 = scmp.lt.s32.totalorder %s226, 15
      %s230 = scalar_select %p229, %s226, 15
      %s231 = smul.addr %s228, 16
      %s232 = sadd.s32 %s230, %s231
      %s233 = smul.addr %s232, 4
      %s234 = scalar_lea.vmem %s3, %s233
      %p235 = pneg %p154
      %p236 = pneg %p151
      %p237 = scmp.lt.s32.totalorder %s20, 3
      %s238 = scalar_select %p237, %s20, 3
      %p239 = scmp.lt.s32.totalorder %s21, 0
      %s240 = scalar_select %p239, %s21, 0
      %s241 = sadd.s32 %s240, %s238
      %s242 = smul.addr %s241, 2
      %s243 = scalar_lea.vmem %s4, %s242
      %s244 = smul.u32 16, %s21
      %p245 = scmp.lt.s32.totalorder %s20, 3
      %s246 = scalar_select %p245, %s20, 3
      %p247 = scmp.lt.s32.totalorder %s244, 15
      %s248 = scalar_select %p247, %s244, 15
      %s249 = smul.addr %s246, 16
      %s250 = sadd.s32 %s248, %s249
      %s251 = smul.addr %s250, 4
      %s252 = scalar_lea.vmem %s0, %s251
      %s253 = smul.u32 16, %s21
      %p254 = scmp.lt.s32.totalorder %s20, 3
      %s255 = scalar_select %p254, %s20, 3
      %s256 = smul.addr %s255, 16
      %s257 = smul.addr %s256, 4
      %s258 = scalar_lea.vmem %s1, %s257
      %s259 = smul.u32 16, %s21
      %p260 = scmp.lt.s32.totalorder %s20, 3
      %s261 = scalar_select %p260, %s20, 3
      %p262 = scmp.lt.s32.totalorder %s259, 15
      %s263 = scalar_select %p262, %s259, 15
      %s264 = smul.addr %s261, 16
      %s265 = sadd.s32 %s263, %s264
      %s266 = smul.addr %s265, 4
      %s267 = scalar_lea.vmem %s3, %s266
      %s268 = smul.u32 16, %s21
      %p269 = scmp.lt.s32.totalorder %s20, 3
      %s270 = scalar_select %p269, %s20, 3
      %p271 = scmp.lt.s32.totalorder %s21, 0
      %s272 = scalar_select %p271, %s21, 0
      %s273 = sadd.s32 %s272, %s270
      %s274 = smul.addr %s273, 2
      %s275 = scalar_lea.vmem %s4, %s274
      %v277 = vld [vmem:[%s252] sm:$0xf]
      %v278 = vld [vmem:[%s252 + $0x4] sm:$0xf]
      %v279 = vld [vmem:[%s252 + $0x8] sm:$0xf]
      %v280 = vld [vmem:[%s252 + $0xc] sm:$0xf]
      %v281 = vld [vmem:[%s252 + $0x10] sm:$0xf]
      %v282 = vld [vmem:[%s252 + $0x14] sm:$0xf]
      %v283 = vld [vmem:[%s252 + $0x18] sm:$0xf]
      %v284 = vld [vmem:[%s252 + $0x1c] sm:$0xf]
      %v285 = vld [vmem:[%s252 + $0x20] sm:$0xf]
      %v286 = vld [vmem:[%s252 + $0x24] sm:$0xf]
      %v287 = vld [vmem:[%s252 + $0x28] sm:$0xf]
      %v288 = vld [vmem:[%s252 + $0x2c] sm:$0xf]
      %v289 = vld [vmem:[%s252 + $0x30] sm:$0xf]
      %v290 = vld [vmem:[%s252 + $0x34] sm:$0xf]
      %v291 = vld [vmem:[%s252 + $0x38] sm:$0xf]
      %v292 = vld [vmem:[%s252 + $0x3c] sm:$0xf]
      %v293 = vld [vmem:[%s258] sm:$0xf]
      %v294 = vld [vmem:[%s258 + $0x4] sm:$0xf]
      %v295 = vld [vmem:[%s258 + $0x8] sm:$0xf]
      %v296 = vld [vmem:[%s258 + $0xc] sm:$0xf]
      %v297 = vld [vmem:[%s258 + $0x10] sm:$0xf]
      %v298 = vld [vmem:[%s258 + $0x14] sm:$0xf]
      %v299 = vld [vmem:[%s258 + $0x18] sm:$0xf]
      %v300 = vld [vmem:[%s258 + $0x1c] sm:$0xf]
      %v301 = vld [vmem:[%s258 + $0x20] sm:$0xf]
      %v302 = vld [vmem:[%s258 + $0x24] sm:$0xf]
      %v303 = vld [vmem:[%s258 + $0x28] sm:$0xf]
      %v304 = vld [vmem:[%s258 + $0x2c] sm:$0xf]
      %v305 = vld [vmem:[%s258 + $0x30] sm:$0xf]
      %v306 = vld [vmem:[%s258 + $0x34] sm:$0xf]
      %v307 = vld [vmem:[%s258 + $0x38] sm:$0xf]
      %v308 = vld [vmem:[%s258 + $0x3c] sm:$0xf]
      %v309 = vld [vmem:[%s2] sm:$0x1]
      %v311 = vlaneseq
      %v312 = vshrl.u32 %v311, 7
      %v313 = vsub.s32 0, %v312
      %v314 = vrot.slane %v309, %v313
      %v332 = vunpack.c.l.b16 %v277
      %v333 = vunpack.c.l.b16 %v278
      %v334 = vunpack.c.l.b16 %v279
      %v335 = vunpack.c.l.b16 %v280
      %v336 = vunpack.c.l.b16 %v281
      %v337 = vunpack.c.l.b16 %v282
      %v338 = vunpack.c.l.b16 %v283
      %v339 = vunpack.c.l.b16 %v284
      %v340 = vunpack.c.l.b16 %v285
      %v341 = vunpack.c.l.b16 %v286
      %v342 = vunpack.c.l.b16 %v287
      %v343 = vunpack.c.l.b16 %v288
      %v344 = vunpack.c.l.b16 %v289
      %v345 = vunpack.c.l.b16 %v290
      %v346 = vunpack.c.l.b16 %v291
      %v347 = vunpack.c.l.b16 %v292
      %v348 = vpack.c.b16 %v333, %v332
      %v349 = vpack.c.b16 %v335, %v334
      %v350 = vpack.c.b16 %v337, %v336
      %v351 = vpack.c.b16 %v339, %v338
      %v352 = vpack.c.b16 %v341, %v340
      %v353 = vpack.c.b16 %v343, %v342
      %v354 = vpack.c.b16 %v345, %v344
      %v355 = vpack.c.b16 %v347, %v346
      %v380 = vunpack.c.l.b16 %v293
      %v381 = vunpack.c.l.b16 %v294
      %v382 = vunpack.c.l.b16 %v295
      %v383 = vunpack.c.l.b16 %v296
      %v384 = vunpack.c.l.b16 %v297
      %v385 = vunpack.c.l.b16 %v298
      %v386 = vunpack.c.l.b16 %v299
      %v387 = vunpack.c.l.b16 %v300
      %v388 = vunpack.c.l.b16 %v301
      %v389 = vunpack.c.l.b16 %v302
      %v390 = vunpack.c.l.b16 %v303
      %v391 = vunpack.c.l.b16 %v304
      %v392 = vunpack.c.l.b16 %v305
      %v393 = vunpack.c.l.b16 %v306
      %v394 = vunpack.c.l.b16 %v307
      %v395 = vunpack.c.l.b16 %v308
      %v396 = vpack.c.b16 %v381, %v380
      %v397 = vpack.c.b16 %v383, %v382
      %v398 = vpack.c.b16 %v385, %v384
      %v399 = vpack.c.b16 %v387, %v386
      %v400 = vpack.c.b16 %v389, %v388
      %v401 = vpack.c.b16 %v391, %v390
      %v402 = vpack.c.b16 %v393, %v392
      %v403 = vpack.c.b16 %v395, %v394
      %412 = vmatprep.subr.bf16.mxu0 0
      %413 = vmatpush1.bf16.msra.mxu0 %v396
      %414 = vmatprep.subr.bf16.mxu0 0
      %415 = vmatpush1.bf16.msra.mxu0 %v397
      %416 = vmatprep.subr.bf16.mxu0 0
      %417 = vmatpush1.bf16.msra.mxu0 %v398
      %418 = vmatprep.subr.bf16.mxu0 0
      %419 = vmatpush1.bf16.msra.mxu0 %v399
      %420 = vmatprep.subr.bf16.mxu0 0
      %421 = vmatpush1.bf16.msra.mxu0 %v400
      %422 = vmatprep.subr.bf16.mxu0 0
      %423 = vmatpush1.bf16.msra.mxu0 %v401
      %424 = vmatprep.subr.bf16.mxu0 0
      %425 = vmatpush1.bf16.msra.mxu0 %v402
      %426 = vmatprep.subr.bf16.mxu0 0
      %427 = vmatpush1.bf16.msra.mxu0 %v403
      %428 = vmatprep.subr.bf16.mxu0 0
      %429 = vmatpush1.bf16.msra.mxu0 0
      %430 = vmatprep.subr.bf16.mxu0 0
      %431 = vmatpush1.bf16.msra.mxu0 0
      %432 = vmatprep.subr.bf16.mxu0 0
      %433 = vmatpush1.bf16.msra.mxu0 0
      %434 = vmatprep.subr.bf16.mxu0 0
      %435 = vmatpush1.bf16.msra.mxu0 0
      %436 = vmatprep.subr.bf16.mxu0 0
      %437 = vmatpush1.bf16.msra.mxu0 0
      %438 = vmatprep.subr.bf16.mxu0 0
      %439 = vmatpush1.bf16.msra.mxu0 0
      %440 = vmatprep.subr.bf16.mxu0 0
      %441 = vmatpush1.bf16.msra.mxu0 0
      %442 = vmatprep.subr.bf16.mxu0 0
      %443 = vmatpush1.bf16.msra.mxu0 0
      %444 = vmatprep.mubr.bf16.mxu0 0
      %445 = vmatmul.mubr.bf16.gmra.mrb[0].mxu0 %v348
      %v446 = vpop.f32.mrb[0].mxu0
      %v447 = vadd.f32 %v314, %v446
      %v448 = vpop.f32.mrb[0].mxu0
      %v449 = vpop.f32.mrb[0].mxu0
      %v450 = vadd.f32 %v314, %v449
      %v451 = vpop.f32.mrb[0].mxu0
      %452 = vmatprep.mubr.bf16.mxu0 0
      %453 = vmatmul.mubr.bf16.gmra.mrb[0].mxu0 %v349
      %v454 = vpop.f32.mrb[0].mxu0
      %v455 = vadd.f32 %v314, %v454
      %v456 = vpop.f32.mrb[0].mxu0
      %v457 = vpop.f32.mrb[0].mxu0
      %v458 = vadd.f32 %v314, %v457
      %v459 = vpop.f32.mrb[0].mxu0
      %460 = vmatprep.mubr.bf16.mxu0 0
      %461 = vmatmul.mubr.bf16.gmra.mrb[0].mxu0 %v350
      %v462 = vpop.f32.mrb[0].mxu0
      %v463 = vadd.f32 %v314, %v462
      %v464 = vpop.f32.mrb[0].mxu0
      %v465 = vpop.f32.mrb[0].mxu0
      %v466 = vadd.f32 %v314, %v465
      %v467 = vpop.f32.mrb[0].mxu0
      %468 = vmatprep.mubr.bf16.mxu0 0
      %469 = vmatmul.mubr.bf16.gmra.mrb[0].mxu0 %v351
      %v470 = vpop.f32.mrb[0].mxu0
      %v471 = vadd.f32 %v314, %v470
      %v472 = vpop.f32.mrb[0].mxu0
      %v473 = vpop.f32.mrb[0].mxu0
      %v474 = vadd.f32 %v314, %v473
      %v475 = vpop.f32.mrb[0].mxu0
      %476 = vmatprep.mubr.bf16.mxu0 0
      %477 = vmatmul.mubr.bf16.gmra.mrb[0].mxu0 %v352
      %v478 = vpop.f32.mrb[0].mxu0
      %v479 = vadd.f32 %v314, %v478
      %v480 = vpop.f32.mrb[0].mxu0
      %v481 = vpop.f32.mrb[0].mxu0
      %v482 = vadd.f32 %v314, %v481
      %v483 = vpop.f32.mrb[0].mxu0
      %484 = vmatprep.mubr.bf16.mxu0 0
      %485 = vmatmul.mubr.bf16.gmra.mrb[0].mxu0 %v353
      %v486 = vpop.f32.mrb[0].mxu0
      %v487 = vadd.f32 %v314, %v486
      %v488 = vpop.f32.mrb[0].mxu0
      %v489 = vpop.f32.mrb[0].mxu0
      %v490 = vadd.f32 %v314, %v489
      %v491 = vpop.f32.mrb[0].mxu0
      %492 = vmatprep.mubr.bf16.mxu0 0
      %493 = vmatmul.mubr.bf16.gmra.mrb[0].mxu0 %v354
      %v494 = vpop.f32.mrb[0].mxu0
      %v495 = vadd.f32 %v314, %v494
      %v496 = vpop.f32.mrb[0].mxu0
      %v497 = vpop.f32.mrb[0].mxu0
      %v498 = vadd.f32 %v314, %v497
      %v499 = vpop.f32.mrb[0].mxu0
      %500 = vmatprep.mubr.bf16.mxu0 0
      %501 = vmatmul.mubr.bf16.gmra.mrb[0].mxu0 %v355
      %v502 = vpop.f32.mrb[0].mxu0
      %v503 = vadd.f32 %v314, %v502
      %v504 = vpop.f32.mrb[0].mxu0
      %v505 = vpop.f32.mrb[0].mxu0
      %v506 = vadd.f32 %v314, %v505
      %v507 = vpop.f32.mrb[0].mxu0
      %508 = vdwg.mxu0
      %v509 = vadd.f32 %v447, %v450
      %v510 = vadd.f32 %v509, %v455
      %v511 = vadd.f32 %v510, %v458
      %v512 = vadd.f32 %v511, %v463
      %v513 = vadd.f32 %v512, %v466
      %v514 = vadd.f32 %v513, %v471
      %v515 = vadd.f32 %v514, %v474
      %v516 = vadd.f32 %v515, %v479
      %v517 = vadd.f32 %v516, %v482
      %v518 = vadd.f32 %v517, %v487
      %v519 = vadd.f32 %v518, %v490
      %v520 = vadd.f32 %v519, %v495
      %v521 = vadd.f32 %v520, %v498
      %v522 = vadd.f32 %v521, %v503
      %v523 = vadd.f32 %v522, %v506
      %v524 = vrot.slane %v523, 4
      %v525 = vadd.f32 %v523, %v524
      %v526 = vrot.slane %v525, 2
      %v527 = vadd.f32 %v525, %v526
      %v528 = vrot.slane %v527, 1
      %v529 = vadd.f32 %v527, %v528
      %v530 = vmul.f32 %v447, %v447
      %v531 = vmul.f32 %v450, %v450
      %v532 = vmul.f32 %v455, %v455
      %v533 = vmul.f32 %v458, %v458
      %v534 = vmul.f32 %v463, %v463
      %v535 = vmul.f32 %v466, %v466
      %v536 = vmul.f32 %v471, %v471
      %v537 = vmul.f32 %v474, %v474
      %v538 = vmul.f32 %v479, %v479
      %v539 = vmul.f32 %v482, %v482
      %v540 = vmul.f32 %v487, %v487
      %v541 = vmul.f32 %v490, %v490
      %v542 = vmul.f32 %v495, %v495
      %v543 = vmul.f32 %v498, %v498
      %v544 = vmul.f32 %v503, %v503
      %v545 = vmul.f32 %v506, %v506
      %v546 = vadd.f32 %v530, %v531
      %v547 = vadd.f32 %v546, %v532
      %v548 = vadd.f32 %v547, %v533
      %v549 = vadd.f32 %v548, %v534
      %v550 = vadd.f32 %v549, %v535
      %v551 = vadd.f32 %v550, %v536
      %v552 = vadd.f32 %v551, %v537
      %v553 = vadd.f32 %v552, %v538
      %v554 = vadd.f32 %v553, %v539
      %v555 = vadd.f32 %v554, %v540
      %v556 = vadd.f32 %v555, %v541
      %v557 = vadd.f32 %v556, %v542
      %v558 = vadd.f32 %v557, %v543
      %v559 = vadd.f32 %v558, %v544
      %v560 = vadd.f32 %v559, %v545
      %v561 = vrot.slane %v560, 4
      %v562 = vadd.f32 %v560, %v561
      %v563 = vrot.slane %v562, 2
      %v564 = vadd.f32 %v562, %v563
      %v565 = vrot.slane %v564, 1
      %v566 = vadd.f32 %v564, %v565
      %vm567 = vcmask 1040384
      %v568 = vsel %vm567, %v529, %v566
      %569 = vst [vmem:[%s275] sm:$0x3] %v568
      %v570 = vpack.c.bf16 %v450, %v447
      %v571 = vpack.c.bf16 %v458, %v455
      %v572 = vpack.c.bf16 %v466, %v463
      %v573 = vpack.c.bf16 %v474, %v471
      %v574 = vpack.c.bf16 %v482, %v479
      %v575 = vpack.c.bf16 %v490, %v487
      %v576 = vpack.c.bf16 %v498, %v495
      %v577 = vpack.c.bf16 %v506, %v503
      %v586 = vunpack.c.l.b16 %v570
      %v587 = vunpack.c.h.b16 %v570
      %v588 = vunpack.c.l.b16 %v571
      %v589 = vunpack.c.h.b16 %v571
      %v590 = vunpack.c.l.b16 %v572
      %v591 = vunpack.c.h.b16 %v572
      %v592 = vunpack.c.l.b16 %v573
      %v593 = vunpack.c.h.b16 %v573
      %v594 = vunpack.c.l.b16 %v574
      %v595 = vunpack.c.h.b16 %v574
      %v596 = vunpack.c.l.b16 %v575
      %v597 = vunpack.c.h.b16 %v575
      %v598 = vunpack.c.l.b16 %v576
      %v599 = vunpack.c.h.b16 %v576
      %v600 = vunpack.c.l.b16 %v577
      %v601 = vunpack.c.h.b16 %v577
      %v602 = vpack.c.b16 %v586, %v586
      %v603 = vpack.c.b16 %v587, %v587
      %v604 = vpack.c.b16 %v588, %v588
      %v605 = vpack.c.b16 %v589, %v589
      %v606 = vpack.c.b16 %v590, %v590
      %v607 = vpack.c.b16 %v591, %v591
      %v608 = vpack.c.b16 %v592, %v592
      %v609 = vpack.c.b16 %v593, %v593
      %v610 = vpack.c.b16 %v594, %v594
      %v611 = vpack.c.b16 %v595, %v595
      %v612 = vpack.c.b16 %v596, %v596
      %v613 = vpack.c.b16 %v597, %v597
      %v614 = vpack.c.b16 %v598, %v598
      %v615 = vpack.c.b16 %v599, %v599
      %v616 = vpack.c.b16 %v600, %v600
      %v617 = vpack.c.b16 %v601, %v601
      %634 = vst [vmem:[%s267] sm:$0xf] %v602
      %635 = vst [vmem:[%s267 + $0x4] sm:$0xf] %v603
      %636 = vst [vmem:[%s267 + $0x8] sm:$0xf] %v604
      %637 = vst [vmem:[%s267 + $0xc] sm:$0xf] %v605
      %638 = vst [vmem:[%s267 + $0x10] sm:$0xf] %v606
      %639 = vst [vmem:[%s267 + $0x14] sm:$0xf] %v607
      %640 = vst [vmem:[%s267 + $0x18] sm:$0xf] %v608
      %641 = vst [vmem:[%s267 + $0x1c] sm:$0xf] %v609
      %642 = vst [vmem:[%s267 + $0x20] sm:$0xf] %v610
      %643 = vst [vmem:[%s267 + $0x24] sm:$0xf] %v611
      %644 = vst [vmem:[%s267 + $0x28] sm:$0xf] %v612
      %645 = vst [vmem:[%s267 + $0x2c] sm:$0xf] %v613
      %646 = vst [vmem:[%s267 + $0x30] sm:$0xf] %v614
      %647 = vst [vmem:[%s267 + $0x34] sm:$0xf] %v615
      %648 = vst [vmem:[%s267 + $0x38] sm:$0xf] %v616
      %649 = vst [vmem:[%s267 + $0x3c] sm:$0xf] %v617
      %s650 = smul.u32 16, %s21
      %p651 = scmp.lt.s32.totalorder %s20, 3
      %s652 = scalar_select %p651, %s20, 3
      %p653 = scmp.lt.s32.totalorder %s650, 15
      %s654 = scalar_select %p653, %s650, 15
      %s655 = smul.addr %s652, 16
      %s656 = sadd.s32 %s654, %s655
      %s657 = smul.addr %s656, 4
      %s658 = scalar_lea.vmem %s3, %s657
      %p659 = scmp.lt.s32.totalorder %s20, 3
      %s660 = scalar_select %p659, %s20, 3
      %p661 = scmp.lt.s32.totalorder %s21, 0
      %s662 = scalar_select %p661, %s21, 0
      %s663 = sadd.s32 %s662, %s660
      %s664 = smul.addr %s663, 2
      %s665 = scalar_lea.vmem %s4, %s664
      // Predicated region
      $region33: #{g_net_forward.49} parent=31 // pred_check
        %p666 = pneg %p123
      $region34: #{g_net_forward.49} parent=31 // pred_check_branch
        %668 = sbr.rel (%p666) target = $region36
      $region35: #{g_net_forward.49} parent=31 // pred_region
        %s669 = smul.u32 16, %s21
      $region36: #{g_net_forward.49} parent=31 // pred_fallthru
        _
      // Predicated region
      $region37: #{g_net_forward.49} parent=31 // pred_check
        %p670 = pneg %p151
      $region38: #{g_net_forward.49} parent=31 // pred_check_branch
        %672 = sbr.rel (%p670) target = $region40
      $region39: #{g_net_forward.49} parent=31 // pred_region
        _
      $region40: #{g_net_forward.49} parent=31 // pred_fallthru
        _
    $region32: #{g_net_forward.49} parent=5 // pred_fallthru
      _
    %p673 = scmp.le.s32.totalorder 2, %s11
    // Predicated region
    $region41: #{g_net_forward.49} parent=5 // pred_check
      %p674 = pneg %p673
    $region42: #{g_net_forward.49} parent=5 // pred_check_branch
      %676 = sbr.rel (%p674) target = $region44
    $region43: #{g_net_forward.49} parent=5 // pred_region
      %s677 = ssub.s32 %s11, 2
      // Predicated region
      $region45: #{g_net_forward.49} parent=43 // pred_check
        %p678 = pneg %p129
      $region46: #{g_net_forward.49} parent=43 // pred_check_branch
        %680 = sbr.rel (%p678) target = $region48
      $region47: #{g_net_forward.49} parent=43 // pred_region
        %s681 = smul.u32 16, %s23
        %p682 = scmp.lt.s32.totalorder %s22, 3
        %s683 = scalar_select %p682, %s22, 3
        %p684 = scmp.lt.s32.totalorder %s681, 15
        %s685 = scalar_select %p684, %s681, 15
        %s686 = smul.addr %s683, 16
        %s687 = sadd.s32 %s685, %s686
        %s688 = smul.addr %s687, 4
        %s689 = scalar_lea.vmem %s3, %s688
      $region48: #{g_net_forward.49} parent=43 // pred_fallthru
        _
      // Predicated region
      $region49: #{g_net_forward.49} parent=43 // pred_check
        %p690 = pneg %p157
      $region50: #{g_net_forward.49} parent=43 // pred_check_branch
        %692 = sbr.rel (%p690) target = $region52
      $region51: #{g_net_forward.49} parent=43 // pred_region
        %p693 = scmp.lt.s32.totalorder %s22, 3
        %s694 = scalar_select %p693, %s22, 3
        %p695 = scmp.lt.s32.totalorder %s23, 0
        %s696 = scalar_select %p695, %s23, 0
        %s697 = sadd.s32 %s696, %s694
        %s698 = smul.addr %s697, 2
        %s699 = scalar_lea.vmem %s4, %s698
      $region52: #{g_net_forward.49} parent=43 // pred_fallthru
        _
    $region44: #{g_net_forward.49} parent=5 // pred_fallthru
      _
  $region6: #{g_net_forward.49} parent=0 // loop_footer
    %s15 = sadd.s32 1, %s11
  $region7: #{g_net_forward.49} parent=0 // loop_footer_branch
    %10 = sbr.rel target = $region3
  $region8: #{g_net_forward.49} parent=0 // loop_exit
    _

// kernel: g_net_forward.51
$region0: #{g_net_forward.51}
  #allocation0 [shape = 'u32[]', space=smem, size = 0x4, offset = 0x4, fixed_abs, tag = 'smem constant byte address 0x4 - core index']
  #allocation1 [shape = 'u32[144,128]{1,0:T(1,128)}', space=vmem, size = 0x12000, scoped, tag = 'internal scratch']
  %s0 = inlined_call_operand.vmem [shape: bf16[1,512,512], index: 0, kind: input, shape index: {}]
  %s1 = inlined_call_operand.vmem [shape: bf16[1,512,128], index: 1, kind: input, shape index: {}]
  %s2 = inlined_call_operand.vmem [shape: f32[1,128], index: 2, kind: input, shape index: {}]
  %s3 = inlined_call_operand.vmem [shape: bf16[1,512,128], index: 3, kind: output, shape index: {0}]
  %s4 = inlined_call_operand.vmem [shape: f32[1,2,2,128], index: 4, kind: output, shape index: {1}]
  %5 = xla_tuple %s3, %s4
  %s6 = sld [smem:[#allocation0]]
  $region53: #{g_net_forward.51} parent=0
    _
  %s8 = ssub.s32 1, %s6
  %s9 = scalar_select 0, %s8, %s6
  loop: start=0, step=1, limit=4
  $region2: #{g_net_forward.51} parent=0 // loop_pre_header
    _
  $region3: #{g_net_forward.51} parent=0 // loop_header
    %s11 = sphi 0, %s15
    %p12 = scmp.ge.s32.totalorder %s11, 4
    %s18 = sphi 0, %s30
    %s19 = sphi 0, %s26
    %s20 = sphi 0, %s18
    %s21 = sphi 0, %s19
    %s22 = sphi 0, %s20
    %s23 = sphi 0, %s21
    %s35 = sphi 0, %s37
    %s38 = sphi 0, %s35
    %s39 = sphi 0, %s38
    %s55 = sphi 0, %s39
    %s61 = sphi 0, %s63
    %s64 = sphi 0, %s61
    %s65 = sphi 0, %s64
    %s81 = sphi 0, %s65
    %s85 = sphi 0, %s85
    %s87 = sphi 0, %s85
    %s88 = sphi 0, %s87
    %s102 = sphi 0, %s88
    %s110 = sphi 0, %s112
    %s113 = sphi 0, %s110
    %s114 = sphi 0, %s113
    %s130 = sphi 0, %s114
    %s138 = sphi 0, %s140
    %s141 = sphi 0, %s138
    %s142 = sphi 0, %s141
    %s158 = sphi 0, %s142
  $region4: #{g_net_forward.51} parent=0 // loop_header_branch
    %14 = sbr.rel (%p12) target = $region8
  $region5: #{g_net_forward.51} parent=0 // loop_body
    %s16 = ssub.s32 %s11, 1
    %s17 = ssub.s32 %s11, 2
    %s24 = sadd.s32 1, %s19
    %p25 = scmp.ge.s32.totalorder %s24, 2
    %s26 = scalar_select %p25, 0, %s24
    %s27 = sadd.s32 1, %s18
    %s28 = scalar_select %p25, %s27, %s18
    %p29 = scmp.ge.s32.totalorder %s28, 1
    %s30 = scalar_select %p29, 0, %s28
    %s31 = ssub.s32 %s18, %s30
    %s32 = ssub.s32 %s19, %s26
    %s33 = sor.u32 %s31, %s32
    %p34 = scmp.eq.s32.totalorder %s33, 0
    %s36 = sadd.s32 %s35, 1
    %s37 = scalar_select %p34, %s35, %s36
    %p40 = pneg %p34
    %p41 = scmp.eq.s32.totalorder %s11, 1
    %p42 = por %p40, %p41
    %p43 = scmp.ne.s32.totalorder %s35, %s38
    %p44 = scmp.eq.s32.totalorder %s11, 0
    %p45 = por %p43, %p44
    %p46 = scmp.ne.s32.totalorder %s35, %s38
    %p47 = scmp.eq.s32.totalorder %s16, 1
    %p48 = por %p46, %p47
    %p49 = scmp.ne.s32.totalorder %s38, %s39
    %p50 = scmp.eq.s32.totalorder %s16, 0
    %p51 = por %p49, %p50
    %p52 = scmp.ne.s32.totalorder %s38, %s39
    %p53 = scmp.eq.s32.totalorder %s17, 1
    %p54 = por %p52, %p53
    %p56 = scmp.ne.s32.totalorder %s39, %s55
    %p57 = scmp.eq.s32.totalorder %s17, 0
    %p58 = por %p56, %p57
    %s59 = ssub.s32 %s18, %s30
    %p60 = scmp.eq.s32.totalorder %s59, 0
    %s62 = sadd.s32 %s61, 1
    %s63 = scalar_select %p60, %s61, %s62
    %p66 = pneg %p60
    %p67 = scmp.eq.s32.totalorder %s11, 1
    %p68 = por %p66, %p67
    %p69 = scmp.ne.s32.totalorder %s61, %s64
    %p70 = scmp.eq.s32.totalorder %s11, 0
    %p71 = por %p69, %p70
    %p72 = scmp.ne.s32.totalorder %s61, %s64
    %p73 = scmp.eq.s32.totalorder %s16, 1
    %p74 = por %p72, %p73
    %p75 = scmp.ne.s32.totalorder %s64, %s65
    %p76 = scmp.eq.s32.totalorder %s16, 0
    %p77 = por %p75, %p76
    %p78 = scmp.ne.s32.totalorder %s64, %s65
    %p79 = scmp.eq.s32.totalorder %s17, 1
    %p80 = por %p78, %p79
    %p82 = scmp.ne.s32.totalorder %s65, %s81
    %p83 = scmp.eq.s32.totalorder %s17, 0
    %p84 = por %p82, %p83
    %s86 = sadd.s32 %s85, 1
    %p89 = scmp.eq.s32.totalorder %s11, 1
    %p90 = scmp.ne.s32.totalorder %s85, %s87
    %p91 = scmp.eq.s32.totalorder %s11, 0
    %p92 = por %p90, %p91
    %p93 = scmp.ne.s32.totalorder %s85, %s87
    %p94 = scmp.eq.s32.totalorder %s16, 1
    %p95 = por %p93, %p94
    %p96 = scmp.ne.s32.totalorder %s87, %s88
    %p97 = scmp.eq.s32.totalorder %s16, 0
    %p98 = por %p96, %p97
    %p99 = scmp.ne.s32.totalorder %s87, %s88
    %p100 = scmp.eq.s32.totalorder %s17, 1
    %p101 = por %p99, %p100
    %p103 = scmp.ne.s32.totalorder %s88, %s102
    %p104 = scmp.eq.s32.totalorder %s17, 0
    %p105 = por %p103, %p104
    %s106 = ssub.s32 %s18, %s30
    %s107 = ssub.s32 %s19, %s26
    %s108 = sor.u32 %s106, %s107
    %p109 = scmp.eq.s32.totalorder %s108, 0
    %s111 = sadd.s32 %s110, 1
    %s112 = scalar_select %p109, %s110, %s111
    %p115 = pneg %p109
    %p116 = scmp.eq.s32.totalorder %s11, 1
    %p117 = por %p115, %p116
    %p118 = scmp.ne.s32.totalorder %s110, %s113
    %p119 = scmp.eq.s32.totalorder %s11, 0
    %p120 = por %p118, %p119
    %p121 = scmp.ne.s32.totalorder %s110, %s113
    %p122 = scmp.eq.s32.totalorder %s16, 1
    %p123 = por %p121, %p122
    %p124 = scmp.ne.s32.totalorder %s113, %s114
    %p125 = scmp.eq.s32.totalorder %s16, 0
    %p126 = por %p124, %p125
    %p127 = scmp.ne.s32.totalorder %s113, %s114
    %p128 = scmp.eq.s32.totalorder %s17, 1
    %p129 = por %p127, %p128
    %p131 = scmp.ne.s32.totalorder %s114, %s130
    %p132 = scmp.eq.s32.totalorder %s17, 0
    %p133 = por %p131, %p132
    %s134 = ssub.s32 %s18, %s30
    %s135 = ssub.s32 %s19, %s26
    %s136 = sor.u32 %s134, %s135
    %p137 = scmp.eq.s32.totalorder %s136, 0
    %s139 = sadd.s32 %s138, 1
    %s140 = scalar_select %p137, %s138, %s139
    %p143 = pneg %p137
    %p144 = scmp.eq.s32.totalorder %s11, 1
    %p145 = por %p143, %p144
    %p146 = scmp.ne.s32.totalorder %s138, %s141
    %p147 = scmp.eq.s32.totalorder %s11, 0
    %p148 = por %p146, %p147
    %p149 = scmp.ne.s32.totalorder %s138, %s141
    %p150 = scmp.eq.s32.totalorder %s16, 1
    %p151 = por %p149, %p150
    %p152 = scmp.ne.s32.totalorder %s141, %s142
    %p153 = scmp.eq.s32.totalorder %s16, 0
    %p154 = por %p152, %p153
    %p155 = scmp.ne.s32.totalorder %s141, %s142
    %p156 = scmp.eq.s32.totalorder %s17, 1
    %p157 = por %p155, %p156
    %p159 = scmp.ne.s32.totalorder %s142, %s158
    %p160 = scmp.eq.s32.totalorder %s17, 0
    %p161 = por %p159, %p160
    %p162 = scmp.le.s32.totalorder 1, %s11
    %p163 = scmp.lt.s32.totalorder %s11, 3
    %p164 = pnand %p162, %p163
    %p165 = pneg %p164
    // Predicated region
    $region9: #{g_net_forward.51} parent=5 // pred_check
      _
    $region10: #{g_net_forward.51} parent=5 // pred_check_branch
      %167 = sbr.rel (%p164) target = $region12
    $region11: #{g_net_forward.51} parent=5 // pred_region
      %s168 = ssub.s32 %s11, 1
      // Predicated region
      $region13: #{g_net_forward.51} parent=11 // pred_check
        %p169 = pneg %p77
      $region14: #{g_net_forward.51} parent=11 // pred_check_branch
        %171 = sbr.rel (%p169) target = $region16
      $region15: #{g_net_forward.51} parent=11 // pred_region
        %p172 = scmp.lt.s32.totalorder %s20, 0
        %s173 = scalar_select %p172, %s20, 0
        %s174 = smul.addr %s173, 64
        %s175 = smul.addr %s174, 4
        %s176 = scalar_lea.vmem %s1, %s175
      $region16: #{g_net_forward.51} parent=11 // pred_fallthru
        _
      // Predicated region
      $region17: #{g_net_forward.51} parent=11 // pred_check
        %p177 = pneg %p98
      $region18: #{g_net_forward.51} parent=11 // pred_check_branch
        %179 = sbr.rel (%p177) target = $region20
      $region19: #{g_net_forward.51} parent=11 // pred_region
        _
      $region20: #{g_net_forward.51} parent=11 // pred_fallthru
        _
    $region12: #{g_net_forward.51} parent=5 // pred_fallthru
      _
    %p180 = scmp.lt.s32.totalorder %s11, 2
    // Predicated region
    $region21: #{g_net_forward.51} parent=5 // pred_check
      %p181 = pneg %p180
    $region22: #{g_net_forward.51} parent=5 // pred_check_branch
      %183 = sbr.rel (%p181) target = $region24
    $region23: #{g_net_forward.51} parent=5 // pred_region
      // Predicated region
      $region25: #{g_net_forward.51} parent=23 // pred_check
        %p184 = pneg %p45
      $region26: #{g_net_forward.51} parent=23 // pred_check_branch
        %186 = sbr.rel (%p184) target = $region28
      $region27: #{g_net_forward.51} parent=23 // pred_region
        %s187 = smul.u32 32, %s19
        %p188 = scmp.lt.s32.totalorder %s18, 0
        %s189 = scalar_select %p188, %s18, 0
        %p190 = scmp.lt.s32.totalorder %s187, 63
        %s191 = scalar_select %p190, %s187, 63
        %s192 = smul.addr %s191, 4
        %s193 = smul.addr %s189, 256
        %s194 = sadd.s32 %s192, %s193
        %s195 = smul.addr %s194, 4
        %s196 = scalar_lea.vmem %s0, %s195
        %s197 = smul.u32 32, %s19
      $region28: #{g_net_forward.51} parent=23 // pred_fallthru
        _
    $region24: #{g_net_forward.51} parent=5 // pred_fallthru
      _
    %p198 = scmp.le.s32.totalorder 1, %s11
    %p199 = scmp.lt.s32.totalorder %s11, 3
    %p200 = pnand %p198, %p199
    %p201 = pneg %p200
    // Predicated region
    $region29: #{g_net_forward.51} parent=5 // pred_check
      _
    $region30: #{g_net_forward.51} parent=5 // pred_check_branch
      %203 = sbr.rel (%p200) target = $region32
    $region31: #{g_net_forward.51} parent=5 // pred_region
      %s204 = ssub.s32 %s11, 1
      %s205 = smul.u32 32, %s21
      %p206 = scmp.lt.s32.totalorder %s20, 0
      %s207 = scalar_select %p206, %s20, 0
      %p208 = scmp.lt.s32.totalorder %s205, 63
      %s209 = scalar_select %p208, %s205, 63
      %s210 = smul.addr %s209, 4
      %s211 = smul.addr %s207, 256
      %s212 = sadd.s32 %s210, %s211
      %s213 = smul.addr %s212, 4
      %s214 = scalar_lea.vmem %s0, %s213
      %p215 = pneg %p51
      %p216 = pneg %p48
      %p217 = scmp.lt.s32.totalorder %s20, 0
      %s218 = scalar_select %p217, %s20, 0
      %s219 = smul.addr %s218, 64
      %s220 = smul.addr %s219, 4
      %s221 = scalar_lea.vmem %s1, %s220
      %p222 = pneg %p77
      %p223 = pneg %p74
      %p224 = pneg %p98
      %p225 = pneg %p95
      %p226 = pneg %p126
      %p227 = pneg %p123
      %s228 = smul.u32 32, %s21
      %p229 = scmp.lt.s32.totalorder %s20, 0
      %s230 = scalar_select %p229, %s20, 0
      %p231 = scmp.lt.s32.totalorder %s228, 63
      %s232 = scalar_select %p231, %s228, 63
      %s233 = smul.addr %s230, 64
      %s234 = sadd.s32 %s232, %s233
      %s235 = smul.addr %s234, 4
      %s236 = scalar_lea.vmem %s3, %s235
      %p237 = pneg %p154
      %p238 = pneg %p151
      %p239 = scmp.lt.s32.totalorder %s20, 0
      %s240 = scalar_select %p239, %s20, 0
      %p241 = scmp.lt.s32.totalorder %s21, 1
      %s242 = scalar_select %p241, %s21, 1
      %s243 = smul.addr %s240, 2
      %s244 = sadd.s32 %s242, %s243
      %s245 = smul.addr %s244, 2
      %s246 = scalar_lea.vmem %s4, %s245
      %s247 = smul.u32 32, %s21
      %p248 = scmp.lt.s32.totalorder %s20, 0
      %s249 = scalar_select %p248, %s20, 0
      %p250 = scmp.lt.s32.totalorder %s247, 63
      %s251 = scalar_select %p250, %s247, 63
      %s252 = smul.addr %s251, 4
      %s253 = smul.addr %s249, 256
      %s254 = sadd.s32 %s252, %s253
      %s255 = smul.addr %s254, 4
      %s256 = scalar_lea.vmem %s0, %s255
      %s257 = smul.u32 32, %s21
      %p258 = scmp.lt.s32.totalorder %s20, 0
      %s259 = scalar_select %p258, %s20, 0
      %s260 = smul.addr %s259, 64
      %s261 = smul.addr %s260, 4
      %s262 = scalar_lea.vmem %s1, %s261
      %s263 = smul.u32 32, %s21
      %p264 = scmp.lt.s32.totalorder %s20, 0
      %s265 = scalar_select %p264, %s20, 0
      %p266 = scmp.lt.s32.totalorder %s263, 63
      %s267 = scalar_select %p266, %s263, 63
      %s268 = smul.addr %s265, 64
      %s269 = sadd.s32 %s267, %s268
      %s270 = smul.addr %s269, 4
      %s271 = scalar_lea.vmem %s3, %s270
      %s272 = smul.u32 32, %s21
      %p273 = scmp.lt.s32.totalorder %s20, 0
      %s274 = scalar_select %p273, %s20, 0
      %p275 = scmp.lt.s32.totalorder %s21, 1
      %s276 = scalar_select %p275, %s21, 1
      %s277 = smul.addr %s274, 2
      %s278 = sadd.s32 %s276, %s277
      %s279 = smul.addr %s278, 2
      %s280 = scalar_lea.vmem %s4, %s279
      %v282 = vld [vmem:[%s256] sm:$0xff]
      %v283 = vld [vmem:[%s256 + $0x8] sm:$0xff]
      %v284 = vld [vmem:[%s256 + $0x10] sm:$0xff]
      %v285 = vld [vmem:[%s256 + $0x18] sm:$0xff]
      %v286 = vld [vmem:[%s256 + $0x20] sm:$0xff]
      %v287 = vld [vmem:[%s256 + $0x28] sm:$0xff]
      %v288 = vld [vmem:[%s256 + $0x30] sm:$0xff]
      %v289 = vld [vmem:[%s256 + $0x38] sm:$0xff]
      %v290 = vld [vmem:[%s256 + $0x40] sm:$0xff]
      %v291 = vld [vmem:[%s256 + $0x48] sm:$0xff]
      %v292 = vld [vmem:[%s256 + $0x50] sm:$0xff]
      %v293 = vld [vmem:[%s256 + $0x58] sm:$0xff]
      %v294 = vld [vmem:[%s256 + $0x60] sm:$0xff]
      %v295 = vld [vmem:[%s256 + $0x68] sm:$0xff]
      %v296 = vld [vmem:[%s256 + $0x70] sm:$0xff]
      %v297 = vld [vmem:[%s256 + $0x78] sm:$0xff]
      %v298 = vld [vmem:[%s256 + $0x80] sm:$0xff]
      %v299 = vld [vmem:[%s256 + $0x88] sm:$0xff]
      %v300 = vld [vmem:[%s256 + $0x90] sm:$0xff]
      %v301 = vld [vmem:[%s256 + $0x98] sm:$0xff]
      %v302 = vld [vmem:[%s256 + $0xa0] sm:$0xff]
      %v303 = vld [vmem:[%s256 + $0xa8] sm:$0xff]
      %v304 = vld [vmem:[%s256 + $0xb0] sm:$0xff]
      %v305 = vld [vmem:[%s256 + $0xb8] sm:$0xff]
      %v306 = vld [vmem:[%s256 + $0xc0] sm:$0xff]
      %v307 = vld [vmem:[%s256 + $0xc8] sm:$0xff]
      %v308 = vld [vmem:[%s256 + $0xd0] sm:$0xff]
      %v309 = vld [vmem:[%s256 + $0xd8] sm:$0xff]
      %v310 = vld [vmem:[%s256 + $0xe0] sm:$0xff]
      %v311 = vld [vmem:[%s256 + $0xe8] sm:$0xff]
      %v312 = vld [vmem:[%s256 + $0xf0] sm:$0xff]
      %v313 = vld [vmem:[%s256 + $0xf8] sm:$0xff]
      %v314 = vld [vmem:[%s256 + $0x100] sm:$0xff]
      %v315 = vld [vmem:[%s256 + $0x108] sm:$0xff]
      %v316 = vld [vmem:[%s256 + $0x110] sm:$0xff]
      %v317 = vld [vmem:[%s256 + $0x118] sm:$0xff]
      %v318 = vld [vmem:[%s256 + $0x120] sm:$0xff]
      %v319 = vld [vmem:[%s256 + $0x128] sm:$0xff]
      %v320 = vld [vmem:[%s256 + $0x130] sm:$0xff]
      %v321 = vld [vmem:[%s256 + $0x138] sm:$0xff]
      %v322 = vld [vmem:[%s256 + $0x140] sm:$0xff]
      %v323 = vld [vmem:[%s256 + $0x148] sm:$0xff]
      %v324 = vld [vmem:[%s256 + $0x150] sm:$0xff]
      %v325 = vld [vmem:[%s256 + $0x158] sm:$0xff]
      %v326 = vld [vmem:[%s256 + $0x160] sm:$0xff]
      %v327 = vld [vmem:[%s256 + $0x168] sm:$0xff]
      %v328 = vld [vmem:[%s256 + $0x170] sm:$0xff]
      %v329 = vld [vmem:[%s256 + $0x178] sm:$0xff]
      %v330 = vld [vmem:[%s256 + $0x180] sm:$0xff]
      %v331 = vld [vmem:[%s256 + $0x188] sm:$0xff]
      %v332 = vld [vmem:[%s256 + $0x190] sm:$0xff]
      %v333 = vld [vmem:[%s256 + $0x198] sm:$0xff]
      %v334 = vld [vmem:[%s256 + $0x1a0] sm:$0xff]
      %v335 = vld [vmem:[%s256 + $0x1a8] sm:$0xff]
      %v336 = vld [vmem:[%s256 + $0x1b0] sm:$0xff]
      %v337 = vld [vmem:[%s256 + $0x1b8] sm:$0xff]
      %v338 = vld [vmem:[%s256 + $0x1c0] sm:$0xff]
      %v339 = vld [vmem:[%s256 + $0x1c8] sm:$0xff]
      %v340 = vld [vmem:[%s256 + $0x1d0] sm:$0xff]
      %v341 = vld [vmem:[%s256 + $0x1d8] sm:$0xff]
      %v342 = vld [vmem:[%s256 + $0x1e0] sm:$0xff]
      %v343 = vld [vmem:[%s256 + $0x1e8] sm:$0xff]
      %v344 = vld [vmem:[%s256 + $0x1f0] sm:$0xff]
      %v345 = vld [vmem:[%s256 + $0x1f8] sm:$0xff]
      %v346 = vld [vmem:[%s262] sm:$0xf]
      %v347 = vld [vmem:[%s262 + $0x4] sm:$0xf]
      %v348 = vld [vmem:[%s262 + $0x8] sm:$0xf]
      %v349 = vld [vmem:[%s262 + $0xc] sm:$0xf]
      %v350 = vld [vmem:[%s262 + $0x10] sm:$0xf]
      %v351 = vld [vmem:[%s262 + $0x14] sm:$0xf]
      %v352 = vld [vmem:[%s262 + $0x18] sm:$0xf]
      %v353 = vld [vmem:[%s262 + $0x1c] sm:$0xf]
      %v354 = vld [vmem:[%s262 + $0x20] sm:$0xf]
      %v355 = vld [vmem:[%s262 + $0x24] sm:$0xf]
      %v356 = vld [vmem:[%s262 + $0x28] sm:$0xf]
      %v357 = vld [vmem:[%s262 + $0x2c] sm:$0xf]
      %v358 = vld [vmem:[%s262 + $0x30] sm:$0xf]
      %v359 = vld [vmem:[%s262 + $0x34] sm:$0xf]
      %v360 = vld [vmem:[%s262 + $0x38] sm:$0xf]
      %v361 = vld [vmem:[%s262 + $0x3c] sm:$0xf]
      %v362 = vld [vmem:[%s262 + $0x40] sm:$0xf]
      %v363 = vld [vmem:[%s262 + $0x44] sm:$0xf]
      %v364 = vld [vmem:[%s262 + $0x48] sm:$0xf]
      %v365 = vld [vmem:[%s262 + $0x4c] sm:$0xf]
      %v366 = vld [vmem:[%s262 + $0x50] sm:$0xf]
      %v367 = vld [vmem:[%s262 + $0x54] sm:$0xf]
      %v368 = vld [vmem:[%s262 + $0x58] sm:$0xf]
      %v369 = vld [vmem:[%s262 + $0x5c] sm:$0xf]
      %v370 = vld [vmem:[%s262 + $0x60] sm:$0xf]
      %v371 = vld [vmem:[%s262 + $0x64] sm:$0xf]
      %v372 = vld [vmem:[%s262 + $0x68] sm:$0xf]
      %v373 = vld [vmem:[%s262 + $0x6c] sm:$0xf]
      %v374 = vld [vmem:[%s262 + $0x70] sm:$0xf]
      %v375 = vld [vmem:[%s262 + $0x74] sm:$0xf]
      %v376 = vld [vmem:[%s262 + $0x78] sm:$0xf]
      %v377 = vld [vmem:[%s262 + $0x7c] sm:$0xf]
      %v378 = vld [vmem:[%s262 + $0x80] sm:$0xf]
      %v379 = vld [vmem:[%s262 + $0x84] sm:$0xf]
      %v380 = vld [vmem:[%s262 + $0x88] sm:$0xf]
      %v381 = vld [vmem:[%s262 + $0x8c] sm:$0xf]
      %v382 = vld [vmem:[%s262 + $0x90] sm:$0xf]
      %v383 = vld [vmem:[%s262 + $0x94] sm:$0xf]
      %v384 = vld [vmem:[%s262 + $0x98] sm:$0xf]
      %v385 = vld [vmem:[%s262 + $0x9c] sm:$0xf]
      %v386 = vld [vmem:[%s262 + $0xa0] sm:$0xf]
      %v387 = vld [vmem:[%s262 + $0xa4] sm:$0xf]
      %v388 = vld [vmem:[%s262 + $0xa8] sm:$0xf]
      %v389 = vld [vmem:[%s262 + $0xac] sm:$0xf]
      %v390 = vld [vmem:[%s262 + $0xb0] sm:$0xf]
      %v391 = vld [vmem:[%s262 + $0xb4] sm:$0xf]
      %v392 = vld [vmem:[%s262 + $0xb8] sm:$0xf]
      %v393 = vld [vmem:[%s262 + $0xbc] sm:$0xf]
      %v394 = vld [vmem:[%s262 + $0xc0] sm:$0xf]
      %v395 = vld [vmem:[%s262 + $0xc4] sm:$0xf]
      %v396 = vld [vmem:[%s262 + $0xc8] sm:$0xf]
      %v397 = vld [vmem:[%s262 + $0xcc] sm:$0xf]
      %v398 = vld [vmem:[%s262 + $0xd0] sm:$0xf]
      %v399 = vld [vmem:[%s262 + $0xd4] sm:$0xf]
      %v400 = vld [vmem:[%s262 + $0xd8] sm:$0xf]
      %v401 = vld [vmem:[%s262 + $0xdc] sm:$0xf]
      %v402 = vld [vmem:[%s262 + $0xe0] sm:$0xf]
      %v403 = vld [vmem:[%s262 + $0xe4] sm:$0xf]
      %v404 = vld [vmem:[%s262 + $0xe8] sm:$0xf]
      %v405 = vld [vmem:[%s262 + $0xec] sm:$0xf]
      %v406 = vld [vmem:[%s262 + $0xf0] sm:$0xf]
      %v407 = vld [vmem:[%s262 + $0xf4] sm:$0xf]
      %v408 = vld [vmem:[%s262 + $0xf8] sm:$0xf]
      %v409 = vld [vmem:[%s262 + $0xfc] sm:$0xf]
      %v410 = vld [vmem:[%s2] sm:$0x1]
      %v412 = vlaneseq
      %v413 = vshrl.u32 %v412, 7
      %v414 = vsub.s32 0, %v413
      %v415 = vrot.slane %v410, %v414
      %v481 = vunpack.c.l.b16 %v282
      %v482 = vunpack.c.h.b16 %v282
      %v483 = vunpack.c.l.b16 %v283
      %v484 = vunpack.c.h.b16 %v283
      %v485 = vunpack.c.l.b16 %v284
      %v486 = vunpack.c.h.b16 %v284
      %v487 = vunpack.c.l.b16 %v285
      %v488 = vunpack.c.h.b16 %v285
      %v489 = vunpack.c.l.b16 %v286
      %v490 = vunpack.c.h.b16 %v286
      %v491 = vunpack.c.l.b16 %v287
      %v492 = vunpack.c.h.b16 %v287
      %v493 = vunpack.c.l.b16 %v288
      %v494 = vunpack.c.h.b16 %v288
      %v495 = vunpack.c.l.b16 %v289
      %v496 = vunpack.c.h.b16 %v289
      %v497 = vunpack.c.l.b16 %v290
      %v498 = vunpack.c.h.b16 %v290
      %v499 = vunpack.c.l.b16 %v291
      %v500 = vunpack.c.h.b16 %v291
      %v501 = vunpack.c.l.b16 %v292
      %v502 = vunpack.c.h.b16 %v292
      %v503 = vunpack.c.l.b16 %v293
      %v504 = vunpack.c.h.b16 %v293
      %v505 = vunpack.c.l.b16 %v294
      %v506 = vunpack.c.h.b16 %v294
      %v507 = vunpack.c.l.b16 %v295
      %v508 = vunpack.c.h.b16 %v295
      %v509 = vunpack.c.l.b16 %v296
      %v510 = vunpack.c.h.b16 %v296
      %v511 = vunpack.c.l.b16 %v297
      %v512 = vunpack.c.h.b16 %v297
      %v513 = vunpack.c.l.b16 %v298
      %v514 = vunpack.c.h.b16 %v298
      %v515 = vunpack.c.l.b16 %v299
      %v516 = vunpack.c.h.b16 %v299
      %v517 = vunpack.c.l.b16 %v300
      %v518 = vunpack.c.h.b16 %v300
      %v519 = vunpack.c.l.b16 %v301
      %v520 = vunpack.c.h.b16 %v301
      %v521 = vunpack.c.l.b16 %v302
      %v522 = vunpack.c.h.b16 %v302
      %v523 = vunpack.c.l.b16 %v303
      %v524 = vunpack.c.h.b16 %v303
      %v525 = vunpack.c.l.b16 %v304
      %v526 = vunpack.c.h.b16 %v304
      %v527 = vunpack.c.l.b16 %v305
      %v528 = vunpack.c.h.b16 %v305
      %v529 = vunpack.c.l.b16 %v306
      %v530 = vunpack.c.h.b16 %v306
      %v531 = vunpack.c.l.b16 %v307
      %v532 = vunpack.c.h.b16 %v307
      %v533 = vunpack.c.l.b16 %v308
      %v534 = vunpack.c.h.b16 %v308
      %v535 = vunpack.c.l.b16 %v309
      %v536 = vunpack.c.h.b16 %v309
      %v537 = vunpack.c.l.b16 %v310
      %v538 = vunpack.c.h.b16 %v310
      %v539 = vunpack.c.l.b16 %v311
      %v540 = vunpack.c.h.b16 %v311
      %v541 = vunpack.c.l.b16 %v312
      %v542 = vunpack.c.h.b16 %v312
      %v543 = vunpack.c.l.b16 %v313
      %v544 = vunpack.c.h.b16 %v313
      %v545 = vunpack.c.l.b16 %v314
      %v546 = vunpack.c.h.b16 %v314
      %v547 = vunpack.c.l.b16 %v315
      %v548 = vunpack.c.h.b16 %v315
      %v549 = vunpack.c.l.b16 %v316
      %v550 = vunpack.c.h.b16 %v316
      %v551 = vunpack.c.l.b16 %v317
      %v552 = vunpack.c.h.b16 %v317
      %v553 = vunpack.c.l.b16 %v318
      %v554 = vunpack.c.h.b16 %v318
      %v555 = vunpack.c.l.b16 %v319
      %v556 = vunpack.c.h.b16 %v319
      %v557 = vunpack.c.l.b16 %v320
      %v558 = vunpack.c.h.b16 %v320
      %v559 = vunpack.c.l.b16 %v321
      %v560 = vunpack.c.h.b16 %v321
      %v561 = vunpack.c.l.b16 %v322
      %v562 = vunpack.c.h.b16 %v322
      %v563 = vunpack.c.l.b16 %v323
      %v564 = vunpack.c.h.b16 %v323
      %v565 = vunpack.c.l.b16 %v324
      %v566 = vunpack.c.h.b16 %v324
      %v567 = vunpack.c.l.b16 %v325
      %v568 = vunpack.c.h.b16 %v325
      %v569 = vunpack.c.l.b16 %v326
      %v570 = vunpack.c.h.b16 %v326
      %v571 = vunpack.c.l.b16 %v327
      %v572 = vunpack.c.h.b16 %v327
      %v573 = vunpack.c.l.b16 %v328
      %v574 = vunpack.c.h.b16 %v328
      %v575 = vunpack.c.l.b16 %v329
      %v576 = vunpack.c.h.b16 %v329
      %v577 = vunpack.c.l.b16 %v330
      %v578 = vunpack.c.h.b16 %v330
      %v579 = vunpack.c.l.b16 %v331
      %v580 = vunpack.c.h.b16 %v331
      %v581 = vunpack.c.l.b16 %v332
      %v582 = vunpack.c.h.b16 %v332
      %v583 = vunpack.c.l.b16 %v333
      %v584 = vunpack.c.h.b16 %v333
      %v585 = vunpack.c.l.b16 %v334
      %v586 = vunpack.c.h.b16 %v334
      %v587 = vunpack.c.l.b16 %v335
      %v588 = vunpack.c.h.b16 %v335
      %v589 = vunpack.c.l.b16 %v336
      %v590 = vunpack.c.h.b16 %v336
      %v591 = vunpack.c.l.b16 %v337
      %v592 = vunpack.c.h.b16 %v337
      %v593 = vunpack.c.l.b16 %v338
      %v594 = vunpack.c.h.b16 %v338
      %v595 = vunpack.c.l.b16 %v339
      %v596 = vunpack.c.h.b16 %v339
      %v597 = vunpack.c.l.b16 %v340
      %v598 = vunpack.c.h.b16 %v340
      %v599 = vunpack.c.l.b16 %v341
      %v600 = vunpack.c.h.b16 %v341
      %v601 = vunpack.c.l.b16 %v342
      %v602 = vunpack.c.h.b16 %v342
      %v603 = vunpack.c.l.b16 %v343
      %v604 = vunpack.c.h.b16 %v343
      %v605 = vunpack.c.l.b16 %v344
      %v606 = vunpack.c.h.b16 %v344
      %v607 = vunpack.c.l.b16 %v345
      %v608 = vunpack.c.h.b16 %v345
      %v609 = vpack.c.b16 %v485, %v481
      %v610 = vpack.c.b16 %v486, %v482
      %v611 = vpack.c.b16 %v487, %v483
      %v612 = vpack.c.b16 %v488, %v484
      %v613 = vpack.c.b16 %v493, %v489
      %v614 = vpack.c.b16 %v494, %v490
      %v615 = vpack.c.b16 %v495, %v491
      %v616 = vpack.c.b16 %v496, %v492
      %v617 = vpack.c.b16 %v501, %v497
      %v618 = vpack.c.b16 %v502, %v498
      %v619 = vpack.c.b16 %v503, %v499
      %v620 = vpack.c.b16 %v504, %v500
      %v621 = vpack.c.b16 %v509, %v505
      %v622 = vpack.c.b16 %v510, %v506
      %v623 = vpack.c.b16 %v511, %v507
      %v624 = vpack.c.b16 %v512, %v508
      %v625 = vpack.c.b16 %v517, %v513
      %v626 = vpack.c.b16 %v518, %v514
      %v627 = vpack.c.b16 %v519, %v515
      %v628 = vpack.c.b16 %v520, %v516
      %v629 = vpack.c.b16 %v525, %v521
      %v630 = vpack.c.b16 %v526, %v522
      %v631 = vpack.c.b16 %v527, %v523
      %v632 = vpack.c.b16 %v528, %v524
      %v633 = vpack.c.b16 %v533, %v529
      %v634 = vpack.c.b16 %v534, %v530
      %v635 = vpack.c.b16 %v535, %v531
      %v636 = vpack.c.b16 %v536, %v532
      %v637 = vpack.c.b16 %v541, %v537
      %v638 = vpack.c.b16 %v542, %v538
      %v639 = vpack.c.b16 %v543, %v539
      %v640 = vpack.c.b16 %v544, %v540
      %v641 = vpack.c.b16 %v549, %v545
      %v642 = vpack.c.b16 %v550, %v546
      %v643 = vpack.c.b16 %v551, %v547
      %v644 = vpack.c.b16 %v552, %v548
      %v645 = vpack.c.b16 %v557, %v553
      %v646 = vpack.c.b16 %v558, %v554
      %v647 = vpack.c.b16 %v559, %v555
      %v648 = vpack.c.b16 %v560, %v556
      %v649 = vpack.c.b16 %v565, %v561
      %v650 = vpack.c.b16 %v566, %v562
      %v651 = vpack.c.b16 %v567, %v563
      %v652 = vpack.c.b16 %v568, %v564
      %v653 = vpack.c.b16 %v573, %v569
      %v654 = vpack.c.b16 %v574, %v570
      %v655 = vpack.c.b16 %v575, %v571
      %v656 = vpack.c.b16 %v576, %v572
      %v657 = vpack.c.b16 %v581, %v577
      %v658 = vpack.c.b16 %v582, %v578
      %v659 = vpack.c.b16 %v583, %v579
      %v660 = vpack.c.b16 %v584, %v580
      %v661 = vpack.c.b16 %v589, %v585
      %v662 = vpack.c.b16 %v590, %v586
      %v663 = vpack.c.b16 %v591, %v587
      %v664 = vpack.c.b16 %v592, %v588
      %v665 = vpack.c.b16 %v597, %v593
      %v666 = vpack.c.b16 %v598, %v594
      %v667 = vpack.c.b16 %v599, %v595
      %v668 = vpack.c.b16 %v600, %v596
      %v669 = vpack.c.b16 %v605, %v601
      %v670 = vpack.c.b16 %v606, %v602
      %v671 = vpack.c.b16 %v607, %v603
      %v672 = vpack.c.b16 %v608, %v604
      %v801 = vunpack.c.l.b16 %v346
      %v802 = vunpack.c.l.b16 %v347
      %v803 = vunpack.c.l.b16 %v348
      %v804 = vunpack.c.l.b16 %v349
      %v805 = vunpack.c.l.b16 %v350
      %v806 = vunpack.c.l.b16 %v351
      %v807 = vunpack.c.l.b16 %v352
      %v808 = vunpack.c.l.b16 %v353
      %v809 = vunpack.c.l.b16 %v354
      %v810 = vunpack.c.l.b16 %v355
      %v811 = vunpack.c.l.b16 %v356
      %v812 = vunpack.c.l.b16 %v357
      %v813 = vunpack.c.l.b16 %v358
      %v814 = vunpack.c.l.b16 %v359
      %v815 = vunpack.c.l.b16 %v360
      %v816 = vunpack.c.l.b16 %v361
      %v817 = vunpack.c.l.b16 %v362
      %v818 = vunpack.c.l.b16 %v363
      %v819 = vunpack.c.l.b16 %v364
      %v820 = vunpack.c.l.b16 %v365
      %v821 = vunpack.c.l.b16 %v366
      %v822 = vunpack.c.l.b16 %v367
      %v823 = vunpack.c.l.b16 %v368
      %v824 = vunpack.c.l.b16 %v369
      %v825 = vunpack.c.l.b16 %v370
      %v826 = vunpack.c.l.b16 %v371
      %v827 = vunpack.c.l.b16 %v372
      %v828 = vunpack.c.l.b16 %v373
      %v829 = vunpack.c.l.b16 %v374
      %v830 = vunpack.c.l.b16 %v375
      %v831 = vunpack.c.l.b16 %v376
      %v832 = vunpack.c.l.b16 %v377
      %v833 = vunpack.c.l.b16 %v378
      %v834 = vunpack.c.l.b16 %v379
      %v835 = vunpack.c.l.b16 %v380
      %v836 = vunpack.c.l.b16 %v381
      %v837 = vunpack.c.l.b16 %v382
      %v838 = vunpack.c.l.b16 %v383
      %v839 = vunpack.c.l.b16 %v384
      %v840 = vunpack.c.l.b16 %v385
      %v841 = vunpack.c.l.b16 %v386
      %v842 = vunpack.c.l.b16 %v387
      %v843 = vunpack.c.l.b16 %v388
      %v844 = vunpack.c.l.b16 %v389
      %v845 = vunpack.c.l.b16 %v390
      %v846 = vunpack.c.l.b16 %v391
      %v847 = vunpack.c.l.b16 %v392
      %v848 = vunpack.c.l.b16 %v393
      %v849 = vunpack.c.l.b16 %v394
      %v850 = vunpack.c.l.b16 %v395
      %v851 = vunpack.c.l.b16 %v396
      %v852 = vunpack.c.l.b16 %v397
      %v853 = vunpack.c.l.b16 %v398
      %v854 = vunpack.c.l.b16 %v399
      %v855 = vunpack.c.l.b16 %v400
      %v856 = vunpack.c.l.b16 %v401
      %v857 = vunpack.c.l.b16 %v402
      %v858 = vunpack.c.l.b16 %v403
      %v859 = vunpack.c.l.b16 %v404
      %v860 = vunpack.c.l.b16 %v405
      %v861 = vunpack.c.l.b16 %v406
      %v862 = vunpack.c.l.b16 %v407
      %v863 = vunpack.c.l.b16 %v408
      %v864 = vunpack.c.l.b16 %v409
      %v865 = vpack.c.b16 %v802, %v801
      %v866 = vpack.c.b16 %v804, %v803
      %v867 = vpack.c.b16 %v806, %v805
      %v868 = vpack.c.b16 %v808, %v807
      %v869 = vpack.c.b16 %v810, %v809
      %v870 = vpack.c.b16 %v812, %v811
      %v871 = vpack.c.b16 %v814, %v813
      %v872 = vpack.c.b16 %v816, %v815
      %v873 = vpack.c.b16 %v818, %v817
      %v874 = vpack.c.b16 %v820, %v819
      %v875 = vpack.c.b16 %v822, %v821
      %v876 = vpack.c.b16 %v824, %v823
      %v877 = vpack.c.b16 %v826, %v825
      %v878 = vpack.c.b16 %v828, %v827
      %v879 = vpack.c.b16 %v830, %v829
      %v880 = vpack.c.b16 %v832, %v831
      %v881 = vpack.c.b16 %v834, %v833
      %v882 = vpack.c.b16 %v836, %v835
      %v883 = vpack.c.b16 %v838, %v837
      %v884 = vpack.c.b16 %v840, %v839
      %v885 = vpack.c.b16 %v842, %v841
      %v886 = vpack.c.b16 %v844, %v843
      %v887 = vpack.c.b16 %v846, %v845
      %v888 = vpack.c.b16 %v848, %v847
      %v889 = vpack.c.b16 %v850, %v849
      %v890 = vpack.c.b16 %v852, %v851
      %v891 = vpack.c.b16 %v854, %v853
      %v892 = vpack.c.b16 %v856, %v855
      %v893 = vpack.c.b16 %v858, %v857
      %v894 = vpack.c.b16 %v860, %v859
      %v895 = vpack.c.b16 %v862, %v861
      %v896 = vpack.c.b16 %v864, %v863
      %929 = vmatprep.subr.bf16.mxu0 0
      %930 = vmatpush1.bf16.msra.mxu0 %v865
      %931 = vmatprep.subr.bf16.mxu0 0
      %932 = vmatpush1.bf16.msra.mxu0 %v866
      %933 = vmatprep.subr.bf16.mxu0 0
      %934 = vmatpush1.bf16.msra.mxu0 %v867
      %935 = vmatprep.subr.bf16.mxu0 0
      %936 = vmatpush1.bf16.msra.mxu0 %v868
      %937 = vmatprep.subr.bf16.mxu0 0
      %938 = vmatpush1.bf16.msra.mxu0 %v869
      %939 = vmatprep.subr.bf16.mxu0 0
      %940 = vmatpush1.bf16.msra.mxu0 %v870
      %941 = vmatprep.subr.bf16.mxu0 0
      %942 = vmatpush1.bf16.msra.mxu0 %v871
      %943 = vmatprep.subr.bf16.mxu0 0
      %944 = vmatpush1.bf16.msra.mxu0 %v872
      %945 = vmatprep.subr.bf16.mxu0 0
      %946 = vmatpush1.bf16.msra.mxu0 %v873
      %947 = vmatprep.subr.bf16.mxu0 0
      %948 = vmatpush1.bf16.msra.mxu0 %v874
      %949 = vmatprep.subr.bf16.mxu0 0
      %950 = vmatpush1.bf16.msra.mxu0 %v875
      %951 = vmatprep.subr.bf16.mxu0 0
      %952 = vmatpush1.bf16.msra.mxu0 %v876
      %953 = vmatprep.subr.bf16.mxu0 0
      %954 = vmatpush1.bf16.msra.mxu0 %v877
      %955 = vmatprep.subr.bf16.mxu0 0
      %956 = vmatpush1.bf16.msra.mxu0 %v878
      %957 = vmatprep.subr.bf16.mxu0 0
      %958 = vmatpush1.bf16.msra.mxu0 %v879
      %959 = vmatprep.subr.bf16.mxu0 0
      %960 = vmatpush1.bf16.msra.mxu0 %v880
      %961 = vmatprep.mubr.bf16.mxu0 %v610
      %962 = vmatmul.mubr.bf16.gmra.mrb[0].mxu0 %v609
      %v963 = vpop.f32.mrb[0].mxu0
      %v964 = vadd.f32 %v415, %v963
      %v965 = vpop.f32.mrb[0].mxu0
      %v966 = vpop.f32.mrb[0].mxu0
      %v967 = vadd.f32 %v415, %v966
      %v968 = vpop.f32.mrb[0].mxu0
      %969 = vmatprep.mubr.bf16.mxu0 %v614
      %970 = vmatmul.mubr.bf16.gmra.mrb[0].mxu0 %v613
      %v971 = vpop.f32.mrb[0].mxu0
      %v972 = vadd.f32 %v415, %v971
      %v973 = vpop.f32.mrb[0].mxu0
      %v974 = vpop.f32.mrb[0].mxu0
      %v975 = vadd.f32 %v415, %v974
      %v976 = vpop.f32.mrb[0].mxu0
      %977 = vmatprep.mubr.bf16.mxu0 %v618
      %978 = vmatmul.mubr.bf16.gmra.mrb[0].mxu0 %v617
      %v979 = vpop.f32.mrb[0].mxu0
      %v980 = vadd.f32 %v415, %v979
      %v981 = vpop.f32.mrb[0].mxu0
      %v982 = vpop.f32.mrb[0].mxu0
      %v983 = vadd.f32 %v415, %v982
      %v984 = vpop.f32.mrb[0].mxu0
      %985 = vmatprep.mubr.bf16.mxu0 %v622
      %986 = vmatmul.mubr.bf16.gmra.mrb[0].mxu0 %v621
      %v987 = vpop.f32.mrb[0].mxu0
      %v988 = vadd.f32 %v415, %v987
      %v989 = vpop.f32.mrb[0].mxu0
      %v990 = vpop.f32.mrb[0].mxu0
      %v991 = vadd.f32 %v415, %v990
      %v992 = vpop.f32.mrb[0].mxu0
      %993 = vmatprep.mubr.bf16.mxu0 %v626
      %994 = vmatmul.mubr.bf16.gmra.mrb[0].mxu0 %v625
      %v995 = vpop.f32.mrb[0].mxu0
      %v996 = vadd.f32 %v415, %v995
      %v997 = vpop.f32.mrb[0].mxu0
      %v998 = vpop.f32.mrb[0].mxu0
      %v999 = vadd.f32 %v415, %v998
      %v1000 = vpop.f32.mrb[0].mxu0
      %1001 = vmatprep.mubr.bf16.mxu0 %v630
      %1002 = vmatmul.mubr.bf16.gmra.mrb[0].mxu0 %v629
      %v1003 = vpop.f32.mrb[0].mxu0
      %v1004 = vadd.f32 %v415, %v1003
      %v1005 = vpop.f32.mrb[0].mxu0
      %v1006 = vpop.f32.mrb[0].mxu0
      %v1007 = vadd.f32 %v415, %v1006
      %v1008 = vpop.f32.mrb[0].mxu0
      %1009 = vmatprep.mubr.bf16.mxu0 %v634
      %1010 = vmatmul.mubr.bf16.gmra.mrb[0].mxu0 %v633
      %v1011 = vpop.f32.mrb[0].mxu0
      %v1012 = vadd.f32 %v415, %v1011
      %v1013 = vpop.f32.mrb[0].mxu0
      %v1014 = vpop.f32.mrb[0].mxu0
      %v1015 = vadd.f32 %v415, %v1014
      %v1016 = vpop.f32.mrb[0].mxu0
      %1017 = vmatprep.mubr.bf16.mxu0 %v638
      %1018 = vmatmul.mubr.bf16.gmra.mrb[0].mxu0 %v637
      %v1019 = vpop.f32.mrb[0].mxu0
      %v1020 = vadd.f32 %v415, %v1019
      %v1021 = vpop.f32.mrb[0].mxu0
      %v1022 = vpop.f32.mrb[0].mxu0
      %v1023 = vadd.f32 %v415, %v1022
      %v1024 = vpop.f32.mrb[0].mxu0
      %1025 = vmatprep.mubr.bf16.mxu0 %v642
      %1026 = vmatmul.mubr.bf16.gmra.mrb[0].mxu0 %v641
      %v1027 = vpop.f32.mrb[0].mxu0
      %v1028 = vadd.f32 %v415, %v1027
      %v1029 = vpop.f32.mrb[0].mxu0
      %v1030 = vpop.f32.mrb[0].mxu0
      %v1031 = vadd.f32 %v415, %v1030
      %v1032 = vpop.f32.mrb[0].mxu0
      %1033 = vmatprep.mubr.bf16.mxu0 %v646
      %1034 = vmatmul.mubr.bf16.gmra.mrb[0].mxu0 %v645
      %v1035 = vpop.f32.mrb[0].mxu0
      %v1036 = vadd.f32 %v415, %v1035
      %v1037 = vpop.f32.mrb[0].mxu0
      %v1038 = vpop.f32.mrb[0].mxu0
      %v1039 = vadd.f32 %v415, %v1038
      %v1040 = vpop.f32.mrb[0].mxu0
      %1041 = vmatprep.mubr.bf16.mxu0 %v650
      %1042 = vmatmul.mubr.bf16.gmra.mrb[0].mxu0 %v649
      %v1043 = vpop.f32.mrb[0].mxu0
      %v1044 = vadd.f32 %v415, %v1043
      %v1045 = vpop.f32.mrb[0].mxu0
      %v1046 = vpop.f32.mrb[0].mxu0
      %v1047 = vadd.f32 %v415, %v1046
      %v1048 = vpop.f32.mrb[0].mxu0
      %1049 = vmatprep.mubr.bf16.mxu0 %v654
      %1050 = vmatmul.mubr.bf16.gmra.mrb[0].mxu0 %v653
      %v1051 = vpop.f32.mrb[0].mxu0
      %v1052 = vadd.f32 %v415, %v1051
      %v1053 = vpop.f32.mrb[0].mxu0
      %v1054 = vpop.f32.mrb[0].mxu0
      %v1055 = vadd.f32 %v415, %v1054
      %v1056 = vpop.f32.mrb[0].mxu0
      %1057 = vmatprep.mubr.bf16.mxu0 %v658
      %1058 = vmatmul.mubr.bf16.gmra.mrb[0].mxu0 %v657
      %v1059 = vpop.f32.mrb[0].mxu0
      %v1060 = vadd.f32 %v415, %v1059
      %v1061 = vpop.f32.mrb[0].mxu0
      %v1062 = vpop.f32.mrb[0].mxu0
      %v1063 = vadd.f32 %v415, %v1062
      %v1064 = vpop.f32.mrb[0].mxu0
      %1065 = vmatprep.mubr.bf16.mxu0 %v662
      %1066 = vmatmul.mubr.bf16.gmra.mrb[0].mxu0 %v661
      %v1067 = vpop.f32.mrb[0].mxu0
      %v1068 = vadd.f32 %v415, %v1067
      %v1069 = vpop.f32.mrb[0].mxu0
      %v1070 = vpop.f32.mrb[0].mxu0
      %v1071 = vadd.f32 %v415, %v1070
      %v1072 = vpop.f32.mrb[0].mxu0
      %1073 = vmatprep.mubr.bf16.mxu0 %v666
      %1074 = vmatmul.mubr.bf16.gmra.mrb[0].mxu0 %v665
      %v1075 = vpop.f32.mrb[0].mxu0
      %v1076 = vadd.f32 %v415, %v1075
      %v1077 = vpop.f32.mrb[0].mxu0
      %v1078 = vpop.f32.mrb[0].mxu0
      %v1079 = vadd.f32 %v415, %v1078
      %v1080 = vpop.f32.mrb[0].mxu0
      %1081 = vmatprep.mubr.bf16.mxu0 %v670
      %1082 = vmatmul.mubr.bf16.gmra.mrb[0].mxu0 %v669
      %v1083 = vpop.f32.mrb[0].mxu0
      %v1084 = vadd.f32 %v415, %v1083
      %v1085 = vpop.f32.mrb[0].mxu0
      %v1086 = vpop.f32.mrb[0].mxu0
      %v1087 = vadd.f32 %v415, %v1086
      %v1088 = vpop.f32.mrb[0].mxu0
      %1089 = vdwg.mxu0
      %1090 = vmatprep.subr.bf16.mxu0 0
      %1091 = vmatpush1.bf16.msra.mxu0 %v881
      %1092 = vmatprep.subr.bf16.mxu0 0
      %1093 = vmatpush1.bf16.msra.mxu0 %v882
      %1094 = vmatprep.subr.bf16.mxu0 0
      %1095 = vmatpush1.bf16.msra.mxu0 %v883
      %1096 = vmatprep.subr.bf16.mxu0 0
      %1097 = vmatpush1.bf16.msra.mxu0 %v884
      %1098 = vmatprep.subr.bf16.mxu0 0
      %1099 = vmatpush1.bf16.msra.mxu0 %v885
      %1100 = vmatprep.subr.bf16.mxu0 0
      %1101 = vmatpush1.bf16.msra.mxu0 %v886
      %1102 = vmatprep.subr.bf16.mxu0 0
      %1103 = vmatpush1.bf16.msra.mxu0 %v887
      %1104 = vmatprep.subr.bf16.mxu0 0
      %1105 = vmatpush1.bf16.msra.mxu0 %v888
      %1106 = vmatprep.subr.bf16.mxu0 0
      %1107 = vmatpush1.bf16.msra.mxu0 %v889
      %1108 = vmatprep.subr.bf16.mxu0 0
      %1109 = vmatpush1.bf16.msra.mxu0 %v890
      %1110 = vmatprep.subr.bf16.mxu0 0
      %1111 = vmatpush1.bf16.msra.mxu0 %v891
      %1112 = vmatprep.subr.bf16.mxu0 0
      %1113 = vmatpush1.bf16.msra.mxu0 %v892
      %1114 = vmatprep.subr.bf16.mxu0 0
      %1115 = vmatpush1.bf16.msra.mxu0 %v893
      %1116 = vmatprep.subr.bf16.mxu0 0
      %1117 = vmatpush1.bf16.msra.mxu0 %v894
      %1118 = vmatprep.subr.bf16.mxu0 0
      %1119 = vmatpush1.bf16.msra.mxu0 %v895
      %1120 = vmatprep.subr.bf16.mxu0 0
      %1121 = vmatpush1.bf16.msra.mxu0 %v896
      %1122 = vmatprep.mubr.bf16.mxu0 %v612
      %1123 = vmatmul.mubr.bf16.gmra.mrb[0].mxu0 %v611
      %v1124 = vpop.f32.mrb[0].mxu0
      %v1125 = vadd.f32 %v964, %v1124
      %v1126 = vpop.f32.mrb[0].mxu0
      %v1127 = vpop.f32.mrb[0].mxu0
      %v1128 = vadd.f32 %v967, %v1127
      %v1129 = vpop.f32.mrb[0].mxu0
      %1130 = vmatprep.mubr.bf16.mxu0 %v616
      %1131 = vmatmul.mubr.bf16.gmra.mrb[0].mxu0 %v615
      %v1132 = vpop.f32.mrb[0].mxu0
      %v1133 = vadd.f32 %v972, %v1132
      %v1134 = vpop.f32.mrb[0].mxu0
      %v1135 = vpop.f32.mrb[0].mxu0
      %v1136 = vadd.f32 %v975, %v1135
      %v1137 = vpop.f32.mrb[0].mxu0
      %1138 = vmatprep.mubr.bf16.mxu0 %v620
      %1139 = vmatmul.mubr.bf16.gmra.mrb[0].mxu0 %v619
      %v1140 = vpop.f32.mrb[0].mxu0
      %v1141 = vadd.f32 %v980, %v1140
      %v1142 = vpop.f32.mrb[0].mxu0
      %v1143 = vpop.f32.mrb[0].mxu0
      %v1144 = vadd.f32 %v983, %v1143
      %v1145 = vpop.f32.mrb[0].mxu0
      %1146 = vmatprep.mubr.bf16.mxu0 %v624
      %1147 = vmatmul.mubr.bf16.gmra.mrb[0].mxu0 %v623
      %v1148 = vpop.f32.mrb[0].mxu0
      %v1149 = vadd.f32 %v988, %v1148
      %v1150 = vpop.f32.mrb[0].mxu0
      %v1151 = vpop.f32.mrb[0].mxu0
      %v1152 = vadd.f32 %v991, %v1151
      %v1153 = vpop.f32.mrb[0].mxu0
      %1154 = vmatprep.mubr.bf16.mxu0 %v628
      %1155 = vmatmul.mubr.bf16.gmra.mrb[0].mxu0 %v627
      %v1156 = vpop.f32.mrb[0].mxu0
      %v1157 = vadd.f32 %v996, %v1156
      %v1158 = vpop.f32.mrb[0].mxu0
      %v1159 = vpop.f32.mrb[0].mxu0
      %v1160 = vadd.f32 %v999, %v1159
      %v1161 = vpop.f32.mrb[0].mxu0
      %1162 = vmatprep.mubr.bf16.mxu0 %v632
      %1163 = vmatmul.mubr.bf16.gmra.mrb[0].mxu0 %v631
      %v1164 = vpop.f32.mrb[0].mxu0
      %v1165 = vadd.f32 %v1004, %v1164
      %v1166 = vpop.f32.mrb[0].mxu0
      %v1167 = vpop.f32.mrb[0].mxu0
      %v1168 = vadd.f32 %v1007, %v1167
      %v1169 = vpop.f32.mrb[0].mxu0
      %1170 = vmatprep.mubr.bf16.mxu0 %v636
      %1171 = vmatmul.mubr.bf16.gmra.mrb[0].mxu0 %v635
      %v1172 = vpop.f32.mrb[0].mxu0
      %v1173 = vadd.f32 %v1012, %v1172
      %v1174 = vpop.f32.mrb[0].mxu0
      %v1175 = vpop.f32.mrb[0].mxu0
      %v1176 = vadd.f32 %v1015, %v1175
      %v1177 = vpop.f32.mrb[0].mxu0
      %1178 = vmatprep.mubr.bf16.mxu0 %v640
      %1179 = vmatmul.mubr.bf16.gmra.mrb[0].mxu0 %v639
      %v1180 = vpop.f32.mrb[0].mxu0
      %v1181 = vadd.f32 %v1020, %v1180
      %v1182 = vpop.f32.mrb[0].mxu0
      %v1183 = vpop.f32.mrb[0].mxu0
      %v1184 = vadd.f32 %v1023, %v1183
      %v1185 = vpop.f32.mrb[0].mxu0
      %1186 = vmatprep.mubr.bf16.mxu0 %v644
      %1187 = vmatmul.mubr.bf16.gmra.mrb[0].mxu0 %v643
      %v1188 = vpop.f32.mrb[0].mxu0
      %v1189 = vadd.f32 %v1028, %v1188
      %v1190 = vpop.f32.mrb[0].mxu0
      %v1191 = vpop.f32.mrb[0].mxu0
      %v1192 = vadd.f32 %v1031, %v1191
      %v1193 = vpop.f32.mrb[0].mxu0
      %1194 = vmatprep.mubr.bf16.mxu0 %v648
      %1195 = vmatmul.mubr.bf16.gmra.mrb[0].mxu0 %v647
      %v1196 = vpop.f32.mrb[0].mxu0
      %v1197 = vadd.f32 %v1036, %v1196
      %v1198 = vpop.f32.mrb[0].mxu0
      %v1199 = vpop.f32.mrb[0].mxu0
      %v1200 = vadd.f32 %v1039, %v1199
      %v1201 = vpop.f32.mrb[0].mxu0
      %1202 = vmatprep.mubr.bf16.mxu0 %v652
      %1203 = vmatmul.mubr.bf16.gmra.mrb[0].mxu0 %v651
      %v1204 = vpop.f32.mrb[0].mxu0
      %v1205 = vadd.f32 %v1044, %v1204
      %v1206 = vpop.f32.mrb[0].mxu0
      %v1207 = vpop.f32.mrb[0].mxu0
      %v1208 = vadd.f32 %v1047, %v1207
      %v1209 = vpop.f32.mrb[0].mxu0
      %1210 = vmatprep.mubr.bf16.mxu0 %v656
      %1211 = vmatmul.mubr.bf16.gmra.mrb[0].mxu0 %v655
      %v1212 = vpop.f32.mrb[0].mxu0
      %v1213 = vadd.f32 %v1052, %v1212
      %v1214 = vpop.f32.mrb[0].mxu0
      %v1215 = vpop.f32.mrb[0].mxu0
      %v1216 = vadd.f32 %v1055, %v1215
      %v1217 = vpop.f32.mrb[0].mxu0
      %1218 = vmatprep.mubr.bf16.mxu0 %v660
      %1219 = vmatmul.mubr.bf16.gmra.mrb[0].mxu0 %v659
      %v1220 = vpop.f32.mrb[0].mxu0
      %v1221 = vadd.f32 %v1060, %v1220
      %v1222 = vpop.f32.mrb[0].mxu0
      %v1223 = vpop.f32.mrb[0].mxu0
      %v1224 = vadd.f32 %v1063, %v1223
      %v1225 = vpop.f32.mrb[0].mxu0
      %1226 = vmatprep.mubr.bf16.mxu0 %v664
      %1227 = vmatmul.mubr.bf16.gmra.mrb[0].mxu0 %v663
      %v1228 = vpop.f32.mrb[0].mxu0
      %v1229 = vadd.f32 %v1068, %v1228
      %v1230 = vpop.f32.mrb[0].mxu0
      %v1231 = vpop.f32.mrb[0].mxu0
      %v1232 = vadd.f32 %v1071, %v1231
      %v1233 = vpop.f32.mrb[0].mxu0
      %1234 = vmatprep.mubr.bf16.mxu0 %v668
      %1235 = vmatmul.mubr.bf16.gmra.mrb[0].mxu0 %v667
      %v1236 = vpop.f32.mrb[0].mxu0
      %v1237 = vadd.f32 %v1076, %v1236
      %v1238 = vpop.f32.mrb[0].mxu0
      %v1239 = vpop.f32.mrb[0].mxu0
      %v1240 = vadd.f32 %v1079, %v1239
      %v1241 = vpop.f32.mrb[0].mxu0
      %1242 = vmatprep.mubr.bf16.mxu0 %v672
      %1243 = vmatmul.mubr.bf16.gmra.mrb[0].mxu0 %v671
      %v1244 = vpop.f32.mrb[0].mxu0
      %v1245 = vadd.f32 %v1084, %v1244
      %v1246 = vpop.f32.mrb[0].mxu0
      %v1247 = vpop.f32.mrb[0].mxu0
      %v1248 = vadd.f32 %v1087, %v1247
      %v1249 = vpop.f32.mrb[0].mxu0
      %1250 = vdwg.mxu0
      %v1251 = vadd.f32 %v1125, %v1128
      %v1252 = vadd.f32 %v1251, %v1133
      %v1253 = vadd.f32 %v1252, %v1136
      %v1254 = vadd.f32 %v1253, %v1141
      %v1255 = vadd.f32 %v1254, %v1144
      %v1256 = vadd.f32 %v1255, %v1149
      %v1257 = vadd.f32 %v1256, %v1152
      %v1258 = vadd.f32 %v1257, %v1157
      %v1259 = vadd.f32 %v1258, %v1160
      %v1260 = vadd.f32 %v1259, %v1165
      %v1261 = vadd.f32 %v1260, %v1168
      %v1262 = vadd.f32 %v1261, %v1173
      %v1263 = vadd.f32 %v1262, %v1176
      %v1264 = vadd.f32 %v1263, %v1181
      %v1265 = vadd.f32 %v1264, %v1184
      %v1266 = vadd.f32 %v1265, %v1189
      %v1267 = vadd.f32 %v1266, %v1192
      %v1268 = vadd.f32 %v1267, %v1197
      %v1269 = vadd.f32 %v1268, %v1200
      %v1270 = vadd.f32 %v1269, %v1205
      %v1271 = vadd.f32 %v1270, %v1208
      %v1272 = vadd.f32 %v1271, %v1213
      %v1273 = vadd.f32 %v1272, %v1216
      %v1274 = vadd.f32 %v1273, %v1221
      %v1275 = vadd.f32 %v1274, %v1224
      %v1276 = vadd.f32 %v1275, %v1229
      %v1277 = vadd.f32 %v1276, %v1232
      %v1278 = vadd.f32 %v1277, %v1237
      %v1279 = vadd.f32 %v1278, %v1240
      %v1280 = vadd.f32 %v1279, %v1245
      %v1281 = vadd.f32 %v1280, %v1248
      %v1282 = vrot.slane %v1281, 4
      %v1283 = vadd.f32 %v1281, %v1282
      %v1284 = vrot.slane %v1283, 2
      %v1285 = vadd.f32 %v1283, %v1284
      %v1286 = vrot.slane %v1285, 1
      %v1287 = vadd.f32 %v1285, %v1286
      %v1288 = vmul.f32 %v1125, %v1125
      %v1289 = vmul.f32 %v1128, %v1128
      %v1290 = vmul.f32 %v1133, %v1133
      %v1291 = vmul.f32 %v1136, %v1136
      %v1292 = vmul.f32 %v1141, %v1141
      %v1293 = vmul.f32 %v1144, %v1144
      %v1294 = vmul.f32 %v1149, %v1149
      %v1295 = vmul.f32 %v1152, %v1152
      %v1296 = vmul.f32 %v1157, %v1157
      %v1297 = vmul.f32 %v1160, %v1160
      %v1298 = vmul.f32 %v1165, %v1165
      %v1299 = vmul.f32 %v1168, %v1168
      %v1300 = vmul.f32 %v1173, %v1173
      %v1301 = vmul.f32 %v1176, %v1176
      %v1302 = vmul.f32 %v1181, %v1181
      %v1303 = vmul.f32 %v1184, %v1184
      %v1304 = vmul.f32 %v1189, %v1189
      %v1305 = vmul.f32 %v1192, %v1192
      %v1306 = vmul.f32 %v1197, %v1197
      %v1307 = vmul.f32 %v1200, %v1200
      %v1308 = vmul.f32 %v1205, %v1205
      %v1309 = vmul.f32 %v1208, %v1208
      %v1310 = vmul.f32 %v1213, %v1213
      %v1311 = vmul.f32 %v1216, %v1216
      %v1312 = vmul.f32 %v1221, %v1221
      %v1313 = vmul.f32 %v1224, %v1224
      %v1314 = vmul.f32 %v1229, %v1229
      %v1315 = vmul.f32 %v1232, %v1232
      %v1316 = vmul.f32 %v1237, %v1237
      %v1317 = vmul.f32 %v1240, %v1240
      %v1318 = vmul.f32 %v1245, %v1245
      %v1319 = vmul.f32 %v1248, %v1248
      %v1320 = vadd.f32 %v1288, %v1289
      %v1321 = vadd.f32 %v1320, %v1290
      %v1322 = vadd.f32 %v1321, %v1291
      %v1323 = vadd.f32 %v1322, %v1292
      %v1324 = vadd.f32 %v1323, %v1293
      %v1325 = vadd.f32 %v1324, %v1294
      %v1326 = vadd.f32 %v1325, %v1295
      %v1327 = vadd.f32 %v1326, %v1296
      %v1328 = vadd.f32 %v1327, %v1297
      %v1329 = vadd.f32 %v1328, %v1298
      %v1330 = vadd.f32 %v1329, %v1299
      %v1331 = vadd.f32 %v1330, %v1300
      %v1332 = vadd.f32 %v1331, %v1301
      %v1333 = vadd.f32 %v1332, %v1302
      %v1334 = vadd.f32 %v1333, %v1303
      %v1335 = vadd.f32 %v1334, %v1304
      %v1336 = vadd.f32 %v1335, %v1305
      %v1337 = vadd.f32 %v1336, %v1306
      %v1338 = vadd.f32 %v1337, %v1307
      %v1339 = vadd.f32 %v1338, %v1308
      %v1340 = vadd.f32 %v1339, %v1309
      %v1341 = vadd.f32 %v1340, %v1310
      %v1342 = vadd.f32 %v1341, %v1311
      %v1343 = vadd.f32 %v1342, %v1312
      %v1344 = vadd.f32 %v1343, %v1313
      %v1345 = vadd.f32 %v1344, %v1314
      %v1346 = vadd.f32 %v1345, %v1315
      %v1347 = vadd.f32 %v1346, %v1316
      %v1348 = vadd.f32 %v1347, %v1317
      %v1349 = vadd.f32 %v1348, %v1318
      %v1350 = vadd.f32 %v1349, %v1319
      %v1351 = vrot.slane %v1350, 4
      %v1352 = vadd.f32 %v1350, %v1351
      %v1353 = vrot.slane %v1352, 2
      %v1354 = vadd.f32 %v1352, %v1353
      %v1355 = vrot.slane %v1354, 1
      %v1356 = vadd.f32 %v1354, %v1355
      %vm1357 = vcmask 1040384
      %v1358 = vsel %vm1357, %v1287, %v1356
      %1359 = vst [vmem:[%s280] sm:$0x3] %v1358
      %v1360 = vpack.c.bf16 %v1128, %v1125
      %v1361 = vpack.c.bf16 %v1136, %v1133
      %v1362 = vpack.c.bf16 %v1144, %v1141
      %v1363 = vpack.c.bf16 %v1152, %v1149
      %v1364 = vpack.c.bf16 %v1160, %v1157
      %v1365 = vpack.c.bf16 %v1168, %v1165
      %v1366 = vpack.c.bf16 %v1176, %v1173
      %v1367 = vpack.c.bf16 %v1184, %v1181
      %v1368 = vpack.c.bf16 %v1192, %v1189
      %v1369 = vpack.c.bf16 %v1200, %v1197
      %v1370 = vpack.c.bf16 %v1208, %v1205
      %v1371 = vpack.c.bf16 %v1216, %v1213
      %v1372 = vpack.c.bf16 %v1224, %v1221
      %v1373 = vpack.c.bf16 %v1232, %v1229
      %v1374 = vpack.c.bf16 %v1240, %v1237
      %v1375 = vpack.c.bf16 %v1248, %v1245
      %v1392 = vunpack.c.l.b16 %v1360
      %v1393 = vunpack.c.h.b16 %v1360
      %v1394 = vunpack.c.l.b16 %v1361
      %v1395 = vunpack.c.h.b16 %v1361
      %v1396 = vunpack.c.l.b16 %v1362
      %v1397 = vunpack.c.h.b16 %v1362
      %v1398 = vunpack.c.l.b16 %v1363
      %v1399 = vunpack.c.h.b16 %v1363
      %v1400 = vunpack.c.l.b16 %v1364
      %v1401 = vunpack.c.h.b16 %v1364
      %v1402 = vunpack.c.l.b16 %v1365
      %v1403 = vunpack.c.h.b16 %v1365
      %v1404 = vunpack.c.l.b16 %v1366
      %v1405 = vunpack.c.h.b16 %v1366
      %v1406 = vunpack.c.l.b16 %v1367
      %v1407 = vunpack.c.h.b16 %v1367
      %v1408 = vunpack.c.l.b16 %v1368
      %v1409 = vunpack.c.h.b16 %v1368
      %v1410 = vunpack.c.l.b16 %v1369
      %v1411 = vunpack.c.h.b16 %v1369
      %v1412 = vunpack.c.l.b16 %v1370
      %v1413 = vunpack.c.h.b16 %v1370
      %v1414 = vunpack.c.l.b16 %v1371
      %v1415 = vunpack.c.h.b16 %v1371
      %v1416 = vunpack.c.l.b16 %v1372
      %v1417 = vunpack.c.h.b16 %v1372
      %v1418 = vunpack.c.l.b16 %v1373
      %v1419 = vunpack.c.h.b16 %v1373
      %v1420 = vunpack.c.l.b16 %v1374
      %v1421 = vunpack.c.h.b16 %v1374
      %v1422 = vunpack.c.l.b16 %v1375
      %v1423 = vunpack.c.h.b16 %v1375
      %v1424 = vpack.c.b16 %v1392, %v1392
      %v1425 = vpack.c.b16 %v1393, %v1393
      %v1426 = vpack.c.b16 %v1394, %v1394
      %v1427 = vpack.c.b16 %v1395, %v1395
      %v1428 = vpack.c.b16 %v1396, %v1396
      %v1429 = vpack.c.b16 %v1397, %v1397
      %v1430 = vpack.c.b16 %v1398, %v1398
      %v1431 = vpack.c.b16 %v1399, %v1399
      %v1432 = vpack.c.b16 %v1400, %v1400
      %v1433 = vpack.c.b16 %v1401, %v1401
      %v1434 = vpack.c.b16 %v1402, %v1402
      %v1435 = vpack.c.b16 %v1403, %v1403
      %v1436 = vpack.c.b16 %v1404, %v1404
      %v1437 = vpack.c.b16 %v1405, %v1405
      %v1438 = vpack.c.b16 %v1406, %v1406
      %v1439 = vpack.c.b16 %v1407, %v1407
      %v1440 = vpack.c.b16 %v1408, %v1408
      %v1441 = vpack.c.b16 %v1409, %v1409
      %v1442 = vpack.c.b16 %v1410, %v1410
      %v1443 = vpack.c.b16 %v1411, %v1411
      %v1444 = vpack.c.b16 %v1412, %v1412
      %v1445 = vpack.c.b16 %v1413, %v1413
      %v1446 = vpack.c.b16 %v1414, %v1414
      %v1447 = vpack.c.b16 %v1415, %v1415
      %v1448 = vpack.c.b16 %v1416, %v1416
      %v1449 = vpack.c.b16 %v1417, %v1417
      %v1450 = vpack.c.b16 %v1418, %v1418
      %v1451 = vpack.c.b16 %v1419, %v1419
      %v1452 = vpack.c.b16 %v1420, %v1420
      %v1453 = vpack.c.b16 %v1421, %v1421
      %v1454 = vpack.c.b16 %v1422, %v1422
      %v1455 = vpack.c.b16 %v1423, %v1423
      %1488 = vst [vmem:[%s271] sm:$0xf] %v1424
      %1489 = vst [vmem:[%s271 + $0x4] sm:$0xf] %v1425
      %1490 = vst [vmem:[%s271 + $0x8] sm:$0xf] %v1426
      %1491 = vst [vmem:[%s271 + $0xc] sm:$0xf] %v1427
      %1492 = vst [vmem:[%s271 + $0x10] sm:$0xf] %v1428
      %1493 = vst [vmem:[%s271 + $0x14] sm:$0xf] %v1429
      %1494 = vst [vmem:[%s271 + $0x18] sm:$0xf] %v1430
      %1495 = vst [vmem:[%s271 + $0x1c] sm:$0xf] %v1431
      %1496 = vst [vmem:[%s271 + $0x20] sm:$0xf] %v1432
      %1497 = vst [vmem:[%s271 + $0x24] sm:$0xf] %v1433
      %1498 = vst [vmem:[%s271 + $0x28] sm:$0xf] %v1434
      %1499 = vst [vmem:[%s271 + $0x2c] sm:$0xf] %v1435
      %1500 = vst [vmem:[%s271 + $0x30] sm:$0xf] %v1436
      %1501 = vst [vmem:[%s271 + $0x34] sm:$0xf] %v1437
      %1502 = vst [vmem:[%s271 + $0x38] sm:$0xf] %v1438
      %1503 = vst [vmem:[%s271 + $0x3c] sm:$0xf] %v1439
      %1504 = vst [vmem:[%s271 + $0x40] sm:$0xf] %v1440
      %1505 = vst [vmem:[%s271 + $0x44] sm:$0xf] %v1441
      %1506 = vst [vmem:[%s271 + $0x48] sm:$0xf] %v1442
      %1507 = vst [vmem:[%s271 + $0x4c] sm:$0xf] %v1443
      %1508 = vst [vmem:[%s271 + $0x50] sm:$0xf] %v1444
      %1509 = vst [vmem:[%s271 + $0x54] sm:$0xf] %v1445
      %1510 = vst [vmem:[%s271 + $0x58] sm:$0xf] %v1446
      %1511 = vst [vmem:[%s271 + $0x5c] sm:$0xf] %v1447
      %1512 = vst [vmem:[%s271 + $0x60] sm:$0xf] %v1448
      %1513 = vst [vmem:[%s271 + $0x64] sm:$0xf] %v1449
      %1514 = vst [vmem:[%s271 + $0x68] sm:$0xf] %v1450
      %1515 = vst [vmem:[%s271 + $0x6c] sm:$0xf] %v1451
      %1516 = vst [vmem:[%s271 + $0x70] sm:$0xf] %v1452
      %1517 = vst [vmem:[%s271 + $0x74] sm:$0xf] %v1453
      %1518 = vst [vmem:[%s271 + $0x78] sm:$0xf] %v1454
      %1519 = vst [vmem:[%s271 + $0x7c] sm:$0xf] %v1455
      %s1520 = smul.u32 32, %s21
      %p1521 = scmp.lt.s32.totalorder %s20, 0
      %s1522 = scalar_select %p1521, %s20, 0
      %p1523 = scmp.lt.s32.totalorder %s1520, 63
      %s1524 = scalar_select %p1523, %s1520, 63
      %s1525 = smul.addr %s1522, 64
      %s1526 = sadd.s32 %s1524, %s1525
      %s1527 = smul.addr %s1526, 4
      %s1528 = scalar_lea.vmem %s3, %s1527
      %p1529 = scmp.lt.s32.totalorder %s20, 0
      %s1530 = scalar_select %p1529, %s20, 0
      %p1531 = scmp.lt.s32.totalorder %s21, 1
      %s1532 = scalar_select %p1531, %s21, 1
      %s1533 = smul.addr %s1530, 2
      %s1534 = sadd.s32 %s1532, %s1533
      %s1535 = smul.addr %s1534, 2
      %s1536 = scalar_lea.vmem %s4, %s1535
      // Predicated region
      $region33: #{g_net_forward.51} parent=31 // pred_check
        %p1537 = pneg %p123
      $region34: #{g_net_forward.51} parent=31 // pred_check_branch
        %1539 = sbr.rel (%p1537) target = $region36
      $region35: #{g_net_forward.51} parent=31 // pred_region
        %s1540 = smul.u32 32, %s21
      $region36: #{g_net_forward.51} parent=31 // pred_fallthru
        _
      // Predicated region
      $region37: #{g_net_forward.51} parent=31 // pred_check
        %p1541 = pneg %p151
      $region38: #{g_net_forward.51} parent=31 // pred_check_branch
        %1543 = sbr.rel (%p1541) target = $region40
      $region39: #{g_net_forward.51} parent=31 // pred_region
        _
      $region40: #{g_net_forward.51} parent=31 // pred_fallthru
        _
    $region32: #{g_net_forward.51} parent=5 // pred_fallthru
      _
    %p1544 = scmp.le.s32.totalorder 2, %s11
    // Predicated region
    $region41: #{g_net_forward.51} parent=5 // pred_check
      %p1545 = pneg %p1544
    $region42: #{g_net_forward.51} parent=5 // pred_check_branch
      %1547 = sbr.rel (%p1545) target = $region44
    $region43: #{g_net_forward.51} parent=5 // pred_region
      %s1548 = ssub.s32 %s11, 2
      // Predicated region
      $region45: #{g_net_forward.51} parent=43 // pred_check
        %p1549 = pneg %p129
      $region46: #{g_net_forward.51} parent=43 // pred_check_branch
        %1551 = sbr.rel (%p1549) target = $region48
      $region47: #{g_net_forward.51} parent=43 // pred_region
        %s1552 = smul.u32 32, %s23
        %p1553 = scmp.lt.s32.totalorder %s22, 0
        %s1554 = scalar_select %p1553, %s22, 0
        %p1555 = scmp.lt.s32.totalorder %s1552, 63
        %s1556 = scalar_select %p1555, %s1552, 63
        %s1557 = smul.addr %s1554, 64
        %s1558 = sadd.s32 %s1556, %s1557
        %s1559 = smul.addr %s1558, 4
        %s1560 = scalar_lea.vmem %s3, %s1559
      $region48: #{g_net_forward.51} parent=43 // pred_fallthru
        _
      // Predicated region
      $region49: #{g_net_forward.51} parent=43 // pred_check
        %p1561 = pneg %p157
      $region50: #{g_net_forward.51} parent=43 // pred_check_branch
        %1563 = sbr.rel (%p1561) target = $region52
      $region51: #{g_net_forward.51} parent=43 // pred_region
        %p1564 = scmp.lt.s32.totalorder %s22, 0
        %s1565 = scalar_select %p1564, %s22, 0
        %p1566 = scmp.lt.s32.totalorder %s23, 1
        %s1567 = scalar_select %p1566, %s23, 1
        %s1568 = smul.addr %s1565, 2
        %s1569 = sadd.s32 %s1567, %s1568
        %s1570 = smul.addr %s1569, 2
        %s1571 = scalar_lea.vmem %s4, %s1570
      $region52: #{g_net_forward.51} parent=43 // pred_fallthru
        _
    $region44: #{g_net_forward.51} parent=5 // pred_fallthru
      _
  $region6: #{g_net_forward.51} parent=0 // loop_footer
    %s15 = sadd.s32 1, %s11
  $region7: #{g_net_forward.51} parent=0 // loop_footer_branch
    %10 = sbr.rel target = $region3
  $region8: #{g_net_forward.51} parent=0 // loop_exit
    _

// kernel: g_net_forward.52
$region0: #{g_net_forward.52}
  #allocation0 [shape = 'u32[]', space=smem, size = 0x4, offset = 0x4, fixed_abs, tag = 'smem constant byte address 0x4 - core index']
  #allocation1 [shape = 'u32[144,128]{1,0:T(1,128)}', space=vmem, size = 0x12000, scoped, tag = 'internal scratch']
  %s0 = inlined_call_operand.vmem [shape: bf16[1,512,128], index: 0, kind: input, shape index: {}]
  %s1 = inlined_call_operand.vmem [shape: f32[1,128], index: 1, kind: input, shape index: {}]
  %s2 = inlined_call_operand.vmem [shape: f32[1,128], index: 2, kind: input, shape index: {}]
  %s3 = inlined_call_operand.vmem [shape: bf16[1,512,128], index: 3, kind: output, shape index: {}]
  %s4 = sld [smem:[#allocation0]]
  $region22: #{g_net_forward.52} parent=0
    _
  %s6 = ssub.s32 1, %s4
  %s7 = scalar_select 0, %s6, %s4
  // Predicated region
  $region2: #{g_net_forward.52} parent=0 // pred_check
    _
  $region3: #{g_net_forward.52} parent=0 // pred_check_branch
    %9 = sbr.rel (0) target = $region5
  $region4: #{g_net_forward.52} parent=0 // pred_region
    _
  $region5: #{g_net_forward.52} parent=0 // pred_fallthru
    _
  // Predicated region
  $region6: #{g_net_forward.52} parent=0 // pred_check
    _
  $region7: #{g_net_forward.52} parent=0 // pred_check_branch
    %11 = sbr.rel (0) target = $region9
  $region8: #{g_net_forward.52} parent=0 // pred_region
    _
  $region9: #{g_net_forward.52} parent=0 // pred_fallthru
    _
  // Predicated region
  $region10: #{g_net_forward.52} parent=0 // pred_check
    _
  $region11: #{g_net_forward.52} parent=0 // pred_check_branch
    %13 = sbr.rel (0) target = $region13
  $region12: #{g_net_forward.52} parent=0 // pred_region
    _
  $region13: #{g_net_forward.52} parent=0 // pred_fallthru
    _
  %v14 = vld [vmem:[%s0] sm:$0xf]
  %v15 = vld [vmem:[%s0 + $0x4] sm:$0xf]
  %v16 = vld [vmem:[%s0 + $0x8] sm:$0xf]
  %v17 = vld [vmem:[%s0 + $0xc] sm:$0xf]
  %v18 = vld [vmem:[%s0 + $0x10] sm:$0xf]
  %v19 = vld [vmem:[%s0 + $0x14] sm:$0xf]
  %v20 = vld [vmem:[%s0 + $0x18] sm:$0xf]
  %v21 = vld [vmem:[%s0 + $0x1c] sm:$0xf]
  %v22 = vld [vmem:[%s0 + $0x20] sm:$0xf]
  %v23 = vld [vmem:[%s0 + $0x24] sm:$0xf]
  %v24 = vld [vmem:[%s0 + $0x28] sm:$0xf]
  %v25 = vld [vmem:[%s0 + $0x2c] sm:$0xf]
  %v26 = vld [vmem:[%s0 + $0x30] sm:$0xf]
  %v27 = vld [vmem:[%s0 + $0x34] sm:$0xf]
  %v28 = vld [vmem:[%s0 + $0x38] sm:$0xf]
  %v29 = vld [vmem:[%s0 + $0x3c] sm:$0xf]
  %v30 = vld [vmem:[%s0 + $0x40] sm:$0xf]
  %v31 = vld [vmem:[%s0 + $0x44] sm:$0xf]
  %v32 = vld [vmem:[%s0 + $0x48] sm:$0xf]
  %v33 = vld [vmem:[%s0 + $0x4c] sm:$0xf]
  %v34 = vld [vmem:[%s0 + $0x50] sm:$0xf]
  %v35 = vld [vmem:[%s0 + $0x54] sm:$0xf]
  %v36 = vld [vmem:[%s0 + $0x58] sm:$0xf]
  %v37 = vld [vmem:[%s0 + $0x5c] sm:$0xf]
  %v38 = vld [vmem:[%s0 + $0x60] sm:$0xf]
  %v39 = vld [vmem:[%s0 + $0x64] sm:$0xf]
  %v40 = vld [vmem:[%s0 + $0x68] sm:$0xf]
  %v41 = vld [vmem:[%s0 + $0x6c] sm:$0xf]
  %v42 = vld [vmem:[%s0 + $0x70] sm:$0xf]
  %v43 = vld [vmem:[%s0 + $0x74] sm:$0xf]
  %v44 = vld [vmem:[%s0 + $0x78] sm:$0xf]
  %v45 = vld [vmem:[%s0 + $0x7c] sm:$0xf]
  %v46 = vld [vmem:[%s0 + $0x80] sm:$0xf]
  %v47 = vld [vmem:[%s0 + $0x84] sm:$0xf]
  %v48 = vld [vmem:[%s0 + $0x88] sm:$0xf]
  %v49 = vld [vmem:[%s0 + $0x8c] sm:$0xf]
  %v50 = vld [vmem:[%s0 + $0x90] sm:$0xf]
  %v51 = vld [vmem:[%s0 + $0x94] sm:$0xf]
  %v52 = vld [vmem:[%s0 + $0x98] sm:$0xf]
  %v53 = vld [vmem:[%s0 + $0x9c] sm:$0xf]
  %v54 = vld [vmem:[%s0 + $0xa0] sm:$0xf]
  %v55 = vld [vmem:[%s0 + $0xa4] sm:$0xf]
  %v56 = vld [vmem:[%s0 + $0xa8] sm:$0xf]
  %v57 = vld [vmem:[%s0 + $0xac] sm:$0xf]
  %v58 = vld [vmem:[%s0 + $0xb0] sm:$0xf]
  %v59 = vld [vmem:[%s0 + $0xb4] sm:$0xf]
  %v60 = vld [vmem:[%s0 + $0xb8] sm:$0xf]
  %v61 = vld [vmem:[%s0 + $0xbc] sm:$0xf]
  %v62 = vld [vmem:[%s0 + $0xc0] sm:$0xf]
  %v63 = vld [vmem:[%s0 + $0xc4] sm:$0xf]
  %v64 = vld [vmem:[%s0 + $0xc8] sm:$0xf]
  %v65 = vld [vmem:[%s0 + $0xcc] sm:$0xf]
  %v66 = vld [vmem:[%s0 + $0xd0] sm:$0xf]
  %v67 = vld [vmem:[%s0 + $0xd4] sm:$0xf]
  %v68 = vld [vmem:[%s0 + $0xd8] sm:$0xf]
  %v69 = vld [vmem:[%s0 + $0xdc] sm:$0xf]
  %v70 = vld [vmem:[%s0 + $0xe0] sm:$0xf]
  %v71 = vld [vmem:[%s0 + $0xe4] sm:$0xf]
  %v72 = vld [vmem:[%s0 + $0xe8] sm:$0xf]
  %v73 = vld [vmem:[%s0 + $0xec] sm:$0xf]
  %v74 = vld [vmem:[%s0 + $0xf0] sm:$0xf]
  %v75 = vld [vmem:[%s0 + $0xf4] sm:$0xf]
  %v76 = vld [vmem:[%s0 + $0xf8] sm:$0xf]
  %v77 = vld [vmem:[%s0 + $0xfc] sm:$0xf]
  %v78 = vunpack.c.l.bf16 %v14
  %v79 = vunpack.c.l.bf16 %v15
  %v80 = vunpack.c.l.bf16 %v16
  %v81 = vunpack.c.l.bf16 %v17
  %v82 = vunpack.c.l.bf16 %v18
  %v83 = vunpack.c.l.bf16 %v19
  %v84 = vunpack.c.l.bf16 %v20
  %v85 = vunpack.c.l.bf16 %v21
  %v86 = vunpack.c.l.bf16 %v22
  %v87 = vunpack.c.l.bf16 %v23
  %v88 = vunpack.c.l.bf16 %v24
  %v89 = vunpack.c.l.bf16 %v25
  %v90 = vunpack.c.l.bf16 %v26
  %v91 = vunpack.c.l.bf16 %v27
  %v92 = vunpack.c.l.bf16 %v28
  %v93 = vunpack.c.l.bf16 %v29
  %v94 = vunpack.c.l.bf16 %v30
  %v95 = vunpack.c.l.bf16 %v31
  %v96 = vunpack.c.l.bf16 %v32
  %v97 = vunpack.c.l.bf16 %v33
  %v98 = vunpack.c.l.bf16 %v34
  %v99 = vunpack.c.l.bf16 %v35
  %v100 = vunpack.c.l.bf16 %v36
  %v101 = vunpack.c.l.bf16 %v37
  %v102 = vunpack.c.l.bf16 %v38
  %v103 = vunpack.c.l.bf16 %v39
  %v104 = vunpack.c.l.bf16 %v40
  %v105 = vunpack.c.l.bf16 %v41
  %v106 = vunpack.c.l.bf16 %v42
  %v107 = vunpack.c.l.bf16 %v43
  %v108 = vunpack.c.l.bf16 %v44
  %v109 = vunpack.c.l.bf16 %v45
  %v110 = vunpack.c.l.bf16 %v46
  %v111 = vunpack.c.l.bf16 %v47
  %v112 = vunpack.c.l.bf16 %v48
  %v113 = vunpack.c.l.bf16 %v49
  %v114 = vunpack.c.l.bf16 %v50
  %v115 = vunpack.c.l.bf16 %v51
  %v116 = vunpack.c.l.bf16 %v52
  %v117 = vunpack.c.l.bf16 %v53
  %v118 = vunpack.c.l.bf16 %v54
  %v119 = vunpack.c.l.bf16 %v55
  %v120 = vunpack.c.l.bf16 %v56
  %v121 = vunpack.c.l.bf16 %v57
  %v122 = vunpack.c.l.bf16 %v58
  %v123 = vunpack.c.l.bf16 %v59
  %v124 = vunpack.c.l.bf16 %v60
  %v125 = vunpack.c.l.bf16 %v61
  %v126 = vunpack.c.l.bf16 %v62
  %v127 = vunpack.c.l.bf16 %v63
  %v128 = vunpack.c.l.bf16 %v64
  %v129 = vunpack.c.l.bf16 %v65
  %v130 = vunpack.c.l.bf16 %v66
  %v131 = vunpack.c.l.bf16 %v67
  %v132 = vunpack.c.l.bf16 %v68
  %v133 = vunpack.c.l.bf16 %v69
  %v134 = vunpack.c.l.bf16 %v70
  %v135 = vunpack.c.l.bf16 %v71
  %v136 = vunpack.c.l.bf16 %v72
  %v137 = vunpack.c.l.bf16 %v73
  %v138 = vunpack.c.l.bf16 %v74
  %v139 = vunpack.c.l.bf16 %v75
  %v140 = vunpack.c.l.bf16 %v76
  %v141 = vunpack.c.l.bf16 %v77
  %v142 = vld [vmem:[%s1] sm:$0x1]
  %v144 = vlaneseq
  %v145 = vshrl.u32 %v144, 7
  %v146 = vsub.s32 0, %v145
  %v147 = vrot.slane %v142, %v146
  %v149 = vmul.f32 %v78, %v147
  %v150 = vmul.f32 %v79, %v147
  %v151 = vmul.f32 %v80, %v147
  %v152 = vmul.f32 %v81, %v147
  %v153 = vmul.f32 %v82, %v147
  %v154 = vmul.f32 %v83, %v147
  %v155 = vmul.f32 %v84, %v147
  %v156 = vmul.f32 %v85, %v147
  %v157 = vmul.f32 %v86, %v147
  %v158 = vmul.f32 %v87, %v147
  %v159 = vmul.f32 %v88, %v147
  %v160 = vmul.f32 %v89, %v147
  %v161 = vmul.f32 %v90, %v147
  %v162 = vmul.f32 %v91, %v147
  %v163 = vmul.f32 %v92, %v147
  %v164 = vmul.f32 %v93, %v147
  %v165 = vmul.f32 %v94, %v147
  %v166 = vmul.f32 %v95, %v147
  %v167 = vmul.f32 %v96, %v147
  %v168 = vmul.f32 %v97, %v147
  %v169 = vmul.f32 %v98, %v147
  %v170 = vmul.f32 %v99, %v147
  %v171 = vmul.f32 %v100, %v147
  %v172 = vmul.f32 %v101, %v147
  %v173 = vmul.f32 %v102, %v147
  %v174 = vmul.f32 %v103, %v147
  %v175 = vmul.f32 %v104, %v147
  %v176 = vmul.f32 %v105, %v147
  %v177 = vmul.f32 %v106, %v147
  %v178 = vmul.f32 %v107, %v147
  %v179 = vmul.f32 %v108, %v147
  %v180 = vmul.f32 %v109, %v147
  %v181 = vmul.f32 %v110, %v147
  %v182 = vmul.f32 %v111, %v147
  %v183 = vmul.f32 %v112, %v147
  %v184 = vmul.f32 %v113, %v147
  %v185 = vmul.f32 %v114, %v147
  %v186 = vmul.f32 %v115, %v147
  %v187 = vmul.f32 %v116, %v147
  %v188 = vmul.f32 %v117, %v147
  %v189 = vmul.f32 %v118, %v147
  %v190 = vmul.f32 %v119, %v147
  %v191 = vmul.f32 %v120, %v147
  %v192 = vmul.f32 %v121, %v147
  %v193 = vmul.f32 %v122, %v147
  %v194 = vmul.f32 %v123, %v147
  %v195 = vmul.f32 %v124, %v147
  %v196 = vmul.f32 %v125, %v147
  %v197 = vmul.f32 %v126, %v147
  %v198 = vmul.f32 %v127, %v147
  %v199 = vmul.f32 %v128, %v147
  %v200 = vmul.f32 %v129, %v147
  %v201 = vmul.f32 %v130, %v147
  %v202 = vmul.f32 %v131, %v147
  %v203 = vmul.f32 %v132, %v147
  %v204 = vmul.f32 %v133, %v147
  %v205 = vmul.f32 %v134, %v147
  %v206 = vmul.f32 %v135, %v147
  %v207 = vmul.f32 %v136, %v147
  %v208 = vmul.f32 %v137, %v147
  %v209 = vmul.f32 %v138, %v147
  %v210 = vmul.f32 %v139, %v147
  %v211 = vmul.f32 %v140, %v147
  %v212 = vmul.f32 %v141, %v147
  %v213 = vld [vmem:[%s2] sm:$0x1]
  %v215 = vlaneseq
  %v216 = vshrl.u32 %v215, 7
  %v217 = vsub.s32 0, %v216
  %v218 = vrot.slane %v213, %v217
  %v220 = vadd.f32 %v149, %v218
  %v221 = vadd.f32 %v150, %v218
  %v222 = vadd.f32 %v151, %v218
  %v223 = vadd.f32 %v152, %v218
  %v224 = vadd.f32 %v153, %v218
  %v225 = vadd.f32 %v154, %v218
  %v226 = vadd.f32 %v155, %v218
  %v227 = vadd.f32 %v156, %v218
  %v228 = vadd.f32 %v157, %v218
  %v229 = vadd.f32 %v158, %v218
  %v230 = vadd.f32 %v159, %v218
  %v231 = vadd.f32 %v160, %v218
  %v232 = vadd.f32 %v161, %v218
  %v233 = vadd.f32 %v162, %v218
  %v234 = vadd.f32 %v163, %v218
  %v235 = vadd.f32 %v164, %v218
  %v236 = vadd.f32 %v165, %v218
  %v237 = vadd.f32 %v166, %v218
  %v238 = vadd.f32 %v167, %v218
  %v239 = vadd.f32 %v168, %v218
  %v240 = vadd.f32 %v169, %v218
  %v241 = vadd.f32 %v170, %v218
  %v242 = vadd.f32 %v171, %v218
  %v243 = vadd.f32 %v172, %v218
  %v244 = vadd.f32 %v173, %v218
  %v245 = vadd.f32 %v174, %v218
  %v246 = vadd.f32 %v175, %v218
  %v247 = vadd.f32 %v176, %v218
  %v248 = vadd.f32 %v177, %v218
  %v249 = vadd.f32 %v178, %v218
  %v250 = vadd.f32 %v179, %v218
  %v251 = vadd.f32 %v180, %v218
  %v252 = vadd.f32 %v181, %v218
  %v253 = vadd.f32 %v182, %v218
  %v254 = vadd.f32 %v183, %v218
  %v255 = vadd.f32 %v184, %v218
  %v256 = vadd.f32 %v185, %v218
  %v257 = vadd.f32 %v186, %v218
  %v258 = vadd.f32 %v187, %v218
  %v259 = vadd.f32 %v188, %v218
  %v260 = vadd.f32 %v189, %v218
  %v261 = vadd.f32 %v190, %v218
  %v262 = vadd.f32 %v191, %v218
  %v263 = vadd.f32 %v192, %v218
  %v264 = vadd.f32 %v193, %v218
  %v265 = vadd.f32 %v194, %v218
  %v266 = vadd.f32 %v195, %v218
  %v267 = vadd.f32 %v196, %v218
  %v268 = vadd.f32 %v197, %v218
  %v269 = vadd.f32 %v198, %v218
  %v270 = vadd.f32 %v199, %v218
  %v271 = vadd.f32 %v200, %v218
  %v272 = vadd.f32 %v201, %v218
  %v273 = vadd.f32 %v202, %v218
  %v274 = vadd.f32 %v203, %v218
  %v275 = vadd.f32 %v204, %v218
  %v276 = vadd.f32 %v205, %v218
  %v277 = vadd.f32 %v206, %v218
  %v278 = vadd.f32 %v207, %v218
  %v279 = vadd.f32 %v208, %v218
  %v280 = vadd.f32 %v209, %v218
  %v281 = vadd.f32 %v210, %v218
  %v282 = vadd.f32 %v211, %v218
  %v283 = vadd.f32 %v212, %v218
  %v284 = vmax.f32 %v220, 0.0
  %v285 = vmax.f32 %v221, 0.0
  %v286 = vmax.f32 %v222, 0.0
  %v287 = vmax.f32 %v223, 0.0
  %v288 = vmax.f32 %v224, 0.0
  %v289 = vmax.f32 %v225, 0.0
  %v290 = vmax.f32 %v226, 0.0
  %v291 = vmax.f32 %v227, 0.0
  %v292 = vmax.f32 %v228, 0.0
  %v293 = vmax.f32 %v229, 0.0
  %v294 = vmax.f32 %v230, 0.0
  %v295 = vmax.f32 %v231, 0.0
  %v296 = vmax.f32 %v232, 0.0
  %v297 = vmax.f32 %v233, 0.0
  %v298 = vmax.f32 %v234, 0.0
  %v299 = vmax.f32 %v235, 0.0
  %v300 = vmax.f32 %v236, 0.0
  %v301 = vmax.f32 %v237, 0.0
  %v302 = vmax.f32 %v238, 0.0
  %v303 = vmax.f32 %v239, 0.0
  %v304 = vmax.f32 %v240, 0.0
  %v305 = vmax.f32 %v241, 0.0
  %v306 = vmax.f32 %v242, 0.0
  %v307 = vmax.f32 %v243, 0.0
  %v308 = vmax.f32 %v244, 0.0
  %v309 = vmax.f32 %v245, 0.0
  %v310 = vmax.f32 %v246, 0.0
  %v311 = vmax.f32 %v247, 0.0
  %v312 = vmax.f32 %v248, 0.0
  %v313 = vmax.f32 %v249, 0.0
  %v314 = vmax.f32 %v250, 0.0
  %v315 = vmax.f32 %v251, 0.0
  %v316 = vmax.f32 %v252, 0.0
  %v317 = vmax.f32 %v253, 0.0
  %v318 = vmax.f32 %v254, 0.0
  %v319 = vmax.f32 %v255, 0.0
  %v320 = vmax.f32 %v256, 0.0
  %v321 = vmax.f32 %v257, 0.0
  %v322 = vmax.f32 %v258, 0.0
  %v323 = vmax.f32 %v259, 0.0
  %v324 = vmax.f32 %v260, 0.0
  %v325 = vmax.f32 %v261, 0.0
  %v326 = vmax.f32 %v262, 0.0
  %v327 = vmax.f32 %v263, 0.0
  %v328 = vmax.f32 %v264, 0.0
  %v329 = vmax.f32 %v265, 0.0
  %v330 = vmax.f32 %v266, 0.0
  %v331 = vmax.f32 %v267, 0.0
  %v332 = vmax.f32 %v268, 0.0
  %v333 = vmax.f32 %v269, 0.0
  %v334 = vmax.f32 %v270, 0.0
  %v335 = vmax.f32 %v271, 0.0
  %v336 = vmax.f32 %v272, 0.0
  %v337 = vmax.f32 %v273, 0.0
  %v338 = vmax.f32 %v274, 0.0
  %v339 = vmax.f32 %v275, 0.0
  %v340 = vmax.f32 %v276, 0.0
  %v341 = vmax.f32 %v277, 0.0
  %v342 = vmax.f32 %v278, 0.0
  %v343 = vmax.f32 %v279, 0.0
  %v344 = vmax.f32 %v280, 0.0
  %v345 = vmax.f32 %v281, 0.0
  %v346 = vmax.f32 %v282, 0.0
  %v347 = vmax.f32 %v283, 0.0
  %v348 = vpack.c.bf16 %v285, %v284
  %v349 = vpack.c.bf16 %v287, %v286
  %v350 = vpack.c.bf16 %v289, %v288
  %v351 = vpack.c.bf16 %v291, %v290
  %v352 = vpack.c.bf16 %v293, %v292
  %v353 = vpack.c.bf16 %v295, %v294
  %v354 = vpack.c.bf16 %v297, %v296
  %v355 = vpack.c.bf16 %v299, %v298
  %v356 = vpack.c.bf16 %v301, %v300
  %v357 = vpack.c.bf16 %v303, %v302
  %v358 = vpack.c.bf16 %v305, %v304
  %v359 = vpack.c.bf16 %v307, %v306
  %v360 = vpack.c.bf16 %v309, %v308
  %v361 = vpack.c.bf16 %v311, %v310
  %v362 = vpack.c.bf16 %v313, %v312
  %v363 = vpack.c.bf16 %v315, %v314
  %v364 = vpack.c.bf16 %v317, %v316
  %v365 = vpack.c.bf16 %v319, %v318
  %v366 = vpack.c.bf16 %v321, %v320
  %v367 = vpack.c.bf16 %v323, %v322
  %v368 = vpack.c.bf16 %v325, %v324
  %v369 = vpack.c.bf16 %v327, %v326
  %v370 = vpack.c.bf16 %v329, %v328
  %v371 = vpack.c.bf16 %v331, %v330
  %v372 = vpack.c.bf16 %v333, %v332
  %v373 = vpack.c.bf16 %v335, %v334
  %v374 = vpack.c.bf16 %v337, %v336
  %v375 = vpack.c.bf16 %v339, %v338
  %v376 = vpack.c.bf16 %v341, %v340
  %v377 = vpack.c.bf16 %v343, %v342
  %v378 = vpack.c.bf16 %v345, %v344
  %v379 = vpack.c.bf16 %v347, %v346
  %v412 = vunpack.c.l.b16 %v348
  %v413 = vunpack.c.h.b16 %v348
  %v414 = vunpack.c.l.b16 %v349
  %v415 = vunpack.c.h.b16 %v349
  %v416 = vunpack.c.l.b16 %v350
  %v417 = vunpack.c.h.b16 %v350
  %v418 = vunpack.c.l.b16 %v351
  %v419 = vunpack.c.h.b16 %v351
  %v420 = vunpack.c.l.b16 %v352
  %v421 = vunpack.c.h.b16 %v352
  %v422 = vunpack.c.l.b16 %v353
  %v423 = vunpack.c.h.b16 %v353
  %v424 = vunpack.c.l.b16 %v354
  %v425 = vunpack.c.h.b16 %v354
  %v426 = vunpack.c.l.b16 %v355
  %v427 = vunpack.c.h.b16 %v355
  %v428 = vunpack.c.l.b16 %v356
  %v429 = vunpack.c.h.b16 %v356
  %v430 = vunpack.c.l.b16 %v357
  %v431 = vunpack.c.h.b16 %v357
  %v432 = vunpack.c.l.b16 %v358
  %v433 = vunpack.c.h.b16 %v358
  %v434 = vunpack.c.l.b16 %v359
  %v435 = vunpack.c.h.b16 %v359
  %v436 = vunpack.c.l.b16 %v360
  %v437 = vunpack.c.h.b16 %v360
  %v438 = vunpack.c.l.b16 %v361
  %v439 = vunpack.c.h.b16 %v361
  %v440 = vunpack.c.l.b16 %v362
  %v441 = vunpack.c.h.b16 %v362
  %v442 = vunpack.c.l.b16 %v363
  %v443 = vunpack.c.h.b16 %v363
  %v444 = vunpack.c.l.b16 %v364
  %v445 = vunpack.c.h.b16 %v364
  %v446 = vunpack.c.l.b16 %v365
  %v447 = vunpack.c.h.b16 %v365
  %v448 = vunpack.c.l.b16 %v366
  %v449 = vunpack.c.h.b16 %v366
  %v450 = vunpack.c.l.b16 %v367
  %v451 = vunpack.c.h.b16 %v367
  %v452 = vunpack.c.l.b16 %v368
  %v453 = vunpack.c.h.b16 %v368
  %v454 = vunpack.c.l.b16 %v369
  %v455 = vunpack.c.h.b16 %v369
  %v456 = vunpack.c.l.b16 %v370
  %v457 = vunpack.c.h.b16 %v370
  %v458 = vunpack.c.l.b16 %v371
  %v459 = vunpack.c.h.b16 %v371
  %v460 = vunpack.c.l.b16 %v372
  %v461 = vunpack.c.h.b16 %v372
  %v462 = vunpack.c.l.b16 %v373
  %v463 = vunpack.c.h.b16 %v373
  %v464 = vunpack.c.l.b16 %v374
  %v465 = vunpack.c.h.b16 %v374
  %v466 = vunpack.c.l.b16 %v375
  %v467 = vunpack.c.h.b16 %v375
  %v468 = vunpack.c.l.b16 %v376
  %v469 = vunpack.c.h.b16 %v376
  %v470 = vunpack.c.l.b16 %v377
  %v471 = vunpack.c.h.b16 %v377
  %v472 = vunpack.c.l.b16 %v378
  %v473 = vunpack.c.h.b16 %v378
  %v474 = vunpack.c.l.b16 %v379
  %v475 = vunpack.c.h.b16 %v379
  %v476 = vpack.c.b16 %v412, %v412
  %v477 = vpack.c.b16 %v413, %v413
  %v478 = vpack.c.b16 %v414, %v414
  %v479 = vpack.c.b16 %v415, %v415
  %v480 = vpack.c.b16 %v416, %v416
  %v481 = vpack.c.b16 %v417, %v417
  %v482 = vpack.c.b16 %v418, %v418
  %v483 = vpack.c.b16 %v419, %v419
  %v484 = vpack.c.b16 %v420, %v420
  %v485 = vpack.c.b16 %v421, %v421
  %v486 = vpack.c.b16 %v422, %v422
  %v487 = vpack.c.b16 %v423, %v423
  %v488 = vpack.c.b16 %v424, %v424
  %v489 = vpack.c.b16 %v425, %v425
  %v490 = vpack.c.b16 %v426, %v426
  %v491 = vpack.c.b16 %v427, %v427
  %v492 = vpack.c.b16 %v428, %v428
  %v493 = vpack.c.b16 %v429, %v429
  %v494 = vpack.c.b16 %v430, %v430
  %v495 = vpack.c.b16 %v431, %v431
  %v496 = vpack.c.b16 %v432, %v432
  %v497 = vpack.c.b16 %v433, %v433
  %v498 = vpack.c.b16 %v434, %v434
  %v499 = vpack.c.b16 %v435, %v435
  %v500 = vpack.c.b16 %v436, %v436
  %v501 = vpack.c.b16 %v437, %v437
  %v502 = vpack.c.b16 %v438, %v438
  %v503 = vpack.c.b16 %v439, %v439
  %v504 = vpack.c.b16 %v440, %v440
  %v505 = vpack.c.b16 %v441, %v441
  %v506 = vpack.c.b16 %v442, %v442
  %v507 = vpack.c.b16 %v443, %v443
  %v508 = vpack.c.b16 %v444, %v444
  %v509 = vpack.c.b16 %v445, %v445
  %v510 = vpack.c.b16 %v446, %v446
  %v511 = vpack.c.b16 %v447, %v447
  %v512 = vpack.c.b16 %v448, %v448
  %v513 = vpack.c.b16 %v449, %v449
  %v514 = vpack.c.b16 %v450, %v450
  %v515 = vpack.c.b16 %v451, %v451
  %v516 = vpack.c.b16 %v452, %v452
  %v517 = vpack.c.b16 %v453, %v453
  %v518 = vpack.c.b16 %v454, %v454
  %v519 = vpack.c.b16 %v455, %v455
  %v520 = vpack.c.b16 %v456, %v456
  %v521 = vpack.c.b16 %v457, %v457
  %v522 = vpack.c.b16 %v458, %v458
  %v523 = vpack.c.b16 %v459, %v459
  %v524 = vpack.c.b16 %v460, %v460
  %v525 = vpack.c.b16 %v461, %v461
  %v526 = vpack.c.b16 %v462, %v462
  %v527 = vpack.c.b16 %v463, %v463
  %v528 = vpack.c.b16 %v464, %v464
  %v529 = vpack.c.b16 %v465, %v465
  %v530 = vpack.c.b16 %v466, %v466
  %v531 = vpack.c.b16 %v467, %v467
  %v532 = vpack.c.b16 %v468, %v468
  %v533 = vpack.c.b16 %v469, %v469
  %v534 = vpack.c.b16 %v470, %v470
  %v535 = vpack.c.b16 %v471, %v471
  %v536 = vpack.c.b16 %v472, %v472
  %v537 = vpack.c.b16 %v473, %v473
  %v538 = vpack.c.b16 %v474, %v474
  %v539 = vpack.c.b16 %v475, %v475
  %604 = vst [vmem:[%s3] sm:$0xf] %v476
  %605 = vst [vmem:[%s3 + $0x4] sm:$0xf] %v477
  %606 = vst [vmem:[%s3 + $0x8] sm:$0xf] %v478
  %607 = vst [vmem:[%s3 + $0xc] sm:$0xf] %v479
  %608 = vst [vmem:[%s3 + $0x10] sm:$0xf] %v480
  %609 = vst [vmem:[%s3 + $0x14] sm:$0xf] %v481
  %610 = vst [vmem:[%s3 + $0x18] sm:$0xf] %v482
  %611 = vst [vmem:[%s3 + $0x1c] sm:$0xf] %v483
  %612 = vst [vmem:[%s3 + $0x20] sm:$0xf] %v484
  %613 = vst [vmem:[%s3 + $0x24] sm:$0xf] %v485
  %614 = vst [vmem:[%s3 + $0x28] sm:$0xf] %v486
  %615 = vst [vmem:[%s3 + $0x2c] sm:$0xf] %v487
  %616 = vst [vmem:[%s3 + $0x30] sm:$0xf] %v488
  %617 = vst [vmem:[%s3 + $0x34] sm:$0xf] %v489
  %618 = vst [vmem:[%s3 + $0x38] sm:$0xf] %v490
  %619 = vst [vmem:[%s3 + $0x3c] sm:$0xf] %v491
  %620 = vst [vmem:[%s3 + $0x40] sm:$0xf] %v492
  %621 = vst [vmem:[%s3 + $0x44] sm:$0xf] %v493
  %622 = vst [vmem:[%s3 + $0x48] sm:$0xf] %v494
  %623 = vst [vmem:[%s3 + $0x4c] sm:$0xf] %v495
  %624 = vst [vmem:[%s3 + $0x50] sm:$0xf] %v496
  %625 = vst [vmem:[%s3 + $0x54] sm:$0xf] %v497
  %626 = vst [vmem:[%s3 + $0x58] sm:$0xf] %v498
  %627 = vst [vmem:[%s3 + $0x5c] sm:$0xf] %v499
  %628 = vst [vmem:[%s3 + $0x60] sm:$0xf] %v500
  %629 = vst [vmem:[%s3 + $0x64] sm:$0xf] %v501
  %630 = vst [vmem:[%s3 + $0x68] sm:$0xf] %v502
  %631 = vst [vmem:[%s3 + $0x6c] sm:$0xf] %v503
  %632 = vst [vmem:[%s3 + $0x70] sm:$0xf] %v504
  %633 = vst [vmem:[%s3 + $0x74] sm:$0xf] %v505
  %634 = vst [vmem:[%s3 + $0x78] sm:$0xf] %v506
  %635 = vst [vmem:[%s3 + $0x7c] sm:$0xf] %v507
  %636 = vst [vmem:[%s3 + $0x80] sm:$0xf] %v508
  %637 = vst [vmem:[%s3 + $0x84] sm:$0xf] %v509
  %638 = vst [vmem:[%s3 + $0x88] sm:$0xf] %v510
  %639 = vst [vmem:[%s3 + $0x8c] sm:$0xf] %v511
  %640 = vst [vmem:[%s3 + $0x90] sm:$0xf] %v512
  %641 = vst [vmem:[%s3 + $0x94] sm:$0xf] %v513
  %642 = vst [vmem:[%s3 + $0x98] sm:$0xf] %v514
  %643 = vst [vmem:[%s3 + $0x9c] sm:$0xf] %v515
  %644 = vst [vmem:[%s3 + $0xa0] sm:$0xf] %v516
  %645 = vst [vmem:[%s3 + $0xa4] sm:$0xf] %v517
  %646 = vst [vmem:[%s3 + $0xa8] sm:$0xf] %v518
  %647 = vst [vmem:[%s3 + $0xac] sm:$0xf] %v519
  %648 = vst [vmem:[%s3 + $0xb0] sm:$0xf] %v520
  %649 = vst [vmem:[%s3 + $0xb4] sm:$0xf] %v521
  %650 = vst [vmem:[%s3 + $0xb8] sm:$0xf] %v522
  %651 = vst [vmem:[%s3 + $0xbc] sm:$0xf] %v523
  %652 = vst [vmem:[%s3 + $0xc0] sm:$0xf] %v524
  %653 = vst [vmem:[%s3 + $0xc4] sm:$0xf] %v525
  %654 = vst [vmem:[%s3 + $0xc8] sm:$0xf] %v526
  %655 = vst [vmem:[%s3 + $0xcc] sm:$0xf] %v527
  %656 = vst [vmem:[%s3 + $0xd0] sm:$0xf] %v528
  %657 = vst [vmem:[%s3 + $0xd4] sm:$0xf] %v529
  %658 = vst [vmem:[%s3 + $0xd8] sm:$0xf] %v530
  %659 = vst [vmem:[%s3 + $0xdc] sm:$0xf] %v531
  %660 = vst [vmem:[%s3 + $0xe0] sm:$0xf] %v532
  %661 = vst [vmem:[%s3 + $0xe4] sm:$0xf] %v533
  %662 = vst [vmem:[%s3 + $0xe8] sm:$0xf] %v534
  %663 = vst [vmem:[%s3 + $0xec] sm:$0xf] %v535
  %664 = vst [vmem:[%s3 + $0xf0] sm:$0xf] %v536
  %665 = vst [vmem:[%s3 + $0xf4] sm:$0xf] %v537
  %666 = vst [vmem:[%s3 + $0xf8] sm:$0xf] %v538
  %667 = vst [vmem:[%s3 + $0xfc] sm:$0xf] %v539
  // Predicated region
  $region14: #{g_net_forward.52} parent=0 // pred_check
    _
  $region15: #{g_net_forward.52} parent=0 // pred_check_branch
    %669 = sbr.rel (0) target = $region17
  $region16: #{g_net_forward.52} parent=0 // pred_region
    _
  $region17: #{g_net_forward.52} parent=0 // pred_fallthru
    _
  // Predicated region
  $region18: #{g_net_forward.52} parent=0 // pred_check
    _
  $region19: #{g_net_forward.52} parent=0 // pred_check_branch
    %671 = sbr.rel (0) target = $region21
  $region20: #{g_net_forward.52} parent=0 // pred_region
    _
  $region21: #{g_net_forward.52} parent=0 // pred_fallthru
    _

// kernel: g_net_forward.54
$region0: #{g_net_forward.54}
  #allocation0 [shape = 'u32[]', space=smem, size = 0x4, offset = 0x4, fixed_abs, tag = 'smem constant byte address 0x4 - core index']
  #allocation1 [shape = 'u32[144,128]{1,0:T(1,128)}', space=vmem, size = 0x12000, scoped, tag = 'internal scratch']
  %s0 = inlined_call_operand.vmem [shape: bf16[1,128,128], index: 0, kind: input, shape index: {}]
  %s1 = inlined_call_operand.vmem [shape: f32[1,128], index: 1, kind: input, shape index: {}]
  %s2 = inlined_call_operand.vmem [shape: f32[1,128], index: 2, kind: input, shape index: {}]
  %s3 = inlined_call_operand.vmem [shape: bf16[1,128,128], index: 3, kind: output, shape index: {}]
  %s4 = sld [smem:[#allocation0]]
  $region22: #{g_net_forward.54} parent=0
    _
  %s6 = ssub.s32 1, %s4
  %s7 = scalar_select 0, %s6, %s4
  // Predicated region
  $region2: #{g_net_forward.54} parent=0 // pred_check
    _
  $region3: #{g_net_forward.54} parent=0 // pred_check_branch
    %9 = sbr.rel (0) target = $region5
  $region4: #{g_net_forward.54} parent=0 // pred_region
    _
  $region5: #{g_net_forward.54} parent=0 // pred_fallthru
    _
  // Predicated region
  $region6: #{g_net_forward.54} parent=0 // pred_check
    _
  $region7: #{g_net_forward.54} parent=0 // pred_check_branch
    %11 = sbr.rel (0) target = $region9
  $region8: #{g_net_forward.54} parent=0 // pred_region
    _
  $region9: #{g_net_forward.54} parent=0 // pred_fallthru
    _
  // Predicated region
  $region10: #{g_net_forward.54} parent=0 // pred_check
    _
  $region11: #{g_net_forward.54} parent=0 // pred_check_branch
    %13 = sbr.rel (0) target = $region13
  $region12: #{g_net_forward.54} parent=0 // pred_region
    _
  $region13: #{g_net_forward.54} parent=0 // pred_fallthru
    _
  %v14 = vld [vmem:[%s0] sm:$0xf]
  %v15 = vld [vmem:[%s0 + $0x4] sm:$0xf]
  %v16 = vld [vmem:[%s0 + $0x8] sm:$0xf]
  %v17 = vld [vmem:[%s0 + $0xc] sm:$0xf]
  %v18 = vld [vmem:[%s0 + $0x10] sm:$0xf]
  %v19 = vld [vmem:[%s0 + $0x14] sm:$0xf]
  %v20 = vld [vmem:[%s0 + $0x18] sm:$0xf]
  %v21 = vld [vmem:[%s0 + $0x1c] sm:$0xf]
  %v22 = vld [vmem:[%s0 + $0x20] sm:$0xf]
  %v23 = vld [vmem:[%s0 + $0x24] sm:$0xf]
  %v24 = vld [vmem:[%s0 + $0x28] sm:$0xf]
  %v25 = vld [vmem:[%s0 + $0x2c] sm:$0xf]
  %v26 = vld [vmem:[%s0 + $0x30] sm:$0xf]
  %v27 = vld [vmem:[%s0 + $0x34] sm:$0xf]
  %v28 = vld [vmem:[%s0 + $0x38] sm:$0xf]
  %v29 = vld [vmem:[%s0 + $0x3c] sm:$0xf]
  %v30 = vunpack.c.l.bf16 %v14
  %v31 = vunpack.c.l.bf16 %v15
  %v32 = vunpack.c.l.bf16 %v16
  %v33 = vunpack.c.l.bf16 %v17
  %v34 = vunpack.c.l.bf16 %v18
  %v35 = vunpack.c.l.bf16 %v19
  %v36 = vunpack.c.l.bf16 %v20
  %v37 = vunpack.c.l.bf16 %v21
  %v38 = vunpack.c.l.bf16 %v22
  %v39 = vunpack.c.l.bf16 %v23
  %v40 = vunpack.c.l.bf16 %v24
  %v41 = vunpack.c.l.bf16 %v25
  %v42 = vunpack.c.l.bf16 %v26
  %v43 = vunpack.c.l.bf16 %v27
  %v44 = vunpack.c.l.bf16 %v28
  %v45 = vunpack.c.l.bf16 %v29
  %v46 = vld [vmem:[%s1] sm:$0x1]
  %v48 = vlaneseq
  %v49 = vshrl.u32 %v48, 7
  %v50 = vsub.s32 0, %v49
  %v51 = vrot.slane %v46, %v50
  %v53 = vmul.f32 %v30, %v51
  %v54 = vmul.f32 %v31, %v51
  %v55 = vmul.f32 %v32, %v51
  %v56 = vmul.f32 %v33, %v51
  %v57 = vmul.f32 %v34, %v51
  %v58 = vmul.f32 %v35, %v51
  %v59 = vmul.f32 %v36, %v51
  %v60 = vmul.f32 %v37, %v51
  %v61 = vmul.f32 %v38, %v51
  %v62 = vmul.f32 %v39, %v51
  %v63 = vmul.f32 %v40, %v51
  %v64 = vmul.f32 %v41, %v51
  %v65 = vmul.f32 %v42, %v51
  %v66 = vmul.f32 %v43, %v51
  %v67 = vmul.f32 %v44, %v51
  %v68 = vmul.f32 %v45, %v51
  %v69 = vld [vmem:[%s2] sm:$0x1]
  %v71 = vlaneseq
  %v72 = vshrl.u32 %v71, 7
  %v73 = vsub.s32 0, %v72
  %v74 = vrot.slane %v69, %v73
  %v76 = vadd.f32 %v53, %v74
  %v77 = vadd.f32 %v54, %v74
  %v78 = vadd.f32 %v55, %v74
  %v79 = vadd.f32 %v56, %v74
  %v80 = vadd.f32 %v57, %v74
  %v81 = vadd.f32 %v58, %v74
  %v82 = vadd.f32 %v59, %v74
  %v83 = vadd.f32 %v60, %v74
  %v84 = vadd.f32 %v61, %v74
  %v85 = vadd.f32 %v62, %v74
  %v86 = vadd.f32 %v63, %v74
  %v87 = vadd.f32 %v64, %v74
  %v88 = vadd.f32 %v65, %v74
  %v89 = vadd.f32 %v66, %v74
  %v90 = vadd.f32 %v67, %v74
  %v91 = vadd.f32 %v68, %v74
  %v92 = vmax.f32 %v76, 0.0
  %v93 = vmax.f32 %v77, 0.0
  %v94 = vmax.f32 %v78, 0.0
  %v95 = vmax.f32 %v79, 0.0
  %v96 = vmax.f32 %v80, 0.0
  %v97 = vmax.f32 %v81, 0.0
  %v98 = vmax.f32 %v82, 0.0
  %v99 = vmax.f32 %v83, 0.0
  %v100 = vmax.f32 %v84, 0.0
  %v101 = vmax.f32 %v85, 0.0
  %v102 = vmax.f32 %v86, 0.0
  %v103 = vmax.f32 %v87, 0.0
  %v104 = vmax.f32 %v88, 0.0
  %v105 = vmax.f32 %v89, 0.0
  %v106 = vmax.f32 %v90, 0.0
  %v107 = vmax.f32 %v91, 0.0
  %v108 = vpack.c.bf16 %v93, %v92
  %v109 = vpack.c.bf16 %v95, %v94
  %v110 = vpack.c.bf16 %v97, %v96
  %v111 = vpack.c.bf16 %v99, %v98
  %v112 = vpack.c.bf16 %v101, %v100
  %v113 = vpack.c.bf16 %v103, %v102
  %v114 = vpack.c.bf16 %v105, %v104
  %v115 = vpack.c.bf16 %v107, %v106
  %v124 = vunpack.c.l.b16 %v108
  %v125 = vunpack.c.h.b16 %v108
  %v126 = vunpack.c.l.b16 %v109
  %v127 = vunpack.c.h.b16 %v109
  %v128 = vunpack.c.l.b16 %v110
  %v129 = vunpack.c.h.b16 %v110
  %v130 = vunpack.c.l.b16 %v111
  %v131 = vunpack.c.h.b16 %v111
  %v132 = vunpack.c.l.b16 %v112
  %v133 = vunpack.c.h.b16 %v112
  %v134 = vunpack.c.l.b16 %v113
  %v135 = vunpack.c.h.b16 %v113
  %v136 = vunpack.c.l.b16 %v114
  %v137 = vunpack.c.h.b16 %v114
  %v138 = vunpack.c.l.b16 %v115
  %v139 = vunpack.c.h.b16 %v115
  %v140 = vpack.c.b16 %v124, %v124
  %v141 = vpack.c.b16 %v125, %v125
  %v142 = vpack.c.b16 %v126, %v126
  %v143 = vpack.c.b16 %v127, %v127
  %v144 = vpack.c.b16 %v128, %v128
  %v145 = vpack.c.b16 %v129, %v129
  %v146 = vpack.c.b16 %v130, %v130
  %v147 = vpack.c.b16 %v131, %v131
  %v148 = vpack.c.b16 %v132, %v132
  %v149 = vpack.c.b16 %v133, %v133
  %v150 = vpack.c.b16 %v134, %v134
  %v151 = vpack.c.b16 %v135, %v135
  %v152 = vpack.c.b16 %v136, %v136
  %v153 = vpack.c.b16 %v137, %v137
  %v154 = vpack.c.b16 %v138, %v138
  %v155 = vpack.c.b16 %v139, %v139
  %172 = vst [vmem:[%s3] sm:$0xf] %v140
  %173 = vst [vmem:[%s3 + $0x4] sm:$0xf] %v141
  %174 = vst [vmem:[%s3 + $0x8] sm:$0xf] %v142
  %175 = vst [vmem:[%s3 + $0xc] sm:$0xf] %v143
  %176 = vst [vmem:[%s3 + $0x10] sm:$0xf] %v144
  %177 = vst [vmem:[%s3 + $0x14] sm:$0xf] %v145
  %178 = vst [vmem:[%s3 + $0x18] sm:$0xf] %v146
  %179 = vst [vmem:[%s3 + $0x1c] sm:$0xf] %v147
  %180 = vst [vmem:[%s3 + $0x20] sm:$0xf] %v148
  %181 = vst [vmem:[%s3 + $0x24] sm:$0xf] %v149
  %182 = vst [vmem:[%s3 + $0x28] sm:$0xf] %v150
  %183 = vst [vmem:[%s3 + $0x2c] sm:$0xf] %v151
  %184 = vst [vmem:[%s3 + $0x30] sm:$0xf] %v152
  %185 = vst [vmem:[%s3 + $0x34] sm:$0xf] %v153
  %186 = vst [vmem:[%s3 + $0x38] sm:$0xf] %v154
  %187 = vst [vmem:[%s3 + $0x3c] sm:$0xf] %v155
  // Predicated region
  $region14: #{g_net_forward.54} parent=0 // pred_check
    _
  $region15: #{g_net_forward.54} parent=0 // pred_check_branch
    %189 = sbr.rel (0) target = $region17
  $region16: #{g_net_forward.54} parent=0 // pred_region
    _
  $region17: #{g_net_forward.54} parent=0 // pred_fallthru
    _
  // Predicated region
  $region18: #{g_net_forward.54} parent=0 // pred_check
    _
  $region19: #{g_net_forward.54} parent=0 // pred_check_branch
    %191 = sbr.rel (0) target = $region21
  $region20: #{g_net_forward.54} parent=0 // pred_region
    _
  $region21: #{g_net_forward.54} parent=0 // pred_fallthru
    _

// kernel: g_net_forward.53
$region0: #{g_net_forward.53}
  #allocation0 [shape = 'u32[]', space=smem, size = 0x4, offset = 0x4, fixed_abs, tag = 'smem constant byte address 0x4 - core index']
  #allocation1 [shape = 'u32[144,128]{1,0:T(1,128)}', space=vmem, size = 0x12000, scoped, tag = 'internal scratch']
  %s0 = inlined_call_operand.vmem [shape: bf16[1,128,256], index: 0, kind: input, shape index: {}]
  %s1 = inlined_call_operand.vmem [shape: bf16[1,256,128], index: 1, kind: input, shape index: {}]
  %s2 = inlined_call_operand.vmem [shape: f32[1,128], index: 2, kind: input, shape index: {}]
  %s3 = inlined_call_operand.vmem [shape: bf16[1,128,128], index: 3, kind: output, shape index: {0}]
  %s4 = inlined_call_operand.vmem [shape: f32[1,1,2,128], index: 4, kind: output, shape index: {1}]
  %5 = xla_tuple %s3, %s4
  %s6 = sld [smem:[#allocation0]]
  $region30: #{g_net_forward.53} parent=0
    _
  %s8 = ssub.s32 1, %s6
  %s9 = scalar_select 0, %s8, %s6
  // Predicated region
  $region2: #{g_net_forward.53} parent=0 // pred_check
    _
  $region3: #{g_net_forward.53} parent=0 // pred_check_branch
    %11 = sbr.rel (0) target = $region5
  $region4: #{g_net_forward.53} parent=0 // pred_region
    _
  $region5: #{g_net_forward.53} parent=0 // pred_fallthru
    _
  // Predicated region
  $region6: #{g_net_forward.53} parent=0 // pred_check
    _
  $region7: #{g_net_forward.53} parent=0 // pred_check_branch
    %13 = sbr.rel (0) target = $region9
  $region8: #{g_net_forward.53} parent=0 // pred_region
    _
  $region9: #{g_net_forward.53} parent=0 // pred_fallthru
    _
  // Predicated region
  $region10: #{g_net_forward.53} parent=0 // pred_check
    _
  $region11: #{g_net_forward.53} parent=0 // pred_check_branch
    %15 = sbr.rel (0) target = $region13
  $region12: #{g_net_forward.53} parent=0 // pred_region
    _
  $region13: #{g_net_forward.53} parent=0 // pred_fallthru
    _
  %v17 = vld [vmem:[%s0] sm:$0xff]
  %v18 = vld [vmem:[%s0 + $0x8] sm:$0xff]
  %v19 = vld [vmem:[%s0 + $0x10] sm:$0xff]
  %v20 = vld [vmem:[%s0 + $0x18] sm:$0xff]
  %v21 = vld [vmem:[%s0 + $0x20] sm:$0xff]
  %v22 = vld [vmem:[%s0 + $0x28] sm:$0xff]
  %v23 = vld [vmem:[%s0 + $0x30] sm:$0xff]
  %v24 = vld [vmem:[%s0 + $0x38] sm:$0xff]
  %v25 = vld [vmem:[%s0 + $0x40] sm:$0xff]
  %v26 = vld [vmem:[%s0 + $0x48] sm:$0xff]
  %v27 = vld [vmem:[%s0 + $0x50] sm:$0xff]
  %v28 = vld [vmem:[%s0 + $0x58] sm:$0xff]
  %v29 = vld [vmem:[%s0 + $0x60] sm:$0xff]
  %v30 = vld [vmem:[%s0 + $0x68] sm:$0xff]
  %v31 = vld [vmem:[%s0 + $0x70] sm:$0xff]
  %v32 = vld [vmem:[%s0 + $0x78] sm:$0xff]
  %v33 = vld [vmem:[%s1] sm:$0xf]
  %v34 = vld [vmem:[%s1 + $0x4] sm:$0xf]
  %v35 = vld [vmem:[%s1 + $0x8] sm:$0xf]
  %v36 = vld [vmem:[%s1 + $0xc] sm:$0xf]
  %v37 = vld [vmem:[%s1 + $0x10] sm:$0xf]
  %v38 = vld [vmem:[%s1 + $0x14] sm:$0xf]
  %v39 = vld [vmem:[%s1 + $0x18] sm:$0xf]
  %v40 = vld [vmem:[%s1 + $0x1c] sm:$0xf]
  %v41 = vld [vmem:[%s1 + $0x20] sm:$0xf]
  %v42 = vld [vmem:[%s1 + $0x24] sm:$0xf]
  %v43 = vld [vmem:[%s1 + $0x28] sm:$0xf]
  %v44 = vld [vmem:[%s1 + $0x2c] sm:$0xf]
  %v45 = vld [vmem:[%s1 + $0x30] sm:$0xf]
  %v46 = vld [vmem:[%s1 + $0x34] sm:$0xf]
  %v47 = vld [vmem:[%s1 + $0x38] sm:$0xf]
  %v48 = vld [vmem:[%s1 + $0x3c] sm:$0xf]
  %v49 = vld [vmem:[%s1 + $0x40] sm:$0xf]
  %v50 = vld [vmem:[%s1 + $0x44] sm:$0xf]
  %v51 = vld [vmem:[%s1 + $0x48] sm:$0xf]
  %v52 = vld [vmem:[%s1 + $0x4c] sm:$0xf]
  %v53 = vld [vmem:[%s1 + $0x50] sm:$0xf]
  %v54 = vld [vmem:[%s1 + $0x54] sm:$0xf]
  %v55 = vld [vmem:[%s1 + $0x58] sm:$0xf]
  %v56 = vld [vmem:[%s1 + $0x5c] sm:$0xf]
  %v57 = vld [vmem:[%s1 + $0x60] sm:$0xf]
  %v58 = vld [vmem:[%s1 + $0x64] sm:$0xf]
  %v59 = vld [vmem:[%s1 + $0x68] sm:$0xf]
  %v60 = vld [vmem:[%s1 + $0x6c] sm:$0xf]
  %v61 = vld [vmem:[%s1 + $0x70] sm:$0xf]
  %v62 = vld [vmem:[%s1 + $0x74] sm:$0xf]
  %v63 = vld [vmem:[%s1 + $0x78] sm:$0xf]
  %v64 = vld [vmem:[%s1 + $0x7c] sm:$0xf]
  %v65 = vld [vmem:[%s2] sm:$0x1]
  %v67 = vlaneseq
  %v68 = vshrl.u32 %v67, 7
  %v69 = vsub.s32 0, %v68
  %v70 = vrot.slane %v65, %v69
  %v88 = vunpack.c.l.b16 %v17
  %v89 = vunpack.c.h.b16 %v17
  %v90 = vunpack.c.l.b16 %v18
  %v91 = vunpack.c.h.b16 %v18
  %v92 = vunpack.c.l.b16 %v19
  %v93 = vunpack.c.h.b16 %v19
  %v94 = vunpack.c.l.b16 %v20
  %v95 = vunpack.c.h.b16 %v20
  %v96 = vunpack.c.l.b16 %v21
  %v97 = vunpack.c.h.b16 %v21
  %v98 = vunpack.c.l.b16 %v22
  %v99 = vunpack.c.h.b16 %v22
  %v100 = vunpack.c.l.b16 %v23
  %v101 = vunpack.c.h.b16 %v23
  %v102 = vunpack.c.l.b16 %v24
  %v103 = vunpack.c.h.b16 %v24
  %v104 = vunpack.c.l.b16 %v25
  %v105 = vunpack.c.h.b16 %v25
  %v106 = vunpack.c.l.b16 %v26
  %v107 = vunpack.c.h.b16 %v26
  %v108 = vunpack.c.l.b16 %v27
  %v109 = vunpack.c.h.b16 %v27
  %v110 = vunpack.c.l.b16 %v28
  %v111 = vunpack.c.h.b16 %v28
  %v112 = vunpack.c.l.b16 %v29
  %v113 = vunpack.c.h.b16 %v29
  %v114 = vunpack.c.l.b16 %v30
  %v115 = vunpack.c.h.b16 %v30
  %v116 = vunpack.c.l.b16 %v31
  %v117 = vunpack.c.h.b16 %v31
  %v118 = vunpack.c.l.b16 %v32
  %v119 = vunpack.c.h.b16 %v32
  %v120 = vpack.c.b16 %v90, %v88
  %v121 = vpack.c.b16 %v91, %v89
  %v122 = vpack.c.b16 %v94, %v92
  %v123 = vpack.c.b16 %v95, %v93
  %v124 = vpack.c.b16 %v98, %v96
  %v125 = vpack.c.b16 %v99, %v97
  %v126 = vpack.c.b16 %v102, %v100
  %v127 = vpack.c.b16 %v103, %v101
  %v128 = vpack.c.b16 %v106, %v104
  %v129 = vpack.c.b16 %v107, %v105
  %v130 = vpack.c.b16 %v110, %v108
  %v131 = vpack.c.b16 %v111, %v109
  %v132 = vpack.c.b16 %v114, %v112
  %v133 = vpack.c.b16 %v115, %v113
  %v134 = vpack.c.b16 %v118, %v116
  %v135 = vpack.c.b16 %v119, %v117
  %v184 = vunpack.c.l.b16 %v33
  %v185 = vunpack.c.l.b16 %v34
  %v186 = vunpack.c.l.b16 %v35
  %v187 = vunpack.c.l.b16 %v36
  %v188 = vunpack.c.l.b16 %v37
  %v189 = vunpack.c.l.b16 %v38
  %v190 = vunpack.c.l.b16 %v39
  %v191 = vunpack.c.l.b16 %v40
  %v192 = vunpack.c.l.b16 %v41
  %v193 = vunpack.c.l.b16 %v42
  %v194 = vunpack.c.l.b16 %v43
  %v195 = vunpack.c.l.b16 %v44
  %v196 = vunpack.c.l.b16 %v45
  %v197 = vunpack.c.l.b16 %v46
  %v198 = vunpack.c.l.b16 %v47
  %v199 = vunpack.c.l.b16 %v48
  %v200 = vunpack.c.l.b16 %v49
  %v201 = vunpack.c.l.b16 %v50
  %v202 = vunpack.c.l.b16 %v51
  %v203 = vunpack.c.l.b16 %v52
  %v204 = vunpack.c.l.b16 %v53
  %v205 = vunpack.c.l.b16 %v54
  %v206 = vunpack.c.l.b16 %v55
  %v207 = vunpack.c.l.b16 %v56
  %v208 = vunpack.c.l.b16 %v57
  %v209 = vunpack.c.l.b16 %v58
  %v210 = vunpack.c.l.b16 %v59
  %v211 = vunpack.c.l.b16 %v60
  %v212 = vunpack.c.l.b16 %v61
  %v213 = vunpack.c.l.b16 %v62
  %v214 = vunpack.c.l.b16 %v63
  %v215 = vunpack.c.l.b16 %v64
  %v216 = vpack.c.b16 %v185, %v184
  %v217 = vpack.c.b16 %v187, %v186
  %v218 = vpack.c.b16 %v189, %v188
  %v219 = vpack.c.b16 %v191, %v190
  %v220 = vpack.c.b16 %v193, %v192
  %v221 = vpack.c.b16 %v195, %v194
  %v222 = vpack.c.b16 %v197, %v196
  %v223 = vpack.c.b16 %v199, %v198
  %v224 = vpack.c.b16 %v201, %v200
  %v225 = vpack.c.b16 %v203, %v202
  %v226 = vpack.c.b16 %v205, %v204
  %v227 = vpack.c.b16 %v207, %v206
  %v228 = vpack.c.b16 %v209, %v208
  %v229 = vpack.c.b16 %v211, %v210
  %v230 = vpack.c.b16 %v213, %v212
  %v231 = vpack.c.b16 %v215, %v214
  %248 = vmatprep.subr.bf16.mxu0 0
  %249 = vmatpush1.bf16.msra.mxu0 %v216
  %250 = vmatprep.subr.bf16.mxu0 0
  %251 = vmatpush1.bf16.msra.mxu0 %v217
  %252 = vmatprep.subr.bf16.mxu0 0
  %253 = vmatpush1.bf16.msra.mxu0 %v218
  %254 = vmatprep.subr.bf16.mxu0 0
  %255 = vmatpush1.bf16.msra.mxu0 %v219
  %256 = vmatprep.subr.bf16.mxu0 0
  %257 = vmatpush1.bf16.msra.mxu0 %v220
  %258 = vmatprep.subr.bf16.mxu0 0
  %259 = vmatpush1.bf16.msra.mxu0 %v221
  %260 = vmatprep.subr.bf16.mxu0 0
  %261 = vmatpush1.bf16.msra.mxu0 %v222
  %262 = vmatprep.subr.bf16.mxu0 0
  %263 = vmatpush1.bf16.msra.mxu0 %v223
  %264 = vmatprep.subr.bf16.mxu0 0
  %265 = vmatpush1.bf16.msra.mxu0 %v224
  %266 = vmatprep.subr.bf16.mxu0 0
  %267 = vmatpush1.bf16.msra.mxu0 %v225
  %268 = vmatprep.subr.bf16.mxu0 0
  %269 = vmatpush1.bf16.msra.mxu0 %v226
  %270 = vmatprep.subr.bf16.mxu0 0
  %271 = vmatpush1.bf16.msra.mxu0 %v227
  %272 = vmatprep.subr.bf16.mxu0 0
  %273 = vmatpush1.bf16.msra.mxu0 %v228
  %274 = vmatprep.subr.bf16.mxu0 0
  %275 = vmatpush1.bf16.msra.mxu0 %v229
  %276 = vmatprep.subr.bf16.mxu0 0
  %277 = vmatpush1.bf16.msra.mxu0 %v230
  %278 = vmatprep.subr.bf16.mxu0 0
  %279 = vmatpush1.bf16.msra.mxu0 %v231
  %280 = vmatprep.mubr.bf16.mxu0 %v121
  %281 = vmatmul.mubr.bf16.gmra.mrb[0].mxu0 %v120
  %v282 = vpop.f32.mrb[0].mxu0
  %v283 = vadd.f32 %v70, %v282
  %v284 = vpop.f32.mrb[0].mxu0
  %v285 = vpop.f32.mrb[0].mxu0
  %v286 = vadd.f32 %v70, %v285
  %v287 = vpop.f32.mrb[0].mxu0
  %288 = vmatprep.mubr.bf16.mxu0 %v123
  %289 = vmatmul.mubr.bf16.gmra.mrb[0].mxu0 %v122
  %v290 = vpop.f32.mrb[0].mxu0
  %v291 = vadd.f32 %v70, %v290
  %v292 = vpop.f32.mrb[0].mxu0
  %v293 = vpop.f32.mrb[0].mxu0
  %v294 = vadd.f32 %v70, %v293
  %v295 = vpop.f32.mrb[0].mxu0
  %296 = vmatprep.mubr.bf16.mxu0 %v125
  %297 = vmatmul.mubr.bf16.gmra.mrb[0].mxu0 %v124
  %v298 = vpop.f32.mrb[0].mxu0
  %v299 = vadd.f32 %v70, %v298
  %v300 = vpop.f32.mrb[0].mxu0
  %v301 = vpop.f32.mrb[0].mxu0
  %v302 = vadd.f32 %v70, %v301
  %v303 = vpop.f32.mrb[0].mxu0
  %304 = vmatprep.mubr.bf16.mxu0 %v127
  %305 = vmatmul.mubr.bf16.gmra.mrb[0].mxu0 %v126
  %v306 = vpop.f32.mrb[0].mxu0
  %v307 = vadd.f32 %v70, %v306
  %v308 = vpop.f32.mrb[0].mxu0
  %v309 = vpop.f32.mrb[0].mxu0
  %v310 = vadd.f32 %v70, %v309
  %v311 = vpop.f32.mrb[0].mxu0
  %312 = vmatprep.mubr.bf16.mxu0 %v129
  %313 = vmatmul.mubr.bf16.gmra.mrb[0].mxu0 %v128
  %v314 = vpop.f32.mrb[0].mxu0
  %v315 = vadd.f32 %v70, %v314
  %v316 = vpop.f32.mrb[0].mxu0
  %v317 = vpop.f32.mrb[0].mxu0
  %v318 = vadd.f32 %v70, %v317
  %v319 = vpop.f32.mrb[0].mxu0
  %320 = vmatprep.mubr.bf16.mxu0 %v131
  %321 = vmatmul.mubr.bf16.gmra.mrb[0].mxu0 %v130
  %v322 = vpop.f32.mrb[0].mxu0
  %v323 = vadd.f32 %v70, %v322
  %v324 = vpop.f32.mrb[0].mxu0
  %v325 = vpop.f32.mrb[0].mxu0
  %v326 = vadd.f32 %v70, %v325
  %v327 = vpop.f32.mrb[0].mxu0
  %328 = vmatprep.mubr.bf16.mxu0 %v133
  %329 = vmatmul.mubr.bf16.gmra.mrb[0].mxu0 %v132
  %v330 = vpop.f32.mrb[0].mxu0
  %v331 = vadd.f32 %v70, %v330
  %v332 = vpop.f32.mrb[0].mxu0
  %v333 = vpop.f32.mrb[0].mxu0
  %v334 = vadd.f32 %v70, %v333
  %v335 = vpop.f32.mrb[0].mxu0
  %336 = vmatprep.mubr.bf16.mxu0 %v135
  %337 = vmatmul.mubr.bf16.gmra.mrb[0].mxu0 %v134
  %v338 = vpop.f32.mrb[0].mxu0
  %v339 = vadd.f32 %v70, %v338
  %v340 = vpop.f32.mrb[0].mxu0
  %v341 = vpop.f32.mrb[0].mxu0
  %v342 = vadd.f32 %v70, %v341
  %v343 = vpop.f32.mrb[0].mxu0
  %344 = vdwg.mxu0
  %v345 = vadd.f32 %v283, %v286
  %v346 = vadd.f32 %v345, %v291
  %v347 = vadd.f32 %v346, %v294
  %v348 = vadd.f32 %v347, %v299
  %v349 = vadd.f32 %v348, %v302
  %v350 = vadd.f32 %v349, %v307
  %v351 = vadd.f32 %v350, %v310
  %v352 = vadd.f32 %v351, %v315
  %v353 = vadd.f32 %v352, %v318
  %v354 = vadd.f32 %v353, %v323
  %v355 = vadd.f32 %v354, %v326
  %v356 = vadd.f32 %v355, %v331
  %v357 = vadd.f32 %v356, %v334
  %v358 = vadd.f32 %v357, %v339
  %v359 = vadd.f32 %v358, %v342
  %v360 = vrot.slane %v359, 4
  %v361 = vadd.f32 %v359, %v360
  %v362 = vrot.slane %v361, 2
  %v363 = vadd.f32 %v361, %v362
  %v364 = vrot.slane %v363, 1
  %v365 = vadd.f32 %v363, %v364
  %v366 = vmul.f32 %v283, %v283
  %v367 = vmul.f32 %v286, %v286
  %v368 = vmul.f32 %v291, %v291
  %v369 = vmul.f32 %v294, %v294
  %v370 = vmul.f32 %v299, %v299
  %v371 = vmul.f32 %v302, %v302
  %v372 = vmul.f32 %v307, %v307
  %v373 = vmul.f32 %v310, %v310
  %v374 = vmul.f32 %v315, %v315
  %v375 = vmul.f32 %v318, %v318
  %v376 = vmul.f32 %v323, %v323
  %v377 = vmul.f32 %v326, %v326
  %v378 = vmul.f32 %v331, %v331
  %v379 = vmul.f32 %v334, %v334
  %v380 = vmul.f32 %v339, %v339
  %v381 = vmul.f32 %v342, %v342
  %v382 = vadd.f32 %v366, %v367
  %v383 = vadd.f32 %v382, %v368
  %v384 = vadd.f32 %v383, %v369
  %v385 = vadd.f32 %v384, %v370
  %v386 = vadd.f32 %v385, %v371
  %v387 = vadd.f32 %v386, %v372
  %v388 = vadd.f32 %v387, %v373
  %v389 = vadd.f32 %v388, %v374
  %v390 = vadd.f32 %v389, %v375
  %v391 = vadd.f32 %v390, %v376
  %v392 = vadd.f32 %v391, %v377
  %v393 = vadd.f32 %v392, %v378
  %v394 = vadd.f32 %v393, %v379
  %v395 = vadd.f32 %v394, %v380
  %v396 = vadd.f32 %v395, %v381
  %v397 = vrot.slane %v396, 4
  %v398 = vadd.f32 %v396, %v397
  %v399 = vrot.slane %v398, 2
  %v400 = vadd.f32 %v398, %v399
  %v401 = vrot.slane %v400, 1
  %v402 = vadd.f32 %v400, %v401
  %vm403 = vcmask 1040384
  %v404 = vsel %vm403, %v365, %v402
  %405 = vst [vmem:[%s4] sm:$0x3] %v404
  %v406 = vpack.c.bf16 %v286, %v283
  %v407 = vpack.c.bf16 %v294, %v291
  %v408 = vpack.c.bf16 %v302, %v299
  %v409 = vpack.c.bf16 %v310, %v307
  %v410 = vpack.c.bf16 %v318, %v315
  %v411 = vpack.c.bf16 %v326, %v323
  %v412 = vpack.c.bf16 %v334, %v331
  %v413 = vpack.c.bf16 %v342, %v339
  %v422 = vunpack.c.l.b16 %v406
  %v423 = vunpack.c.h.b16 %v406
  %v424 = vunpack.c.l.b16 %v407
  %v425 = vunpack.c.h.b16 %v407
  %v426 = vunpack.c.l.b16 %v408
  %v427 = vunpack.c.h.b16 %v408
  %v428 = vunpack.c.l.b16 %v409
  %v429 = vunpack.c.h.b16 %v409
  %v430 = vunpack.c.l.b16 %v410
  %v431 = vunpack.c.h.b16 %v410
  %v432 = vunpack.c.l.b16 %v411
  %v433 = vunpack.c.h.b16 %v411
  %v434 = vunpack.c.l.b16 %v412
  %v435 = vunpack.c.h.b16 %v412
  %v436 = vunpack.c.l.b16 %v413
  %v437 = vunpack.c.h.b16 %v413
  %v438 = vpack.c.b16 %v422, %v422
  %v439 = vpack.c.b16 %v423, %v423
  %v440 = vpack.c.b16 %v424, %v424
  %v441 = vpack.c.b16 %v425, %v425
  %v442 = vpack.c.b16 %v426, %v426
  %v443 = vpack.c.b16 %v427, %v427
  %v444 = vpack.c.b16 %v428, %v428
  %v445 = vpack.c.b16 %v429, %v429
  %v446 = vpack.c.b16 %v430, %v430
  %v447 = vpack.c.b16 %v431, %v431
  %v448 = vpack.c.b16 %v432, %v432
  %v449 = vpack.c.b16 %v433, %v433
  %v450 = vpack.c.b16 %v434, %v434
  %v451 = vpack.c.b16 %v435, %v435
  %v452 = vpack.c.b16 %v436, %v436
  %v453 = vpack.c.b16 %v437, %v437
  %470 = vst [vmem:[%s3] sm:$0xf] %v438
  %471 = vst [vmem:[%s3 + $0x4] sm:$0xf] %v439
  %472 = vst [vmem:[%s3 + $0x8] sm:$0xf] %v440
  %473 = vst [vmem:[%s3 + $0xc] sm:$0xf] %v441
  %474 = vst [vmem:[%s3 + $0x10] sm:$0xf] %v442
  %475 = vst [vmem:[%s3 + $0x14] sm:$0xf] %v443
  %476 = vst [vmem:[%s3 + $0x18] sm:$0xf] %v444
  %477 = vst [vmem:[%s3 + $0x1c] sm:$0xf] %v445
  %478 = vst [vmem:[%s3 + $0x20] sm:$0xf] %v446
  %479 = vst [vmem:[%s3 + $0x24] sm:$0xf] %v447
  %480 = vst [vmem:[%s3 + $0x28] sm:$0xf] %v448
  %481 = vst [vmem:[%s3 + $0x2c] sm:$0xf] %v449
  %482 = vst [vmem:[%s3 + $0x30] sm:$0xf] %v450
  %483 = vst [vmem:[%s3 + $0x34] sm:$0xf] %v451
  %484 = vst [vmem:[%s3 + $0x38] sm:$0xf] %v452
  %485 = vst [vmem:[%s3 + $0x3c] sm:$0xf] %v453
  // Predicated region
  $region14: #{g_net_forward.53} parent=0 // pred_check
    _
  $region15: #{g_net_forward.53} parent=0 // pred_check_branch
    %487 = sbr.rel (0) target = $region17
  $region16: #{g_net_forward.53} parent=0 // pred_region
    _
  $region17: #{g_net_forward.53} parent=0 // pred_fallthru
    _
  // Predicated region
  $region18: #{g_net_forward.53} parent=0 // pred_check
    _
  $region19: #{g_net_forward.53} parent=0 // pred_check_branch
    %489 = sbr.rel (0) target = $region21
  $region20: #{g_net_forward.53} parent=0 // pred_region
    _
  $region21: #{g_net_forward.53} parent=0 // pred_fallthru
    _
  // Predicated region
  $region22: #{g_net_forward.53} parent=0 // pred_check
    _
  $region23: #{g_net_forward.53} parent=0 // pred_check_branch
    %491 = sbr.rel (0) target = $region25
  $region24: #{g_net_forward.53} parent=0 // pred_region
    _
  $region25: #{g_net_forward.53} parent=0 // pred_fallthru
    _
  // Predicated region
  $region26: #{g_net_forward.53} parent=0 // pred_check
    _
  $region27: #{g_net_forward.53} parent=0 // pred_check_branch
    %493 = sbr.rel (0) target = $region29
  $region28: #{g_net_forward.53} parent=0 // pred_region
    _
  $region29: #{g_net_forward.53} parent=0 // pred_fallthru
    _

// kernel: g_net_forward.57
$region0: #{g_net_forward.57}
  #allocation0 [shape = 'u32[]', space=smem, size = 0x4, offset = 0x4, fixed_abs, tag = 'smem constant byte address 0x4 - core index']
  #allocation1 [shape = 'u32[144,128]{1,0:T(1,128)}', space=vmem, size = 0x12000, scoped, tag = 'internal scratch']
  %s0 = inlined_call_operand.vmem [shape: bf16[1,32,128], index: 0, kind: input, shape index: {}]
  %s1 = inlined_call_operand.vmem [shape: bf16[1,128,128], index: 1, kind: input, shape index: {}]
  %s2 = inlined_call_operand.vmem [shape: f32[1,128], index: 2, kind: input, shape index: {}]
  %s3 = inlined_call_operand.vmem [shape: bf16[1,32,128], index: 3, kind: output, shape index: {0}]
  %s4 = inlined_call_operand.vmem [shape: f32[1,1,2,128], index: 4, kind: output, shape index: {1}]
  %5 = xla_tuple %s3, %s4
  %s6 = sld [smem:[#allocation0]]
  $region30: #{g_net_forward.57} parent=0
    _
  %s8 = ssub.s32 1, %s6
  %s9 = scalar_select 0, %s8, %s6
  // Predicated region
  $region2: #{g_net_forward.57} parent=0 // pred_check
    _
  $region3: #{g_net_forward.57} parent=0 // pred_check_branch
    %11 = sbr.rel (0) target = $region5
  $region4: #{g_net_forward.57} parent=0 // pred_region
    _
  $region5: #{g_net_forward.57} parent=0 // pred_fallthru
    _
  // Predicated region
  $region6: #{g_net_forward.57} parent=0 // pred_check
    _
  $region7: #{g_net_forward.57} parent=0 // pred_check_branch
    %13 = sbr.rel (0) target = $region9
  $region8: #{g_net_forward.57} parent=0 // pred_region
    _
  $region9: #{g_net_forward.57} parent=0 // pred_fallthru
    _
  // Predicated region
  $region10: #{g_net_forward.57} parent=0 // pred_check
    _
  $region11: #{g_net_forward.57} parent=0 // pred_check_branch
    %15 = sbr.rel (0) target = $region13
  $region12: #{g_net_forward.57} parent=0 // pred_region
    _
  $region13: #{g_net_forward.57} parent=0 // pred_fallthru
    _
  %v17 = vld [vmem:[%s0] sm:$0xf]
  %v18 = vld [vmem:[%s0 + $0x4] sm:$0xf]
  %v19 = vld [vmem:[%s0 + $0x8] sm:$0xf]
  %v20 = vld [vmem:[%s0 + $0xc] sm:$0xf]
  %v21 = vld [vmem:[%s1] sm:$0xf]
  %v22 = vld [vmem:[%s1 + $0x4] sm:$0xf]
  %v23 = vld [vmem:[%s1 + $0x8] sm:$0xf]
  %v24 = vld [vmem:[%s1 + $0xc] sm:$0xf]
  %v25 = vld [vmem:[%s1 + $0x10] sm:$0xf]
  %v26 = vld [vmem:[%s1 + $0x14] sm:$0xf]
  %v27 = vld [vmem:[%s1 + $0x18] sm:$0xf]
  %v28 = vld [vmem:[%s1 + $0x1c] sm:$0xf]
  %v29 = vld [vmem:[%s1 + $0x20] sm:$0xf]
  %v30 = vld [vmem:[%s1 + $0x24] sm:$0xf]
  %v31 = vld [vmem:[%s1 + $0x28] sm:$0xf]
  %v32 = vld [vmem:[%s1 + $0x2c] sm:$0xf]
  %v33 = vld [vmem:[%s1 + $0x30] sm:$0xf]
  %v34 = vld [vmem:[%s1 + $0x34] sm:$0xf]
  %v35 = vld [vmem:[%s1 + $0x38] sm:$0xf]
  %v36 = vld [vmem:[%s1 + $0x3c] sm:$0xf]
  %v37 = vld [vmem:[%s2] sm:$0x1]
  %v39 = vlaneseq
  %v40 = vshrl.u32 %v39, 7
  %v41 = vsub.s32 0, %v40
  %v42 = vrot.slane %v37, %v41
  %v48 = vunpack.c.l.b16 %v17
  %v49 = vunpack.c.l.b16 %v18
  %v50 = vunpack.c.l.b16 %v19
  %v51 = vunpack.c.l.b16 %v20
  %v52 = vpack.c.b16 %v49, %v48
  %v53 = vpack.c.b16 %v51, %v50
  %v72 = vunpack.c.l.b16 %v21
  %v73 = vunpack.c.l.b16 %v22
  %v74 = vunpack.c.l.b16 %v23
  %v75 = vunpack.c.l.b16 %v24
  %v76 = vunpack.c.l.b16 %v25
  %v77 = vunpack.c.l.b16 %v26
  %v78 = vunpack.c.l.b16 %v27
  %v79 = vunpack.c.l.b16 %v28
  %v80 = vunpack.c.l.b16 %v29
  %v81 = vunpack.c.l.b16 %v30
  %v82 = vunpack.c.l.b16 %v31
  %v83 = vunpack.c.l.b16 %v32
  %v84 = vunpack.c.l.b16 %v33
  %v85 = vunpack.c.l.b16 %v34
  %v86 = vunpack.c.l.b16 %v35
  %v87 = vunpack.c.l.b16 %v36
  %v88 = vpack.c.b16 %v73, %v72
  %v89 = vpack.c.b16 %v75, %v74
  %v90 = vpack.c.b16 %v77, %v76
  %v91 = vpack.c.b16 %v79, %v78
  %v92 = vpack.c.b16 %v81, %v80
  %v93 = vpack.c.b16 %v83, %v82
  %v94 = vpack.c.b16 %v85, %v84
  %v95 = vpack.c.b16 %v87, %v86
  %104 = vmatprep.subr.bf16.mxu0 0
  %105 = vmatpush1.bf16.msra.mxu0 %v88
  %106 = vmatprep.subr.bf16.mxu0 0
  %107 = vmatpush1.bf16.msra.mxu0 %v89
  %108 = vmatprep.subr.bf16.mxu0 0
  %109 = vmatpush1.bf16.msra.mxu0 %v90
  %110 = vmatprep.subr.bf16.mxu0 0
  %111 = vmatpush1.bf16.msra.mxu0 %v91
  %112 = vmatprep.subr.bf16.mxu0 0
  %113 = vmatpush1.bf16.msra.mxu0 %v92
  %114 = vmatprep.subr.bf16.mxu0 0
  %115 = vmatpush1.bf16.msra.mxu0 %v93
  %116 = vmatprep.subr.bf16.mxu0 0
  %117 = vmatpush1.bf16.msra.mxu0 %v94
  %118 = vmatprep.subr.bf16.mxu0 0
  %119 = vmatpush1.bf16.msra.mxu0 %v95
  %120 = vmatprep.subr.bf16.mxu0 0
  %121 = vmatpush1.bf16.msra.mxu0 0
  %122 = vmatprep.subr.bf16.mxu0 0
  %123 = vmatpush1.bf16.msra.mxu0 0
  %124 = vmatprep.subr.bf16.mxu0 0
  %125 = vmatpush1.bf16.msra.mxu0 0
  %126 = vmatprep.subr.bf16.mxu0 0
  %127 = vmatpush1.bf16.msra.mxu0 0
  %128 = vmatprep.subr.bf16.mxu0 0
  %129 = vmatpush1.bf16.msra.mxu0 0
  %130 = vmatprep.subr.bf16.mxu0 0
  %131 = vmatpush1.bf16.msra.mxu0 0
  %132 = vmatprep.subr.bf16.mxu0 0
  %133 = vmatpush1.bf16.msra.mxu0 0
  %134 = vmatprep.subr.bf16.mxu0 0
  %135 = vmatpush1.bf16.msra.mxu0 0
  %136 = vmatprep.mubr.bf16.mxu0 0
  %137 = vmatmul.mubr.bf16.gmra.mrb[0].mxu0 %v52
  %v138 = vpop.f32.mrb[0].mxu0
  %v139 = vadd.f32 %v42, %v138
  %v140 = vpop.f32.mrb[0].mxu0
  %v141 = vpop.f32.mrb[0].mxu0
  %v142 = vadd.f32 %v42, %v141
  %v143 = vpop.f32.mrb[0].mxu0
  %144 = vmatprep.mubr.bf16.mxu0 0
  %145 = vmatmul.mubr.bf16.gmra.mrb[0].mxu0 %v53
  %v146 = vpop.f32.mrb[0].mxu0
  %v147 = vadd.f32 %v42, %v146
  %v148 = vpop.f32.mrb[0].mxu0
  %v149 = vpop.f32.mrb[0].mxu0
  %v150 = vadd.f32 %v42, %v149
  %v151 = vpop.f32.mrb[0].mxu0
  %152 = vdwg.mxu0
  %v153 = vadd.f32 %v139, %v142
  %v154 = vadd.f32 %v153, %v147
  %v155 = vadd.f32 %v154, %v150
  %v156 = vrot.slane %v155, 4
  %v157 = vadd.f32 %v155, %v156
  %v158 = vrot.slane %v157, 2
  %v159 = vadd.f32 %v157, %v158
  %v160 = vrot.slane %v159, 1
  %v161 = vadd.f32 %v159, %v160
  %v162 = vmul.f32 %v139, %v139
  %v163 = vmul.f32 %v142, %v142
  %v164 = vmul.f32 %v147, %v147
  %v165 = vmul.f32 %v150, %v150
  %v166 = vadd.f32 %v162, %v163
  %v167 = vadd.f32 %v166, %v164
  %v168 = vadd.f32 %v167, %v165
  %v169 = vrot.slane %v168, 4
  %v170 = vadd.f32 %v168, %v169
  %v171 = vrot.slane %v170, 2
  %v172 = vadd.f32 %v170, %v171
  %v173 = vrot.slane %v172, 1
  %v174 = vadd.f32 %v172, %v173
  %vm175 = vcmask 1040384
  %v176 = vsel %vm175, %v161, %v174
  %177 = vst [vmem:[%s4] sm:$0x3] %v176
  %v178 = vpack.c.bf16 %v142, %v139
  %v179 = vpack.c.bf16 %v150, %v147
  %v182 = vunpack.c.l.b16 %v178
  %v183 = vunpack.c.h.b16 %v178
  %v184 = vunpack.c.l.b16 %v179
  %v185 = vunpack.c.h.b16 %v179
  %v186 = vpack.c.b16 %v182, %v182
  %v187 = vpack.c.b16 %v183, %v183
  %v188 = vpack.c.b16 %v184, %v184
  %v189 = vpack.c.b16 %v185, %v185
  %194 = vst [vmem:[%s3] sm:$0xf] %v186
  %195 = vst [vmem:[%s3 + $0x4] sm:$0xf] %v187
  %196 = vst [vmem:[%s3 + $0x8] sm:$0xf] %v188
  %197 = vst [vmem:[%s3 + $0xc] sm:$0xf] %v189
  // Predicated region
  $region14: #{g_net_forward.57} parent=0 // pred_check
    _
  $region15: #{g_net_forward.57} parent=0 // pred_check_branch
    %199 = sbr.rel (0) target = $region17
  $region16: #{g_net_forward.57} parent=0 // pred_region
    _
  $region17: #{g_net_forward.57} parent=0 // pred_fallthru
    _
  // Predicated region
  $region18: #{g_net_forward.57} parent=0 // pred_check
    _
  $region19: #{g_net_forward.57} parent=0 // pred_check_branch
    %201 = sbr.rel (0) target = $region21
  $region20: #{g_net_forward.57} parent=0 // pred_region
    _
  $region21: #{g_net_forward.57} parent=0 // pred_fallthru
    _
  // Predicated region
  $region22: #{g_net_forward.57} parent=0 // pred_check
    _
  $region23: #{g_net_forward.57} parent=0 // pred_check_branch
    %203 = sbr.rel (0) target = $region25
  $region24: #{g_net_forward.57} parent=0 // pred_region
    _
  $region25: #{g_net_forward.57} parent=0 // pred_fallthru
    _
  // Predicated region
  $region26: #{g_net_forward.57} parent=0 // pred_check
    _
  $region27: #{g_net_forward.57} parent=0 // pred_check_branch
    %205 = sbr.rel (0) target = $region29
  $region28: #{g_net_forward.57} parent=0 // pred_region
    _
  $region29: #{g_net_forward.57} parent=0 // pred_fallthru
    _

// kernel: g_net_forward.56
$region0: #{g_net_forward.56}
  #allocation0 [shape = 'u32[]', space=smem, size = 0x4, offset = 0x4, fixed_abs, tag = 'smem constant byte address 0x4 - core index']
  #allocation1 [shape = 'u32[144,128]{1,0:T(1,128)}', space=vmem, size = 0x12000, scoped, tag = 'internal scratch']
  %s0 = inlined_call_operand.vmem [shape: bf16[1,32,128], index: 0, kind: input, shape index: {}]
  %s1 = inlined_call_operand.vmem [shape: f32[1,128], index: 1, kind: input, shape index: {}]
  %s2 = inlined_call_operand.vmem [shape: f32[1,128], index: 2, kind: input, shape index: {}]
  %s3 = inlined_call_operand.vmem [shape: bf16[1,32,128], index: 3, kind: output, shape index: {}]
  %s4 = sld [smem:[#allocation0]]
  $region22: #{g_net_forward.56} parent=0
    _
  %s6 = ssub.s32 1, %s4
  %s7 = scalar_select 0, %s6, %s4
  // Predicated region
  $region2: #{g_net_forward.56} parent=0 // pred_check
    _
  $region3: #{g_net_forward.56} parent=0 // pred_check_branch
    %9 = sbr.rel (0) target = $region5
  $region4: #{g_net_forward.56} parent=0 // pred_region
    _
  $region5: #{g_net_forward.56} parent=0 // pred_fallthru
    _
  // Predicated region
  $region6: #{g_net_forward.56} parent=0 // pred_check
    _
  $region7: #{g_net_forward.56} parent=0 // pred_check_branch
    %11 = sbr.rel (0) target = $region9
  $region8: #{g_net_forward.56} parent=0 // pred_region
    _
  $region9: #{g_net_forward.56} parent=0 // pred_fallthru
    _
  // Predicated region
  $region10: #{g_net_forward.56} parent=0 // pred_check
    _
  $region11: #{g_net_forward.56} parent=0 // pred_check_branch
    %13 = sbr.rel (0) target = $region13
  $region12: #{g_net_forward.56} parent=0 // pred_region
    _
  $region13: #{g_net_forward.56} parent=0 // pred_fallthru
    _
  %v14 = vld [vmem:[%s0] sm:$0xf]
  %v15 = vld [vmem:[%s0 + $0x4] sm:$0xf]
  %v16 = vld [vmem:[%s0 + $0x8] sm:$0xf]
  %v17 = vld [vmem:[%s0 + $0xc] sm:$0xf]
  %v18 = vunpack.c.l.bf16 %v14
  %v19 = vunpack.c.l.bf16 %v15
  %v20 = vunpack.c.l.bf16 %v16
  %v21 = vunpack.c.l.bf16 %v17
  %v22 = vld [vmem:[%s1] sm:$0x1]
  %v24 = vlaneseq
  %v25 = vshrl.u32 %v24, 7
  %v26 = vsub.s32 0, %v25
  %v27 = vrot.slane %v22, %v26
  %v29 = vmul.f32 %v18, %v27
  %v30 = vmul.f32 %v19, %v27
  %v31 = vmul.f32 %v20, %v27
  %v32 = vmul.f32 %v21, %v27
  %v33 = vld [vmem:[%s2] sm:$0x1]
  %v35 = vlaneseq
  %v36 = vshrl.u32 %v35, 7
  %v37 = vsub.s32 0, %v36
  %v38 = vrot.slane %v33, %v37
  %v40 = vadd.f32 %v29, %v38
  %v41 = vadd.f32 %v30, %v38
  %v42 = vadd.f32 %v31, %v38
  %v43 = vadd.f32 %v32, %v38
  %v44 = vmax.f32 %v40, 0.0
  %v45 = vmax.f32 %v41, 0.0
  %v46 = vmax.f32 %v42, 0.0
  %v47 = vmax.f32 %v43, 0.0
  %v48 = vpack.c.bf16 %v45, %v44
  %v49 = vpack.c.bf16 %v47, %v46
  %v52 = vunpack.c.l.b16 %v48
  %v53 = vunpack.c.h.b16 %v48
  %v54 = vunpack.c.l.b16 %v49
  %v55 = vunpack.c.h.b16 %v49
  %v56 = vpack.c.b16 %v52, %v52
  %v57 = vpack.c.b16 %v53, %v53
  %v58 = vpack.c.b16 %v54, %v54
  %v59 = vpack.c.b16 %v55, %v55
  %64 = vst [vmem:[%s3] sm:$0xf] %v56
  %65 = vst [vmem:[%s3 + $0x4] sm:$0xf] %v57
  %66 = vst [vmem:[%s3 + $0x8] sm:$0xf] %v58
  %67 = vst [vmem:[%s3 + $0xc] sm:$0xf] %v59
  // Predicated region
  $region14: #{g_net_forward.56} parent=0 // pred_check
    _
  $region15: #{g_net_forward.56} parent=0 // pred_check_branch
    %69 = sbr.rel (0) target = $region17
  $region16: #{g_net_forward.56} parent=0 // pred_region
    _
  $region17: #{g_net_forward.56} parent=0 // pred_fallthru
    _
  // Predicated region
  $region18: #{g_net_forward.56} parent=0 // pred_check
    _
  $region19: #{g_net_forward.56} parent=0 // pred_check_branch
    %71 = sbr.rel (0) target = $region21
  $region20: #{g_net_forward.56} parent=0 // pred_region
    _
  $region21: #{g_net_forward.56} parent=0 // pred_fallthru
    _

// kernel: g_net_forward.55
$region0: #{g_net_forward.55}
  #allocation0 [shape = 'u32[]', space=smem, size = 0x4, offset = 0x4, fixed_abs, tag = 'smem constant byte address 0x4 - core index']
  #allocation1 [shape = 'u32[144,128]{1,0:T(1,128)}', space=vmem, size = 0x12000, scoped, tag = 'internal scratch']
  %s0 = inlined_call_operand.vmem [shape: bf16[1,32,384], index: 0, kind: input, shape index: {}]
  %s1 = inlined_call_operand.vmem [shape: bf16[1,384,128], index: 1, kind: input, shape index: {}]
  %s2 = inlined_call_operand.vmem [shape: f32[1,128], index: 2, kind: input, shape index: {}]
  %s3 = inlined_call_operand.vmem [shape: bf16[1,32,128], index: 3, kind: output, shape index: {0}]
  %s4 = inlined_call_operand.vmem [shape: f32[1,1,2,128], index: 4, kind: output, shape index: {1}]
  %5 = xla_tuple %s3, %s4
  %s6 = sld [smem:[#allocation0]]
  $region30: #{g_net_forward.55} parent=0
    _
  %s8 = ssub.s32 1, %s6
  %s9 = scalar_select 0, %s8, %s6
  // Predicated region
  $region2: #{g_net_forward.55} parent=0 // pred_check
    _
  $region3: #{g_net_forward.55} parent=0 // pred_check_branch
    %11 = sbr.rel (0) target = $region5
  $region4: #{g_net_forward.55} parent=0 // pred_region
    _
  $region5: #{g_net_forward.55} parent=0 // pred_fallthru
    _
  // Predicated region
  $region6: #{g_net_forward.55} parent=0 // pred_check
    _
  $region7: #{g_net_forward.55} parent=0 // pred_check_branch
    %13 = sbr.rel (0) target = $region9
  $region8: #{g_net_forward.55} parent=0 // pred_region
    _
  $region9: #{g_net_forward.55} parent=0 // pred_fallthru
    _
  // Predicated region
  $region10: #{g_net_forward.55} parent=0 // pred_check
    _
  $region11: #{g_net_forward.55} parent=0 // pred_check_branch
    %15 = sbr.rel (0) target = $region13
  $region12: #{g_net_forward.55} parent=0 // pred_region
    _
  $region13: #{g_net_forward.55} parent=0 // pred_fallthru
    _
  %v17 = vld [vmem:[%s0] sm:$0xff]
  %v18 = vld [vmem:[%s0 + $0x8] sm:$0xf]
  %v19 = vld [vmem:[%s0 + $0xc] sm:$0xff]
  %v20 = vld [vmem:[%s0 + $0x14] sm:$0xf]
  %v21 = vld [vmem:[%s0 + $0x18] sm:$0xff]
  %v22 = vld [vmem:[%s0 + $0x20] sm:$0xf]
  %v23 = vld [vmem:[%s0 + $0x24] sm:$0xff]
  %v24 = vld [vmem:[%s0 + $0x2c] sm:$0xf]
  %v25 = vld [vmem:[%s1] sm:$0xf]
  %v26 = vld [vmem:[%s1 + $0x4] sm:$0xf]
  %v27 = vld [vmem:[%s1 + $0x8] sm:$0xf]
  %v28 = vld [vmem:[%s1 + $0xc] sm:$0xf]
  %v29 = vld [vmem:[%s1 + $0x10] sm:$0xf]
  %v30 = vld [vmem:[%s1 + $0x14] sm:$0xf]
  %v31 = vld [vmem:[%s1 + $0x18] sm:$0xf]
  %v32 = vld [vmem:[%s1 + $0x1c] sm:$0xf]
  %v33 = vld [vmem:[%s1 + $0x20] sm:$0xf]
  %v34 = vld [vmem:[%s1 + $0x24] sm:$0xf]
  %v35 = vld [vmem:[%s1 + $0x28] sm:$0xf]
  %v36 = vld [vmem:[%s1 + $0x2c] sm:$0xf]
  %v37 = vld [vmem:[%s1 + $0x30] sm:$0xf]
  %v38 = vld [vmem:[%s1 + $0x34] sm:$0xf]
  %v39 = vld [vmem:[%s1 + $0x38] sm:$0xf]
  %v40 = vld [vmem:[%s1 + $0x3c] sm:$0xf]
  %v41 = vld [vmem:[%s1 + $0x40] sm:$0xf]
  %v42 = vld [vmem:[%s1 + $0x44] sm:$0xf]
  %v43 = vld [vmem:[%s1 + $0x48] sm:$0xf]
  %v44 = vld [vmem:[%s1 + $0x4c] sm:$0xf]
  %v45 = vld [vmem:[%s1 + $0x50] sm:$0xf]
  %v46 = vld [vmem:[%s1 + $0x54] sm:$0xf]
  %v47 = vld [vmem:[%s1 + $0x58] sm:$0xf]
  %v48 = vld [vmem:[%s1 + $0x5c] sm:$0xf]
  %v49 = vld [vmem:[%s1 + $0x60] sm:$0xf]
  %v50 = vld [vmem:[%s1 + $0x64] sm:$0xf]
  %v51 = vld [vmem:[%s1 + $0x68] sm:$0xf]
  %v52 = vld [vmem:[%s1 + $0x6c] sm:$0xf]
  %v53 = vld [vmem:[%s1 + $0x70] sm:$0xf]
  %v54 = vld [vmem:[%s1 + $0x74] sm:$0xf]
  %v55 = vld [vmem:[%s1 + $0x78] sm:$0xf]
  %v56 = vld [vmem:[%s1 + $0x7c] sm:$0xf]
  %v57 = vld [vmem:[%s1 + $0x80] sm:$0xf]
  %v58 = vld [vmem:[%s1 + $0x84] sm:$0xf]
  %v59 = vld [vmem:[%s1 + $0x88] sm:$0xf]
  %v60 = vld [vmem:[%s1 + $0x8c] sm:$0xf]
  %v61 = vld [vmem:[%s1 + $0x90] sm:$0xf]
  %v62 = vld [vmem:[%s1 + $0x94] sm:$0xf]
  %v63 = vld [vmem:[%s1 + $0x98] sm:$0xf]
  %v64 = vld [vmem:[%s1 + $0x9c] sm:$0xf]
  %v65 = vld [vmem:[%s1 + $0xa0] sm:$0xf]
  %v66 = vld [vmem:[%s1 + $0xa4] sm:$0xf]
  %v67 = vld [vmem:[%s1 + $0xa8] sm:$0xf]
  %v68 = vld [vmem:[%s1 + $0xac] sm:$0xf]
  %v69 = vld [vmem:[%s1 + $0xb0] sm:$0xf]
  %v70 = vld [vmem:[%s1 + $0xb4] sm:$0xf]
  %v71 = vld [vmem:[%s1 + $0xb8] sm:$0xf]
  %v72 = vld [vmem:[%s1 + $0xbc] sm:$0xf]
  %v73 = vld [vmem:[%s2] sm:$0x1]
  %v75 = vlaneseq
  %v76 = vshrl.u32 %v75, 7
  %v77 = vsub.s32 0, %v76
  %v78 = vrot.slane %v73, %v77
  %v88 = vunpack.c.l.b16 %v17
  %v89 = vunpack.c.h.b16 %v17
  %v90 = vunpack.c.l.b16 %v18
  %v91 = vunpack.c.l.b16 %v19
  %v92 = vunpack.c.h.b16 %v19
  %v93 = vunpack.c.l.b16 %v20
  %v94 = vunpack.c.l.b16 %v21
  %v95 = vunpack.c.h.b16 %v21
  %v96 = vunpack.c.l.b16 %v22
  %v97 = vunpack.c.l.b16 %v23
  %v98 = vunpack.c.h.b16 %v23
  %v99 = vunpack.c.l.b16 %v24
  %v100 = vpack.c.b16 %v91, %v88
  %v101 = vpack.c.b16 %v92, %v89
  %v102 = vpack.c.b16 %v93, %v90
  %v103 = vpack.c.b16 %v97, %v94
  %v104 = vpack.c.b16 %v98, %v95
  %v105 = vpack.c.b16 %v99, %v96
  %v160 = vunpack.c.l.b16 %v25
  %v161 = vunpack.c.l.b16 %v26
  %v162 = vunpack.c.l.b16 %v27
  %v163 = vunpack.c.l.b16 %v28
  %v164 = vunpack.c.l.b16 %v29
  %v165 = vunpack.c.l.b16 %v30
  %v166 = vunpack.c.l.b16 %v31
  %v167 = vunpack.c.l.b16 %v32
  %v168 = vunpack.c.l.b16 %v33
  %v169 = vunpack.c.l.b16 %v34
  %v170 = vunpack.c.l.b16 %v35
  %v171 = vunpack.c.l.b16 %v36
  %v172 = vunpack.c.l.b16 %v37
  %v173 = vunpack.c.l.b16 %v38
  %v174 = vunpack.c.l.b16 %v39
  %v175 = vunpack.c.l.b16 %v40
  %v176 = vunpack.c.l.b16 %v41
  %v177 = vunpack.c.l.b16 %v42
  %v178 = vunpack.c.l.b16 %v43
  %v179 = vunpack.c.l.b16 %v44
  %v180 = vunpack.c.l.b16 %v45
  %v181 = vunpack.c.l.b16 %v46
  %v182 = vunpack.c.l.b16 %v47
  %v183 = vunpack.c.l.b16 %v48
  %v184 = vunpack.c.l.b16 %v49
  %v185 = vunpack.c.l.b16 %v50
  %v186 = vunpack.c.l.b16 %v51
  %v187 = vunpack.c.l.b16 %v52
  %v188 = vunpack.c.l.b16 %v53
  %v189 = vunpack.c.l.b16 %v54
  %v190 = vunpack.c.l.b16 %v55
  %v191 = vunpack.c.l.b16 %v56
  %v192 = vunpack.c.l.b16 %v57
  %v193 = vunpack.c.l.b16 %v58
  %v194 = vunpack.c.l.b16 %v59
  %v195 = vunpack.c.l.b16 %v60
  %v196 = vunpack.c.l.b16 %v61
  %v197 = vunpack.c.l.b16 %v62
  %v198 = vunpack.c.l.b16 %v63
  %v199 = vunpack.c.l.b16 %v64
  %v200 = vunpack.c.l.b16 %v65
  %v201 = vunpack.c.l.b16 %v66
  %v202 = vunpack.c.l.b16 %v67
  %v203 = vunpack.c.l.b16 %v68
  %v204 = vunpack.c.l.b16 %v69
  %v205 = vunpack.c.l.b16 %v70
  %v206 = vunpack.c.l.b16 %v71
  %v207 = vunpack.c.l.b16 %v72
  %v208 = vpack.c.b16 %v161, %v160
  %v209 = vpack.c.b16 %v163, %v162
  %v210 = vpack.c.b16 %v165, %v164
  %v211 = vpack.c.b16 %v167, %v166
  %v212 = vpack.c.b16 %v169, %v168
  %v213 = vpack.c.b16 %v171, %v170
  %v214 = vpack.c.b16 %v173, %v172
  %v215 = vpack.c.b16 %v175, %v174
  %v216 = vpack.c.b16 %v177, %v176
  %v217 = vpack.c.b16 %v179, %v178
  %v218 = vpack.c.b16 %v181, %v180
  %v219 = vpack.c.b16 %v183, %v182
  %v220 = vpack.c.b16 %v185, %v184
  %v221 = vpack.c.b16 %v187, %v186
  %v222 = vpack.c.b16 %v189, %v188
  %v223 = vpack.c.b16 %v191, %v190
  %v224 = vpack.c.b16 %v193, %v192
  %v225 = vpack.c.b16 %v195, %v194
  %v226 = vpack.c.b16 %v197, %v196
  %v227 = vpack.c.b16 %v199, %v198
  %v228 = vpack.c.b16 %v201, %v200
  %v229 = vpack.c.b16 %v203, %v202
  %v230 = vpack.c.b16 %v205, %v204
  %v231 = vpack.c.b16 %v207, %v206
  %256 = vmatprep.subr.bf16.mxu0 0
  %257 = vmatpush1.bf16.msra.mxu0 %v208
  %258 = vmatprep.subr.bf16.mxu0 0
  %259 = vmatpush1.bf16.msra.mxu0 %v209
  %260 = vmatprep.subr.bf16.mxu0 0
  %261 = vmatpush1.bf16.msra.mxu0 %v210
  %262 = vmatprep.subr.bf16.mxu0 0
  %263 = vmatpush1.bf16.msra.mxu0 %v211
  %264 = vmatprep.subr.bf16.mxu0 0
  %265 = vmatpush1.bf16.msra.mxu0 %v212
  %266 = vmatprep.subr.bf16.mxu0 0
  %267 = vmatpush1.bf16.msra.mxu0 %v213
  %268 = vmatprep.subr.bf16.mxu0 0
  %269 = vmatpush1.bf16.msra.mxu0 %v214
  %270 = vmatprep.subr.bf16.mxu0 0
  %271 = vmatpush1.bf16.msra.mxu0 %v215
  %272 = vmatprep.subr.bf16.mxu0 0
  %273 = vmatpush1.bf16.msra.mxu0 %v216
  %274 = vmatprep.subr.bf16.mxu0 0
  %275 = vmatpush1.bf16.msra.mxu0 %v217
  %276 = vmatprep.subr.bf16.mxu0 0
  %277 = vmatpush1.bf16.msra.mxu0 %v218
  %278 = vmatprep.subr.bf16.mxu0 0
  %279 = vmatpush1.bf16.msra.mxu0 %v219
  %280 = vmatprep.subr.bf16.mxu0 0
  %281 = vmatpush1.bf16.msra.mxu0 %v220
  %282 = vmatprep.subr.bf16.mxu0 0
  %283 = vmatpush1.bf16.msra.mxu0 %v221
  %284 = vmatprep.subr.bf16.mxu0 0
  %285 = vmatpush1.bf16.msra.mxu0 %v222
  %286 = vmatprep.subr.bf16.mxu0 0
  %287 = vmatpush1.bf16.msra.mxu0 %v223
  %288 = vmatprep.mubr.bf16.mxu0 %v101
  %289 = vmatmul.mubr.bf16.gmra.mrb[0].mxu0 %v100
  %v290 = vpop.f32.mrb[0].mxu0
  %v291 = vadd.f32 %v78, %v290
  %v292 = vpop.f32.mrb[0].mxu0
  %v293 = vpop.f32.mrb[0].mxu0
  %v294 = vadd.f32 %v78, %v293
  %v295 = vpop.f32.mrb[0].mxu0
  %296 = vmatprep.mubr.bf16.mxu0 %v104
  %297 = vmatmul.mubr.bf16.gmra.mrb[0].mxu0 %v103
  %v298 = vpop.f32.mrb[0].mxu0
  %v299 = vadd.f32 %v78, %v298
  %v300 = vpop.f32.mrb[0].mxu0
  %v301 = vpop.f32.mrb[0].mxu0
  %v302 = vadd.f32 %v78, %v301
  %v303 = vpop.f32.mrb[0].mxu0
  %304 = vdwg.mxu0
  %305 = vmatprep.subr.bf16.mxu0 0
  %306 = vmatpush1.bf16.msra.mxu0 %v224
  %307 = vmatprep.subr.bf16.mxu0 0
  %308 = vmatpush1.bf16.msra.mxu0 %v225
  %309 = vmatprep.subr.bf16.mxu0 0
  %310 = vmatpush1.bf16.msra.mxu0 %v226
  %311 = vmatprep.subr.bf16.mxu0 0
  %312 = vmatpush1.bf16.msra.mxu0 %v227
  %313 = vmatprep.subr.bf16.mxu0 0
  %314 = vmatpush1.bf16.msra.mxu0 %v228
  %315 = vmatprep.subr.bf16.mxu0 0
  %316 = vmatpush1.bf16.msra.mxu0 %v229
  %317 = vmatprep.subr.bf16.mxu0 0
  %318 = vmatpush1.bf16.msra.mxu0 %v230
  %319 = vmatprep.subr.bf16.mxu0 0
  %320 = vmatpush1.bf16.msra.mxu0 %v231
  %321 = vmatprep.subr.bf16.mxu0 0
  %322 = vmatpush1.bf16.msra.mxu0 0
  %323 = vmatprep.subr.bf16.mxu0 0
  %324 = vmatpush1.bf16.msra.mxu0 0
  %325 = vmatprep.subr.bf16.mxu0 0
  %326 = vmatpush1.bf16.msra.mxu0 0
  %327 = vmatprep.subr.bf16.mxu0 0
  %328 = vmatpush1.bf16.msra.mxu0 0
  %329 = vmatprep.subr.bf16.mxu0 0
  %330 = vmatpush1.bf16.msra.mxu0 0
  %331 = vmatprep.subr.bf16.mxu0 0
  %332 = vmatpush1.bf16.msra.mxu0 0
  %333 = vmatprep.subr.bf16.mxu0 0
  %334 = vmatpush1.bf16.msra.mxu0 0
  %335 = vmatprep.subr.bf16.mxu0 0
  %336 = vmatpush1.bf16.msra.mxu0 0
  %337 = vmatprep.mubr.bf16.mxu0 0
  %338 = vmatmul.mubr.bf16.gmra.mrb[0].mxu0 %v102
  %v339 = vpop.f32.mrb[0].mxu0
  %v340 = vadd.f32 %v291, %v339
  %v341 = vpop.f32.mrb[0].mxu0
  %v342 = vpop.f32.mrb[0].mxu0
  %v343 = vadd.f32 %v294, %v342
  %v344 = vpop.f32.mrb[0].mxu0
  %345 = vmatprep.mubr.bf16.mxu0 0
  %346 = vmatmul.mubr.bf16.gmra.mrb[0].mxu0 %v105
  %v347 = vpop.f32.mrb[0].mxu0
  %v348 = vadd.f32 %v299, %v347
  %v349 = vpop.f32.mrb[0].mxu0
  %v350 = vpop.f32.mrb[0].mxu0
  %v351 = vadd.f32 %v302, %v350
  %v352 = vpop.f32.mrb[0].mxu0
  %353 = vdwg.mxu0
  %v354 = vadd.f32 %v340, %v343
  %v355 = vadd.f32 %v354, %v348
  %v356 = vadd.f32 %v355, %v351
  %v357 = vrot.slane %v356, 4
  %v358 = vadd.f32 %v356, %v357
  %v359 = vrot.slane %v358, 2
  %v360 = vadd.f32 %v358, %v359
  %v361 = vrot.slane %v360, 1
  %v362 = vadd.f32 %v360, %v361
  %v363 = vmul.f32 %v340, %v340
  %v364 = vmul.f32 %v343, %v343
  %v365 = vmul.f32 %v348, %v348
  %v366 = vmul.f32 %v351, %v351
  %v367 = vadd.f32 %v363, %v364
  %v368 = vadd.f32 %v367, %v365
  %v369 = vadd.f32 %v368, %v366
  %v370 = vrot.slane %v369, 4
  %v371 = vadd.f32 %v369, %v370
  %v372 = vrot.slane %v371, 2
  %v373 = vadd.f32 %v371, %v372
  %v374 = vrot.slane %v373, 1
  %v375 = vadd.f32 %v373, %v374
  %vm376 = vcmask 1040384
  %v377 = vsel %vm376, %v362, %v375
  %378 = vst [vmem:[%s4] sm:$0x3] %v377
  %v379 = vpack.c.bf16 %v343, %v340
  %v380 = vpack.c.bf16 %v351, %v348
  %v383 = vunpack.c.l.b16 %v379
  %v384 = vunpack.c.h.b16 %v379
  %v385 = vunpack.c.l.b16 %v380
  %v386 = vunpack.c.h.b16 %v380
  %v387 = vpack.c.b16 %v383, %v383
  %v388 = vpack.c.b16 %v384, %v384
  %v389 = vpack.c.b16 %v385, %v385
  %v390 = vpack.c.b16 %v386, %v386
  %395 = vst [vmem:[%s3] sm:$0xf] %v387
  %396 = vst [vmem:[%s3 + $0x4] sm:$0xf] %v388
  %397 = vst [vmem:[%s3 + $0x8] sm:$0xf] %v389
  %398 = vst [vmem:[%s3 + $0xc] sm:$0xf] %v390
  // Predicated region
  $region14: #{g_net_forward.55} parent=0 // pred_check
    _
  $region15: #{g_net_forward.55} parent=0 // pred_check_branch
    %400 = sbr.rel (0) target = $region17
  $region16: #{g_net_forward.55} parent=0 // pred_region
    _
  $region17: #{g_net_forward.55} parent=0 // pred_fallthru
    _
  // Predicated region
  $region18: #{g_net_forward.55} parent=0 // pred_check
    _
  $region19: #{g_net_forward.55} parent=0 // pred_check_branch
    %402 = sbr.rel (0) target = $region21
  $region20: #{g_net_forward.55} parent=0 // pred_region
    _
  $region21: #{g_net_forward.55} parent=0 // pred_fallthru
    _
  // Predicated region
  $region22: #{g_net_forward.55} parent=0 // pred_check
    _
  $region23: #{g_net_forward.55} parent=0 // pred_check_branch
    %404 = sbr.rel (0) target = $region25
  $region24: #{g_net_forward.55} parent=0 // pred_region
    _
  $region25: #{g_net_forward.55} parent=0 // pred_fallthru
    _
  // Predicated region
  $region26: #{g_net_forward.55} parent=0 // pred_check
    _
  $region27: #{g_net_forward.55} parent=0 // pred_check_branch
    %406 = sbr.rel (0) target = $region29
  $region28: #{g_net_forward.55} parent=0 // pred_region
    _
  $region29: #{g_net_forward.55} parent=0 // pred_fallthru
    _

// kernel: g_net_forward.62
$region0: #{g_net_forward.62}
  #allocation0 [shape = 'u32[]', space=smem, size = 0x4, offset = 0x4, fixed_abs, tag = 'smem constant byte address 0x4 - core index']
  #allocation1 [shape = 'u32[144,128]{1,0:T(1,128)}', space=vmem, size = 0x12000, scoped, tag = 'internal scratch']
  %s0 = inlined_call_operand.vmem [shape: bf16[1,32,128], index: 0, kind: input, shape index: {}]
  %s1 = inlined_call_operand.vmem [shape: f32[1,128], index: 1, kind: input, shape index: {}]
  %s2 = inlined_call_operand.vmem [shape: f32[1,128], index: 2, kind: input, shape index: {}]
  %s3 = inlined_call_operand.vmem [shape: bf16[1,32,128], index: 3, kind: input, shape index: {}]
  %s4 = inlined_call_operand.vmem [shape: bf16[1,32,128], index: 4, kind: output, shape index: {}]
  %s5 = sld [smem:[#allocation0]]
  $region26: #{g_net_forward.62} parent=0
    _
  %s7 = ssub.s32 1, %s5
  %s8 = scalar_select 0, %s7, %s5
  // Predicated region
  $region2: #{g_net_forward.62} parent=0 // pred_check
    _
  $region3: #{g_net_forward.62} parent=0 // pred_check_branch
    %10 = sbr.rel (0) target = $region5
  $region4: #{g_net_forward.62} parent=0 // pred_region
    _
  $region5: #{g_net_forward.62} parent=0 // pred_fallthru
    _
  // Predicated region
  $region6: #{g_net_forward.62} parent=0 // pred_check
    _
  $region7: #{g_net_forward.62} parent=0 // pred_check_branch
    %12 = sbr.rel (0) target = $region9
  $region8: #{g_net_forward.62} parent=0 // pred_region
    _
  $region9: #{g_net_forward.62} parent=0 // pred_fallthru
    _
  // Predicated region
  $region10: #{g_net_forward.62} parent=0 // pred_check
    _
  $region11: #{g_net_forward.62} parent=0 // pred_check_branch
    %14 = sbr.rel (0) target = $region13
  $region12: #{g_net_forward.62} parent=0 // pred_region
    _
  $region13: #{g_net_forward.62} parent=0 // pred_fallthru
    _
  // Predicated region
  $region14: #{g_net_forward.62} parent=0 // pred_check
    _
  $region15: #{g_net_forward.62} parent=0 // pred_check_branch
    %16 = sbr.rel (0) target = $region17
  $region16: #{g_net_forward.62} parent=0 // pred_region
    _
  $region17: #{g_net_forward.62} parent=0 // pred_fallthru
    _
  %v17 = vld [vmem:[%s0] sm:$0xf]
  %v18 = vld [vmem:[%s0 + $0x4] sm:$0xf]
  %v19 = vld [vmem:[%s0 + $0x8] sm:$0xf]
  %v20 = vld [vmem:[%s0 + $0xc] sm:$0xf]
  %v21 = vunpack.c.l.bf16 %v17
  %v22 = vunpack.c.l.bf16 %v18
  %v23 = vunpack.c.l.bf16 %v19
  %v24 = vunpack.c.l.bf16 %v20
  %v25 = vld [vmem:[%s1] sm:$0x1]
  %v27 = vlaneseq
  %v28 = vshrl.u32 %v27, 7
  %v29 = vsub.s32 0, %v28
  %v30 = vrot.slane %v25, %v29
  %v32 = vmul.f32 %v21, %v30
  %v33 = vmul.f32 %v22, %v30
  %v34 = vmul.f32 %v23, %v30
  %v35 = vmul.f32 %v24, %v30
  %v36 = vld [vmem:[%s2] sm:$0x1]
  %v38 = vlaneseq
  %v39 = vshrl.u32 %v38, 7
  %v40 = vsub.s32 0, %v39
  %v41 = vrot.slane %v36, %v40
  %v43 = vadd.f32 %v32, %v41
  %v44 = vadd.f32 %v33, %v41
  %v45 = vadd.f32 %v34, %v41
  %v46 = vadd.f32 %v35, %v41
  %v47 = vld [vmem:[%s3] sm:$0xf]
  %v48 = vld [vmem:[%s3 + $0x4] sm:$0xf]
  %v49 = vld [vmem:[%s3 + $0x8] sm:$0xf]
  %v50 = vld [vmem:[%s3 + $0xc] sm:$0xf]
  %v51 = vunpack.c.l.bf16 %v47
  %v52 = vunpack.c.l.bf16 %v48
  %v53 = vunpack.c.l.bf16 %v49
  %v54 = vunpack.c.l.bf16 %v50
  %v55 = vadd.f32 %v43, %v51
  %v56 = vadd.f32 %v44, %v52
  %v57 = vadd.f32 %v45, %v53
  %v58 = vadd.f32 %v46, %v54
  %v59 = vmax.f32 %v55, 0.0
  %v60 = vmax.f32 %v56, 0.0
  %v61 = vmax.f32 %v57, 0.0
  %v62 = vmax.f32 %v58, 0.0
  %v63 = vpack.c.bf16 %v60, %v59
  %v64 = vpack.c.bf16 %v62, %v61
  %v67 = vunpack.c.l.b16 %v63
  %v68 = vunpack.c.h.b16 %v63
  %v69 = vunpack.c.l.b16 %v64
  %v70 = vunpack.c.h.b16 %v64
  %v71 = vpack.c.b16 %v67, %v67
  %v72 = vpack.c.b16 %v68, %v68
  %v73 = vpack.c.b16 %v69, %v69
  %v74 = vpack.c.b16 %v70, %v70
  %79 = vst [vmem:[%s4] sm:$0xf] %v71
  %80 = vst [vmem:[%s4 + $0x4] sm:$0xf] %v72
  %81 = vst [vmem:[%s4 + $0x8] sm:$0xf] %v73
  %82 = vst [vmem:[%s4 + $0xc] sm:$0xf] %v74
  // Predicated region
  $region18: #{g_net_forward.62} parent=0 // pred_check
    _
  $region19: #{g_net_forward.62} parent=0 // pred_check_branch
    %84 = sbr.rel (0) target = $region21
  $region20: #{g_net_forward.62} parent=0 // pred_region
    _
  $region21: #{g_net_forward.62} parent=0 // pred_fallthru
    _
  // Predicated region
  $region22: #{g_net_forward.62} parent=0 // pred_check
    _
  $region23: #{g_net_forward.62} parent=0 // pred_check_branch
    %86 = sbr.rel (0) target = $region25
  $region24: #{g_net_forward.62} parent=0 // pred_region
    _
  $region25: #{g_net_forward.62} parent=0 // pred_fallthru
    _

// kernel: g_net_forward.94
$region0: #{g_net_forward.94}
  #allocation0 [shape = 'u32[]', space=smem, size = 0x4, offset = 0x4, fixed_abs, tag = 'smem constant byte address 0x4 - core index']
  #allocation1 [shape = 'u32[144,128]{1,0:T(1,128)}', space=vmem, size = 0x12000, scoped, tag = 'internal scratch']
  %s0 = inlined_call_operand.vmem [shape: bf16[4,32,128], index: 0, kind: input, shape index: {}]
  %s1 = inlined_call_operand.vmem [shape: f32[1,128], index: 1, kind: input, shape index: {}]
  %s2 = inlined_call_operand.vmem [shape: f32[1,128], index: 2, kind: input, shape index: {}]
  %s3 = inlined_call_operand.vmem [shape: bf16[4,32,128], index: 3, kind: output, shape index: {}]
  %s4 = sld [smem:[#allocation0]]
  $region45: #{g_net_forward.94} parent=0
    _
  %s6 = ssub.s32 1, %s4
  %s7 = scalar_select 0, %s6, %s4
  loop: start=0, step=1, limit=6
  $region2: #{g_net_forward.94} parent=0 // loop_pre_header
    _
  $region3: #{g_net_forward.94} parent=0 // loop_header
    %s9 = sphi 0, %s13
    %p10 = scmp.ge.s32.totalorder %s9, 6
    %s16 = sphi 0, %s28
    %s17 = sphi 0, %s24
    %s18 = sphi 0, %s16
    %s19 = sphi 0, %s17
    %s20 = sphi 0, %s18
    %s21 = sphi 0, %s19
    %s33 = sphi 0, %s35
    %s36 = sphi 0, %s33
    %s37 = sphi 0, %s36
    %s53 = sphi 0, %s37
    %s57 = sphi 0, %s57
    %s59 = sphi 0, %s57
    %s60 = sphi 0, %s59
    %s74 = sphi 0, %s60
    %s78 = sphi 0, %s78
    %s80 = sphi 0, %s78
    %s81 = sphi 0, %s80
    %s95 = sphi 0, %s81
    %s103 = sphi 0, %s105
    %s106 = sphi 0, %s103
    %s107 = sphi 0, %s106
    %s123 = sphi 0, %s107
  $region4: #{g_net_forward.94} parent=0 // loop_header_branch
    %12 = sbr.rel (%p10) target = $region8
  $region5: #{g_net_forward.94} parent=0 // loop_body
    %s14 = ssub.s32 %s9, 1
    %s15 = ssub.s32 %s9, 2
    %s22 = sadd.s32 1, %s17
    %p23 = scmp.ge.s32.totalorder %s22, 1
    %s24 = scalar_select %p23, 0, %s22
    %s25 = sadd.s32 1, %s16
    %s26 = scalar_select %p23, %s25, %s16
    %p27 = scmp.ge.s32.totalorder %s26, 4
    %s28 = scalar_select %p27, 0, %s26
    %s29 = ssub.s32 %s16, %s28
    %s30 = ssub.s32 %s17, %s24
    %s31 = sor.u32 %s29, %s30
    %p32 = scmp.eq.s32.totalorder %s31, 0
    %s34 = sadd.s32 %s33, 1
    %s35 = scalar_select %p32, %s33, %s34
    %p38 = pneg %p32
    %p39 = scmp.eq.s32.totalorder %s9, 3
    %p40 = por %p38, %p39
    %p41 = scmp.ne.s32.totalorder %s33, %s36
    %p42 = scmp.eq.s32.totalorder %s9, 0
    %p43 = por %p41, %p42
    %p44 = scmp.ne.s32.totalorder %s33, %s36
    %p45 = scmp.eq.s32.totalorder %s14, 3
    %p46 = por %p44, %p45
    %p47 = scmp.ne.s32.totalorder %s36, %s37
    %p48 = scmp.eq.s32.totalorder %s14, 0
    %p49 = por %p47, %p48
    %p50 = scmp.ne.s32.totalorder %s36, %s37
    %p51 = scmp.eq.s32.totalorder %s15, 3
    %p52 = por %p50, %p51
    %p54 = scmp.ne.s32.totalorder %s37, %s53
    %p55 = scmp.eq.s32.totalorder %s15, 0
    %p56 = por %p54, %p55
    %s58 = sadd.s32 %s57, 1
    %p61 = scmp.eq.s32.totalorder %s9, 3
    %p62 = scmp.ne.s32.totalorder %s57, %s59
    %p63 = scmp.eq.s32.totalorder %s9, 0
    %p64 = por %p62, %p63
    %p65 = scmp.ne.s32.totalorder %s57, %s59
    %p66 = scmp.eq.s32.totalorder %s14, 3
    %p67 = por %p65, %p66
    %p68 = scmp.ne.s32.totalorder %s59, %s60
    %p69 = scmp.eq.s32.totalorder %s14, 0
    %p70 = por %p68, %p69
    %p71 = scmp.ne.s32.totalorder %s59, %s60
    %p72 = scmp.eq.s32.totalorder %s15, 3
    %p73 = por %p71, %p72
    %p75 = scmp.ne.s32.totalorder %s60, %s74
    %p76 = scmp.eq.s32.totalorder %s15, 0
    %p77 = por %p75, %p76
    %s79 = sadd.s32 %s78, 1
    %p82 = scmp.eq.s32.totalorder %s9, 3
    %p83 = scmp.ne.s32.totalorder %s78, %s80
    %p84 = scmp.eq.s32.totalorder %s9, 0
    %p85 = por %p83, %p84
    %p86 = scmp.ne.s32.totalorder %s78, %s80
    %p87 = scmp.eq.s32.totalorder %s14, 3
    %p88 = por %p86, %p87
    %p89 = scmp.ne.s32.totalorder %s80, %s81
    %p90 = scmp.eq.s32.totalorder %s14, 0
    %p91 = por %p89, %p90
    %p92 = scmp.ne.s32.totalorder %s80, %s81
    %p93 = scmp.eq.s32.totalorder %s15, 3
    %p94 = por %p92, %p93
    %p96 = scmp.ne.s32.totalorder %s81, %s95
    %p97 = scmp.eq.s32.totalorder %s15, 0
    %p98 = por %p96, %p97
    %s99 = ssub.s32 %s16, %s28
    %s100 = ssub.s32 %s17, %s24
    %s101 = sor.u32 %s99, %s100
    %p102 = scmp.eq.s32.totalorder %s101, 0
    %s104 = sadd.s32 %s103, 1
    %s105 = scalar_select %p102, %s103, %s104
    %p108 = pneg %p102
    %p109 = scmp.eq.s32.totalorder %s9, 3
    %p110 = por %p108, %p109
    %p111 = scmp.ne.s32.totalorder %s103, %s106
    %p112 = scmp.eq.s32.totalorder %s9, 0
    %p113 = por %p111, %p112
    %p114 = scmp.ne.s32.totalorder %s103, %s106
    %p115 = scmp.eq.s32.totalorder %s14, 3
    %p116 = por %p114, %p115
    %p117 = scmp.ne.s32.totalorder %s106, %s107
    %p118 = scmp.eq.s32.totalorder %s14, 0
    %p119 = por %p117, %p118
    %p120 = scmp.ne.s32.totalorder %s106, %s107
    %p121 = scmp.eq.s32.totalorder %s15, 3
    %p122 = por %p120, %p121
    %p124 = scmp.ne.s32.totalorder %s107, %s123
    %p125 = scmp.eq.s32.totalorder %s15, 0
    %p126 = por %p124, %p125
    %p127 = scmp.le.s32.totalorder 1, %s9
    %p128 = scmp.lt.s32.totalorder %s9, 5
    %p129 = pnand %p127, %p128
    %p130 = pneg %p129
    // Predicated region
    $region9: #{g_net_forward.94} parent=5 // pred_check
      _
    $region10: #{g_net_forward.94} parent=5 // pred_check_branch
      %132 = sbr.rel (%p129) target = $region12
    $region11: #{g_net_forward.94} parent=5 // pred_region
      %s133 = ssub.s32 %s9, 1
      // Predicated region
      $region13: #{g_net_forward.94} parent=11 // pred_check
        %p134 = pneg %p70
      $region14: #{g_net_forward.94} parent=11 // pred_check_branch
        %136 = sbr.rel (%p134) target = $region16
      $region15: #{g_net_forward.94} parent=11 // pred_region
        _
      $region16: #{g_net_forward.94} parent=11 // pred_fallthru
        _
      // Predicated region
      $region17: #{g_net_forward.94} parent=11 // pred_check
        %p137 = pneg %p91
      $region18: #{g_net_forward.94} parent=11 // pred_check_branch
        %139 = sbr.rel (%p137) target = $region20
      $region19: #{g_net_forward.94} parent=11 // pred_region
        _
      $region20: #{g_net_forward.94} parent=11 // pred_fallthru
        _
    $region12: #{g_net_forward.94} parent=5 // pred_fallthru
      _
    %p140 = scmp.lt.s32.totalorder %s9, 4
    // Predicated region
    $region21: #{g_net_forward.94} parent=5 // pred_check
      %p141 = pneg %p140
    $region22: #{g_net_forward.94} parent=5 // pred_check_branch
      %143 = sbr.rel (%p141) target = $region24
    $region23: #{g_net_forward.94} parent=5 // pred_region
      // Predicated region
      $region25: #{g_net_forward.94} parent=23 // pred_check
        %p144 = pneg %p43
      $region26: #{g_net_forward.94} parent=23 // pred_check_branch
        %146 = sbr.rel (%p144) target = $region28
      $region27: #{g_net_forward.94} parent=23 // pred_region
        %s147 = smul.u32 4, %s17
        %p148 = scmp.lt.s32.totalorder %s16, 3
        %s149 = scalar_select %p148, %s16, 3
        %p150 = scmp.lt.s32.totalorder %s147, 3
        %s151 = scalar_select %p150, %s147, 3
        %s152 = smul.addr %s149, 4
        %s153 = sadd.s32 %s151, %s152
        %s154 = smul.addr %s153, 4
        %s155 = scalar_lea.vmem %s0, %s154
        %s156 = smul.u32 4, %s17
      $region28: #{g_net_forward.94} parent=23 // pred_fallthru
        _
    $region24: #{g_net_forward.94} parent=5 // pred_fallthru
      _
    %p157 = scmp.le.s32.totalorder 1, %s9
    %p158 = scmp.lt.s32.totalorder %s9, 5
    %p159 = pnand %p157, %p158
    %p160 = pneg %p159
    // Predicated region
    $region29: #{g_net_forward.94} parent=5 // pred_check
      _
    $region30: #{g_net_forward.94} parent=5 // pred_check_branch
      %162 = sbr.rel (%p159) target = $region32
    $region31: #{g_net_forward.94} parent=5 // pred_region
      %s163 = ssub.s32 %s9, 1
      %s164 = smul.u32 4, %s19
      %p165 = scmp.lt.s32.totalorder %s18, 3
      %s166 = scalar_select %p165, %s18, 3
      %p167 = scmp.lt.s32.totalorder %s164, 3
      %s168 = scalar_select %p167, %s164, 3
      %s169 = smul.addr %s166, 4
      %s170 = sadd.s32 %s168, %s169
      %s171 = smul.addr %s170, 4
      %s172 = scalar_lea.vmem %s0, %s171
      %p173 = pneg %p49
      %p174 = pneg %p46
      %p175 = pneg %p70
      %p176 = pneg %p67
      %p177 = pneg %p91
      %p178 = pneg %p88
      %p179 = pneg %p119
      %p180 = pneg %p116
      %s181 = smul.u32 4, %s19
      %p182 = scmp.lt.s32.totalorder %s18, 3
      %s183 = scalar_select %p182, %s18, 3
      %p184 = scmp.lt.s32.totalorder %s181, 3
      %s185 = scalar_select %p184, %s181, 3
      %s186 = smul.addr %s183, 4
      %s187 = sadd.s32 %s185, %s186
      %s188 = smul.addr %s187, 4
      %s189 = scalar_lea.vmem %s3, %s188
      %s190 = smul.u32 4, %s19
      %p191 = scmp.lt.s32.totalorder %s18, 3
      %s192 = scalar_select %p191, %s18, 3
      %p193 = scmp.lt.s32.totalorder %s190, 3
      %s194 = scalar_select %p193, %s190, 3
      %s195 = smul.addr %s192, 4
      %s196 = sadd.s32 %s194, %s195
      %s197 = smul.addr %s196, 4
      %s198 = scalar_lea.vmem %s0, %s197
      %s199 = smul.u32 4, %s19
      %s200 = smul.u32 4, %s19
      %p201 = scmp.lt.s32.totalorder %s18, 3
      %s202 = scalar_select %p201, %s18, 3
      %p203 = scmp.lt.s32.totalorder %s200, 3
      %s204 = scalar_select %p203, %s200, 3
      %s205 = smul.addr %s202, 4
      %s206 = sadd.s32 %s204, %s205
      %s207 = smul.addr %s206, 4
      %s208 = scalar_lea.vmem %s3, %s207
      %s209 = smul.u32 4, %s19
      %v210 = vld [vmem:[%s198] sm:$0xf]
      %v211 = vld [vmem:[%s198 + $0x4] sm:$0xf]
      %v212 = vld [vmem:[%s198 + $0x8] sm:$0xf]
      %v213 = vld [vmem:[%s198 + $0xc] sm:$0xf]
      %v214 = vunpack.c.l.bf16 %v210
      %v215 = vunpack.c.l.bf16 %v211
      %v216 = vunpack.c.l.bf16 %v212
      %v217 = vunpack.c.l.bf16 %v213
      %v218 = vld [vmem:[%s1] sm:$0x1]
      %v220 = vlaneseq
      %v221 = vshrl.u32 %v220, 7
      %v222 = vsub.s32 0, %v221
      %v223 = vrot.slane %v218, %v222
      %v225 = vmul.f32 %v214, %v223
      %v226 = vmul.f32 %v215, %v223
      %v227 = vmul.f32 %v216, %v223
      %v228 = vmul.f32 %v217, %v223
      %v229 = vld [vmem:[%s2] sm:$0x1]
      %v231 = vlaneseq
      %v232 = vshrl.u32 %v231, 7
      %v233 = vsub.s32 0, %v232
      %v234 = vrot.slane %v229, %v233
      %v236 = vadd.f32 %v225, %v234
      %v237 = vadd.f32 %v226, %v234
      %v238 = vadd.f32 %v227, %v234
      %v239 = vadd.f32 %v228, %v234
      %v240 = vmax.f32 %v236, 0.0
      %v241 = vmax.f32 %v237, 0.0
      %v242 = vmax.f32 %v238, 0.0
      %v243 = vmax.f32 %v239, 0.0
      %v244 = vpack.c.bf16 %v241, %v240
      %v245 = vpack.c.bf16 %v243, %v242
      %v248 = vunpack.c.l.b16 %v244
      %v249 = vunpack.c.h.b16 %v244
      %v250 = vunpack.c.l.b16 %v245
      %v251 = vunpack.c.h.b16 %v245
      %v252 = vpack.c.b16 %v248, %v248
      %v253 = vpack.c.b16 %v249, %v249
      %v254 = vpack.c.b16 %v250, %v250
      %v255 = vpack.c.b16 %v251, %v251
      %260 = vst [vmem:[%s208] sm:$0xf] %v252
      %261 = vst [vmem:[%s208 + $0x4] sm:$0xf] %v253
      %262 = vst [vmem:[%s208 + $0x8] sm:$0xf] %v254
      %263 = vst [vmem:[%s208 + $0xc] sm:$0xf] %v255
      %s264 = smul.u32 4, %s19
      %p265 = scmp.lt.s32.totalorder %s18, 3
      %s266 = scalar_select %p265, %s18, 3
      %p267 = scmp.lt.s32.totalorder %s264, 3
      %s268 = scalar_select %p267, %s264, 3
      %s269 = smul.addr %s266, 4
      %s270 = sadd.s32 %s268, %s269
      %s271 = smul.addr %s270, 4
      %s272 = scalar_lea.vmem %s3, %s271
      // Predicated region
      $region33: #{g_net_forward.94} parent=31 // pred_check
        %p273 = pneg %p116
      $region34: #{g_net_forward.94} parent=31 // pred_check_branch
        %275 = sbr.rel (%p273) target = $region36
      $region35: #{g_net_forward.94} parent=31 // pred_region
        %s276 = smul.u32 4, %s19
      $region36: #{g_net_forward.94} parent=31 // pred_fallthru
        _
    $region32: #{g_net_forward.94} parent=5 // pred_fallthru
      _
    %p277 = scmp.le.s32.totalorder 2, %s9
    // Predicated region
    $region37: #{g_net_forward.94} parent=5 // pred_check
      %p278 = pneg %p277
    $region38: #{g_net_forward.94} parent=5 // pred_check_branch
      %280 = sbr.rel (%p278) target = $region40
    $region39: #{g_net_forward.94} parent=5 // pred_region
      %s281 = ssub.s32 %s9, 2
      // Predicated region
      $region41: #{g_net_forward.94} parent=39 // pred_check
        %p282 = pneg %p122
      $region42: #{g_net_forward.94} parent=39 // pred_check_branch
        %284 = sbr.rel (%p282) target = $region44
      $region43: #{g_net_forward.94} parent=39 // pred_region
        %s285 = smul.u32 4, %s21
        %p286 = scmp.lt.s32.totalorder %s20, 3
        %s287 = scalar_select %p286, %s20, 3
        %p288 = scmp.lt.s32.totalorder %s285, 3
        %s289 = scalar_select %p288, %s285, 3
        %s290 = smul.addr %s287, 4
        %s291 = sadd.s32 %s289, %s290
        %s292 = smul.addr %s291, 4
        %s293 = scalar_lea.vmem %s3, %s292
      $region44: #{g_net_forward.94} parent=39 // pred_fallthru
        _
    $region40: #{g_net_forward.94} parent=5 // pred_fallthru
      _
  $region6: #{g_net_forward.94} parent=0 // loop_footer
    %s13 = sadd.s32 1, %s9
  $region7: #{g_net_forward.94} parent=0 // loop_footer_branch
    %8 = sbr.rel target = $region3
  $region8: #{g_net_forward.94} parent=0 // loop_exit
    _

// kernel: g_net_forward.93
$region0: #{g_net_forward.93}
  #allocation0 [shape = 'u32[]', space=smem, size = 0x4, offset = 0x4, fixed_abs, tag = 'smem constant byte address 0x4 - core index']
  #allocation1 [shape = 'u32[144,128]{1,0:T(1,128)}', space=vmem, size = 0x12000, scoped, tag = 'internal scratch']
  %s0 = inlined_call_operand.vmem [shape: bf16[4,32,128], index: 0, kind: input, shape index: {}]
  %s1 = inlined_call_operand.vmem [shape: bf16[4,128,128], index: 1, kind: input, shape index: {}]
  %s2 = inlined_call_operand.vmem [shape: f32[1,128], index: 2, kind: input, shape index: {}]
  %s3 = inlined_call_operand.vmem [shape: bf16[4,32,128], index: 3, kind: output, shape index: {0}]
  %s4 = inlined_call_operand.vmem [shape: f32[4,1,2,128], index: 4, kind: output, shape index: {1}]
  %5 = xla_tuple %s3, %s4
  %s6 = sld [smem:[#allocation0]]
  $region53: #{g_net_forward.93} parent=0
    _
  %s8 = ssub.s32 1, %s6
  %s9 = scalar_select 0, %s8, %s6
  loop: start=0, step=1, limit=6
  $region2: #{g_net_forward.93} parent=0 // loop_pre_header
    _
  $region3: #{g_net_forward.93} parent=0 // loop_header
    %s11 = sphi 0, %s15
    %p12 = scmp.ge.s32.totalorder %s11, 6
    %s18 = sphi 0, %s30
    %s19 = sphi 0, %s26
    %s20 = sphi 0, %s18
    %s21 = sphi 0, %s19
    %s22 = sphi 0, %s20
    %s23 = sphi 0, %s21
    %s35 = sphi 0, %s37
    %s38 = sphi 0, %s35
    %s39 = sphi 0, %s38
    %s55 = sphi 0, %s39
    %s61 = sphi 0, %s63
    %s64 = sphi 0, %s61
    %s65 = sphi 0, %s64
    %s81 = sphi 0, %s65
    %s85 = sphi 0, %s85
    %s87 = sphi 0, %s85
    %s88 = sphi 0, %s87
    %s102 = sphi 0, %s88
    %s110 = sphi 0, %s112
    %s113 = sphi 0, %s110
    %s114 = sphi 0, %s113
    %s130 = sphi 0, %s114
    %s138 = sphi 0, %s140
    %s141 = sphi 0, %s138
    %s142 = sphi 0, %s141
    %s158 = sphi 0, %s142
  $region4: #{g_net_forward.93} parent=0 // loop_header_branch
    %14 = sbr.rel (%p12) target = $region8
  $region5: #{g_net_forward.93} parent=0 // loop_body
    %s16 = ssub.s32 %s11, 1
    %s17 = ssub.s32 %s11, 2
    %s24 = sadd.s32 1, %s19
    %p25 = scmp.ge.s32.totalorder %s24, 1
    %s26 = scalar_select %p25, 0, %s24
    %s27 = sadd.s32 1, %s18
    %s28 = scalar_select %p25, %s27, %s18
    %p29 = scmp.ge.s32.totalorder %s28, 4
    %s30 = scalar_select %p29, 0, %s28
    %s31 = ssub.s32 %s18, %s30
    %s32 = ssub.s32 %s19, %s26
    %s33 = sor.u32 %s31, %s32
    %p34 = scmp.eq.s32.totalorder %s33, 0
    %s36 = sadd.s32 %s35, 1
    %s37 = scalar_select %p34, %s35, %s36
    %p40 = pneg %p34
    %p41 = scmp.eq.s32.totalorder %s11, 3
    %p42 = por %p40, %p41
    %p43 = scmp.ne.s32.totalorder %s35, %s38
    %p44 = scmp.eq.s32.totalorder %s11, 0
    %p45 = por %p43, %p44
    %p46 = scmp.ne.s32.totalorder %s35, %s38
    %p47 = scmp.eq.s32.totalorder %s16, 3
    %p48 = por %p46, %p47
    %p49 = scmp.ne.s32.totalorder %s38, %s39
    %p50 = scmp.eq.s32.totalorder %s16, 0
    %p51 = por %p49, %p50
    %p52 = scmp.ne.s32.totalorder %s38, %s39
    %p53 = scmp.eq.s32.totalorder %s17, 3
    %p54 = por %p52, %p53
    %p56 = scmp.ne.s32.totalorder %s39, %s55
    %p57 = scmp.eq.s32.totalorder %s17, 0
    %p58 = por %p56, %p57
    %s59 = ssub.s32 %s18, %s30
    %p60 = scmp.eq.s32.totalorder %s59, 0
    %s62 = sadd.s32 %s61, 1
    %s63 = scalar_select %p60, %s61, %s62
    %p66 = pneg %p60
    %p67 = scmp.eq.s32.totalorder %s11, 3
    %p68 = por %p66, %p67
    %p69 = scmp.ne.s32.totalorder %s61, %s64
    %p70 = scmp.eq.s32.totalorder %s11, 0
    %p71 = por %p69, %p70
    %p72 = scmp.ne.s32.totalorder %s61, %s64
    %p73 = scmp.eq.s32.totalorder %s16, 3
    %p74 = por %p72, %p73
    %p75 = scmp.ne.s32.totalorder %s64, %s65
    %p76 = scmp.eq.s32.totalorder %s16, 0
    %p77 = por %p75, %p76
    %p78 = scmp.ne.s32.totalorder %s64, %s65
    %p79 = scmp.eq.s32.totalorder %s17, 3
    %p80 = por %p78, %p79
    %p82 = scmp.ne.s32.totalorder %s65, %s81
    %p83 = scmp.eq.s32.totalorder %s17, 0
    %p84 = por %p82, %p83
    %s86 = sadd.s32 %s85, 1
    %p89 = scmp.eq.s32.totalorder %s11, 3
    %p90 = scmp.ne.s32.totalorder %s85, %s87
    %p91 = scmp.eq.s32.totalorder %s11, 0
    %p92 = por %p90, %p91
    %p93 = scmp.ne.s32.totalorder %s85, %s87
    %p94 = scmp.eq.s32.totalorder %s16, 3
    %p95 = por %p93, %p94
    %p96 = scmp.ne.s32.totalorder %s87, %s88
    %p97 = scmp.eq.s32.totalorder %s16, 0
    %p98 = por %p96, %p97
    %p99 = scmp.ne.s32.totalorder %s87, %s88
    %p100 = scmp.eq.s32.totalorder %s17, 3
    %p101 = por %p99, %p100
    %p103 = scmp.ne.s32.totalorder %s88, %s102
    %p104 = scmp.eq.s32.totalorder %s17, 0
    %p105 = por %p103, %p104
    %s106 = ssub.s32 %s18, %s30
    %s107 = ssub.s32 %s19, %s26
    %s108 = sor.u32 %s106, %s107
    %p109 = scmp.eq.s32.totalorder %s108, 0
    %s111 = sadd.s32 %s110, 1
    %s112 = scalar_select %p109, %s110, %s111
    %p115 = pneg %p109
    %p116 = scmp.eq.s32.totalorder %s11, 3
    %p117 = por %p115, %p116
    %p118 = scmp.ne.s32.totalorder %s110, %s113
    %p119 = scmp.eq.s32.totalorder %s11, 0
    %p120 = por %p118, %p119
    %p121 = scmp.ne.s32.totalorder %s110, %s113
    %p122 = scmp.eq.s32.totalorder %s16, 3
    %p123 = por %p121, %p122
    %p124 = scmp.ne.s32.totalorder %s113, %s114
    %p125 = scmp.eq.s32.totalorder %s16, 0
    %p126 = por %p124, %p125
    %p127 = scmp.ne.s32.totalorder %s113, %s114
    %p128 = scmp.eq.s32.totalorder %s17, 3
    %p129 = por %p127, %p128
    %p131 = scmp.ne.s32.totalorder %s114, %s130
    %p132 = scmp.eq.s32.totalorder %s17, 0
    %p133 = por %p131, %p132
    %s134 = ssub.s32 %s18, %s30
    %s135 = ssub.s32 %s19, %s26
    %s136 = sor.u32 %s134, %s135
    %p137 = scmp.eq.s32.totalorder %s136, 0
    %s139 = sadd.s32 %s138, 1
    %s140 = scalar_select %p137, %s138, %s139
    %p143 = pneg %p137
    %p144 = scmp.eq.s32.totalorder %s11, 3
    %p145 = por %p143, %p144
    %p146 = scmp.ne.s32.totalorder %s138, %s141
    %p147 = scmp.eq.s32.totalorder %s11, 0
    %p148 = por %p146, %p147
    %p149 = scmp.ne.s32.totalorder %s138, %s141
    %p150 = scmp.eq.s32.totalorder %s16, 3
    %p151 = por %p149, %p150
    %p152 = scmp.ne.s32.totalorder %s141, %s142
    %p153 = scmp.eq.s32.totalorder %s16, 0
    %p154 = por %p152, %p153
    %p155 = scmp.ne.s32.totalorder %s141, %s142
    %p156 = scmp.eq.s32.totalorder %s17, 3
    %p157 = por %p155, %p156
    %p159 = scmp.ne.s32.totalorder %s142, %s158
    %p160 = scmp.eq.s32.totalorder %s17, 0
    %p161 = por %p159, %p160
    %p162 = scmp.le.s32.totalorder 1, %s11
    %p163 = scmp.lt.s32.totalorder %s11, 5
    %p164 = pnand %p162, %p163
    %p165 = pneg %p164
    // Predicated region
    $region9: #{g_net_forward.93} parent=5 // pred_check
      _
    $region10: #{g_net_forward.93} parent=5 // pred_check_branch
      %167 = sbr.rel (%p164) target = $region12
    $region11: #{g_net_forward.93} parent=5 // pred_region
      %s168 = ssub.s32 %s11, 1
      // Predicated region
      $region13: #{g_net_forward.93} parent=11 // pred_check
        %p169 = pneg %p98
      $region14: #{g_net_forward.93} parent=11 // pred_check_branch
        %171 = sbr.rel (%p169) target = $region16
      $region15: #{g_net_forward.93} parent=11 // pred_region
        _
      $region16: #{g_net_forward.93} parent=11 // pred_fallthru
        _
    $region12: #{g_net_forward.93} parent=5 // pred_fallthru
      _
    %p172 = scmp.lt.s32.totalorder %s11, 4
    // Predicated region
    $region17: #{g_net_forward.93} parent=5 // pred_check
      %p173 = pneg %p172
    $region18: #{g_net_forward.93} parent=5 // pred_check_branch
      %175 = sbr.rel (%p173) target = $region20
    $region19: #{g_net_forward.93} parent=5 // pred_region
      // Predicated region
      $region21: #{g_net_forward.93} parent=19 // pred_check
        %p176 = pneg %p45
      $region22: #{g_net_forward.93} parent=19 // pred_check_branch
        %178 = sbr.rel (%p176) target = $region24
      $region23: #{g_net_forward.93} parent=19 // pred_region
        %s179 = smul.u32 4, %s19
        %p180 = scmp.lt.s32.totalorder %s18, 3
        %s181 = scalar_select %p180, %s18, 3
        %p182 = scmp.lt.s32.totalorder %s179, 3
        %s183 = scalar_select %p182, %s179, 3
        %s184 = smul.addr %s181, 4
        %s185 = sadd.s32 %s183, %s184
        %s186 = smul.addr %s185, 4
        %s187 = scalar_lea.vmem %s0, %s186
        %s188 = smul.u32 4, %s19
      $region24: #{g_net_forward.93} parent=19 // pred_fallthru
        _
      // Predicated region
      $region25: #{g_net_forward.93} parent=19 // pred_check
        %p189 = pneg %p71
      $region26: #{g_net_forward.93} parent=19 // pred_check_branch
        %191 = sbr.rel (%p189) target = $region28
      $region27: #{g_net_forward.93} parent=19 // pred_region
        %p192 = scmp.lt.s32.totalorder %s18, 3
        %s193 = scalar_select %p192, %s18, 3
        %s194 = smul.addr %s193, 16
        %s195 = smul.addr %s194, 4
        %s196 = scalar_lea.vmem %s1, %s195
      $region28: #{g_net_forward.93} parent=19 // pred_fallthru
        _
    $region20: #{g_net_forward.93} parent=5 // pred_fallthru
      _
    %p197 = scmp.le.s32.totalorder 1, %s11
    %p198 = scmp.lt.s32.totalorder %s11, 5
    %p199 = pnand %p197, %p198
    %p200 = pneg %p199
    // Predicated region
    $region29: #{g_net_forward.93} parent=5 // pred_check
      _
    $region30: #{g_net_forward.93} parent=5 // pred_check_branch
      %202 = sbr.rel (%p199) target = $region32
    $region31: #{g_net_forward.93} parent=5 // pred_region
      %s203 = ssub.s32 %s11, 1
      %s204 = smul.u32 4, %s21
      %p205 = scmp.lt.s32.totalorder %s20, 3
      %s206 = scalar_select %p205, %s20, 3
      %p207 = scmp.lt.s32.totalorder %s204, 3
      %s208 = scalar_select %p207, %s204, 3
      %s209 = smul.addr %s206, 4
      %s210 = sadd.s32 %s208, %s209
      %s211 = smul.addr %s210, 4
      %s212 = scalar_lea.vmem %s0, %s211
      %p213 = pneg %p51
      %p214 = pneg %p48
      %p215 = scmp.lt.s32.totalorder %s20, 3
      %s216 = scalar_select %p215, %s20, 3
      %s217 = smul.addr %s216, 16
      %s218 = smul.addr %s217, 4
      %s219 = scalar_lea.vmem %s1, %s218
      %p220 = pneg %p77
      %p221 = pneg %p74
      %p222 = pneg %p98
      %p223 = pneg %p95
      %p224 = pneg %p126
      %p225 = pneg %p123
      %s226 = smul.u32 4, %s21
      %p227 = scmp.lt.s32.totalorder %s20, 3
      %s228 = scalar_select %p227, %s20, 3
      %p229 = scmp.lt.s32.totalorder %s226, 3
      %s230 = scalar_select %p229, %s226, 3
      %s231 = smul.addr %s228, 4
      %s232 = sadd.s32 %s230, %s231
      %s233 = smul.addr %s232, 4
      %s234 = scalar_lea.vmem %s3, %s233
      %p235 = pneg %p154
      %p236 = pneg %p151
      %p237 = scmp.lt.s32.totalorder %s20, 3
      %s238 = scalar_select %p237, %s20, 3
      %p239 = scmp.lt.s32.totalorder %s21, 0
      %s240 = scalar_select %p239, %s21, 0
      %s241 = sadd.s32 %s240, %s238
      %s242 = smul.addr %s241, 2
      %s243 = scalar_lea.vmem %s4, %s242
      %s244 = smul.u32 4, %s21
      %p245 = scmp.lt.s32.totalorder %s20, 3
      %s246 = scalar_select %p245, %s20, 3
      %p247 = scmp.lt.s32.totalorder %s244, 3
      %s248 = scalar_select %p247, %s244, 3
      %s249 = smul.addr %s246, 4
      %s250 = sadd.s32 %s248, %s249
      %s251 = smul.addr %s250, 4
      %s252 = scalar_lea.vmem %s0, %s251
      %s253 = smul.u32 4, %s21
      %p254 = scmp.lt.s32.totalorder %s20, 3
      %s255 = scalar_select %p254, %s20, 3
      %s256 = smul.addr %s255, 16
      %s257 = smul.addr %s256, 4
      %s258 = scalar_lea.vmem %s1, %s257
      %s259 = smul.u32 4, %s21
      %p260 = scmp.lt.s32.totalorder %s20, 3
      %s261 = scalar_select %p260, %s20, 3
      %p262 = scmp.lt.s32.totalorder %s259, 3
      %s263 = scalar_select %p262, %s259, 3
      %s264 = smul.addr %s261, 4
      %s265 = sadd.s32 %s263, %s264
      %s266 = smul.addr %s265, 4
      %s267 = scalar_lea.vmem %s3, %s266
      %s268 = smul.u32 4, %s21
      %p269 = scmp.lt.s32.totalorder %s20, 3
      %s270 = scalar_select %p269, %s20, 3
      %p271 = scmp.lt.s32.totalorder %s21, 0
      %s272 = scalar_select %p271, %s21, 0
      %s273 = sadd.s32 %s272, %s270
      %s274 = smul.addr %s273, 2
      %s275 = scalar_lea.vmem %s4, %s274
      %v277 = vld [vmem:[%s252] sm:$0xf]
      %v278 = vld [vmem:[%s252 + $0x4] sm:$0xf]
      %v279 = vld [vmem:[%s252 + $0x8] sm:$0xf]
      %v280 = vld [vmem:[%s252 + $0xc] sm:$0xf]
      %v281 = vld [vmem:[%s258] sm:$0xf]
      %v282 = vld [vmem:[%s258 + $0x4] sm:$0xf]
      %v283 = vld [vmem:[%s258 + $0x8] sm:$0xf]
      %v284 = vld [vmem:[%s258 + $0xc] sm:$0xf]
      %v285 = vld [vmem:[%s258 + $0x10] sm:$0xf]
      %v286 = vld [vmem:[%s258 + $0x14] sm:$0xf]
      %v287 = vld [vmem:[%s258 + $0x18] sm:$0xf]
      %v288 = vld [vmem:[%s258 + $0x1c] sm:$0xf]
      %v289 = vld [vmem:[%s258 + $0x20] sm:$0xf]
      %v290 = vld [vmem:[%s258 + $0x24] sm:$0xf]
      %v291 = vld [vmem:[%s258 + $0x28] sm:$0xf]
      %v292 = vld [vmem:[%s258 + $0x2c] sm:$0xf]
      %v293 = vld [vmem:[%s258 + $0x30] sm:$0xf]
      %v294 = vld [vmem:[%s258 + $0x34] sm:$0xf]
      %v295 = vld [vmem:[%s258 + $0x38] sm:$0xf]
      %v296 = vld [vmem:[%s258 + $0x3c] sm:$0xf]
      %v297 = vld [vmem:[%s2] sm:$0x1]
      %v299 = vlaneseq
      %v300 = vshrl.u32 %v299, 7
      %v301 = vsub.s32 0, %v300
      %v302 = vrot.slane %v297, %v301
      %v308 = vunpack.c.l.b16 %v277
      %v309 = vunpack.c.l.b16 %v278
      %v310 = vunpack.c.l.b16 %v279
      %v311 = vunpack.c.l.b16 %v280
      %v312 = vpack.c.b16 %v309, %v308
      %v313 = vpack.c.b16 %v311, %v310
      %v332 = vunpack.c.l.b16 %v281
      %v333 = vunpack.c.l.b16 %v282
      %v334 = vunpack.c.l.b16 %v283
      %v335 = vunpack.c.l.b16 %v284
      %v336 = vunpack.c.l.b16 %v285
      %v337 = vunpack.c.l.b16 %v286
      %v338 = vunpack.c.l.b16 %v287
      %v339 = vunpack.c.l.b16 %v288
      %v340 = vunpack.c.l.b16 %v289
      %v341 = vunpack.c.l.b16 %v290
      %v342 = vunpack.c.l.b16 %v291
      %v343 = vunpack.c.l.b16 %v292
      %v344 = vunpack.c.l.b16 %v293
      %v345 = vunpack.c.l.b16 %v294
      %v346 = vunpack.c.l.b16 %v295
      %v347 = vunpack.c.l.b16 %v296
      %v348 = vpack.c.b16 %v333, %v332
      %v349 = vpack.c.b16 %v335, %v334
      %v350 = vpack.c.b16 %v337, %v336
      %v351 = vpack.c.b16 %v339, %v338
      %v352 = vpack.c.b16 %v341, %v340
      %v353 = vpack.c.b16 %v343, %v342
      %v354 = vpack.c.b16 %v345, %v344
      %v355 = vpack.c.b16 %v347, %v346
      %364 = vmatprep.subr.bf16.mxu0 0
      %365 = vmatpush1.bf16.msra.mxu0 %v348
      %366 = vmatprep.subr.bf16.mxu0 0
      %367 = vmatpush1.bf16.msra.mxu0 %v349
      %368 = vmatprep.subr.bf16.mxu0 0
      %369 = vmatpush1.bf16.msra.mxu0 %v350
      %370 = vmatprep.subr.bf16.mxu0 0
      %371 = vmatpush1.bf16.msra.mxu0 %v351
      %372 = vmatprep.subr.bf16.mxu0 0
      %373 = vmatpush1.bf16.msra.mxu0 %v352
      %374 = vmatprep.subr.bf16.mxu0 0
      %375 = vmatpush1.bf16.msra.mxu0 %v353
      %376 = vmatprep.subr.bf16.mxu0 0
      %377 = vmatpush1.bf16.msra.mxu0 %v354
      %378 = vmatprep.subr.bf16.mxu0 0
      %379 = vmatpush1.bf16.msra.mxu0 %v355
      %380 = vmatprep.subr.bf16.mxu0 0
      %381 = vmatpush1.bf16.msra.mxu0 0
      %382 = vmatprep.subr.bf16.mxu0 0
      %383 = vmatpush1.bf16.msra.mxu0 0
      %384 = vmatprep.subr.bf16.mxu0 0
      %385 = vmatpush1.bf16.msra.mxu0 0
      %386 = vmatprep.subr.bf16.mxu0 0
      %387 = vmatpush1.bf16.msra.mxu0 0
      %388 = vmatprep.subr.bf16.mxu0 0
      %389 = vmatpush1.bf16.msra.mxu0 0
      %390 = vmatprep.subr.bf16.mxu0 0
      %391 = vmatpush1.bf16.msra.mxu0 0
      %392 = vmatprep.subr.bf16.mxu0 0
      %393 = vmatpush1.bf16.msra.mxu0 0
      %394 = vmatprep.subr.bf16.mxu0 0
      %395 = vmatpush1.bf16.msra.mxu0 0
      %396 = vmatprep.mubr.bf16.mxu0 0
      %397 = vmatmul.mubr.bf16.gmra.mrb[0].mxu0 %v312
      %v398 = vpop.f32.mrb[0].mxu0
      %v399 = vadd.f32 %v302, %v398
      %v400 = vpop.f32.mrb[0].mxu0
      %v401 = vpop.f32.mrb[0].mxu0
      %v402 = vadd.f32 %v302, %v401
      %v403 = vpop.f32.mrb[0].mxu0
      %404 = vmatprep.mubr.bf16.mxu0 0
      %405 = vmatmul.mubr.bf16.gmra.mrb[0].mxu0 %v313
      %v406 = vpop.f32.mrb[0].mxu0
      %v407 = vadd.f32 %v302, %v406
      %v408 = vpop.f32.mrb[0].mxu0
      %v409 = vpop.f32.mrb[0].mxu0
      %v410 = vadd.f32 %v302, %v409
      %v411 = vpop.f32.mrb[0].mxu0
      %412 = vdwg.mxu0
      %v413 = vadd.f32 %v399, %v402
      %v414 = vadd.f32 %v413, %v407
      %v415 = vadd.f32 %v414, %v410
      %v416 = vrot.slane %v415, 4
      %v417 = vadd.f32 %v415, %v416
      %v418 = vrot.slane %v417, 2
      %v419 = vadd.f32 %v417, %v418
      %v420 = vrot.slane %v419, 1
      %v421 = vadd.f32 %v419, %v420
      %v422 = vmul.f32 %v399, %v399
      %v423 = vmul.f32 %v402, %v402
      %v424 = vmul.f32 %v407, %v407
      %v425 = vmul.f32 %v410, %v410
      %v426 = vadd.f32 %v422, %v423
      %v427 = vadd.f32 %v426, %v424
      %v428 = vadd.f32 %v427, %v425
      %v429 = vrot.slane %v428, 4
      %v430 = vadd.f32 %v428, %v429
      %v431 = vrot.slane %v430, 2
      %v432 = vadd.f32 %v430, %v431
      %v433 = vrot.slane %v432, 1
      %v434 = vadd.f32 %v432, %v433
      %vm435 = vcmask 1040384
      %v436 = vsel %vm435, %v421, %v434
      %437 = vst [vmem:[%s275] sm:$0x3] %v436
      %v438 = vpack.c.bf16 %v402, %v399
      %v439 = vpack.c.bf16 %v410, %v407
      %v442 = vunpack.c.l.b16 %v438
      %v443 = vunpack.c.h.b16 %v438
      %v444 = vunpack.c.l.b16 %v439
      %v445 = vunpack.c.h.b16 %v439
      %v446 = vpack.c.b16 %v442, %v442
      %v447 = vpack.c.b16 %v443, %v443
      %v448 = vpack.c.b16 %v444, %v444
      %v449 = vpack.c.b16 %v445, %v445
      %454 = vst [vmem:[%s267] sm:$0xf] %v446
      %455 = vst [vmem:[%s267 + $0x4] sm:$0xf] %v447
      %456 = vst [vmem:[%s267 + $0x8] sm:$0xf] %v448
      %457 = vst [vmem:[%s267 + $0xc] sm:$0xf] %v449
      %s458 = smul.u32 4, %s21
      %p459 = scmp.lt.s32.totalorder %s20, 3
      %s460 = scalar_select %p459, %s20, 3
      %p461 = scmp.lt.s32.totalorder %s458, 3
      %s462 = scalar_select %p461, %s458, 3
      %s463 = smul.addr %s460, 4
      %s464 = sadd.s32 %s462, %s463
      %s465 = smul.addr %s464, 4
      %s466 = scalar_lea.vmem %s3, %s465
      %p467 = scmp.lt.s32.totalorder %s20, 3
      %s468 = scalar_select %p467, %s20, 3
      %p469 = scmp.lt.s32.totalorder %s21, 0
      %s470 = scalar_select %p469, %s21, 0
      %s471 = sadd.s32 %s470, %s468
      %s472 = smul.addr %s471, 2
      %s473 = scalar_lea.vmem %s4, %s472
      // Predicated region
      $region33: #{g_net_forward.93} parent=31 // pred_check
        %p474 = pneg %p123
      $region34: #{g_net_forward.93} parent=31 // pred_check_branch
        %476 = sbr.rel (%p474) target = $region36
      $region35: #{g_net_forward.93} parent=31 // pred_region
        %s477 = smul.u32 4, %s21
      $region36: #{g_net_forward.93} parent=31 // pred_fallthru
        _
      // Predicated region
      $region37: #{g_net_forward.93} parent=31 // pred_check
        %p478 = pneg %p151
      $region38: #{g_net_forward.93} parent=31 // pred_check_branch
        %480 = sbr.rel (%p478) target = $region40
      $region39: #{g_net_forward.93} parent=31 // pred_region
        _
      $region40: #{g_net_forward.93} parent=31 // pred_fallthru
        _
    $region32: #{g_net_forward.93} parent=5 // pred_fallthru
      _
    %p481 = scmp.le.s32.totalorder 2, %s11
    // Predicated region
    $region41: #{g_net_forward.93} parent=5 // pred_check
      %p482 = pneg %p481
    $region42: #{g_net_forward.93} parent=5 // pred_check_branch
      %484 = sbr.rel (%p482) target = $region44
    $region43: #{g_net_forward.93} parent=5 // pred_region
      %s485 = ssub.s32 %s11, 2
      // Predicated region
      $region45: #{g_net_forward.93} parent=43 // pred_check
        %p486 = pneg %p129
      $region46: #{g_net_forward.93} parent=43 // pred_check_branch
        %488 = sbr.rel (%p486) target = $region48
      $region47: #{g_net_forward.93} parent=43 // pred_region
        %s489 = smul.u32 4, %s23
        %p490 = scmp.lt.s32.totalorder %s22, 3
        %s491 = scalar_select %p490, %s22, 3
        %p492 = scmp.lt.s32.totalorder %s489, 3
        %s493 = scalar_select %p492, %s489, 3
        %s494 = smul.addr %s491, 4
        %s495 = sadd.s32 %s493, %s494
        %s496 = smul.addr %s495, 4
        %s497 = scalar_lea.vmem %s3, %s496
      $region48: #{g_net_forward.93} parent=43 // pred_fallthru
        _
      // Predicated region
      $region49: #{g_net_forward.93} parent=43 // pred_check
        %p498 = pneg %p157
      $region50: #{g_net_forward.93} parent=43 // pred_check_branch
        %500 = sbr.rel (%p498) target = $region52
      $region51: #{g_net_forward.93} parent=43 // pred_region
        %p501 = scmp.lt.s32.totalorder %s22, 3
        %s502 = scalar_select %p501, %s22, 3
        %p503 = scmp.lt.s32.totalorder %s23, 0
        %s504 = scalar_select %p503, %s23, 0
        %s505 = sadd.s32 %s504, %s502
        %s506 = smul.addr %s505, 2
        %s507 = scalar_lea.vmem %s4, %s506
      $region52: #{g_net_forward.93} parent=43 // pred_fallthru
        _
    $region44: #{g_net_forward.93} parent=5 // pred_fallthru
      _
  $region6: #{g_net_forward.93} parent=0 // loop_footer
    %s15 = sadd.s32 1, %s11
  $region7: #{g_net_forward.93} parent=0 // loop_footer_branch
    %10 = sbr.rel target = $region3
  $region8: #{g_net_forward.93} parent=0 // loop_exit
    _

// kernel: g_net_forward.97
$region0: #{g_net_forward.97}
  #allocation0 [shape = 'u32[]', space=smem, size = 0x4, offset = 0x4, fixed_abs, tag = 'smem constant byte address 0x4 - core index']
  #allocation1 [shape = 'u32[144,128]{1,0:T(1,128)}', space=vmem, size = 0x12000, scoped, tag = 'internal scratch']
  %s0 = inlined_call_operand.vmem [shape: bf16[1,512,512], index: 0, kind: input, shape index: {}]
  %s1 = inlined_call_operand.vmem [shape: bf16[1,512,128], index: 1, kind: input, shape index: {}]
  %s2 = inlined_call_operand.vmem [shape: f32[1,128], index: 2, kind: input, shape index: {}]
  %s3 = inlined_call_operand.vmem [shape: bf16[1,512,128], index: 3, kind: output, shape index: {0}]
  %s4 = inlined_call_operand.hbm [shape: f32[1,2,2,128], index: 4, kind: output, shape index: {1}]
  %5 = xla_tuple %s3, %s4
  %s6 = sld [smem:[#allocation0]]
  $region53: #{g_net_forward.97} parent=0
    _
  %s8 = ssub.s32 1, %s6
  %s9 = scalar_select 0, %s8, %s6
  $region1: #{g_net_forward.97} parent=0
    #allocation2 [shape = 'u8[2048]{0}', space=vmem, size = 0x800, scoped, tag = 'output window, operand 1']
    #allocation3 [shape = 's32[2]{0}', space=sflag, size = 0x8, scoped, tag = 'scoped memory for g_net_forward.97']
    %10 = vsyncpa [#allocation3], 0
    %s11 = scalar_lea.sflag [#allocation3], 1
    %12 = vsyncpa %s11, 0
    loop: start=0, step=1, limit=4
    $region2: #{g_net_forward.97} parent=1 // loop_pre_header
      _
    $region3: #{g_net_forward.97} parent=1 // loop_header
      %s14 = sphi 0, %s18
      %p15 = scmp.ge.s32.totalorder %s14, 4
      %s21 = sphi 0, %s33
      %s22 = sphi 0, %s29
      %s23 = sphi 0, %s21
      %s24 = sphi 0, %s22
      %s25 = sphi 0, %s23
      %s26 = sphi 0, %s24
      %s38 = sphi 0, %s40
      %s41 = sphi 0, %s38
      %s42 = sphi 0, %s41
      %s58 = sphi 0, %s42
      %s64 = sphi 0, %s66
      %s67 = sphi 0, %s64
      %s68 = sphi 0, %s67
      %s84 = sphi 0, %s68
      %s88 = sphi 0, %s88
      %s90 = sphi 0, %s88
      %s91 = sphi 0, %s90
      %s105 = sphi 0, %s91
      %s113 = sphi 0, %s115
      %s116 = sphi 0, %s113
      %s117 = sphi 0, %s116
      %s133 = sphi 0, %s117
      %s141 = sphi 0, %s143
      %s144 = sphi 0, %s141
      %s145 = sphi 0, %s144
      %s161 = sphi 0, %s145
    $region4: #{g_net_forward.97} parent=1 // loop_header_branch
      %17 = sbr.rel (%p15) target = $region8
    $region5: #{g_net_forward.97} parent=1 // loop_body
      %s19 = ssub.s32 %s14, 1
      %s20 = ssub.s32 %s14, 2
      %s27 = sadd.s32 1, %s22
      %p28 = scmp.ge.s32.totalorder %s27, 2
      %s29 = scalar_select %p28, 0, %s27
      %s30 = sadd.s32 1, %s21
      %s31 = scalar_select %p28, %s30, %s21
      %p32 = scmp.ge.s32.totalorder %s31, 1
      %s33 = scalar_select %p32, 0, %s31
      %s34 = ssub.s32 %s21, %s33
      %s35 = ssub.s32 %s22, %s29
      %s36 = sor.u32 %s34, %s35
      %p37 = scmp.eq.s32.totalorder %s36, 0
      %s39 = sadd.s32 %s38, 1
      %s40 = scalar_select %p37, %s38, %s39
      %p43 = pneg %p37
      %p44 = scmp.eq.s32.totalorder %s14, 1
      %p45 = por %p43, %p44
      %p46 = scmp.ne.s32.totalorder %s38, %s41
      %p47 = scmp.eq.s32.totalorder %s14, 0
      %p48 = por %p46, %p47
      %p49 = scmp.ne.s32.totalorder %s38, %s41
      %p50 = scmp.eq.s32.totalorder %s19, 1
      %p51 = por %p49, %p50
      %p52 = scmp.ne.s32.totalorder %s41, %s42
      %p53 = scmp.eq.s32.totalorder %s19, 0
      %p54 = por %p52, %p53
      %p55 = scmp.ne.s32.totalorder %s41, %s42
      %p56 = scmp.eq.s32.totalorder %s20, 1
      %p57 = por %p55, %p56
      %p59 = scmp.ne.s32.totalorder %s42, %s58
      %p60 = scmp.eq.s32.totalorder %s20, 0
      %p61 = por %p59, %p60
      %s62 = ssub.s32 %s21, %s33
      %p63 = scmp.eq.s32.totalorder %s62, 0
      %s65 = sadd.s32 %s64, 1
      %s66 = scalar_select %p63, %s64, %s65
      %p69 = pneg %p63
      %p70 = scmp.eq.s32.totalorder %s14, 1
      %p71 = por %p69, %p70
      %p72 = scmp.ne.s32.totalorder %s64, %s67
      %p73 = scmp.eq.s32.totalorder %s14, 0
      %p74 = por %p72, %p73
      %p75 = scmp.ne.s32.totalorder %s64, %s67
      %p76 = scmp.eq.s32.totalorder %s19, 1
      %p77 = por %p75, %p76
      %p78 = scmp.ne.s32.totalorder %s67, %s68
      %p79 = scmp.eq.s32.totalorder %s19, 0
      %p80 = por %p78, %p79
      %p81 = scmp.ne.s32.totalorder %s67, %s68
      %p82 = scmp.eq.s32.totalorder %s20, 1
      %p83 = por %p81, %p82
      %p85 = scmp.ne.s32.totalorder %s68, %s84
      %p86 = scmp.eq.s32.totalorder %s20, 0
      %p87 = por %p85, %p86
      %s89 = sadd.s32 %s88, 1
      %p92 = scmp.eq.s32.totalorder %s14, 1
      %p93 = scmp.ne.s32.totalorder %s88, %s90
      %p94 = scmp.eq.s32.totalorder %s14, 0
      %p95 = por %p93, %p94
      %p96 = scmp.ne.s32.totalorder %s88, %s90
      %p97 = scmp.eq.s32.totalorder %s19, 1
      %p98 = por %p96, %p97
      %p99 = scmp.ne.s32.totalorder %s90, %s91
      %p100 = scmp.eq.s32.totalorder %s19, 0
      %p101 = por %p99, %p100
      %p102 = scmp.ne.s32.totalorder %s90, %s91
      %p103 = scmp.eq.s32.totalorder %s20, 1
      %p104 = por %p102, %p103
      %p106 = scmp.ne.s32.totalorder %s91, %s105
      %p107 = scmp.eq.s32.totalorder %s20, 0
      %p108 = por %p106, %p107
      %s109 = ssub.s32 %s21, %s33
      %s110 = ssub.s32 %s22, %s29
      %s111 = sor.u32 %s109, %s110
      %p112 = scmp.eq.s32.totalorder %s111, 0
      %s114 = sadd.s32 %s113, 1
      %s115 = scalar_select %p112, %s113, %s114
      %p118 = pneg %p112
      %p119 = scmp.eq.s32.totalorder %s14, 1
      %p120 = por %p118, %p119
      %p121 = scmp.ne.s32.totalorder %s113, %s116
      %p122 = scmp.eq.s32.totalorder %s14, 0
      %p123 = por %p121, %p122
      %p124 = scmp.ne.s32.totalorder %s113, %s116
      %p125 = scmp.eq.s32.totalorder %s19, 1
      %p126 = por %p124, %p125
      %p127 = scmp.ne.s32.totalorder %s116, %s117
      %p128 = scmp.eq.s32.totalorder %s19, 0
      %p129 = por %p127, %p128
      %p130 = scmp.ne.s32.totalorder %s116, %s117
      %p131 = scmp.eq.s32.totalorder %s20, 1
      %p132 = por %p130, %p131
      %p134 = scmp.ne.s32.totalorder %s117, %s133
      %p135 = scmp.eq.s32.totalorder %s20, 0
      %p136 = por %p134, %p135
      %s137 = ssub.s32 %s21, %s33
      %s138 = ssub.s32 %s22, %s29
      %s139 = sor.u32 %s137, %s138
      %p140 = scmp.eq.s32.totalorder %s139, 0
      %s142 = sadd.s32 %s141, 1
      %s143 = scalar_select %p140, %s141, %s142
      %p146 = pneg %p140
      %p147 = scmp.eq.s32.totalorder %s14, 1
      %p148 = por %p146, %p147
      %p149 = scmp.ne.s32.totalorder %s141, %s144
      %p150 = scmp.eq.s32.totalorder %s14, 0
      %p151 = por %p149, %p150
      %p152 = scmp.ne.s32.totalorder %s141, %s144
      %p153 = scmp.eq.s32.totalorder %s19, 1
      %p154 = por %p152, %p153
      %p155 = scmp.ne.s32.totalorder %s144, %s145
      %p156 = scmp.eq.s32.totalorder %s19, 0
      %p157 = por %p155, %p156
      %p158 = scmp.ne.s32.totalorder %s144, %s145
      %p159 = scmp.eq.s32.totalorder %s20, 1
      %p160 = por %p158, %p159
      %p162 = scmp.ne.s32.totalorder %s145, %s161
      %p163 = scmp.eq.s32.totalorder %s20, 0
      %p164 = por %p162, %p163
      %p165 = scmp.le.s32.totalorder 1, %s14
      %p166 = scmp.lt.s32.totalorder %s14, 3
      %p167 = pnand %p165, %p166
      %p168 = pneg %p167
      // Predicated region
      $region9: #{g_net_forward.97} parent=5 // pred_check
        _
      $region10: #{g_net_forward.97} parent=5 // pred_check_branch
        %170 = sbr.rel (%p167) target = $region12
      $region11: #{g_net_forward.97} parent=5 // pred_region
        %s171 = ssub.s32 %s14, 1
        // Predicated region
        $region13: #{g_net_forward.97} parent=11 // pred_check
          %p172 = pneg %p80
        $region14: #{g_net_forward.97} parent=11 // pred_check_branch
          %174 = sbr.rel (%p172) target = $region16
        $region15: #{g_net_forward.97} parent=11 // pred_region
          %p175 = scmp.lt.s32.totalorder %s23, 0
          %s176 = scalar_select %p175, %s23, 0
          %s177 = smul.addr %s176, 64
          %s178 = smul.addr %s177, 4
          %s179 = scalar_lea.vmem %s1, %s178
        $region16: #{g_net_forward.97} parent=11 // pred_fallthru
          _
        // Predicated region
        $region17: #{g_net_forward.97} parent=11 // pred_check
          %p180 = pneg %p101
        $region18: #{g_net_forward.97} parent=11 // pred_check_branch
          %182 = sbr.rel (%p180) target = $region20
        $region19: #{g_net_forward.97} parent=11 // pred_region
          _
        $region20: #{g_net_forward.97} parent=11 // pred_fallthru
          _
      $region12: #{g_net_forward.97} parent=5 // pred_fallthru
        _
      %p183 = scmp.lt.s32.totalorder %s14, 2
      // Predicated region
      $region21: #{g_net_forward.97} parent=5 // pred_check
        %p184 = pneg %p183
      $region22: #{g_net_forward.97} parent=5 // pred_check_branch
        %186 = sbr.rel (%p184) target = $region24
      $region23: #{g_net_forward.97} parent=5 // pred_region
        // Predicated region
        $region25: #{g_net_forward.97} parent=23 // pred_check
          %p187 = pneg %p48
        $region26: #{g_net_forward.97} parent=23 // pred_check_branch
          %189 = sbr.rel (%p187) target = $region28
        $region27: #{g_net_forward.97} parent=23 // pred_region
          %s190 = smul.u32 32, %s22
          %p191 = scmp.lt.s32.totalorder %s21, 0
          %s192 = scalar_select %p191, %s21, 0
          %p193 = scmp.lt.s32.totalorder %s190, 63
          %s194 = scalar_select %p193, %s190, 63
          %s195 = smul.addr %s194, 4
          %s196 = smul.addr %s192, 256
          %s197 = sadd.s32 %s195, %s196
          %s198 = smul.addr %s197, 4
          %s199 = scalar_lea.vmem %s0, %s198
          %s200 = smul.u32 32, %s22
        $region28: #{g_net_forward.97} parent=23 // pred_fallthru
          _
      $region24: #{g_net_forward.97} parent=5 // pred_fallthru
        _
      %p201 = scmp.le.s32.totalorder 1, %s14
      %p202 = scmp.lt.s32.totalorder %s14, 3
      %p203 = pnand %p201, %p202
      %p204 = pneg %p203
      // Predicated region
      $region29: #{g_net_forward.97} parent=5 // pred_check
        _
      $region30: #{g_net_forward.97} parent=5 // pred_check_branch
        %206 = sbr.rel (%p203) target = $region32
      $region31: #{g_net_forward.97} parent=5 // pred_region
        %s207 = ssub.s32 %s14, 1
        %s208 = smul.u32 32, %s24
        %p209 = scmp.lt.s32.totalorder %s23, 0
        %s210 = scalar_select %p209, %s23, 0
        %p211 = scmp.lt.s32.totalorder %s208, 63
        %s212 = scalar_select %p211, %s208, 63
        %s213 = smul.addr %s212, 4
        %s214 = smul.addr %s210, 256
        %s215 = sadd.s32 %s213, %s214
        %s216 = smul.addr %s215, 4
        %s217 = scalar_lea.vmem %s0, %s216
        %p218 = pneg %p54
        %p219 = pneg %p51
        %p220 = scmp.lt.s32.totalorder %s23, 0
        %s221 = scalar_select %p220, %s23, 0
        %s222 = smul.addr %s221, 64
        %s223 = smul.addr %s222, 4
        %s224 = scalar_lea.vmem %s1, %s223
        %p225 = pneg %p80
        %p226 = pneg %p77
        %p227 = pneg %p101
        %p228 = pneg %p98
        %p229 = pneg %p129
        %p230 = pneg %p126
        %s231 = smul.u32 32, %s24
        %p232 = scmp.lt.s32.totalorder %s23, 0
        %s233 = scalar_select %p232, %s23, 0
        %p234 = scmp.lt.s32.totalorder %s231, 63
        %s235 = scalar_select %p234, %s231, 63
        %s236 = smul.addr %s233, 64
        %s237 = sadd.s32 %s235, %s236
        %s238 = smul.addr %s237, 4
        %s239 = scalar_lea.vmem %s3, %s238
        %p240 = pneg %p157
        %p241 = pneg %p154
        %s242 = sand.u32 %s144, 1
        %s243 = scalar_lea.sflag [#allocation3], %s242
        %s244 = sand.u32 %s144, 1
        %s245 = smul.addr %s244, 2
        %s246 = scalar_lea.vmem [#allocation2], %s245
        %s247 = smul.u32 32, %s24
        %p248 = scmp.lt.s32.totalorder %s23, 0
        %s249 = scalar_select %p248, %s23, 0
        %p250 = scmp.lt.s32.totalorder %s247, 63
        %s251 = scalar_select %p250, %s247, 63
        %s252 = smul.addr %s251, 4
        %s253 = smul.addr %s249, 256
        %s254 = sadd.s32 %s252, %s253
        %s255 = smul.addr %s254, 4
        %s256 = scalar_lea.vmem %s0, %s255
        %s257 = smul.u32 32, %s24
        %p258 = scmp.lt.s32.totalorder %s23, 0
        %s259 = scalar_select %p258, %s23, 0
        %s260 = smul.addr %s259, 64
        %s261 = smul.addr %s260, 4
        %s262 = scalar_lea.vmem %s1, %s261
        %s263 = smul.u32 32, %s24
        %p264 = scmp.lt.s32.totalorder %s23, 0
        %s265 = scalar_select %p264, %s23, 0
        %p266 = scmp.lt.s32.totalorder %s263, 63
        %s267 = scalar_select %p266, %s263, 63
        %s268 = smul.addr %s265, 64
        %s269 = sadd.s32 %s267, %s268
        %s270 = smul.addr %s269, 4
        %s271 = scalar_lea.vmem %s3, %s270
        %s272 = smul.u32 32, %s24
        %v274 = vld [vmem:[%s256] sm:$0xff]
        %v275 = vld [vmem:[%s256 + $0x8] sm:$0xff]
        %v276 = vld [vmem:[%s256 + $0x10] sm:$0xff]
        %v277 = vld [vmem:[%s256 + $0x18] sm:$0xff]
        %v278 = vld [vmem:[%s256 + $0x20] sm:$0xff]
        %v279 = vld [vmem:[%s256 + $0x28] sm:$0xff]
        %v280 = vld [vmem:[%s256 + $0x30] sm:$0xff]
        %v281 = vld [vmem:[%s256 + $0x38] sm:$0xff]
        %v282 = vld [vmem:[%s256 + $0x40] sm:$0xff]
        %v283 = vld [vmem:[%s256 + $0x48] sm:$0xff]
        %v284 = vld [vmem:[%s256 + $0x50] sm:$0xff]
        %v285 = vld [vmem:[%s256 + $0x58] sm:$0xff]
        %v286 = vld [vmem:[%s256 + $0x60] sm:$0xff]
        %v287 = vld [vmem:[%s256 + $0x68] sm:$0xff]
        %v288 = vld [vmem:[%s256 + $0x70] sm:$0xff]
        %v289 = vld [vmem:[%s256 + $0x78] sm:$0xff]
        %v290 = vld [vmem:[%s256 + $0x80] sm:$0xff]
        %v291 = vld [vmem:[%s256 + $0x88] sm:$0xff]
        %v292 = vld [vmem:[%s256 + $0x90] sm:$0xff]
        %v293 = vld [vmem:[%s256 + $0x98] sm:$0xff]
        %v294 = vld [vmem:[%s256 + $0xa0] sm:$0xff]
        %v295 = vld [vmem:[%s256 + $0xa8] sm:$0xff]
        %v296 = vld [vmem:[%s256 + $0xb0] sm:$0xff]
        %v297 = vld [vmem:[%s256 + $0xb8] sm:$0xff]
        %v298 = vld [vmem:[%s256 + $0xc0] sm:$0xff]
        %v299 = vld [vmem:[%s256 + $0xc8] sm:$0xff]
        %v300 = vld [vmem:[%s256 + $0xd0] sm:$0xff]
        %v301 = vld [vmem:[%s256 + $0xd8] sm:$0xff]
        %v302 = vld [vmem:[%s256 + $0xe0] sm:$0xff]
        %v303 = vld [vmem:[%s256 + $0xe8] sm:$0xff]
        %v304 = vld [vmem:[%s256 + $0xf0] sm:$0xff]
        %v305 = vld [vmem:[%s256 + $0xf8] sm:$0xff]
        %v306 = vld [vmem:[%s256 + $0x100] sm:$0xff]
        %v307 = vld [vmem:[%s256 + $0x108] sm:$0xff]
        %v308 = vld [vmem:[%s256 + $0x110] sm:$0xff]
        %v309 = vld [vmem:[%s256 + $0x118] sm:$0xff]
        %v310 = vld [vmem:[%s256 + $0x120] sm:$0xff]
        %v311 = vld [vmem:[%s256 + $0x128] sm:$0xff]
        %v312 = vld [vmem:[%s256 + $0x130] sm:$0xff]
        %v313 = vld [vmem:[%s256 + $0x138] sm:$0xff]
        %v314 = vld [vmem:[%s256 + $0x140] sm:$0xff]
        %v315 = vld [vmem:[%s256 + $0x148] sm:$0xff]
        %v316 = vld [vmem:[%s256 + $0x150] sm:$0xff]
        %v317 = vld [vmem:[%s256 + $0x158] sm:$0xff]
        %v318 = vld [vmem:[%s256 + $0x160] sm:$0xff]
        %v319 = vld [vmem:[%s256 + $0x168] sm:$0xff]
        %v320 = vld [vmem:[%s256 + $0x170] sm:$0xff]
        %v321 = vld [vmem:[%s256 + $0x178] sm:$0xff]
        %v322 = vld [vmem:[%s256 + $0x180] sm:$0xff]
        %v323 = vld [vmem:[%s256 + $0x188] sm:$0xff]
        %v324 = vld [vmem:[%s256 + $0x190] sm:$0xff]
        %v325 = vld [vmem:[%s256 + $0x198] sm:$0xff]
        %v326 = vld [vmem:[%s256 + $0x1a0] sm:$0xff]
        %v327 = vld [vmem:[%s256 + $0x1a8] sm:$0xff]
        %v328 = vld [vmem:[%s256 + $0x1b0] sm:$0xff]
        %v329 = vld [vmem:[%s256 + $0x1b8] sm:$0xff]
        %v330 = vld [vmem:[%s256 + $0x1c0] sm:$0xff]
        %v331 = vld [vmem:[%s256 + $0x1c8] sm:$0xff]
        %v332 = vld [vmem:[%s256 + $0x1d0] sm:$0xff]
        %v333 = vld [vmem:[%s256 + $0x1d8] sm:$0xff]
        %v334 = vld [vmem:[%s256 + $0x1e0] sm:$0xff]
        %v335 = vld [vmem:[%s256 + $0x1e8] sm:$0xff]
        %v336 = vld [vmem:[%s256 + $0x1f0] sm:$0xff]
        %v337 = vld [vmem:[%s256 + $0x1f8] sm:$0xff]
        %v338 = vld [vmem:[%s262] sm:$0xf]
        %v339 = vld [vmem:[%s262 + $0x4] sm:$0xf]
        %v340 = vld [vmem:[%s262 + $0x8] sm:$0xf]
        %v341 = vld [vmem:[%s262 + $0xc] sm:$0xf]
        %v342 = vld [vmem:[%s262 + $0x10] sm:$0xf]
        %v343 = vld [vmem:[%s262 + $0x14] sm:$0xf]
        %v344 = vld [vmem:[%s262 + $0x18] sm:$0xf]
        %v345 = vld [vmem:[%s262 + $0x1c] sm:$0xf]
        %v346 = vld [vmem:[%s262 + $0x20] sm:$0xf]
        %v347 = vld [vmem:[%s262 + $0x24] sm:$0xf]
        %v348 = vld [vmem:[%s262 + $0x28] sm:$0xf]
        %v349 = vld [vmem:[%s262 + $0x2c] sm:$0xf]
        %v350 = vld [vmem:[%s262 + $0x30] sm:$0xf]
        %v351 = vld [vmem:[%s262 + $0x34] sm:$0xf]
        %v352 = vld [vmem:[%s262 + $0x38] sm:$0xf]
        %v353 = vld [vmem:[%s262 + $0x3c] sm:$0xf]
        %v354 = vld [vmem:[%s262 + $0x40] sm:$0xf]
        %v355 = vld [vmem:[%s262 + $0x44] sm:$0xf]
        %v356 = vld [vmem:[%s262 + $0x48] sm:$0xf]
        %v357 = vld [vmem:[%s262 + $0x4c] sm:$0xf]
        %v358 = vld [vmem:[%s262 + $0x50] sm:$0xf]
        %v359 = vld [vmem:[%s262 + $0x54] sm:$0xf]
        %v360 = vld [vmem:[%s262 + $0x58] sm:$0xf]
        %v361 = vld [vmem:[%s262 + $0x5c] sm:$0xf]
        %v362 = vld [vmem:[%s262 + $0x60] sm:$0xf]
        %v363 = vld [vmem:[%s262 + $0x64] sm:$0xf]
        %v364 = vld [vmem:[%s262 + $0x68] sm:$0xf]
        %v365 = vld [vmem:[%s262 + $0x6c] sm:$0xf]
        %v366 = vld [vmem:[%s262 + $0x70] sm:$0xf]
        %v367 = vld [vmem:[%s262 + $0x74] sm:$0xf]
        %v368 = vld [vmem:[%s262 + $0x78] sm:$0xf]
        %v369 = vld [vmem:[%s262 + $0x7c] sm:$0xf]
        %v370 = vld [vmem:[%s262 + $0x80] sm:$0xf]
        %v371 = vld [vmem:[%s262 + $0x84] sm:$0xf]
        %v372 = vld [vmem:[%s262 + $0x88] sm:$0xf]
        %v373 = vld [vmem:[%s262 + $0x8c] sm:$0xf]
        %v374 = vld [vmem:[%s262 + $0x90] sm:$0xf]
        %v375 = vld [vmem:[%s262 + $0x94] sm:$0xf]
        %v376 = vld [vmem:[%s262 + $0x98] sm:$0xf]
        %v377 = vld [vmem:[%s262 + $0x9c] sm:$0xf]
        %v378 = vld [vmem:[%s262 + $0xa0] sm:$0xf]
        %v379 = vld [vmem:[%s262 + $0xa4] sm:$0xf]
        %v380 = vld [vmem:[%s262 + $0xa8] sm:$0xf]
        %v381 = vld [vmem:[%s262 + $0xac] sm:$0xf]
        %v382 = vld [vmem:[%s262 + $0xb0] sm:$0xf]
        %v383 = vld [vmem:[%s262 + $0xb4] sm:$0xf]
        %v384 = vld [vmem:[%s262 + $0xb8] sm:$0xf]
        %v385 = vld [vmem:[%s262 + $0xbc] sm:$0xf]
        %v386 = vld [vmem:[%s262 + $0xc0] sm:$0xf]
        %v387 = vld [vmem:[%s262 + $0xc4] sm:$0xf]
        %v388 = vld [vmem:[%s262 + $0xc8] sm:$0xf]
        %v389 = vld [vmem:[%s262 + $0xcc] sm:$0xf]
        %v390 = vld [vmem:[%s262 + $0xd0] sm:$0xf]
        %v391 = vld [vmem:[%s262 + $0xd4] sm:$0xf]
        %v392 = vld [vmem:[%s262 + $0xd8] sm:$0xf]
        %v393 = vld [vmem:[%s262 + $0xdc] sm:$0xf]
        %v394 = vld [vmem:[%s262 + $0xe0] sm:$0xf]
        %v395 = vld [vmem:[%s262 + $0xe4] sm:$0xf]
        %v396 = vld [vmem:[%s262 + $0xe8] sm:$0xf]
        %v397 = vld [vmem:[%s262 + $0xec] sm:$0xf]
        %v398 = vld [vmem:[%s262 + $0xf0] sm:$0xf]
        %v399 = vld [vmem:[%s262 + $0xf4] sm:$0xf]
        %v400 = vld [vmem:[%s262 + $0xf8] sm:$0xf]
        %v401 = vld [vmem:[%s262 + $0xfc] sm:$0xf]
        %v402 = vld [vmem:[%s2] sm:$0x1]
        %v404 = vlaneseq
        %v405 = vshrl.u32 %v404, 7
        %v406 = vsub.s32 0, %v405
        %v407 = vrot.slane %v402, %v406
        %v473 = vunpack.c.l.b16 %v274
        %v474 = vunpack.c.h.b16 %v274
        %v475 = vunpack.c.l.b16 %v275
        %v476 = vunpack.c.h.b16 %v275
        %v477 = vunpack.c.l.b16 %v276
        %v478 = vunpack.c.h.b16 %v276
        %v479 = vunpack.c.l.b16 %v277
        %v480 = vunpack.c.h.b16 %v277
        %v481 = vunpack.c.l.b16 %v278
        %v482 = vunpack.c.h.b16 %v278
        %v483 = vunpack.c.l.b16 %v279
        %v484 = vunpack.c.h.b16 %v279
        %v485 = vunpack.c.l.b16 %v280
        %v486 = vunpack.c.h.b16 %v280
        %v487 = vunpack.c.l.b16 %v281
        %v488 = vunpack.c.h.b16 %v281
        %v489 = vunpack.c.l.b16 %v282
        %v490 = vunpack.c.h.b16 %v282
        %v491 = vunpack.c.l.b16 %v283
        %v492 = vunpack.c.h.b16 %v283
        %v493 = vunpack.c.l.b16 %v284
        %v494 = vunpack.c.h.b16 %v284
        %v495 = vunpack.c.l.b16 %v285
        %v496 = vunpack.c.h.b16 %v285
        %v497 = vunpack.c.l.b16 %v286
        %v498 = vunpack.c.h.b16 %v286
        %v499 = vunpack.c.l.b16 %v287
        %v500 = vunpack.c.h.b16 %v287
        %v501 = vunpack.c.l.b16 %v288
        %v502 = vunpack.c.h.b16 %v288
        %v503 = vunpack.c.l.b16 %v289
        %v504 = vunpack.c.h.b16 %v289
        %v505 = vunpack.c.l.b16 %v290
        %v506 = vunpack.c.h.b16 %v290
        %v507 = vunpack.c.l.b16 %v291
        %v508 = vunpack.c.h.b16 %v291
        %v509 = vunpack.c.l.b16 %v292
        %v510 = vunpack.c.h.b16 %v292
        %v511 = vunpack.c.l.b16 %v293
        %v512 = vunpack.c.h.b16 %v293
        %v513 = vunpack.c.l.b16 %v294
        %v514 = vunpack.c.h.b16 %v294
        %v515 = vunpack.c.l.b16 %v295
        %v516 = vunpack.c.h.b16 %v295
        %v517 = vunpack.c.l.b16 %v296
        %v518 = vunpack.c.h.b16 %v296
        %v519 = vunpack.c.l.b16 %v297
        %v520 = vunpack.c.h.b16 %v297
        %v521 = vunpack.c.l.b16 %v298
        %v522 = vunpack.c.h.b16 %v298
        %v523 = vunpack.c.l.b16 %v299
        %v524 = vunpack.c.h.b16 %v299
        %v525 = vunpack.c.l.b16 %v300
        %v526 = vunpack.c.h.b16 %v300
        %v527 = vunpack.c.l.b16 %v301
        %v528 = vunpack.c.h.b16 %v301
        %v529 = vunpack.c.l.b16 %v302
        %v530 = vunpack.c.h.b16 %v302
        %v531 = vunpack.c.l.b16 %v303
        %v532 = vunpack.c.h.b16 %v303
        %v533 = vunpack.c.l.b16 %v304
        %v534 = vunpack.c.h.b16 %v304
        %v535 = vunpack.c.l.b16 %v305
        %v536 = vunpack.c.h.b16 %v305
        %v537 = vunpack.c.l.b16 %v306
        %v538 = vunpack.c.h.b16 %v306
        %v539 = vunpack.c.l.b16 %v307
        %v540 = vunpack.c.h.b16 %v307
        %v541 = vunpack.c.l.b16 %v308
        %v542 = vunpack.c.h.b16 %v308
        %v543 = vunpack.c.l.b16 %v309
        %v544 = vunpack.c.h.b16 %v309
        %v545 = vunpack.c.l.b16 %v310
        %v546 = vunpack.c.h.b16 %v310
        %v547 = vunpack.c.l.b16 %v311
        %v548 = vunpack.c.h.b16 %v311
        %v549 = vunpack.c.l.b16 %v312
        %v550 = vunpack.c.h.b16 %v312
        %v551 = vunpack.c.l.b16 %v313
        %v552 = vunpack.c.h.b16 %v313
        %v553 = vunpack.c.l.b16 %v314
        %v554 = vunpack.c.h.b16 %v314
        %v555 = vunpack.c.l.b16 %v315
        %v556 = vunpack.c.h.b16 %v315
        %v557 = vunpack.c.l.b16 %v316
        %v558 = vunpack.c.h.b16 %v316
        %v559 = vunpack.c.l.b16 %v317
        %v560 = vunpack.c.h.b16 %v317
        %v561 = vunpack.c.l.b16 %v318
        %v562 = vunpack.c.h.b16 %v318
        %v563 = vunpack.c.l.b16 %v319
        %v564 = vunpack.c.h.b16 %v319
        %v565 = vunpack.c.l.b16 %v320
        %v566 = vunpack.c.h.b16 %v320
        %v567 = vunpack.c.l.b16 %v321
        %v568 = vunpack.c.h.b16 %v321
        %v569 = vunpack.c.l.b16 %v322
        %v570 = vunpack.c.h.b16 %v322
        %v571 = vunpack.c.l.b16 %v323
        %v572 = vunpack.c.h.b16 %v323
        %v573 = vunpack.c.l.b16 %v324
        %v574 = vunpack.c.h.b16 %v324
        %v575 = vunpack.c.l.b16 %v325
        %v576 = vunpack.c.h.b16 %v325
        %v577 = vunpack.c.l.b16 %v326
        %v578 = vunpack.c.h.b16 %v326
        %v579 = vunpack.c.l.b16 %v327
        %v580 = vunpack.c.h.b16 %v327
        %v581 = vunpack.c.l.b16 %v328
        %v582 = vunpack.c.h.b16 %v328
        %v583 = vunpack.c.l.b16 %v329
        %v584 = vunpack.c.h.b16 %v329
        %v585 = vunpack.c.l.b16 %v330
        %v586 = vunpack.c.h.b16 %v330
        %v587 = vunpack.c.l.b16 %v331
        %v588 = vunpack.c.h.b16 %v331
        %v589 = vunpack.c.l.b16 %v332
        %v590 = vunpack.c.h.b16 %v332
        %v591 = vunpack.c.l.b16 %v333
        %v592 = vunpack.c.h.b16 %v333
        %v593 = vunpack.c.l.b16 %v334
        %v594 = vunpack.c.h.b16 %v334
        %v595 = vunpack.c.l.b16 %v335
        %v596 = vunpack.c.h.b16 %v335
        %v597 = vunpack.c.l.b16 %v336
        %v598 = vunpack.c.h.b16 %v336
        %v599 = vunpack.c.l.b16 %v337
        %v600 = vunpack.c.h.b16 %v337
        %v601 = vpack.c.b16 %v477, %v473
        %v602 = vpack.c.b16 %v478, %v474
        %v603 = vpack.c.b16 %v479, %v475
        %v604 = vpack.c.b16 %v480, %v476
        %v605 = vpack.c.b16 %v485, %v481
        %v606 = vpack.c.b16 %v486, %v482
        %v607 = vpack.c.b16 %v487, %v483
        %v608 = vpack.c.b16 %v488, %v484
        %v609 = vpack.c.b16 %v493, %v489
        %v610 = vpack.c.b16 %v494, %v490
        %v611 = vpack.c.b16 %v495, %v491
        %v612 = vpack.c.b16 %v496, %v492
        %v613 = vpack.c.b16 %v501, %v497
        %v614 = vpack.c.b16 %v502, %v498
        %v615 = vpack.c.b16 %v503, %v499
        %v616 = vpack.c.b16 %v504, %v500
        %v617 = vpack.c.b16 %v509, %v505
        %v618 = vpack.c.b16 %v510, %v506
        %v619 = vpack.c.b16 %v511, %v507
        %v620 = vpack.c.b16 %v512, %v508
        %v621 = vpack.c.b16 %v517, %v513
        %v622 = vpack.c.b16 %v518, %v514
        %v623 = vpack.c.b16 %v519, %v515
        %v624 = vpack.c.b16 %v520, %v516
        %v625 = vpack.c.b16 %v525, %v521
        %v626 = vpack.c.b16 %v526, %v522
        %v627 = vpack.c.b16 %v527, %v523
        %v628 = vpack.c.b16 %v528, %v524
        %v629 = vpack.c.b16 %v533, %v529
        %v630 = vpack.c.b16 %v534, %v530
        %v631 = vpack.c.b16 %v535, %v531
        %v632 = vpack.c.b16 %v536, %v532
        %v633 = vpack.c.b16 %v541, %v537
        %v634 = vpack.c.b16 %v542, %v538
        %v635 = vpack.c.b16 %v543, %v539
        %v636 = vpack.c.b16 %v544, %v540
        %v637 = vpack.c.b16 %v549, %v545
        %v638 = vpack.c.b16 %v550, %v546
        %v639 = vpack.c.b16 %v551, %v547
        %v640 = vpack.c.b16 %v552, %v548
        %v641 = vpack.c.b16 %v557, %v553
        %v642 = vpack.c.b16 %v558, %v554
        %v643 = vpack.c.b16 %v559, %v555
        %v644 = vpack.c.b16 %v560, %v556
        %v645 = vpack.c.b16 %v565, %v561
        %v646 = vpack.c.b16 %v566, %v562
        %v647 = vpack.c.b16 %v567, %v563
        %v648 = vpack.c.b16 %v568, %v564
        %v649 = vpack.c.b16 %v573, %v569
        %v650 = vpack.c.b16 %v574, %v570
        %v651 = vpack.c.b16 %v575, %v571
        %v652 = vpack.c.b16 %v576, %v572
        %v653 = vpack.c.b16 %v581, %v577
        %v654 = vpack.c.b16 %v582, %v578
        %v655 = vpack.c.b16 %v583, %v579
        %v656 = vpack.c.b16 %v584, %v580
        %v657 = vpack.c.b16 %v589, %v585
        %v658 = vpack.c.b16 %v590, %v586
        %v659 = vpack.c.b16 %v591, %v587
        %v660 = vpack.c.b16 %v592, %v588
        %v661 = vpack.c.b16 %v597, %v593
        %v662 = vpack.c.b16 %v598, %v594
        %v663 = vpack.c.b16 %v599, %v595
        %v664 = vpack.c.b16 %v600, %v596
        %v793 = vunpack.c.l.b16 %v338
        %v794 = vunpack.c.l.b16 %v339
        %v795 = vunpack.c.l.b16 %v340
        %v796 = vunpack.c.l.b16 %v341
        %v797 = vunpack.c.l.b16 %v342
        %v798 = vunpack.c.l.b16 %v343
        %v799 = vunpack.c.l.b16 %v344
        %v800 = vunpack.c.l.b16 %v345
        %v801 = vunpack.c.l.b16 %v346
        %v802 = vunpack.c.l.b16 %v347
        %v803 = vunpack.c.l.b16 %v348
        %v804 = vunpack.c.l.b16 %v349
        %v805 = vunpack.c.l.b16 %v350
        %v806 = vunpack.c.l.b16 %v351
        %v807 = vunpack.c.l.b16 %v352
        %v808 = vunpack.c.l.b16 %v353
        %v809 = vunpack.c.l.b16 %v354
        %v810 = vunpack.c.l.b16 %v355
        %v811 = vunpack.c.l.b16 %v356
        %v812 = vunpack.c.l.b16 %v357
        %v813 = vunpack.c.l.b16 %v358
        %v814 = vunpack.c.l.b16 %v359
        %v815 = vunpack.c.l.b16 %v360
        %v816 = vunpack.c.l.b16 %v361
        %v817 = vunpack.c.l.b16 %v362
        %v818 = vunpack.c.l.b16 %v363
        %v819 = vunpack.c.l.b16 %v364
        %v820 = vunpack.c.l.b16 %v365
        %v821 = vunpack.c.l.b16 %v366
        %v822 = vunpack.c.l.b16 %v367
        %v823 = vunpack.c.l.b16 %v368
        %v824 = vunpack.c.l.b16 %v369
        %v825 = vunpack.c.l.b16 %v370
        %v826 = vunpack.c.l.b16 %v371
        %v827 = vunpack.c.l.b16 %v372
        %v828 = vunpack.c.l.b16 %v373
        %v829 = vunpack.c.l.b16 %v374
        %v830 = vunpack.c.l.b16 %v375
        %v831 = vunpack.c.l.b16 %v376
        %v832 = vunpack.c.l.b16 %v377
        %v833 = vunpack.c.l.b16 %v378
        %v834 = vunpack.c.l.b16 %v379
        %v835 = vunpack.c.l.b16 %v380
        %v836 = vunpack.c.l.b16 %v381
        %v837 = vunpack.c.l.b16 %v382
        %v838 = vunpack.c.l.b16 %v383
        %v839 = vunpack.c.l.b16 %v384
        %v840 = vunpack.c.l.b16 %v385
        %v841 = vunpack.c.l.b16 %v386
        %v842 = vunpack.c.l.b16 %v387
        %v843 = vunpack.c.l.b16 %v388
        %v844 = vunpack.c.l.b16 %v389
        %v845 = vunpack.c.l.b16 %v390
        %v846 = vunpack.c.l.b16 %v391
        %v847 = vunpack.c.l.b16 %v392
        %v848 = vunpack.c.l.b16 %v393
        %v849 = vunpack.c.l.b16 %v394
        %v850 = vunpack.c.l.b16 %v395
        %v851 = vunpack.c.l.b16 %v396
        %v852 = vunpack.c.l.b16 %v397
        %v853 = vunpack.c.l.b16 %v398
        %v854 = vunpack.c.l.b16 %v399
        %v855 = vunpack.c.l.b16 %v400
        %v856 = vunpack.c.l.b16 %v401
        %v857 = vpack.c.b16 %v794, %v793
        %v858 = vpack.c.b16 %v796, %v795
        %v859 = vpack.c.b16 %v798, %v797
        %v860 = vpack.c.b16 %v800, %v799
        %v861 = vpack.c.b16 %v802, %v801
        %v862 = vpack.c.b16 %v804, %v803
        %v863 = vpack.c.b16 %v806, %v805
        %v864 = vpack.c.b16 %v808, %v807
        %v865 = vpack.c.b16 %v810, %v809
        %v866 = vpack.c.b16 %v812, %v811
        %v867 = vpack.c.b16 %v814, %v813
        %v868 = vpack.c.b16 %v816, %v815
        %v869 = vpack.c.b16 %v818, %v817
        %v870 = vpack.c.b16 %v820, %v819
        %v871 = vpack.c.b16 %v822, %v821
        %v872 = vpack.c.b16 %v824, %v823
        %v873 = vpack.c.b16 %v826, %v825
        %v874 = vpack.c.b16 %v828, %v827
        %v875 = vpack.c.b16 %v830, %v829
        %v876 = vpack.c.b16 %v832, %v831
        %v877 = vpack.c.b16 %v834, %v833
        %v878 = vpack.c.b16 %v836, %v835
        %v879 = vpack.c.b16 %v838, %v837
        %v880 = vpack.c.b16 %v840, %v839
        %v881 = vpack.c.b16 %v842, %v841
        %v882 = vpack.c.b16 %v844, %v843
        %v883 = vpack.c.b16 %v846, %v845
        %v884 = vpack.c.b16 %v848, %v847
        %v885 = vpack.c.b16 %v850, %v849
        %v886 = vpack.c.b16 %v852, %v851
        %v887 = vpack.c.b16 %v854, %v853
        %v888 = vpack.c.b16 %v856, %v855
        %921 = vmatprep.subr.bf16.mxu0 0
        %922 = vmatpush1.bf16.msra.mxu0 %v857
        %923 = vmatprep.subr.bf16.mxu0 0
        %924 = vmatpush1.bf16.msra.mxu0 %v858
        %925 = vmatprep.subr.bf16.mxu0 0
        %926 = vmatpush1.bf16.msra.mxu0 %v859
        %927 = vmatprep.subr.bf16.mxu0 0
        %928 = vmatpush1.bf16.msra.mxu0 %v860
        %929 = vmatprep.subr.bf16.mxu0 0
        %930 = vmatpush1.bf16.msra.mxu0 %v861
        %931 = vmatprep.subr.bf16.mxu0 0
        %932 = vmatpush1.bf16.msra.mxu0 %v862
        %933 = vmatprep.subr.bf16.mxu0 0
        %934 = vmatpush1.bf16.msra.mxu0 %v863
        %935 = vmatprep.subr.bf16.mxu0 0
        %936 = vmatpush1.bf16.msra.mxu0 %v864
        %937 = vmatprep.subr.bf16.mxu0 0
        %938 = vmatpush1.bf16.msra.mxu0 %v865
        %939 = vmatprep.subr.bf16.mxu0 0
        %940 = vmatpush1.bf16.msra.mxu0 %v866
        %941 = vmatprep.subr.bf16.mxu0 0
        %942 = vmatpush1.bf16.msra.mxu0 %v867
        %943 = vmatprep.subr.bf16.mxu0 0
        %944 = vmatpush1.bf16.msra.mxu0 %v868
        %945 = vmatprep.subr.bf16.mxu0 0
        %946 = vmatpush1.bf16.msra.mxu0 %v869
        %947 = vmatprep.subr.bf16.mxu0 0
        %948 = vmatpush1.bf16.msra.mxu0 %v870
        %949 = vmatprep.subr.bf16.mxu0 0
        %950 = vmatpush1.bf16.msra.mxu0 %v871
        %951 = vmatprep.subr.bf16.mxu0 0
        %952 = vmatpush1.bf16.msra.mxu0 %v872
        %953 = vmatprep.mubr.bf16.mxu0 %v602
        %954 = vmatmul.mubr.bf16.gmra.mrb[0].mxu0 %v601
        %v955 = vpop.f32.mrb[0].mxu0
        %v956 = vadd.f32 %v407, %v955
        %v957 = vpop.f32.mrb[0].mxu0
        %v958 = vpop.f32.mrb[0].mxu0
        %v959 = vadd.f32 %v407, %v958
        %v960 = vpop.f32.mrb[0].mxu0
        %961 = vmatprep.mubr.bf16.mxu0 %v606
        %962 = vmatmul.mubr.bf16.gmra.mrb[0].mxu0 %v605
        %v963 = vpop.f32.mrb[0].mxu0
        %v964 = vadd.f32 %v407, %v963
        %v965 = vpop.f32.mrb[0].mxu0
        %v966 = vpop.f32.mrb[0].mxu0
        %v967 = vadd.f32 %v407, %v966
        %v968 = vpop.f32.mrb[0].mxu0
        %969 = vmatprep.mubr.bf16.mxu0 %v610
        %970 = vmatmul.mubr.bf16.gmra.mrb[0].mxu0 %v609
        %v971 = vpop.f32.mrb[0].mxu0
        %v972 = vadd.f32 %v407, %v971
        %v973 = vpop.f32.mrb[0].mxu0
        %v974 = vpop.f32.mrb[0].mxu0
        %v975 = vadd.f32 %v407, %v974
        %v976 = vpop.f32.mrb[0].mxu0
        %977 = vmatprep.mubr.bf16.mxu0 %v614
        %978 = vmatmul.mubr.bf16.gmra.mrb[0].mxu0 %v613
        %v979 = vpop.f32.mrb[0].mxu0
        %v980 = vadd.f32 %v407, %v979
        %v981 = vpop.f32.mrb[0].mxu0
        %v982 = vpop.f32.mrb[0].mxu0
        %v983 = vadd.f32 %v407, %v982
        %v984 = vpop.f32.mrb[0].mxu0
        %985 = vmatprep.mubr.bf16.mxu0 %v618
        %986 = vmatmul.mubr.bf16.gmra.mrb[0].mxu0 %v617
        %v987 = vpop.f32.mrb[0].mxu0
        %v988 = vadd.f32 %v407, %v987
        %v989 = vpop.f32.mrb[0].mxu0
        %v990 = vpop.f32.mrb[0].mxu0
        %v991 = vadd.f32 %v407, %v990
        %v992 = vpop.f32.mrb[0].mxu0
        %993 = vmatprep.mubr.bf16.mxu0 %v622
        %994 = vmatmul.mubr.bf16.gmra.mrb[0].mxu0 %v621
        %v995 = vpop.f32.mrb[0].mxu0
        %v996 = vadd.f32 %v407, %v995
        %v997 = vpop.f32.mrb[0].mxu0
        %v998 = vpop.f32.mrb[0].mxu0
        %v999 = vadd.f32 %v407, %v998
        %v1000 = vpop.f32.mrb[0].mxu0
        %1001 = vmatprep.mubr.bf16.mxu0 %v626
        %1002 = vmatmul.mubr.bf16.gmra.mrb[0].mxu0 %v625
        %v1003 = vpop.f32.mrb[0].mxu0
        %v1004 = vadd.f32 %v407, %v1003
        %v1005 = vpop.f32.mrb[0].mxu0
        %v1006 = vpop.f32.mrb[0].mxu0
        %v1007 = vadd.f32 %v407, %v1006
        %v1008 = vpop.f32.mrb[0].mxu0
        %1009 = vmatprep.mubr.bf16.mxu0 %v630
        %1010 = vmatmul.mubr.bf16.gmra.mrb[0].mxu0 %v629
        %v1011 = vpop.f32.mrb[0].mxu0
        %v1012 = vadd.f32 %v407, %v1011
        %v1013 = vpop.f32.mrb[0].mxu0
        %v1014 = vpop.f32.mrb[0].mxu0
        %v1015 = vadd.f32 %v407, %v1014
        %v1016 = vpop.f32.mrb[0].mxu0
        %1017 = vmatprep.mubr.bf16.mxu0 %v634
        %1018 = vmatmul.mubr.bf16.gmra.mrb[0].mxu0 %v633
        %v1019 = vpop.f32.mrb[0].mxu0
        %v1020 = vadd.f32 %v407, %v1019
        %v1021 = vpop.f32.mrb[0].mxu0
        %v1022 = vpop.f32.mrb[0].mxu0
        %v1023 = vadd.f32 %v407, %v1022
        %v1024 = vpop.f32.mrb[0].mxu0
        %1025 = vmatprep.mubr.bf16.mxu0 %v638
        %1026 = vmatmul.mubr.bf16.gmra.mrb[0].mxu0 %v637
        %v1027 = vpop.f32.mrb[0].mxu0
        %v1028 = vadd.f32 %v407, %v1027
        %v1029 = vpop.f32.mrb[0].mxu0
        %v1030 = vpop.f32.mrb[0].mxu0
        %v1031 = vadd.f32 %v407, %v1030
        %v1032 = vpop.f32.mrb[0].mxu0
        %1033 = vmatprep.mubr.bf16.mxu0 %v642
        %1034 = vmatmul.mubr.bf16.gmra.mrb[0].mxu0 %v641
        %v1035 = vpop.f32.mrb[0].mxu0
        %v1036 = vadd.f32 %v407, %v1035
        %v1037 = vpop.f32.mrb[0].mxu0
        %v1038 = vpop.f32.mrb[0].mxu0
        %v1039 = vadd.f32 %v407, %v1038
        %v1040 = vpop.f32.mrb[0].mxu0
        %1041 = vmatprep.mubr.bf16.mxu0 %v646
        %1042 = vmatmul.mubr.bf16.gmra.mrb[0].mxu0 %v645
        %v1043 = vpop.f32.mrb[0].mxu0
        %v1044 = vadd.f32 %v407, %v1043
        %v1045 = vpop.f32.mrb[0].mxu0
        %v1046 = vpop.f32.mrb[0].mxu0
        %v1047 = vadd.f32 %v407, %v1046
        %v1048 = vpop.f32.mrb[0].mxu0
        %1049 = vmatprep.mubr.bf16.mxu0 %v650
        %1050 = vmatmul.mubr.bf16.gmra.mrb[0].mxu0 %v649
        %v1051 = vpop.f32.mrb[0].mxu0
        %v1052 = vadd.f32 %v407, %v1051
        %v1053 = vpop.f32.mrb[0].mxu0
        %v1054 = vpop.f32.mrb[0].mxu0
        %v1055 = vadd.f32 %v407, %v1054
        %v1056 = vpop.f32.mrb[0].mxu0
        %1057 = vmatprep.mubr.bf16.mxu0 %v654
        %1058 = vmatmul.mubr.bf16.gmra.mrb[0].mxu0 %v653
        %v1059 = vpop.f32.mrb[0].mxu0
        %v1060 = vadd.f32 %v407, %v1059
        %v1061 = vpop.f32.mrb[0].mxu0
        %v1062 = vpop.f32.mrb[0].mxu0
        %v1063 = vadd.f32 %v407, %v1062
        %v1064 = vpop.f32.mrb[0].mxu0
        %1065 = vmatprep.mubr.bf16.mxu0 %v658
        %1066 = vmatmul.mubr.bf16.gmra.mrb[0].mxu0 %v657
        %v1067 = vpop.f32.mrb[0].mxu0
        %v1068 = vadd.f32 %v407, %v1067
        %v1069 = vpop.f32.mrb[0].mxu0
        %v1070 = vpop.f32.mrb[0].mxu0
        %v1071 = vadd.f32 %v407, %v1070
        %v1072 = vpop.f32.mrb[0].mxu0
        %1073 = vmatprep.mubr.bf16.mxu0 %v662
        %1074 = vmatmul.mubr.bf16.gmra.mrb[0].mxu0 %v661
        %v1075 = vpop.f32.mrb[0].mxu0
        %v1076 = vadd.f32 %v407, %v1075
        %v1077 = vpop.f32.mrb[0].mxu0
        %v1078 = vpop.f32.mrb[0].mxu0
        %v1079 = vadd.f32 %v407, %v1078
        %v1080 = vpop.f32.mrb[0].mxu0
        %1081 = vdwg.mxu0
        %1082 = vmatprep.subr.bf16.mxu0 0
        %1083 = vmatpush1.bf16.msra.mxu0 %v873
        %1084 = vmatprep.subr.bf16.mxu0 0
        %1085 = vmatpush1.bf16.msra.mxu0 %v874
        %1086 = vmatprep.subr.bf16.mxu0 0
        %1087 = vmatpush1.bf16.msra.mxu0 %v875
        %1088 = vmatprep.subr.bf16.mxu0 0
        %1089 = vmatpush1.bf16.msra.mxu0 %v876
        %1090 = vmatprep.subr.bf16.mxu0 0
        %1091 = vmatpush1.bf16.msra.mxu0 %v877
        %1092 = vmatprep.subr.bf16.mxu0 0
        %1093 = vmatpush1.bf16.msra.mxu0 %v878
        %1094 = vmatprep.subr.bf16.mxu0 0
        %1095 = vmatpush1.bf16.msra.mxu0 %v879
        %1096 = vmatprep.subr.bf16.mxu0 0
        %1097 = vmatpush1.bf16.msra.mxu0 %v880
        %1098 = vmatprep.subr.bf16.mxu0 0
        %1099 = vmatpush1.bf16.msra.mxu0 %v881
        %1100 = vmatprep.subr.bf16.mxu0 0
        %1101 = vmatpush1.bf16.msra.mxu0 %v882
        %1102 = vmatprep.subr.bf16.mxu0 0
        %1103 = vmatpush1.bf16.msra.mxu0 %v883
        %1104 = vmatprep.subr.bf16.mxu0 0
        %1105 = vmatpush1.bf16.msra.mxu0 %v884
        %1106 = vmatprep.subr.bf16.mxu0 0
        %1107 = vmatpush1.bf16.msra.mxu0 %v885
        %1108 = vmatprep.subr.bf16.mxu0 0
        %1109 = vmatpush1.bf16.msra.mxu0 %v886
        %1110 = vmatprep.subr.bf16.mxu0 0
        %1111 = vmatpush1.bf16.msra.mxu0 %v887
        %1112 = vmatprep.subr.bf16.mxu0 0
        %1113 = vmatpush1.bf16.msra.mxu0 %v888
        %1114 = vmatprep.mubr.bf16.mxu0 %v604
        %1115 = vmatmul.mubr.bf16.gmra.mrb[0].mxu0 %v603
        %v1116 = vpop.f32.mrb[0].mxu0
        %v1117 = vadd.f32 %v956, %v1116
        %v1118 = vpop.f32.mrb[0].mxu0
        %v1119 = vpop.f32.mrb[0].mxu0
        %v1120 = vadd.f32 %v959, %v1119
        %v1121 = vpop.f32.mrb[0].mxu0
        %1122 = vmatprep.mubr.bf16.mxu0 %v608
        %1123 = vmatmul.mubr.bf16.gmra.mrb[0].mxu0 %v607
        %v1124 = vpop.f32.mrb[0].mxu0
        %v1125 = vadd.f32 %v964, %v1124
        %v1126 = vpop.f32.mrb[0].mxu0
        %v1127 = vpop.f32.mrb[0].mxu0
        %v1128 = vadd.f32 %v967, %v1127
        %v1129 = vpop.f32.mrb[0].mxu0
        %1130 = vmatprep.mubr.bf16.mxu0 %v612
        %1131 = vmatmul.mubr.bf16.gmra.mrb[0].mxu0 %v611
        %v1132 = vpop.f32.mrb[0].mxu0
        %v1133 = vadd.f32 %v972, %v1132
        %v1134 = vpop.f32.mrb[0].mxu0
        %v1135 = vpop.f32.mrb[0].mxu0
        %v1136 = vadd.f32 %v975, %v1135
        %v1137 = vpop.f32.mrb[0].mxu0
        %1138 = vmatprep.mubr.bf16.mxu0 %v616
        %1139 = vmatmul.mubr.bf16.gmra.mrb[0].mxu0 %v615
        %v1140 = vpop.f32.mrb[0].mxu0
        %v1141 = vadd.f32 %v980, %v1140
        %v1142 = vpop.f32.mrb[0].mxu0
        %v1143 = vpop.f32.mrb[0].mxu0
        %v1144 = vadd.f32 %v983, %v1143
        %v1145 = vpop.f32.mrb[0].mxu0
        %1146 = vmatprep.mubr.bf16.mxu0 %v620
        %1147 = vmatmul.mubr.bf16.gmra.mrb[0].mxu0 %v619
        %v1148 = vpop.f32.mrb[0].mxu0
        %v1149 = vadd.f32 %v988, %v1148
        %v1150 = vpop.f32.mrb[0].mxu0
        %v1151 = vpop.f32.mrb[0].mxu0
        %v1152 = vadd.f32 %v991, %v1151
        %v1153 = vpop.f32.mrb[0].mxu0
        %1154 = vmatprep.mubr.bf16.mxu0 %v624
        %1155 = vmatmul.mubr.bf16.gmra.mrb[0].mxu0 %v623
        %v1156 = vpop.f32.mrb[0].mxu0
        %v1157 = vadd.f32 %v996, %v1156
        %v1158 = vpop.f32.mrb[0].mxu0
        %v1159 = vpop.f32.mrb[0].mxu0
        %v1160 = vadd.f32 %v999, %v1159
        %v1161 = vpop.f32.mrb[0].mxu0
        %1162 = vmatprep.mubr.bf16.mxu0 %v628
        %1163 = vmatmul.mubr.bf16.gmra.mrb[0].mxu0 %v627
        %v1164 = vpop.f32.mrb[0].mxu0
        %v1165 = vadd.f32 %v1004, %v1164
        %v1166 = vpop.f32.mrb[0].mxu0
        %v1167 = vpop.f32.mrb[0].mxu0
        %v1168 = vadd.f32 %v1007, %v1167
        %v1169 = vpop.f32.mrb[0].mxu0
        %1170 = vmatprep.mubr.bf16.mxu0 %v632
        %1171 = vmatmul.mubr.bf16.gmra.mrb[0].mxu0 %v631
        %v1172 = vpop.f32.mrb[0].mxu0
        %v1173 = vadd.f32 %v1012, %v1172
        %v1174 = vpop.f32.mrb[0].mxu0
        %v1175 = vpop.f32.mrb[0].mxu0
        %v1176 = vadd.f32 %v1015, %v1175
        %v1177 = vpop.f32.mrb[0].mxu0
        %1178 = vmatprep.mubr.bf16.mxu0 %v636
        %1179 = vmatmul.mubr.bf16.gmra.mrb[0].mxu0 %v635
        %v1180 = vpop.f32.mrb[0].mxu0
        %v1181 = vadd.f32 %v1020, %v1180
        %v1182 = vpop.f32.mrb[0].mxu0
        %v1183 = vpop.f32.mrb[0].mxu0
        %v1184 = vadd.f32 %v1023, %v1183
        %v1185 = vpop.f32.mrb[0].mxu0
        %1186 = vmatprep.mubr.bf16.mxu0 %v640
        %1187 = vmatmul.mubr.bf16.gmra.mrb[0].mxu0 %v639
        %v1188 = vpop.f32.mrb[0].mxu0
        %v1189 = vadd.f32 %v1028, %v1188
        %v1190 = vpop.f32.mrb[0].mxu0
        %v1191 = vpop.f32.mrb[0].mxu0
        %v1192 = vadd.f32 %v1031, %v1191
        %v1193 = vpop.f32.mrb[0].mxu0
        %1194 = vmatprep.mubr.bf16.mxu0 %v644
        %1195 = vmatmul.mubr.bf16.gmra.mrb[0].mxu0 %v643
        %v1196 = vpop.f32.mrb[0].mxu0
        %v1197 = vadd.f32 %v1036, %v1196
        %v1198 = vpop.f32.mrb[0].mxu0
        %v1199 = vpop.f32.mrb[0].mxu0
        %v1200 = vadd.f32 %v1039, %v1199
        %v1201 = vpop.f32.mrb[0].mxu0
        %1202 = vmatprep.mubr.bf16.mxu0 %v648
        %1203 = vmatmul.mubr.bf16.gmra.mrb[0].mxu0 %v647
        %v1204 = vpop.f32.mrb[0].mxu0
        %v1205 = vadd.f32 %v1044, %v1204
        %v1206 = vpop.f32.mrb[0].mxu0
        %v1207 = vpop.f32.mrb[0].mxu0
        %v1208 = vadd.f32 %v1047, %v1207
        %v1209 = vpop.f32.mrb[0].mxu0
        %1210 = vmatprep.mubr.bf16.mxu0 %v652
        %1211 = vmatmul.mubr.bf16.gmra.mrb[0].mxu0 %v651
        %v1212 = vpop.f32.mrb[0].mxu0
        %v1213 = vadd.f32 %v1052, %v1212
        %v1214 = vpop.f32.mrb[0].mxu0
        %v1215 = vpop.f32.mrb[0].mxu0
        %v1216 = vadd.f32 %v1055, %v1215
        %v1217 = vpop.f32.mrb[0].mxu0
        %1218 = vmatprep.mubr.bf16.mxu0 %v656
        %1219 = vmatmul.mubr.bf16.gmra.mrb[0].mxu0 %v655
        %v1220 = vpop.f32.mrb[0].mxu0
        %v1221 = vadd.f32 %v1060, %v1220
        %v1222 = vpop.f32.mrb[0].mxu0
        %v1223 = vpop.f32.mrb[0].mxu0
        %v1224 = vadd.f32 %v1063, %v1223
        %v1225 = vpop.f32.mrb[0].mxu0
        %1226 = vmatprep.mubr.bf16.mxu0 %v660
        %1227 = vmatmul.mubr.bf16.gmra.mrb[0].mxu0 %v659
        %v1228 = vpop.f32.mrb[0].mxu0
        %v1229 = vadd.f32 %v1068, %v1228
        %v1230 = vpop.f32.mrb[0].mxu0
        %v1231 = vpop.f32.mrb[0].mxu0
        %v1232 = vadd.f32 %v1071, %v1231
        %v1233 = vpop.f32.mrb[0].mxu0
        %1234 = vmatprep.mubr.bf16.mxu0 %v664
        %1235 = vmatmul.mubr.bf16.gmra.mrb[0].mxu0 %v663
        %v1236 = vpop.f32.mrb[0].mxu0
        %v1237 = vadd.f32 %v1076, %v1236
        %v1238 = vpop.f32.mrb[0].mxu0
        %v1239 = vpop.f32.mrb[0].mxu0
        %v1240 = vadd.f32 %v1079, %v1239
        %v1241 = vpop.f32.mrb[0].mxu0
        %1242 = vdwg.mxu0
        %v1243 = vadd.f32 %v1117, %v1120
        %v1244 = vadd.f32 %v1243, %v1125
        %v1245 = vadd.f32 %v1244, %v1128
        %v1246 = vadd.f32 %v1245, %v1133
        %v1247 = vadd.f32 %v1246, %v1136
        %v1248 = vadd.f32 %v1247, %v1141
        %v1249 = vadd.f32 %v1248, %v1144
        %v1250 = vadd.f32 %v1249, %v1149
        %v1251 = vadd.f32 %v1250, %v1152
        %v1252 = vadd.f32 %v1251, %v1157
        %v1253 = vadd.f32 %v1252, %v1160
        %v1254 = vadd.f32 %v1253, %v1165
        %v1255 = vadd.f32 %v1254, %v1168
        %v1256 = vadd.f32 %v1255, %v1173
        %v1257 = vadd.f32 %v1256, %v1176
        %v1258 = vadd.f32 %v1257, %v1181
        %v1259 = vadd.f32 %v1258, %v1184
        %v1260 = vadd.f32 %v1259, %v1189
        %v1261 = vadd.f32 %v1260, %v1192
        %v1262 = vadd.f32 %v1261, %v1197
        %v1263 = vadd.f32 %v1262, %v1200
        %v1264 = vadd.f32 %v1263, %v1205
        %v1265 = vadd.f32 %v1264, %v1208
        %v1266 = vadd.f32 %v1265, %v1213
        %v1267 = vadd.f32 %v1266, %v1216
        %v1268 = vadd.f32 %v1267, %v1221
        %v1269 = vadd.f32 %v1268, %v1224
        %v1270 = vadd.f32 %v1269, %v1229
        %v1271 = vadd.f32 %v1270, %v1232
        %v1272 = vadd.f32 %v1271, %v1237
        %v1273 = vadd.f32 %v1272, %v1240
        %v1274 = vrot.slane %v1273, 4
        %v1275 = vadd.f32 %v1273, %v1274
        %v1276 = vrot.slane %v1275, 2
        %v1277 = vadd.f32 %v1275, %v1276
        %v1278 = vrot.slane %v1277, 1
        %v1279 = vadd.f32 %v1277, %v1278
        %v1280 = vmul.f32 %v1117, %v1117
        %v1281 = vmul.f32 %v1120, %v1120
        %v1282 = vmul.f32 %v1125, %v1125
        %v1283 = vmul.f32 %v1128, %v1128
        %v1284 = vmul.f32 %v1133, %v1133
        %v1285 = vmul.f32 %v1136, %v1136
        %v1286 = vmul.f32 %v1141, %v1141
        %v1287 = vmul.f32 %v1144, %v1144
        %v1288 = vmul.f32 %v1149, %v1149
        %v1289 = vmul.f32 %v1152, %v1152
        %v1290 = vmul.f32 %v1157, %v1157
        %v1291 = vmul.f32 %v1160, %v1160
        %v1292 = vmul.f32 %v1165, %v1165
        %v1293 = vmul.f32 %v1168, %v1168
        %v1294 = vmul.f32 %v1173, %v1173
        %v1295 = vmul.f32 %v1176, %v1176
        %v1296 = vmul.f32 %v1181, %v1181
        %v1297 = vmul.f32 %v1184, %v1184
        %v1298 = vmul.f32 %v1189, %v1189
        %v1299 = vmul.f32 %v1192, %v1192
        %v1300 = vmul.f32 %v1197, %v1197
        %v1301 = vmul.f32 %v1200, %v1200
        %v1302 = vmul.f32 %v1205, %v1205
        %v1303 = vmul.f32 %v1208, %v1208
        %v1304 = vmul.f32 %v1213, %v1213
        %v1305 = vmul.f32 %v1216, %v1216
        %v1306 = vmul.f32 %v1221, %v1221
        %v1307 = vmul.f32 %v1224, %v1224
        %v1308 = vmul.f32 %v1229, %v1229
        %v1309 = vmul.f32 %v1232, %v1232
        %v1310 = vmul.f32 %v1237, %v1237
        %v1311 = vmul.f32 %v1240, %v1240
        %v1312 = vadd.f32 %v1280, %v1281
        %v1313 = vadd.f32 %v1312, %v1282
        %v1314 = vadd.f32 %v1313, %v1283
        %v1315 = vadd.f32 %v1314, %v1284
        %v1316 = vadd.f32 %v1315, %v1285
        %v1317 = vadd.f32 %v1316, %v1286
        %v1318 = vadd.f32 %v1317, %v1287
        %v1319 = vadd.f32 %v1318, %v1288
        %v1320 = vadd.f32 %v1319, %v1289
        %v1321 = vadd.f32 %v1320, %v1290
        %v1322 = vadd.f32 %v1321, %v1291
        %v1323 = vadd.f32 %v1322, %v1292
        %v1324 = vadd.f32 %v1323, %v1293
        %v1325 = vadd.f32 %v1324, %v1294
        %v1326 = vadd.f32 %v1325, %v1295
        %v1327 = vadd.f32 %v1326, %v1296
        %v1328 = vadd.f32 %v1327, %v1297
        %v1329 = vadd.f32 %v1328, %v1298
        %v1330 = vadd.f32 %v1329, %v1299
        %v1331 = vadd.f32 %v1330, %v1300
        %v1332 = vadd.f32 %v1331, %v1301
        %v1333 = vadd.f32 %v1332, %v1302
        %v1334 = vadd.f32 %v1333, %v1303
        %v1335 = vadd.f32 %v1334, %v1304
        %v1336 = vadd.f32 %v1335, %v1305
        %v1337 = vadd.f32 %v1336, %v1306
        %v1338 = vadd.f32 %v1337, %v1307
        %v1339 = vadd.f32 %v1338, %v1308
        %v1340 = vadd.f32 %v1339, %v1309
        %v1341 = vadd.f32 %v1340, %v1310
        %v1342 = vadd.f32 %v1341, %v1311
        %v1343 = vrot.slane %v1342, 4
        %v1344 = vadd.f32 %v1342, %v1343
        %v1345 = vrot.slane %v1344, 2
        %v1346 = vadd.f32 %v1344, %v1345
        %v1347 = vrot.slane %v1346, 1
        %v1348 = vadd.f32 %v1346, %v1347
        %vm1349 = vcmask 1040384
        %v1350 = vsel %vm1349, %v1279, %v1348
        %1351 = vst [vmem:[%s246] sm:$0x3] %v1350
        %v1352 = vtanh.pop %v1117
        %v1353 = vtanh.pop %v1120
        %v1354 = vtanh.pop %v1125
        %v1355 = vtanh.pop %v1128
        %v1356 = vtanh.pop %v1133
        %v1357 = vtanh.pop %v1136
        %v1358 = vtanh.pop %v1141
        %v1359 = vtanh.pop %v1144
        %v1360 = vtanh.pop %v1149
        %v1361 = vtanh.pop %v1152
        %v1362 = vtanh.pop %v1157
        %v1363 = vtanh.pop %v1160
        %v1364 = vtanh.pop %v1165
        %v1365 = vtanh.pop %v1168
        %v1366 = vtanh.pop %v1173
        %v1367 = vtanh.pop %v1176
        %v1368 = vtanh.pop %v1181
        %v1369 = vtanh.pop %v1184
        %v1370 = vtanh.pop %v1189
        %v1371 = vtanh.pop %v1192
        %v1372 = vtanh.pop %v1197
        %v1373 = vtanh.pop %v1200
        %v1374 = vtanh.pop %v1205
        %v1375 = vtanh.pop %v1208
        %v1376 = vtanh.pop %v1213
        %v1377 = vtanh.pop %v1216
        %v1378 = vtanh.pop %v1221
        %v1379 = vtanh.pop %v1224
        %v1380 = vtanh.pop %v1229
        %v1381 = vtanh.pop %v1232
        %v1382 = vtanh.pop %v1237
        %v1383 = vtanh.pop %v1240
        %v1384 = vtanh.pop %v1352
        %v1385 = vtanh.pop %v1353
        %v1386 = vtanh.pop %v1354
        %v1387 = vtanh.pop %v1355
        %v1388 = vtanh.pop %v1356
        %v1389 = vtanh.pop %v1357
        %v1390 = vtanh.pop %v1358
        %v1391 = vtanh.pop %v1359
        %v1392 = vtanh.pop %v1360
        %v1393 = vtanh.pop %v1361
        %v1394 = vtanh.pop %v1362
        %v1395 = vtanh.pop %v1363
        %v1396 = vtanh.pop %v1364
        %v1397 = vtanh.pop %v1365
        %v1398 = vtanh.pop %v1366
        %v1399 = vtanh.pop %v1367
        %v1400 = vtanh.pop %v1368
        %v1401 = vtanh.pop %v1369
        %v1402 = vtanh.pop %v1370
        %v1403 = vtanh.pop %v1371
        %v1404 = vtanh.pop %v1372
        %v1405 = vtanh.pop %v1373
        %v1406 = vtanh.pop %v1374
        %v1407 = vtanh.pop %v1375
        %v1408 = vtanh.pop %v1376
        %v1409 = vtanh.pop %v1377
        %v1410 = vtanh.pop %v1378
        %v1411 = vtanh.pop %v1379
        %v1412 = vtanh.pop %v1380
        %v1413 = vtanh.pop %v1381
        %v1414 = vtanh.pop %v1382
        %v1415 = vtanh.pop %v1383
        %v1416 = vpack.c.bf16 %v1385, %v1384
        %v1417 = vpack.c.bf16 %v1387, %v1386
        %v1418 = vpack.c.bf16 %v1389, %v1388
        %v1419 = vpack.c.bf16 %v1391, %v1390
        %v1420 = vpack.c.bf16 %v1393, %v1392
        %v1421 = vpack.c.bf16 %v1395, %v1394
        %v1422 = vpack.c.bf16 %v1397, %v1396
        %v1423 = vpack.c.bf16 %v1399, %v1398
        %v1424 = vpack.c.bf16 %v1401, %v1400
        %v1425 = vpack.c.bf16 %v1403, %v1402
        %v1426 = vpack.c.bf16 %v1405, %v1404
        %v1427 = vpack.c.bf16 %v1407, %v1406
        %v1428 = vpack.c.bf16 %v1409, %v1408
        %v1429 = vpack.c.bf16 %v1411, %v1410
        %v1430 = vpack.c.bf16 %v1413, %v1412
        %v1431 = vpack.c.bf16 %v1415, %v1414
        %v1448 = vunpack.c.l.b16 %v1416
        %v1449 = vunpack.c.h.b16 %v1416
        %v1450 = vunpack.c.l.b16 %v1417
        %v1451 = vunpack.c.h.b16 %v1417
        %v1452 = vunpack.c.l.b16 %v1418
        %v1453 = vunpack.c.h.b16 %v1418
        %v1454 = vunpack.c.l.b16 %v1419
        %v1455 = vunpack.c.h.b16 %v1419
        %v1456 = vunpack.c.l.b16 %v1420
        %v1457 = vunpack.c.h.b16 %v1420
        %v1458 = vunpack.c.l.b16 %v1421
        %v1459 = vunpack.c.h.b16 %v1421
        %v1460 = vunpack.c.l.b16 %v1422
        %v1461 = vunpack.c.h.b16 %v1422
        %v1462 = vunpack.c.l.b16 %v1423
        %v1463 = vunpack.c.h.b16 %v1423
        %v1464 = vunpack.c.l.b16 %v1424
        %v1465 = vunpack.c.h.b16 %v1424
        %v1466 = vunpack.c.l.b16 %v1425
        %v1467 = vunpack.c.h.b16 %v1425
        %v1468 = vunpack.c.l.b16 %v1426
        %v1469 = vunpack.c.h.b16 %v1426
        %v1470 = vunpack.c.l.b16 %v1427
        %v1471 = vunpack.c.h.b16 %v1427
        %v1472 = vunpack.c.l.b16 %v1428
        %v1473 = vunpack.c.h.b16 %v1428
        %v1474 = vunpack.c.l.b16 %v1429
        %v1475 = vunpack.c.h.b16 %v1429
        %v1476 = vunpack.c.l.b16 %v1430
        %v1477 = vunpack.c.h.b16 %v1430
        %v1478 = vunpack.c.l.b16 %v1431
        %v1479 = vunpack.c.h.b16 %v1431
        %v1480 = vpack.c.b16 %v1448, %v1448
        %v1481 = vpack.c.b16 %v1449, %v1449
        %v1482 = vpack.c.b16 %v1450, %v1450
        %v1483 = vpack.c.b16 %v1451, %v1451
        %v1484 = vpack.c.b16 %v1452, %v1452
        %v1485 = vpack.c.b16 %v1453, %v1453
        %v1486 = vpack.c.b16 %v1454, %v1454
        %v1487 = vpack.c.b16 %v1455, %v1455
        %v1488 = vpack.c.b16 %v1456, %v1456
        %v1489 = vpack.c.b16 %v1457, %v1457
        %v1490 = vpack.c.b16 %v1458, %v1458
        %v1491 = vpack.c.b16 %v1459, %v1459
        %v1492 = vpack.c.b16 %v1460, %v1460
        %v1493 = vpack.c.b16 %v1461, %v1461
        %v1494 = vpack.c.b16 %v1462, %v1462
        %v1495 = vpack.c.b16 %v1463, %v1463
        %v1496 = vpack.c.b16 %v1464, %v1464
        %v1497 = vpack.c.b16 %v1465, %v1465
        %v1498 = vpack.c.b16 %v1466, %v1466
        %v1499 = vpack.c.b16 %v1467, %v1467
        %v1500 = vpack.c.b16 %v1468, %v1468
        %v1501 = vpack.c.b16 %v1469, %v1469
        %v1502 = vpack.c.b16 %v1470, %v1470
        %v1503 = vpack.c.b16 %v1471, %v1471
        %v1504 = vpack.c.b16 %v1472, %v1472
        %v1505 = vpack.c.b16 %v1473, %v1473
        %v1506 = vpack.c.b16 %v1474, %v1474
        %v1507 = vpack.c.b16 %v1475, %v1475
        %v1508 = vpack.c.b16 %v1476, %v1476
        %v1509 = vpack.c.b16 %v1477, %v1477
        %v1510 = vpack.c.b16 %v1478, %v1478
        %v1511 = vpack.c.b16 %v1479, %v1479
        %1544 = vst [vmem:[%s271] sm:$0xf] %v1480
        %1545 = vst [vmem:[%s271 + $0x4] sm:$0xf] %v1481
        %1546 = vst [vmem:[%s271 + $0x8] sm:$0xf] %v1482
        %1547 = vst [vmem:[%s271 + $0xc] sm:$0xf] %v1483
        %1548 = vst [vmem:[%s271 + $0x10] sm:$0xf] %v1484
        %1549 = vst [vmem:[%s271 + $0x14] sm:$0xf] %v1485
        %1550 = vst [vmem:[%s271 + $0x18] sm:$0xf] %v1486
        %1551 = vst [vmem:[%s271 + $0x1c] sm:$0xf] %v1487
        %1552 = vst [vmem:[%s271 + $0x20] sm:$0xf] %v1488
        %1553 = vst [vmem:[%s271 + $0x24] sm:$0xf] %v1489
        %1554 = vst [vmem:[%s271 + $0x28] sm:$0xf] %v1490
        %1555 = vst [vmem:[%s271 + $0x2c] sm:$0xf] %v1491
        %1556 = vst [vmem:[%s271 + $0x30] sm:$0xf] %v1492
        %1557 = vst [vmem:[%s271 + $0x34] sm:$0xf] %v1493
        %1558 = vst [vmem:[%s271 + $0x38] sm:$0xf] %v1494
        %1559 = vst [vmem:[%s271 + $0x3c] sm:$0xf] %v1495
        %1560 = vst [vmem:[%s271 + $0x40] sm:$0xf] %v1496
        %1561 = vst [vmem:[%s271 + $0x44] sm:$0xf] %v1497
        %1562 = vst [vmem:[%s271 + $0x48] sm:$0xf] %v1498
        %1563 = vst [vmem:[%s271 + $0x4c] sm:$0xf] %v1499
        %1564 = vst [vmem:[%s271 + $0x50] sm:$0xf] %v1500
        %1565 = vst [vmem:[%s271 + $0x54] sm:$0xf] %v1501
        %1566 = vst [vmem:[%s271 + $0x58] sm:$0xf] %v1502
        %1567 = vst [vmem:[%s271 + $0x5c] sm:$0xf] %v1503
        %1568 = vst [vmem:[%s271 + $0x60] sm:$0xf] %v1504
        %1569 = vst [vmem:[%s271 + $0x64] sm:$0xf] %v1505
        %1570 = vst [vmem:[%s271 + $0x68] sm:$0xf] %v1506
        %1571 = vst [vmem:[%s271 + $0x6c] sm:$0xf] %v1507
        %1572 = vst [vmem:[%s271 + $0x70] sm:$0xf] %v1508
        %1573 = vst [vmem:[%s271 + $0x74] sm:$0xf] %v1509
        %1574 = vst [vmem:[%s271 + $0x78] sm:$0xf] %v1510
        %1575 = vst [vmem:[%s271 + $0x7c] sm:$0xf] %v1511
        %s1576 = smul.u32 32, %s24
        %p1577 = scmp.lt.s32.totalorder %s23, 0
        %s1578 = scalar_select %p1577, %s23, 0
        %p1579 = scmp.lt.s32.totalorder %s1576, 63
        %s1580 = scalar_select %p1579, %s1576, 63
        %s1581 = smul.addr %s1578, 64
        %s1582 = sadd.s32 %s1580, %s1581
        %s1583 = smul.addr %s1582, 4
        %s1584 = scalar_lea.vmem %s3, %s1583
        %s1585 = sand.u32 %s144, 1
        %s1586 = scalar_lea.sflag [#allocation3], %s1585
        %s1587 = sand.u32 %s144, 1
        %s1588 = smul.addr %s1587, 2
        %s1589 = scalar_lea.vmem [#allocation2], %s1588
        // Predicated region
        $region33: #{g_net_forward.97} parent=31 // pred_check
          %p1590 = pneg %p126
        $region34: #{g_net_forward.97} parent=31 // pred_check_branch
          %1592 = sbr.rel (%p1590) target = $region36
        $region35: #{g_net_forward.97} parent=31 // pred_region
          %s1593 = smul.u32 32, %s24
        $region36: #{g_net_forward.97} parent=31 // pred_fallthru
          _
        // Predicated region
        $region37: #{g_net_forward.97} parent=31 // pred_check
          %p1594 = pneg %p154
        $region38: #{g_net_forward.97} parent=31 // pred_check_branch
          %1596 = sbr.rel (%p1594) target = $region40
        $region39: #{g_net_forward.97} parent=31 // pred_region
          %s1598 = ssub.s32 32, 32
          %1599 = vsyncadd %s1586, %s1598
          %s1600 = smul.addr %s23, 2
          %s1601 = sadd.s32 %s24, %s1600
          %s1602 = smul.addr %s1601, 32
          %s1603 = scalar_lea.hbm %s4, %s1602
          %s1605 = sshll.u32 %s1589, 4
          %s1606 = int_to_ptr.vmem [resolvable:$true] %s1605
          %1608 = dma.vmem_to_hbm [thread:$0]  %s1606, 32, %s1603, %s1586
        $region40: #{g_net_forward.97} parent=31 // pred_fallthru
          _
      $region32: #{g_net_forward.97} parent=5 // pred_fallthru
        _
      %p1609 = scmp.le.s32.totalorder 2, %s14
      // Predicated region
      $region41: #{g_net_forward.97} parent=5 // pred_check
        %p1610 = pneg %p1609
      $region42: #{g_net_forward.97} parent=5 // pred_check_branch
        %1612 = sbr.rel (%p1610) target = $region44
      $region43: #{g_net_forward.97} parent=5 // pred_region
        %s1613 = ssub.s32 %s14, 2
        // Predicated region
        $region45: #{g_net_forward.97} parent=43 // pred_check
          %p1614 = pneg %p132
        $region46: #{g_net_forward.97} parent=43 // pred_check_branch
          %1616 = sbr.rel (%p1614) target = $region48
        $region47: #{g_net_forward.97} parent=43 // pred_region
          %s1617 = smul.u32 32, %s26
          %p1618 = scmp.lt.s32.totalorder %s25, 0
          %s1619 = scalar_select %p1618, %s25, 0
          %p1620 = scmp.lt.s32.totalorder %s1617, 63
          %s1621 = scalar_select %p1620, %s1617, 63
          %s1622 = smul.addr %s1619, 64
          %s1623 = sadd.s32 %s1621, %s1622
          %s1624 = smul.addr %s1623, 4
          %s1625 = scalar_lea.vmem %s3, %s1624
        $region48: #{g_net_forward.97} parent=43 // pred_fallthru
          _
        // Predicated region
        $region49: #{g_net_forward.97} parent=43 // pred_check
          %p1626 = pneg %p160
        $region50: #{g_net_forward.97} parent=43 // pred_check_branch
          %1628 = sbr.rel (%p1626) target = $region52
        $region51: #{g_net_forward.97} parent=43 // pred_region
          %s1629 = sand.u32 %s145, 1
          %s1630 = scalar_lea.sflag [#allocation3], %s1629
          %s1631 = sand.u32 %s145, 1
          %s1632 = smul.addr %s1631, 2
          %s1633 = scalar_lea.vmem [#allocation2], %s1632
          %1634 = dma.done %s1630, 32
        $region52: #{g_net_forward.97} parent=43 // pred_fallthru
          _
      $region44: #{g_net_forward.97} parent=5 // pred_fallthru
        _
    $region6: #{g_net_forward.97} parent=1 // loop_footer
      %s18 = sadd.s32 1, %s14
    $region7: #{g_net_forward.97} parent=1 // loop_footer_branch
      %13 = sbr.rel target = $region3
    $region8: #{g_net_forward.97} parent=1 // loop_exit
      _
    %1635 = vsyncpa [#allocation3], 1
    %s1636 = scalar_lea.sflag [#allocation3], 1
    %1637 = vsyncpa %s1636, 1

</llo_original>
